<compile_context>
chip_gen: v5e
topology: v5e:2x2
jax: 0.10.0
libtpu: 0.0.40
codegen_flags: <defaults>
</compile_context>

<pallas_src>
import math
from functools import partial

import jax
import jax.numpy as jnp
from jax import lax
from jax.experimental import pallas as pl
from jax.experimental.pallas import tpu as pltpu

LANE = 128


# ----------------------------- small helpers --------------------------------

def _round_up(x, m):
    return ((x + m - 1) // m) * m


def _row_tile(m):
    """Largest row-tile (multiple of 8) that divides m."""
    assert m % 8 == 0, m
    for t in (1024, 512, 256, 128, 64, 32, 16, 8):
        if m % t == 0:
            return t
    return 8


# ----------------------------- Pallas kernels --------------------------------

def bn_stats_kernel(x_ref, psum_ref, psq_ref):
    """Per-tile partial sums / sums-of-squares as (8, Cp) unmasked stores."""
    x = x_ref[...].astype(jnp.float32)
    tm, cp = x.shape
    xr = x.reshape(tm // 8, 8, cp)
    psum_ref[0] = jnp.sum(xr, axis=0)
    psq_ref[0] = jnp.sum(xr * xr, axis=0)


def bn_apply_kernel(x_ref, s_ref, b_ref, o_ref):
    """y = relu(x * scale + shift), bf16 output (halves HBM traffic)."""
    x = x_ref[...].astype(jnp.float32)
    o_ref[...] = jnp.maximum(x * s_ref[...] + b_ref[...], 0.0).astype(o_ref.dtype)


def _conv3x3_tap_body(x_ref, s_ref, b_ref, w_ref, r_ref, o_ref, slab_ref, acc_ref):
    """Fused BN(scale/shift)+ReLU + 3x3/stride-1/pad-1 conv (+ residual)."""
    _, H, W, Cp = x_ref.shape
    Coutp = o_ref.shape[-1]
    PADL = 8  # aligned sublane offset of the interior inside the halo'd slab

    # Zero the slab so halo rows/columns are zero in *activation* space.
    slab_ref[...] = jnp.zeros_like(slab_ref)

    # BN affine + ReLU applied exactly once (fused into the conv A-path),
    # written with a fully aligned (offset multiple of 8) store.
    x = x_ref[0].astype(jnp.float32)
    scale = s_ref[...].reshape(1, 1, Cp)
    shift = b_ref[...].reshape(1, 1, Cp)
    act = jnp.maximum(x * scale + shift, 0.0).astype(slab_ref.dtype)
    slab_ref[1:H + 1, PADL:PADL + W, :] = act

    # 9 accumulated tap matmuls; weight block stays resident in VMEM.
    acc_ref[...] = jnp.zeros_like(acc_ref)
    for kh in range(3):
        rows = slab_ref[kh:kh + H]                        # (H, W+16, Cp) aligned load
        for kw in range(3):
            c0 = PADL - 1 + kw
            tap = rows[:, c0:c0 + W, :]                   # shifted window (value slice)
            acc_ref[...] += jnp.dot(tap.reshape(H * W, Cp),
                                    w_ref[kh * 3 + kw],
                                    preferred_element_type=jnp.float32)

    res = acc_ref[...]
    if r_ref is not None:  # fused residual add in the epilogue (bf16 operand)
        res = res + r_ref[0].reshape(H * W, Coutp).astype(jnp.float32)
    o_ref[0] = res.reshape(H, W, Coutp).astype(o_ref.dtype)


def fused_conv3x3_kernel(x_ref, s_ref, b_ref, w_ref, o_ref, slab_ref, acc_ref):
    _conv3x3_tap_body(x_ref, s_ref, b_ref, w_ref, None, o_ref, slab_ref, acc_ref)


def fused_conv3x3_res_kernel(x_ref, s_ref, b_ref, w_ref, r_ref, o_ref, slab_ref, acc_ref):
    _conv3x3_tap_body(x_ref, s_ref, b_ref, w_ref, r_ref, o_ref, slab_ref, acc_ref)


def matmul_kernel(a_ref, b_ref, o_ref):
    """Full-K matmul tile: resident B, f32 MXU accumulation, bf16 output."""
    o_ref[...] = jnp.dot(a_ref[...], b_ref[...],
                         preferred_element_type=jnp.float32).astype(o_ref.dtype)


# ----------------------------- Pallas wrappers -------------------------------

def batch_stats_scale_shift(x, gamma_p, beta_p, eps=1e-5):
    """Training-mode BatchNorm scale/shift from batch stats of x (N,H,W,Cp)."""
    N, H, W, Cp = x.shape
    M = N * H * W
    x2 = x.reshape(M, Cp)
    TM = _row_tile(M)
    G = M // TM

    psum, psq = pl.pallas_call(
        bn_stats_kernel,
        out_shape=(jax.ShapeDtypeStruct((G, 8, Cp), jnp.float32),
                   jax.ShapeDtypeStruct((G, 8, Cp), jnp.float32)),
        grid=(G,),
        in_specs=[pl.BlockSpec((TM, Cp), lambda i: (i, 0))],
        out_specs=(pl.BlockSpec((1, 8, Cp), lambda i: (i, 0, 0)),
                   pl.BlockSpec((1, 8, Cp), lambda i: (i, 0, 0))),
        compiler_params=pltpu.CompilerParams(dimension_semantics=("parallel",)),
    )(x2)

    s = jnp.sum(psum, axis=(0, 1))
    sq = jnp.sum(psq, axis=(0, 1))
    mean = s / M
    var = sq / M - mean * mean          # biased variance, like PyTorch training
    inv = lax.rsqrt(var + eps)
    g = gamma_p.reshape(-1)
    scale = (g * inv).reshape(1, Cp)
    shift = (beta_p.reshape(-1) - mean * g * inv).reshape(1, Cp)
    return scale, shift


def bn_relu_apply(x, scale, shift):
    """Standalone BN-apply + ReLU (bf16 out); only used when the activation is
    consumed by two different convs (layer 0 with a projection shortcut)."""
    N, H, W, Cp = x.shape
    M = N * H * W
    TM = _row_tile(M)
    y = pl.pallas_call(
        bn_apply_kernel,
        out_shape=jax.ShapeDtypeStruct((M, Cp), jnp.bfloat16),
        grid=(M // TM,),
        in_specs=[pl.BlockSpec((TM, Cp), lambda i: (i, 0)),
                  pl.BlockSpec((1, Cp), lambda i: (0, 0)),
                  pl.BlockSpec((1, Cp), lambda i: (0, 0))],
        out_specs=pl.BlockSpec((TM, Cp), lambda i: (i, 0)),
        compiler_params=pltpu.CompilerParams(dimension_semantics=("parallel",)),
    )(x.reshape(M, Cp), scale, shift)
    return y.reshape(N, H, W, Cp)


def fused_bn_relu_conv3x3(x, scale, shift, w9, residual=None):
    """relu(x*scale+shift) -> conv3x3(stride=1, pad=1) [-> + residual].

    x: (N,H,W,Cp) bf16; scale/shift: (1,Cp) f32; w9: (9,Cp,Coutp) bf16.
    """
    N, H, W, Cp = x.shape
    Coutp = w9.shape[-1]
    assert H % 8 == 0 and W % 8 == 0, "spatial dims must be multiples of 8"

    in_specs = [
        pl.BlockSpec((1, H, W, Cp), lambda n: (n, 0, 0, 0)),
        pl.BlockSpec((1, Cp), lambda n: (0, 0)),
        pl.BlockSpec((1, Cp), lambda n: (0, 0)),
        pl.BlockSpec((9, Cp, Coutp), lambda n: (0, 0, 0)),   # resident weight
    ]
    args = [x, scale, shift, w9]
    kernel = fused_conv3x3_kernel
    if residual is not None:
        in_specs.append(pl.BlockSpec((1, H, W, Coutp), lambda n: (n, 0, 0, 0)))
        args.append(residual)
        kernel = fused_conv3x3_res_kernel

    return pl.pallas_call(
        kernel,
        out_shape=jax.ShapeDtypeStruct((N, H, W, Coutp), jnp.bfloat16),
        grid=(N,),
        in_specs=in_specs,
        out_specs=pl.BlockSpec((1, H, W, Coutp), lambda n: (n, 0, 0, 0)),
        scratch_shapes=[pltpu.VMEM((H + 2, W + 16, Cp), jnp.bfloat16),
                        pltpu.VMEM((H * W, Coutp), jnp.float32)],
        compiler_params=pltpu.CompilerParams(
            dimension_semantics=("parallel",),
            # Re-derive for v7x's 64 MiB VMEM at very wide layers; fine here.
            vmem_limit_bytes=48 * 1024 * 1024),
    )(*args)


def matmul_bf16(a, b, tm=256):
    """(M,K)x(K,N) bf16 matmul with full-K blocks (resident B), bf16 output."""
    M, K = a.shape
    K2, Nout = b.shape
    assert K == K2
    TM = min(tm, M)
    Mp = _round_up(M, TM)
    if Mp != M:
        a = jnp.pad(a, ((0, Mp - M), (0, 0)))
    out = pl.pallas_call(
        matmul_kernel,
        out_shape=jax.ShapeDtypeStruct((Mp, Nout), jnp.bfloat16),
        grid=(Mp // TM,),
        in_specs=[pl.BlockSpec((TM, K), lambda i: (i, 0)),
                  pl.BlockSpec((K, Nout), lambda i: (0, 0))],
        out_specs=pl.BlockSpec((TM, Nout), lambda i: (i, 0)),
        compiler_params=pltpu.CompilerParams(dimension_semantics=("parallel",)),
    )(a, b)
    return out[:M] if Mp != M else out


# ------------------------------- layer helpers -------------------------------

def conv3x3_strided(a, w9, stride):
    """3x3 conv, pad=1, stride>1, on an already-activated bf16 input.

    TODO(synk): form the stride-2 taps in-kernel (phase-split DMA) to remove
    this remaining wrapper-side im2col.
    """
    N, H, W, Cp = a.shape
    Coutp = w9.shape[-1]
    ap = jnp.pad(a, ((0, 0), (1, 1), (1, 1), (0, 0)))
    Ho = (H + 2 - 3) // stride + 1
    Wo = (W + 2 - 3) // stride + 1
    taps = [ap[:, kh:kh + (Ho - 1) * stride + 1:stride,
               kw:kw + (Wo - 1) * stride + 1:stride, :]
            for kh in range(3) for kw in range(3)]
    patches = jnp.stack(taps, axis=3).reshape(N * Ho * Wo, 9 * Cp)
    y = matmul_bf16(patches, w9.reshape(9 * Cp, Coutp))
    return y.reshape(N, Ho, Wo, Coutp)


def conv1x1(a, w_io, stride):
    """1x1 projection shortcut (no bias)."""
    # TODO(synk): do the stride-2 spatial subsample in the DMA (strided
    # index_map) instead of an XLA strided slice.
    xs = a[:, ::stride, ::stride, :] if stride > 1 else a
    N, Ho, Wo, Cp = xs.shape
    y = matmul_bf16(xs.reshape(N * Ho * Wo, Cp), w_io)
    return y.reshape(N, Ho, Wo, -1)


# --------------------------- BasicBlock / NetworkBlock ------------------------

def init_basic_block_params(key, in_planes, out_planes):
    k1, k2, k3 = jax.random.split(key, 3)
    cip, cop = _round_up(in_planes, LANE), _round_up(out_planes, LANE)

    def conv3x3_init(k, cin, cout, cinp, coutp):
        n = 3 * 3 * cout
        w = jax.random.normal(k, (3, 3, cin, cout), jnp.float32) * math.sqrt(2.0 / n)
        wp = jnp.zeros((3, 3, cinp, coutp), jnp.float32).at[:, :, :cin, :cout].set(w)
        # Pre-padded, pre-cast, tap-major weight -> no per-forward pad/cast copies.
        return wp.reshape(9, cinp, coutp).astype(jnp.bfloat16)

    params = {
        "bn1_g": jnp.pad(jnp.ones((in_planes,), jnp.float32),
                         (0, cip - in_planes)).reshape(1, cip),
        "bn1_b": jnp.zeros((1, cip), jnp.float32),
        "w1": conv3x3_init(k1, in_planes, out_planes, cip, cop),
        "bn2_g": jnp.pad(jnp.ones((out_planes,), jnp.float32),
                         (0, cop - out_planes)).reshape(1, cop),
        "bn2_b": jnp.zeros((1, cop), jnp.float32),
        "w2": conv3x3_init(k2, out_planes, out_planes, cop, cop),
    }
    if in_planes != out_planes:
        n = 1 * 1 * out_planes
        ws = jax.random.normal(k3, (in_planes, out_planes), jnp.float32) * math.sqrt(2.0 / n)
        params["ws"] = (jnp.zeros((cip, cop), jnp.float32)
                        .at[:in_planes, :out_planes].set(ws).astype(jnp.bfloat16))
    return params


def basic_block_forward(x, params, stride, drop_rate=0.0):
    """x: (N,H,W,Cp_in) bf16, channel-padded persistent layout."""
    equal = "ws" not in params            # static pytree-structure check
    scale1, shift1 = batch_stats_scale_shift(x, params["bn1_g"], params["bn1_b"])

    if equal:
        assert stride == 1, "identity shortcut requires stride 1 (as in PyTorch ref)"
        # BN1+ReLU fused into conv1's A-path (no materialized activation).
        y = fused_bn_relu_conv3x3(x, scale1, shift1, params["w1"])
        shortcut = x
    else:
        # Activation consumed twice (conv1 + projection shortcut): materialize once.
        a = bn_relu_apply(x, scale1, shift1)
        if stride == 1:
            ones = jnp.ones((1, a.shape[-1]), jnp.float32)
            zeros = jnp.zeros((1, a.shape[-1]), jnp.float32)
            y = fused_bn_relu_conv3x3(a, ones, zeros, params["w1"])  # relu idempotent
        else:
            y = conv3x3_strided(a, params["w1"], stride)
        shortcut = conv1x1(a, params["ws"], stride)

    scale2, shift2 = batch_stats_scale_shift(y, params["bn2_g"], params["bn2_b"])
    # drop_rate == 0.0 -> dropout is the identity.
    # TODO(synk): in-kernel dropout via pltpu.prng_random_bits if drop_rate > 0.

    # BN2+ReLU fused into conv2's A-path; residual add fused into its epilogue.
    return fused_bn_relu_conv3x3(y, scale2, shift2, params["w2"], residual=shortcut)


def init_network_block_params(key, nb_layers, in_planes, out_planes):
    keys = jax.random.split(key, nb_layers)
    return [init_basic_block_params(keys[i],
                                    in_planes if i == 0 else out_planes,
                                    out_planes)
            for i in range(nb_layers)]


def network_block_forward(x_nchw, layer_params, *, stride, out_planes, drop_rate=0.0):
    # NCHW (PyTorch) -> channel-padded bf16 NHWC, kept for the whole block.
    x = jnp.transpose(x_nchw, (0, 2, 3, 1))
    C = x.shape[-1]
    Cp = _round_up(C, LANE)
    x = jnp.pad(x, ((0, 0), (0, 0), (0, 0), (0, Cp - C))).astype(jnp.bfloat16)
    for i, p in enumerate(layer_params):
        x = basic_block_forward(x, p, stride if i == 0 else 1, drop_rate)
    x = x.astype(jnp.float32)[..., :out_planes]
    return jnp.transpose(x, (0, 3, 1, 2))


# ------------------------- pure-JAX reference (f32) ---------------------------

def _ref_bn_relu(x, g, b, eps=1e-5):
    mean = jnp.mean(x, axis=(0, 1, 2), keepdims=True)
    var = jnp.mean(jnp.square(x - mean), axis=(0, 1, 2), keepdims=True)
    return jnp.maximum((x - mean) * lax.rsqrt(var + eps) * g + b, 0.0)


def _ref_conv(x, w, stride, padding):
    return lax.conv_general_dilated(x, w, (stride, stride), padding,
                                    dimension_numbers=("NHWC", "HWIO", "NHWC"))


def _ref_basic_block(x, p, cin, cout, stride):
    equal = cin == cout
    g1, b1 = p["bn1_g"][0, :cin], p["bn1_b"][0, :cin]
    w1 = p["w1"].astype(jnp.float32)[:, :cin, :cout].reshape(3, 3, cin, cout)
    g2, b2 = p["bn2_g"][0, :cout], p["bn2_b"][0, :cout]
    w2 = p["w2"].astype(jnp.float32)[:, :cout, :cout].reshape(3, 3, cout, cout)
    if equal:
        out = _ref_bn_relu(x, g1, b1)
        sc = x
    else:
        x = _ref_bn_relu(x, g1, b1)
        out = x
        sc = x
    out = _ref_conv(out, w1, stride, [(1, 1), (1, 1)])
    out = _ref_bn_relu(out, g2, b2)
    out = _ref_conv(out, w2, 1, [(1, 1), (1, 1)])
    if not equal:
        ws = p["ws"].astype(jnp.float32)[:cin, :cout].reshape(1, 1, cin, cout)
        sc = _ref_conv(sc, ws, stride, [(0, 0), (0, 0)])
    return sc + out


def _ref_network_block(x_nchw, params, in_planes, out_planes, stride):
    x = jnp.transpose(x_nchw, (0, 2, 3, 1)).astype(jnp.float32)
    for i, p in enumerate(params):
        x = _ref_basic_block(x, p, in_planes if i == 0 else out_planes,
                             out_planes, stride if i == 0 else 1)
    return jnp.transpose(x, (0, 3, 1, 2))


# ------------------------------------ main ------------------------------------

if __name__ == "__main__":
    key = jax.random.PRNGKey(0)
    k_param, k_x = jax.random.split(key)

    nb_layers, in_planes, out_planes, stride = 2, 4, 8, 2
    params = init_network_block_params(k_param, nb_layers, in_planes, out_planes)
    x = jax.random.normal(k_x, (2, in_planes, 16, 16), jnp.float32)  # NCHW

    fwd = jax.jit(partial(network_block_forward, stride=stride,
                          out_planes=out_planes, drop_rate=0.0))
    out = fwd(x, params)
    jax.block_until_ready(out)

    assert out.shape == (2, out_planes, 8, 8), out.shape
    assert bool(jnp.all(jnp.isfinite(out)))

    # Numerical check against a pure-JAX f32 reference (bf16 compute tolerance).
    ref = _ref_network_block(x, params, in_planes, out_planes, stride)
    err = float(jnp.max(jnp.abs(out - ref)))
    mag = float(jnp.max(jnp.abs(ref)))
    assert err <= 0.1 * mag + 0.05, (err, mag)

    print("KERNEL_OK")
</pallas_src>

<mosaic_0001>
module attributes {stable_mosaic.version = 11 : i64} {
  func.func @bn_stats_kernel(%arg0: i32, %arg1: memref<512x128xbf16, #tpu.memory_space<vmem>>, %arg2: memref<1x8x128xf32, #tpu.memory_space<vmem>>, %arg3: memref<1x8x128xf32, #tpu.memory_space<vmem>>) attributes {dimension_semantics = [#tpu.dimension_semantics<parallel>], iteration_bounds = array<i64: 1>, scalar_prefetch = 0 : i64, scratch_operands = 0 : i64, tpu.core_type = #tpu.core_type<tc>, window_params = [{transform_indices = @transform_0, window_bounds = array<i64: 512, 128>}, {transform_indices = @transform_1, window_bounds = array<i64: 1, 8, 128>}, {transform_indices = @transform_2, window_bounds = array<i64: 1, 8, 128>}]} {
    %c0 = arith.constant 0 : index
    %c0_0 = arith.constant 0 : index
    %0 = vector.load %arg1[%c0, %c0_0] : memref<512x128xbf16, #tpu.memory_space<vmem>>, vector<512x128xbf16>
    %1 = arith.extf %0 : vector<512x128xbf16> to vector<512x128xf32>
    %2 = vector.shape_cast %1 : vector<512x128xf32> to vector<64x8x128xf32>
    %cst = arith.constant dense<0.000000e+00> : vector<8x128xf32>
    %3 = vector.multi_reduction <add>, %2, %cst [0] : vector<64x8x128xf32> to vector<8x128xf32>
    %c0_1 = arith.constant 0 : index
    %c0_2 = arith.constant 0 : index
    %c0_3 = arith.constant 0 : index
    %4 = vector.load %arg2[%c0_1, %c0_2, %c0_3] : memref<1x8x128xf32, #tpu.memory_space<vmem>>, vector<1x8x128xf32>
    %5 = vector.shape_cast %4 : vector<1x8x128xf32> to vector<8x128xf32>
    %6 = vector.shape_cast %3 : vector<8x128xf32> to vector<1x8x128xf32>
    tpu.vector_store %arg2[%c0_1, %c0_2, %c0_3], %6 {strides = array<i32>} : memref<1x8x128xf32, #tpu.memory_space<vmem>>, vector<1x8x128xf32>,
    %7 = arith.mulf %2, %2 : vector<64x8x128xf32>
    %cst_4 = arith.constant dense<0.000000e+00> : vector<8x128xf32>
    %8 = vector.multi_reduction <add>, %7, %cst_4 [0] : vector<64x8x128xf32> to vector<8x128xf32>
    %c0_5 = arith.constant 0 : index
    %c0_6 = arith.constant 0 : index
    %c0_7 = arith.constant 0 : index
    %9 = vector.load %arg3[%c0_5, %c0_6, %c0_7] : memref<1x8x128xf32, #tpu.memory_space<vmem>>, vector<1x8x128xf32>
    %10 = vector.shape_cast %9 : vector<1x8x128xf32> to vector<8x128xf32>
    %11 = vector.shape_cast %8 : vector<8x128xf32> to vector<1x8x128xf32>
    tpu.vector_store %arg3[%c0_5, %c0_6, %c0_7], %11 {strides = array<i32>} : memref<1x8x128xf32, #tpu.memory_space<vmem>>, vector<1x8x128xf32>,
    return
  }
  func.func @transform_0(%arg0: i32) -> (i32, i32) {
    %c0_i32 = arith.constant 0 : i32
    %c0_i32_0 = arith.constant 0 : i32
    return %arg0, %c0_i32 : i32, i32
  }
  func.func @transform_1(%arg0: i32) -> (i32, i32, i32) {
    %c0_i32 = arith.constant 0 : i32
    %c0_i32_0 = arith.constant 0 : i32
    %c0_i32_1 = arith.constant 0 : i32
    return %arg0, %c0_i32, %c0_i32_0 : i32, i32, i32
  }
  func.func @transform_2(%arg0: i32) -> (i32, i32, i32) {
    %c0_i32 = arith.constant 0 : i32
    %c0_i32_0 = arith.constant 0 : i32
    %c0_i32_1 = arith.constant 0 : i32
    return %arg0, %c0_i32, %c0_i32_0 : i32, i32, i32
  }
}

module attributes {stable_mosaic.version = 11 : i64} {
  func.func @bn_apply_kernel(%arg0: i32, %arg1: memref<512x128xbf16, #tpu.memory_space<vmem>>, %arg2: memref<1x128xf32, #tpu.memory_space<vmem>>, %arg3: memref<1x128xf32, #tpu.memory_space<vmem>>, %arg4: memref<512x128xbf16, #tpu.memory_space<vmem>>) attributes {dimension_semantics = [#tpu.dimension_semantics<parallel>], iteration_bounds = array<i64: 1>, scalar_prefetch = 0 : i64, scratch_operands = 0 : i64, tpu.core_type = #tpu.core_type<tc>, window_params = [{transform_indices = @transform_0, window_bounds = array<i64: 512, 128>}, {pipeline_mode = #tpu.pipeline_mode<synchronous>, transform_indices = @transform_1, window_bounds = array<i64: 1, 128>}, {pipeline_mode = #tpu.pipeline_mode<synchronous>, transform_indices = @transform_2, window_bounds = array<i64: 1, 128>}, {transform_indices = @transform_3, window_bounds = array<i64: 512, 128>}]} {
    %c0 = arith.constant 0 : index
    %c0_0 = arith.constant 0 : index
    %0 = vector.load %arg1[%c0, %c0_0] : memref<512x128xbf16, #tpu.memory_space<vmem>>, vector<512x128xbf16>
    %1 = arith.extf %0 : vector<512x128xbf16> to vector<512x128xf32>
    %c0_1 = arith.constant 0 : index
    %c0_2 = arith.constant 0 : index
    %2 = vector.load %arg2[%c0_1, %c0_2] : memref<1x128xf32, #tpu.memory_space<vmem>>, vector<1x128xf32>
    %3 = vector.broadcast %2 : vector<1x128xf32> to vector<512x128xf32>
    %4 = arith.mulf %1, %3 : vector<512x128xf32>
    %c0_3 = arith.constant 0 : index
    %c0_4 = arith.constant 0 : index
    %5 = vector.load %arg3[%c0_3, %c0_4] : memref<1x128xf32, #tpu.memory_space<vmem>>, vector<1x128xf32>
    %6 = vector.broadcast %5 : vector<1x128xf32> to vector<512x128xf32>
    %7 = arith.addf %4, %6 : vector<512x128xf32>
    %cst = arith.constant 0.000000e+00 : f32
    %8 = vector.broadcast %cst : f32 to vector<512x128xf32>
    %9 = arith.maximumf %7, %8 : vector<512x128xf32>
    %10 = arith.truncf %9 : vector<512x128xf32> to vector<512x128xbf16>
    %c0_5 = arith.constant 0 : index
    %c0_6 = arith.constant 0 : index
    %11 = vector.load %arg4[%c0_5, %c0_6] : memref<512x128xbf16, #tpu.memory_space<vmem>>, vector<512x128xbf16>
    tpu.vector_store %arg4[%c0_5, %c0_6], %10 {strides = array<i32>} : memref<512x128xbf16, #tpu.memory_space<vmem>>, vector<512x128xbf16>,
    return
  }
  func.func @transform_0(%arg0: i32) -> (i32, i32) {
    %c0_i32 = arith.constant 0 : i32
    %c0_i32_0 = arith.constant 0 : i32
    return %arg0, %c0_i32 : i32, i32
  }
  func.func @transform_1(%arg0: i32) -> (i32, i32) {
    %c0_i32 = arith.constant 0 : i32
    %c0_i32_0 = arith.constant 0 : i32
    %c0_i32_1 = arith.constant 0 : i32
    return %c0_i32, %c0_i32_0 : i32, i32
  }
  func.func @transform_2(%arg0: i32) -> (i32, i32) {
    %c0_i32 = arith.constant 0 : i32
    %c0_i32_0 = arith.constant 0 : i32
    %c0_i32_1 = arith.constant 0 : i32
    return %c0_i32, %c0_i32_0 : i32, i32
  }
  func.func @transform_3(%arg0: i32) -> (i32, i32) {
    %c0_i32 = arith.constant 0 : i32
    %c0_i32_0 = arith.constant 0 : i32
    return %arg0, %c0_i32 : i32, i32
  }
}

module attributes {stable_mosaic.version = 11 : i64} {
  func.func @matmul_kernel(%arg0: i32, %arg1: memref<128x128xbf16, #tpu.memory_space<vmem>>, %arg2: memref<128x128xbf16, #tpu.memory_space<vmem>>, %arg3: memref<128x128xbf16, #tpu.memory_space<vmem>>) attributes {dimension_semantics = [#tpu.dimension_semantics<parallel>], iteration_bounds = array<i64: 1>, scalar_prefetch = 0 : i64, scratch_operands = 0 : i64, tpu.core_type = #tpu.core_type<tc>, window_params = [{transform_indices = @transform_0, window_bounds = array<i64: 128, 128>}, {pipeline_mode = #tpu.pipeline_mode<synchronous>, transform_indices = @transform_1, window_bounds = array<i64: 128, 128>}, {transform_indices = @transform_2, window_bounds = array<i64: 128, 128>}]} {
    %c0 = arith.constant 0 : index
    %c0_0 = arith.constant 0 : index
    %0 = vector.load %arg1[%c0, %c0_0] : memref<128x128xbf16, #tpu.memory_space<vmem>>, vector<128x128xbf16>
    %c0_1 = arith.constant 0 : index
    %c0_2 = arith.constant 0 : index
    %1 = vector.load %arg2[%c0_1, %c0_2] : memref<128x128xbf16, #tpu.memory_space<vmem>>, vector<128x128xbf16>
    %cst = arith.constant dense<0.000000e+00> : vector<128x128xf32>
    %2 = tpu.matmul %0, %1, %cst {dimension_numbers = #tpu.dot_dimension_numbers<[1], [0], [0], [1], [0, 0, 1, 1], [], []>} : vector<128x128xbf16>, vector<128x128xbf16>, vector<128x128xf32> -> vector<128x128xf32>
    %3 = arith.truncf %2 : vector<128x128xf32> to vector<128x128xbf16>
    %c0_3 = arith.constant 0 : index
    %c0_4 = arith.constant 0 : index
    %4 = vector.load %arg3[%c0_3, %c0_4] : memref<128x128xbf16, #tpu.memory_space<vmem>>, vector<128x128xbf16>
    tpu.vector_store %arg3[%c0_3, %c0_4], %3 {strides = array<i32>} : memref<128x128xbf16, #tpu.memory_space<vmem>>, vector<128x128xbf16>,
    return
  }
  func.func @transform_0(%arg0: i32) -> (i32, i32) {
    %c0_i32 = arith.constant 0 : i32
    %c0_i32_0 = arith.constant 0 : i32
    return %arg0, %c0_i32 : i32, i32
  }
  func.func @transform_1(%arg0: i32) -> (i32, i32) {
    %c0_i32 = arith.constant 0 : i32
    %c0_i32_0 = arith.constant 0 : i32
    %c0_i32_1 = arith.constant 0 : i32
    return %c0_i32, %c0_i32_0 : i32, i32
  }
  func.func @transform_2(%arg0: i32) -> (i32, i32) {
    %c0_i32 = arith.constant 0 : i32
    %c0_i32_0 = arith.constant 0 : i32
    return %arg0, %c0_i32 : i32, i32
  }
}

module attributes {stable_mosaic.version = 11 : i64} {
  func.func @matmul_kernel(%arg0: i32, %arg1: memref<128x1152xbf16, #tpu.memory_space<vmem>>, %arg2: memref<1152x128xbf16, #tpu.memory_space<vmem>>, %arg3: memref<128x128xbf16, #tpu.memory_space<vmem>>) attributes {dimension_semantics = [#tpu.dimension_semantics<parallel>], iteration_bounds = array<i64: 1>, scalar_prefetch = 0 : i64, scratch_operands = 0 : i64, tpu.core_type = #tpu.core_type<tc>, window_params = [{transform_indices = @transform_0, window_bounds = array<i64: 128, 1152>}, {pipeline_mode = #tpu.pipeline_mode<synchronous>, transform_indices = @transform_1, window_bounds = array<i64: 1152, 128>}, {transform_indices = @transform_2, window_bounds = array<i64: 128, 128>}]} {
    %c0 = arith.constant 0 : index
    %c0_0 = arith.constant 0 : index
    %0 = vector.load %arg1[%c0, %c0_0] : memref<128x1152xbf16, #tpu.memory_space<vmem>>, vector<128x1152xbf16>
    %c0_1 = arith.constant 0 : index
    %c0_2 = arith.constant 0 : index
    %1 = vector.load %arg2[%c0_1, %c0_2] : memref<1152x128xbf16, #tpu.memory_space<vmem>>, vector<1152x128xbf16>
    %cst = arith.constant dense<0.000000e+00> : vector<128x128xf32>
    %2 = tpu.matmul %0, %1, %cst {dimension_numbers = #tpu.dot_dimension_numbers<[1], [0], [0], [1], [0, 0, 1, 1], [], []>} : vector<128x1152xbf16>, vector<1152x128xbf16>, vector<128x128xf32> -> vector<128x128xf32>
    %3 = arith.truncf %2 : vector<128x128xf32> to vector<128x128xbf16>
    %c0_3 = arith.constant 0 : index
    %c0_4 = arith.constant 0 : index
    %4 = vector.load %arg3[%c0_3, %c0_4] : memref<128x128xbf16, #tpu.memory_space<vmem>>, vector<128x128xbf16>
    tpu.vector_store %arg3[%c0_3, %c0_4], %3 {strides = array<i32>} : memref<128x128xbf16, #tpu.memory_space<vmem>>, vector<128x128xbf16>,
    return
  }
  func.func @transform_0(%arg0: i32) -> (i32, i32) {
    %c0_i32 = arith.constant 0 : i32
    %c0_i32_0 = arith.constant 0 : i32
    return %arg0, %c0_i32 : i32, i32
  }
  func.func @transform_1(%arg0: i32) -> (i32, i32) {
    %c0_i32 = arith.constant 0 : i32
    %c0_i32_0 = arith.constant 0 : i32
    %c0_i32_1 = arith.constant 0 : i32
    return %c0_i32, %c0_i32_0 : i32, i32
  }
  func.func @transform_2(%arg0: i32) -> (i32, i32) {
    %c0_i32 = arith.constant 0 : i32
    %c0_i32_0 = arith.constant 0 : i32
    return %arg0, %c0_i32 : i32, i32
  }
}

module attributes {stable_mosaic.version = 11 : i64} {
  func.func @bn_stats_kernel(%arg0: i32, %arg1: memref<128x128xbf16, #tpu.memory_space<vmem>>, %arg2: memref<1x8x128xf32, #tpu.memory_space<vmem>>, %arg3: memref<1x8x128xf32, #tpu.memory_space<vmem>>) attributes {dimension_semantics = [#tpu.dimension_semantics<parallel>], iteration_bounds = array<i64: 1>, scalar_prefetch = 0 : i64, scratch_operands = 0 : i64, tpu.core_type = #tpu.core_type<tc>, window_params = [{transform_indices = @transform_0, window_bounds = array<i64: 128, 128>}, {transform_indices = @transform_1, window_bounds = array<i64: 1, 8, 128>}, {transform_indices = @transform_2, window_bounds = array<i64: 1, 8, 128>}]} {
    %c0 = arith.constant 0 : index
    %c0_0 = arith.constant 0 : index
    %0 = vector.load %arg1[%c0, %c0_0] : memref<128x128xbf16, #tpu.memory_space<vmem>>, vector<128x128xbf16>
    %1 = arith.extf %0 : vector<128x128xbf16> to vector<128x128xf32>
    %2 = vector.shape_cast %1 : vector<128x128xf32> to vector<16x8x128xf32>
    %cst = arith.constant dense<0.000000e+00> : vector<8x128xf32>
    %3 = vector.multi_reduction <add>, %2, %cst [0] : vector<16x8x128xf32> to vector<8x128xf32>
    %c0_1 = arith.constant 0 : index
    %c0_2 = arith.constant 0 : index
    %c0_3 = arith.constant 0 : index
    %4 = vector.load %arg2[%c0_1, %c0_2, %c0_3] : memref<1x8x128xf32, #tpu.memory_space<vmem>>, vector<1x8x128xf32>
    %5 = vector.shape_cast %4 : vector<1x8x128xf32> to vector<8x128xf32>
    %6 = vector.shape_cast %3 : vector<8x128xf32> to vector<1x8x128xf32>
    tpu.vector_store %arg2[%c0_1, %c0_2, %c0_3], %6 {strides = array<i32>} : memref<1x8x128xf32, #tpu.memory_space<vmem>>, vector<1x8x128xf32>,
    %7 = arith.mulf %2, %2 : vector<16x8x128xf32>
    %cst_4 = arith.constant dense<0.000000e+00> : vector<8x128xf32>
    %8 = vector.multi_reduction <add>, %7, %cst_4 [0] : vector<16x8x128xf32> to vector<8x128xf32>
    %c0_5 = arith.constant 0 : index
    %c0_6 = arith.constant 0 : index
    %c0_7 = arith.constant 0 : index
    %9 = vector.load %arg3[%c0_5, %c0_6, %c0_7] : memref<1x8x128xf32, #tpu.memory_space<vmem>>, vector<1x8x128xf32>
    %10 = vector.shape_cast %9 : vector<1x8x128xf32> to vector<8x128xf32>
    %11 = vector.shape_cast %8 : vector<8x128xf32> to vector<1x8x128xf32>
    tpu.vector_store %arg3[%c0_5, %c0_6, %c0_7], %11 {strides = array<i32>} : memref<1x8x128xf32, #tpu.memory_space<vmem>>, vector<1x8x128xf32>,
    return
  }
  func.func @transform_0(%arg0: i32) -> (i32, i32) {
    %c0_i32 = arith.constant 0 : i32
    %c0_i32_0 = arith.constant 0 : i32
    return %arg0, %c0_i32 : i32, i32
  }
  func.func @transform_1(%arg0: i32) -> (i32, i32, i32) {
    %c0_i32 = arith.constant 0 : i32
    %c0_i32_0 = arith.constant 0 : i32
    %c0_i32_1 = arith.constant 0 : i32
    return %arg0, %c0_i32, %c0_i32_0 : i32, i32, i32
  }
  func.func @transform_2(%arg0: i32) -> (i32, i32, i32) {
    %c0_i32 = arith.constant 0 : i32
    %c0_i32_0 = arith.constant 0 : i32
    %c0_i32_1 = arith.constant 0 : i32
    return %arg0, %c0_i32, %c0_i32_0 : i32, i32, i32
  }
}

module attributes {stable_mosaic.version = 11 : i64} {
  func.func @fused_conv3x3_kernel(%arg0: i32, %arg1: memref<1x8x8x128xbf16, #tpu.memory_space<vmem>>, %arg2: memref<1x128xf32, #tpu.memory_space<vmem>>, %arg3: memref<1x128xf32, #tpu.memory_space<vmem>>, %arg4: memref<9x128x128xbf16, #tpu.memory_space<vmem>>, %arg5: memref<1x8x8x128xbf16, #tpu.memory_space<vmem>>, %arg6: memref<10x24x128xbf16, #tpu.memory_space<vmem>>, %arg7: memref<64x128xf32, #tpu.memory_space<vmem>>) attributes {dimension_semantics = [#tpu.dimension_semantics<parallel>], iteration_bounds = array<i64: 2>, scalar_prefetch = 0 : i64, scratch_operands = 2 : i64, tpu.core_type = #tpu.core_type<tc>, window_params = [{transform_indices = @transform_0, window_bounds = array<i64: 1, 8, 8, 128>}, {pipeline_mode = #tpu.pipeline_mode<synchronous>, transform_indices = @transform_1, window_bounds = array<i64: 1, 128>}, {pipeline_mode = #tpu.pipeline_mode<synchronous>, transform_indices = @transform_2, window_bounds = array<i64: 1, 128>}, {pipeline_mode = #tpu.pipeline_mode<synchronous>, transform_indices = @transform_3, window_bounds = array<i64: 9, 128, 128>}, {transform_indices = @transform_4, window_bounds = array<i64: 1, 8, 8, 128>}]} {
    %cst = arith.constant 0.000000e+00 : bf16
    %0 = vector.broadcast %cst : bf16 to vector<10x24x128xbf16>
    %c0 = arith.constant 0 : index
    %c0_0 = arith.constant 0 : index
    %c0_1 = arith.constant 0 : index
    %1 = vector.load %arg6[%c0, %c0_0, %c0_1] : memref<10x24x128xbf16, #tpu.memory_space<vmem>>, vector<10x24x128xbf16>
    tpu.vector_store %arg6[%c0, %c0_0, %c0_1], %0 {strides = array<i32>} : memref<10x24x128xbf16, #tpu.memory_space<vmem>>, vector<10x24x128xbf16>,
    %c0_2 = arith.constant 0 : index
    %c0_3 = arith.constant 0 : index
    %c0_4 = arith.constant 0 : index
    %c0_5 = arith.constant 0 : index
    %2 = vector.load %arg1[%c0_2, %c0_3, %c0_4, %c0_5] : memref<1x8x8x128xbf16, #tpu.memory_space<vmem>>, vector<1x8x8x128xbf16>
    %3 = vector.shape_cast %2 : vector<1x8x8x128xbf16> to vector<8x8x128xbf16>
    %4 = arith.extf %3 : vector<8x8x128xbf16> to vector<8x8x128xf32>
    %c0_6 = arith.constant 0 : index
    %c0_7 = arith.constant 0 : index
    %5 = vector.load %arg2[%c0_6, %c0_7] : memref<1x128xf32, #tpu.memory_space<vmem>>, vector<1x128xf32>
    %6 = vector.shape_cast %5 : vector<1x128xf32> to vector<1x1x128xf32>
    %c0_8 = arith.constant 0 : index
    %c0_9 = arith.constant 0 : index
    %7 = vector.load %arg3[%c0_8, %c0_9] : memref<1x128xf32, #tpu.memory_space<vmem>>, vector<1x128xf32>
    %8 = vector.shape_cast %7 : vector<1x128xf32> to vector<1x1x128xf32>
    %9 = vector.broadcast %6 : vector<1x1x128xf32> to vector<8x8x128xf32>
    %10 = arith.mulf %4, %9 : vector<8x8x128xf32>
    %11 = vector.broadcast %8 : vector<1x1x128xf32> to vector<8x8x128xf32>
    %12 = arith.addf %10, %11 : vector<8x8x128xf32>
    %cst_10 = arith.constant 0.000000e+00 : f32
    %13 = vector.broadcast %cst_10 : f32 to vector<8x8x128xf32>
    %14 = arith.maximumf %12, %13 : vector<8x8x128xf32>
    %15 = arith.truncf %14 : vector<8x8x128xf32> to vector<8x8x128xbf16>
    %c1 = arith.constant 1 : index
    %c8 = arith.constant 8 : index
    %c0_11 = arith.constant 0 : index
    %16 = vector.load %arg6[%c1, %c8, %c0_11] : memref<10x24x128xbf16, #tpu.memory_space<vmem>>, vector<8x8x128xbf16>
    tpu.vector_store %arg6[%c1, %c8, %c0_11], %15 {strides = array<i32>} : memref<10x24x128xbf16, #tpu.memory_space<vmem>>, vector<8x8x128xbf16>,
    %cst_12 = arith.constant 0.000000e+00 : f32
    %17 = vector.broadcast %cst_12 : f32 to vector<64x128xf32>
    %c0_13 = arith.constant 0 : index
    %c0_14 = arith.constant 0 : index
    %18 = vector.load %arg7[%c0_13, %c0_14] : memref<64x128xf32, #tpu.memory_space<vmem>>, vector<64x128xf32>
    tpu.vector_store %arg7[%c0_13, %c0_14], %17 {strides = array<i32>} : memref<64x128xf32, #tpu.memory_space<vmem>>, vector<64x128xf32>,
    %c0_15 = arith.constant 0 : index
    %c0_16 = arith.constant 0 : index
    %c0_17 = arith.constant 0 : index
    %19 = vector.load %arg6[%c0_15, %c0_16, %c0_17] : memref<10x24x128xbf16, #tpu.memory_space<vmem>>, vector<8x24x128xbf16>
    %20 = vector.extract_strided_slice %19 {offsets = [0, 7, 0], sizes = [8, 8, 128], strides = [1, 1, 1]} : vector<8x24x128xbf16> to vector<8x8x128xbf16>
    %c0_18 = arith.constant 0 : index
    %c0_19 = arith.constant 0 : index
    %21 = vector.load %arg7[%c0_18, %c0_19] : memref<64x128xf32, #tpu.memory_space<vmem>>, vector<64x128xf32>
    %22 = vector.shape_cast %20 : vector<8x8x128xbf16> to vector<64x128xbf16>
    %c0_20 = arith.constant 0 : index
    %c0_21 = arith.constant 0 : index
    %c0_22 = arith.constant 0 : index
    %23 = vector.load %arg4[%c0_20, %c0_21, %c0_22] : memref<9x128x128xbf16, #tpu.memory_space<vmem>>, vector<1x128x128xbf16>
    %24 = vector.shape_cast %23 : vector<1x128x128xbf16> to vector<128x128xbf16>
    %cst_23 = arith.constant dense<0.000000e+00> : vector<64x128xf32>
    %25 = tpu.matmul %22, %24, %cst_23 {dimension_numbers = #tpu.dot_dimension_numbers<[1], [0], [0], [1], [0, 0, 1, 1], [], []>} : vector<64x128xbf16>, vector<128x128xbf16>, vector<64x128xf32> -> vector<64x128xf32>
    %26 = arith.addf %21, %25 : vector<64x128xf32>
    %c0_24 = arith.constant 0 : index
    %c0_25 = arith.constant 0 : index
    %27 = vector.load %arg7[%c0_24, %c0_25] : memref<64x128xf32, #tpu.memory_space<vmem>>, vector<64x128xf32>
    tpu.vector_store %arg7[%c0_24, %c0_25], %26 {strides = array<i32>} : memref<64x128xf32, #tpu.memory_space<vmem>>, vector<64x128xf32>,
    %28 = vector.extract_strided_slice %19 {offsets = [0, 8, 0], sizes = [8, 8, 128], strides = [1, 1, 1]} : vector<8x24x128xbf16> to vector<8x8x128xbf16>
    %c0_26 = arith.constant 0 : index
    %c0_27 = arith.constant 0 : index
    %29 = vector.load %arg7[%c0_26, %c0_27] : memref<64x128xf32, #tpu.memory_space<vmem>>, vector<64x128xf32>
    %30 = vector.shape_cast %28 : vector<8x8x128xbf16> to vector<64x128xbf16>
    %c1_28 = arith.constant 1 : index
    %c0_29 = arith.constant 0 : index
    %c0_30 = arith.constant 0 : index
    %31 = vector.load %arg4[%c1_28, %c0_29, %c0_30] : memref<9x128x128xbf16, #tpu.memory_space<vmem>>, vector<1x128x128xbf16>
    %32 = vector.shape_cast %31 : vector<1x128x128xbf16> to vector<128x128xbf16>
    %cst_31 = arith.constant dense<0.000000e+00> : vector<64x128xf32>
    %33 = tpu.matmul %30, %32, %cst_31 {dimension_numbers = #tpu.dot_dimension_numbers<[1], [0], [0], [1], [0, 0, 1, 1], [], []>} : vector<64x128xbf16>, vector<128x128xbf16>, vector<64x128xf32> -> vector<64x128xf32>
    %34 = arith.addf %29, %33 : vector<64x128xf32>
    %c0_32 = arith.constant 0 : index
    %c0_33 = arith.constant 0 : index
    %35 = vector.load %arg7[%c0_32, %c0_33] : memref<64x128xf32, #tpu.memory_space<vmem>>, vector<64x128xf32>
    tpu.vector_store %arg7[%c0_32, %c0_33], %34 {strides = array<i32>} : memref<64x128xf32, #tpu.memory_space<vmem>>, vector<64x128xf32>,
    %36 = vector.extract_strided_slice %19 {offsets = [0, 9, 0], sizes = [8, 8, 128], strides = [1, 1, 1]} : vector<8x24x128xbf16> to vector<8x8x128xbf16>
    %c0_34 = arith.constant 0 : index
    %c0_35 = arith.constant 0 : index
    %37 = vector.load %arg7[%c0_34, %c0_35] : memref<64x128xf32, #tpu.memory_space<vmem>>, vector<64x128xf32>
    %38 = vector.shape_cast %36 : vector<8x8x128xbf16> to vector<64x128xbf16>
    %c2 = arith.constant 2 : index
    %c0_36 = arith.constant 0 : index
    %c0_37 = arith.constant 0 : index
    %39 = vector.load %arg4[%c2, %c0_36, %c0_37] : memref<9x128x128xbf16, #tpu.memory_space<vmem>>, vector<1x128x128xbf16>
    %40 = vector.shape_cast %39 : vector<1x128x128xbf16> to vector<128x128xbf16>
    %cst_38 = arith.constant dense<0.000000e+00> : vector<64x128xf32>
    %41 = tpu.matmul %38, %40, %cst_38 {dimension_numbers = #tpu.dot_dimension_numbers<[1], [0], [0], [1], [0, 0, 1, 1], [], []>} : vector<64x128xbf16>, vector<128x128xbf16>, vector<64x128xf32> -> vector<64x128xf32>
    %42 = arith.addf %37, %41 : vector<64x128xf32>
    %c0_39 = arith.constant 0 : index
    %c0_40 = arith.constant 0 : index
    %43 = vector.load %arg7[%c0_39, %c0_40] : memref<64x128xf32, #tpu.memory_space<vmem>>, vector<64x128xf32>
    tpu.vector_store %arg7[%c0_39, %c0_40], %42 {strides = array<i32>} : memref<64x128xf32, #tpu.memory_space<vmem>>, vector<64x128xf32>,
    %c1_41 = arith.constant 1 : index
    %c0_42 = arith.constant 0 : index
    %c0_43 = arith.constant 0 : index
    %44 = vector.load %arg6[%c1_41, %c0_42, %c0_43] : memref<10x24x128xbf16, #tpu.memory_space<vmem>>, vector<8x24x128xbf16>
    %45 = vector.extract_strided_slice %44 {offsets = [0, 7, 0], sizes = [8, 8, 128], strides = [1, 1, 1]} : vector<8x24x128xbf16> to vector<8x8x128xbf16>
    %c0_44 = arith.constant 0 : index
    %c0_45 = arith.constant 0 : index
    %46 = vector.load %arg7[%c0_44, %c0_45] : memref<64x128xf32, #tpu.memory_space<vmem>>, vector<64x128xf32>
    %47 = vector.shape_cast %45 : vector<8x8x128xbf16> to vector<64x128xbf16>
    %c3 = arith.constant 3 : index
    %c0_46 = arith.constant 0 : index
    %c0_47 = arith.constant 0 : index
    %48 = vector.load %arg4[%c3, %c0_46, %c0_47] : memref<9x128x128xbf16, #tpu.memory_space<vmem>>, vector<1x128x128xbf16>
    %49 = vector.shape_cast %48 : vector<1x128x128xbf16> to vector<128x128xbf16>
    %cst_48 = arith.constant dense<0.000000e+00> : vector<64x128xf32>
    %50 = tpu.matmul %47, %49, %cst_48 {dimension_numbers = #tpu.dot_dimension_numbers<[1], [0], [0], [1], [0, 0, 1, 1], [], []>} : vector<64x128xbf16>, vector<128x128xbf16>, vector<64x128xf32> -> vector<64x128xf32>
    %51 = arith.addf %46, %50 : vector<64x128xf32>
    %c0_49 = arith.constant 0 : index
    %c0_50 = arith.constant 0 : index
    %52 = vector.load %arg7[%c0_49, %c0_50] : memref<64x128xf32, #tpu.memory_space<vmem>>, vector<64x128xf32>
    tpu.vector_store %arg7[%c0_49, %c0_50], %51 {strides = array<i32>} : memref<64x128xf32, #tpu.memory_space<vmem>>, vector<64x128xf32>,
    %53 = vector.extract_strided_slice %44 {offsets = [0, 8, 0], sizes = [8, 8, 128], strides = [1, 1, 1]} : vector<8x24x128xbf16> to vector<8x8x128xbf16>
    %c0_51 = arith.constant 0 : index
    %c0_52 = arith.constant 0 : index
    %54 = vector.load %arg7[%c0_51, %c0_52] : memref<64x128xf32, #tpu.memory_space<vmem>>, vector<64x128xf32>
    %55 = vector.shape_cast %53 : vector<8x8x128xbf16> to vector<64x128xbf16>
    %c4 = arith.constant 4 : index
    %c0_53 = arith.constant 0 : index
    %c0_54 = arith.constant 0 : index
    %56 = vector.load %arg4[%c4, %c0_53, %c0_54] : memref<9x128x128xbf16, #tpu.memory_space<vmem>>, vector<1x128x128xbf16>
    %57 = vector.shape_cast %56 : vector<1x128x128xbf16> to vector<128x128xbf16>
    %cst_55 = arith.constant dense<0.000000e+00> : vector<64x128xf32>
    %58 = tpu.matmul %55, %57, %cst_55 {dimension_numbers = #tpu.dot_dimension_numbers<[1], [0], [0], [1], [0, 0, 1, 1], [], []>} : vector<64x128xbf16>, vector<128x128xbf16>, vector<64x128xf32> -> vector<64x128xf32>
    %59 = arith.addf %54, %58 : vector<64x128xf32>
    %c0_56 = arith.constant 0 : index
    %c0_57 = arith.constant 0 : index
    %60 = vector.load %arg7[%c0_56, %c0_57] : memref<64x128xf32, #tpu.memory_space<vmem>>, vector<64x128xf32>
    tpu.vector_store %arg7[%c0_56, %c0_57], %59 {strides = array<i32>} : memref<64x128xf32, #tpu.memory_space<vmem>>, vector<64x128xf32>,
    %61 = vector.extract_strided_slice %44 {offsets = [0, 9, 0], sizes = [8, 8, 128], strides = [1, 1, 1]} : vector<8x24x128xbf16> to vector<8x8x128xbf16>
    %c0_58 = arith.constant 0 : index
    %c0_59 = arith.constant 0 : index
    %62 = vector.load %arg7[%c0_58, %c0_59] : memref<64x128xf32, #tpu.memory_space<vmem>>, vector<64x128xf32>
    %63 = vector.shape_cast %61 : vector<8x8x128xbf16> to vector<64x128xbf16>
    %c5 = arith.constant 5 : index
    %c0_60 = arith.constant 0 : index
    %c0_61 = arith.constant 0 : index
    %64 = vector.load %arg4[%c5, %c0_60, %c0_61] : memref<9x128x128xbf16, #tpu.memory_space<vmem>>, vector<1x128x128xbf16>
    %65 = vector.shape_cast %64 : vector<1x128x128xbf16> to vector<128x128xbf16>
    %cst_62 = arith.constant dense<0.000000e+00> : vector<64x128xf32>
    %66 = tpu.matmul %63, %65, %cst_62 {dimension_numbers = #tpu.dot_dimension_numbers<[1], [0], [0], [1], [0, 0, 1, 1], [], []>} : vector<64x128xbf16>, vector<128x128xbf16>, vector<64x128xf32> -> vector<64x128xf32>
    %67 = arith.addf %62, %66 : vector<64x128xf32>
    %c0_63 = arith.constant 0 : index
    %c0_64 = arith.constant 0 : index
    %68 = vector.load %arg7[%c0_63, %c0_64] : memref<64x128xf32, #tpu.memory_space<vmem>>, vector<64x128xf32>
    tpu.vector_store %arg7[%c0_63, %c0_64], %67 {strides = array<i32>} : memref<64x128xf32, #tpu.memory_space<vmem>>, vector<64x128xf32>,
    %c2_65 = arith.constant 2 : index
    %c0_66 = arith.constant 0 : index
    %c0_67 = arith.constant 0 : index
    %69 = vector.load %arg6[%c2_65, %c0_66, %c0_67] : memref<10x24x128xbf16, #tpu.memory_space<vmem>>, vector<8x24x128xbf16>
    %70 = vector.extract_strided_slice %69 {offsets = [0, 7, 0], sizes = [8, 8, 128], strides = [1, 1, 1]} : vector<8x24x128xbf16> to vector<8x8x128xbf16>
    %c0_68 = arith.constant 0 : index
    %c0_69 = arith.constant 0 : index
    %71 = vector.load %arg7[%c0_68, %c0_69] : memref<64x128xf32, #tpu.memory_space<vmem>>, vector<64x128xf32>
    %72 = vector.shape_cast %70 : vector<8x8x128xbf16> to vector<64x128xbf16>
    %c6 = arith.constant 6 : index
    %c0_70 = arith.constant 0 : index
    %c0_71 = arith.constant 0 : index
    %73 = vector.load %arg4[%c6, %c0_70, %c0_71] : memref<9x128x128xbf16, #tpu.memory_space<vmem>>, vector<1x128x128xbf16>
    %74 = vector.shape_cast %73 : vector<1x128x128xbf16> to vector<128x128xbf16>
    %cst_72 = arith.constant dense<0.000000e+00> : vector<64x128xf32>
    %75 = tpu.matmul %72, %74, %cst_72 {dimension_numbers = #tpu.dot_dimension_numbers<[1], [0], [0], [1], [0, 0, 1, 1], [], []>} : vector<64x128xbf16>, vector<128x128xbf16>, vector<64x128xf32> -> vector<64x128xf32>
    %76 = arith.addf %71, %75 : vector<64x128xf32>
    %c0_73 = arith.constant 0 : index
    %c0_74 = arith.constant 0 : index
    %77 = vector.load %arg7[%c0_73, %c0_74] : memref<64x128xf32, #tpu.memory_space<vmem>>, vector<64x128xf32>
    tpu.vector_store %arg7[%c0_73, %c0_74], %76 {strides = array<i32>} : memref<64x128xf32, #tpu.memory_space<vmem>>, vector<64x128xf32>,
    %78 = vector.extract_strided_slice %69 {offsets = [0, 8, 0], sizes = [8, 8, 128], strides = [1, 1, 1]} : vector<8x24x128xbf16> to vector<8x8x128xbf16>
    %c0_75 = arith.constant 0 : index
    %c0_76 = arith.constant 0 : index
    %79 = vector.load %arg7[%c0_75, %c0_76] : memref<64x128xf32, #tpu.memory_space<vmem>>, vector<64x128xf32>
    %80 = vector.shape_cast %78 : vector<8x8x128xbf16> to vector<64x128xbf16>
    %c7 = arith.constant 7 : index
    %c0_77 = arith.constant 0 : index
    %c0_78 = arith.constant 0 : index
    %81 = vector.load %arg4[%c7, %c0_77, %c0_78] : memref<9x128x128xbf16, #tpu.memory_space<vmem>>, vector<1x128x128xbf16>
    %82 = vector.shape_cast %81 : vector<1x128x128xbf16> to vector<128x128xbf16>
    %cst_79 = arith.constant dense<0.000000e+00> : vector<64x128xf32>
    %83 = tpu.matmul %80, %82, %cst_79 {dimension_numbers = #tpu.dot_dimension_numbers<[1], [0], [0], [1], [0, 0, 1, 1], [], []>} : vector<64x128xbf16>, vector<128x128xbf16>, vector<64x128xf32> -> vector<64x128xf32>
    %84 = arith.addf %79, %83 : vector<64x128xf32>
    %c0_80 = arith.constant 0 : index
    %c0_81 = arith.constant 0 : index
    %85 = vector.load %arg7[%c0_80, %c0_81] : memref<64x128xf32, #tpu.memory_space<vmem>>, vector<64x128xf32>
    tpu.vector_store %arg7[%c0_80, %c0_81], %84 {strides = array<i32>} : memref<64x128xf32, #tpu.memory_space<vmem>>, vector<64x128xf32>,
    %86 = vector.extract_strided_slice %69 {offsets = [0, 9, 0], sizes = [8, 8, 128], strides = [1, 1, 1]} : vector<8x24x128xbf16> to vector<8x8x128xbf16>
    %c0_82 = arith.constant 0 : index
    %c0_83 = arith.constant 0 : index
    %87 = vector.load %arg7[%c0_82, %c0_83] : memref<64x128xf32, #tpu.memory_space<vmem>>, vector<64x128xf32>
    %88 = vector.shape_cast %86 : vector<8x8x128xbf16> to vector<64x128xbf16>
    %c8_84 = arith.constant 8 : index
    %c0_85 = arith.constant 0 : index
    %c0_86 = arith.constant 0 : index
    %89 = vector.load %arg4[%c8_84, %c0_85, %c0_86] : memref<9x128x128xbf16, #tpu.memory_space<vmem>>, vector<1x128x128xbf16>
    %90 = vector.shape_cast %89 : vector<1x128x128xbf16> to vector<128x128xbf16>
    %cst_87 = arith.constant dense<0.000000e+00> : vector<64x128xf32>
    %91 = tpu.matmul %88, %90, %cst_87 {dimension_numbers = #tpu.dot_dimension_numbers<[1], [0], [0], [1], [0, 0, 1, 1], [], []>} : vector<64x128xbf16>, vector<128x128xbf16>, vector<64x128xf32> -> vector<64x128xf32>
    %92 = arith.addf %87, %91 : vector<64x128xf32>
    %c0_88 = arith.constant 0 : index
    %c0_89 = arith.constant 0 : index
    %93 = vector.load %arg7[%c0_88, %c0_89] : memref<64x128xf32, #tpu.memory_space<vmem>>, vector<64x128xf32>
    tpu.vector_store %arg7[%c0_88, %c0_89], %92 {strides = array<i32>} : memref<64x128xf32, #tpu.memory_space<vmem>>, vector<64x128xf32>,
    %c0_90 = arith.constant 0 : index
    %c0_91 = arith.constant 0 : index
    %94 = vector.load %arg7[%c0_90, %c0_91] : memref<64x128xf32, #tpu.memory_space<vmem>>, vector<64x128xf32>
    %95 = vector.shape_cast %94 : vector<64x128xf32> to vector<8x8x128xf32>
    %96 = arith.truncf %95 : vector<8x8x128xf32> to vector<8x8x128xbf16>
    %c0_92 = arith.constant 0 : index
    %c0_93 = arith.constant 0 : index
    %c0_94 = arith.constant 0 : index
    %c0_95 = arith.constant 0 : index
    %97 = vector.load %arg5[%c0_92, %c0_93, %c0_94, %c0_95] : memref<1x8x8x128xbf16, #tpu.memory_space<vmem>>, vector<1x8x8x128xbf16>
    %98 = vector.shape_cast %97 : vector<1x8x8x128xbf16> to vector<8x8x128xbf16>
    %99 = vector.shape_cast %96 : vector<8x8x128xbf16> to vector<1x8x8x128xbf16>
    tpu.vector_store %arg5[%c0_92, %c0_93, %c0_94, %c0_95], %99 {strides = array<i32>} : memref<1x8x8x128xbf16, #tpu.memory_space<vmem>>, vector<1x8x8x128xbf16>,
    return
  }
  func.func @transform_0(%arg0: i32) -> (i32, i32, i32, i32) {
    %c0_i32 = arith.constant 0 : i32
    %c0_i32_0 = arith.constant 0 : i32
    %c0_i32_1 = arith.constant 0 : i32
    %c0_i32_2 = arith.constant 0 : i32
    return %arg0, %c0_i32, %c0_i32_0, %c0_i32_1 : i32, i32, i32, i32
  }
  func.func @transform_1(%arg0: i32) -> (i32, i32) {
    %c0_i32 = arith.constant 0 : i32
    %c0_i32_0 = arith.constant 0 : i32
    %c0_i32_1 = arith.constant 0 : i32
    return %c0_i32, %c0_i32_0 : i32, i32
  }
  func.func @transform_2(%arg0: i32) -> (i32, i32) {
    %c0_i32 = arith.constant 0 : i32
    %c0_i32_0 = arith.constant 0 : i32
    %c0_i32_1 = arith.constant 0 : i32
    return %c0_i32, %c0_i32_0 : i32, i32
  }
  func.func @transform_3(%arg0: i32) -> (i32, i32, i32) {
    %c0_i32 = arith.constant 0 : i32
    %c0_i32_0 = arith.constant 0 : i32
    %c0_i32_1 = arith.constant 0 : i32
    %c0_i32_2 = arith.constant 0 : i32
    return %c0_i32, %c0_i32_0, %c0_i32_1 : i32, i32, i32
  }
  func.func @transform_4(%arg0: i32) -> (i32, i32, i32, i32) {
    %c0_i32 = arith.constant 0 : i32
    %c0_i32_0 = arith.constant 0 : i32
    %c0_i32_1 = arith.constant 0 : i32
    %c0_i32_2 = arith.constant 0 : i32
    return %arg0, %c0_i32, %c0_i32_0, %c0_i32_1 : i32, i32, i32, i32
  }
}

module attributes {stable_mosaic.version = 11 : i64} {
  func.func @fused_conv3x3_res_kernel(%arg0: i32, %arg1: memref<1x8x8x128xbf16, #tpu.memory_space<vmem>>, %arg2: memref<1x128xf32, #tpu.memory_space<vmem>>, %arg3: memref<1x128xf32, #tpu.memory_space<vmem>>, %arg4: memref<9x128x128xbf16, #tpu.memory_space<vmem>>, %arg5: memref<1x8x8x128xbf16, #tpu.memory_space<vmem>>, %arg6: memref<1x8x8x128xbf16, #tpu.memory_space<vmem>>, %arg7: memref<10x24x128xbf16, #tpu.memory_space<vmem>>, %arg8: memref<64x128xf32, #tpu.memory_space<vmem>>) attributes {dimension_semantics = [#tpu.dimension_semantics<parallel>], iteration_bounds = array<i64: 2>, scalar_prefetch = 0 : i64, scratch_operands = 2 : i64, tpu.core_type = #tpu.core_type<tc>, window_params = [{transform_indices = @transform_0, window_bounds = array<i64: 1, 8, 8, 128>}, {pipeline_mode = #tpu.pipeline_mode<synchronous>, transform_indices = @transform_1, window_bounds = array<i64: 1, 128>}, {pipeline_mode = #tpu.pipeline_mode<synchronous>, transform_indices = @transform_2, window_bounds = array<i64: 1, 128>}, {pipeline_mode = #tpu.pipeline_mode<synchronous>, transform_indices = @transform_3, window_bounds = array<i64: 9, 128, 128>}, {transform_indices = @transform_4, window_bounds = array<i64: 1, 8, 8, 128>}, {transform_indices = @transform_5, window_bounds = array<i64: 1, 8, 8, 128>}]} {
    %cst = arith.constant 0.000000e+00 : bf16
    %0 = vector.broadcast %cst : bf16 to vector<10x24x128xbf16>
    %c0 = arith.constant 0 : index
    %c0_0 = arith.constant 0 : index
    %c0_1 = arith.constant 0 : index
    %1 = vector.load %arg7[%c0, %c0_0, %c0_1] : memref<10x24x128xbf16, #tpu.memory_space<vmem>>, vector<10x24x128xbf16>
    tpu.vector_store %arg7[%c0, %c0_0, %c0_1], %0 {strides = array<i32>} : memref<10x24x128xbf16, #tpu.memory_space<vmem>>, vector<10x24x128xbf16>,
    %c0_2 = arith.constant 0 : index
    %c0_3 = arith.constant 0 : index
    %c0_4 = arith.constant 0 : index
    %c0_5 = arith.constant 0 : index
    %2 = vector.load %arg1[%c0_2, %c0_3, %c0_4, %c0_5] : memref<1x8x8x128xbf16, #tpu.memory_space<vmem>>, vector<1x8x8x128xbf16>
    %3 = vector.shape_cast %2 : vector<1x8x8x128xbf16> to vector<8x8x128xbf16>
    %4 = arith.extf %3 : vector<8x8x128xbf16> to vector<8x8x128xf32>
    %c0_6 = arith.constant 0 : index
    %c0_7 = arith.constant 0 : index
    %5 = vector.load %arg2[%c0_6, %c0_7] : memref<1x128xf32, #tpu.memory_space<vmem>>, vector<1x128xf32>
    %6 = vector.shape_cast %5 : vector<1x128xf32> to vector<1x1x128xf32>
    %c0_8 = arith.constant 0 : index
    %c0_9 = arith.constant 0 : index
    %7 = vector.load %arg3[%c0_8, %c0_9] : memref<1x128xf32, #tpu.memory_space<vmem>>, vector<1x128xf32>
    %8 = vector.shape_cast %7 : vector<1x128xf32> to vector<1x1x128xf32>
    %9 = vector.broadcast %6 : vector<1x1x128xf32> to vector<8x8x128xf32>
    %10 = arith.mulf %4, %9 : vector<8x8x128xf32>
    %11 = vector.broadcast %8 : vector<1x1x128xf32> to vector<8x8x128xf32>
    %12 = arith.addf %10, %11 : vector<8x8x128xf32>
    %cst_10 = arith.constant 0.000000e+00 : f32
    %13 = vector.broadcast %cst_10 : f32 to vector<8x8x128xf32>
    %14 = arith.maximumf %12, %13 : vector<8x8x128xf32>
    %15 = arith.truncf %14 : vector<8x8x128xf32> to vector<8x8x128xbf16>
    %c1 = arith.constant 1 : index
    %c8 = arith.constant 8 : index
    %c0_11 = arith.constant 0 : index
    %16 = vector.load %arg7[%c1, %c8, %c0_11] : memref<10x24x128xbf16, #tpu.memory_space<vmem>>, vector<8x8x128xbf16>
    tpu.vector_store %arg7[%c1, %c8, %c0_11], %15 {strides = array<i32>} : memref<10x24x128xbf16, #tpu.memory_space<vmem>>, vector<8x8x128xbf16>,
    %cst_12 = arith.constant 0.000000e+00 : f32
    %17 = vector.broadcast %cst_12 : f32 to vector<64x128xf32>
    %c0_13 = arith.constant 0 : index
    %c0_14 = arith.constant 0 : index
    %18 = vector.load %arg8[%c0_13, %c0_14] : memref<64x128xf32, #tpu.memory_space<vmem>>, vector<64x128xf32>
    tpu.vector_store %arg8[%c0_13, %c0_14], %17 {strides = array<i32>} : memref<64x128xf32, #tpu.memory_space<vmem>>, vector<64x128xf32>,
    %c0_15 = arith.constant 0 : index
    %c0_16 = arith.constant 0 : index
    %c0_17 = arith.constant 0 : index
    %19 = vector.load %arg7[%c0_15, %c0_16, %c0_17] : memref<10x24x128xbf16, #tpu.memory_space<vmem>>, vector<8x24x128xbf16>
    %20 = vector.extract_strided_slice %19 {offsets = [0, 7, 0], sizes = [8, 8, 128], strides = [1, 1, 1]} : vector<8x24x128xbf16> to vector<8x8x128xbf16>
    %c0_18 = arith.constant 0 : index
    %c0_19 = arith.constant 0 : index
    %21 = vector.load %arg8[%c0_18, %c0_19] : memref<64x128xf32, #tpu.memory_space<vmem>>, vector<64x128xf32>
    %22 = vector.shape_cast %20 : vector<8x8x128xbf16> to vector<64x128xbf16>
    %c0_20 = arith.constant 0 : index
    %c0_21 = arith.constant 0 : index
    %c0_22 = arith.constant 0 : index
    %23 = vector.load %arg4[%c0_20, %c0_21, %c0_22] : memref<9x128x128xbf16, #tpu.memory_space<vmem>>, vector<1x128x128xbf16>
    %24 = vector.shape_cast %23 : vector<1x128x128xbf16> to vector<128x128xbf16>
    %cst_23 = arith.constant dense<0.000000e+00> : vector<64x128xf32>
    %25 = tpu.matmul %22, %24, %cst_23 {dimension_numbers = #tpu.dot_dimension_numbers<[1], [0], [0], [1], [0, 0, 1, 1], [], []>} : vector<64x128xbf16>, vector<128x128xbf16>, vector<64x128xf32> -> vector<64x128xf32>
    %26 = arith.addf %21, %25 : vector<64x128xf32>
    %c0_24 = arith.constant 0 : index
    %c0_25 = arith.constant 0 : index
    %27 = vector.load %arg8[%c0_24, %c0_25] : memref<64x128xf32, #tpu.memory_space<vmem>>, vector<64x128xf32>
    tpu.vector_store %arg8[%c0_24, %c0_25], %26 {strides = array<i32>} : memref<64x128xf32, #tpu.memory_space<vmem>>, vector<64x128xf32>,
    %28 = vector.extract_strided_slice %19 {offsets = [0, 8, 0], sizes = [8, 8, 128], strides = [1, 1, 1]} : vector<8x24x128xbf16> to vector<8x8x128xbf16>
    %c0_26 = arith.constant 0 : index
    %c0_27 = arith.constant 0 : index
    %29 = vector.load %arg8[%c0_26, %c0_27] : memref<64x128xf32, #tpu.memory_space<vmem>>, vector<64x128xf32>
    %30 = vector.shape_cast %28 : vector<8x8x128xbf16> to vector<64x128xbf16>
    %c1_28 = arith.constant 1 : index
    %c0_29 = arith.constant 0 : index
    %c0_30 = arith.constant 0 : index
    %31 = vector.load %arg4[%c1_28, %c0_29, %c0_30] : memref<9x128x128xbf16, #tpu.memory_space<vmem>>, vector<1x128x128xbf16>
    %32 = vector.shape_cast %31 : vector<1x128x128xbf16> to vector<128x128xbf16>
    %cst_31 = arith.constant dense<0.000000e+00> : vector<64x128xf32>
    %33 = tpu.matmul %30, %32, %cst_31 {dimension_numbers = #tpu.dot_dimension_numbers<[1], [0], [0], [1], [0, 0, 1, 1], [], []>} : vector<64x128xbf16>, vector<128x128xbf16>, vector<64x128xf32> -> vector<64x128xf32>
    %34 = arith.addf %29, %33 : vector<64x128xf32>
    %c0_32 = arith.constant 0 : index
    %c0_33 = arith.constant 0 : index
    %35 = vector.load %arg8[%c0_32, %c0_33] : memref<64x128xf32, #tpu.memory_space<vmem>>, vector<64x128xf32>
    tpu.vector_store %arg8[%c0_32, %c0_33], %34 {strides = array<i32>} : memref<64x128xf32, #tpu.memory_space<vmem>>, vector<64x128xf32>,
    %36 = vector.extract_strided_slice %19 {offsets = [0, 9, 0], sizes = [8, 8, 128], strides = [1, 1, 1]} : vector<8x24x128xbf16> to vector<8x8x128xbf16>
    %c0_34 = arith.constant 0 : index
    %c0_35 = arith.constant 0 : index
    %37 = vector.load %arg8[%c0_34, %c0_35] : memref<64x128xf32, #tpu.memory_space<vmem>>, vector<64x128xf32>
    %38 = vector.shape_cast %36 : vector<8x8x128xbf16> to vector<64x128xbf16>
    %c2 = arith.constant 2 : index
    %c0_36 = arith.constant 0 : index
    %c0_37 = arith.constant 0 : index
    %39 = vector.load %arg4[%c2, %c0_36, %c0_37] : memref<9x128x128xbf16, #tpu.memory_space<vmem>>, vector<1x128x128xbf16>
    %40 = vector.shape_cast %39 : vector<1x128x128xbf16> to vector<128x128xbf16>
    %cst_38 = arith.constant dense<0.000000e+00> : vector<64x128xf32>
    %41 = tpu.matmul %38, %40, %cst_38 {dimension_numbers = #tpu.dot_dimension_numbers<[1], [0], [0], [1], [0, 0, 1, 1], [], []>} : vector<64x128xbf16>, vector<128x128xbf16>, vector<64x128xf32> -> vector<64x128xf32>
    %42 = arith.addf %37, %41 : vector<64x128xf32>
    %c0_39 = arith.constant 0 : index
    %c0_40 = arith.constant 0 : index
    %43 = vector.load %arg8[%c0_39, %c0_40] : memref<64x128xf32, #tpu.memory_space<vmem>>, vector<64x128xf32>
    tpu.vector_store %arg8[%c0_39, %c0_40], %42 {strides = array<i32>} : memref<64x128xf32, #tpu.memory_space<vmem>>, vector<64x128xf32>,
    %c1_41 = arith.constant 1 : index
    %c0_42 = arith.constant 0 : index
    %c0_43 = arith.constant 0 : index
    %44 = vector.load %arg7[%c1_41, %c0_42, %c0_43] : memref<10x24x128xbf16, #tpu.memory_space<vmem>>, vector<8x24x128xbf16>
    %45 = vector.extract_strided_slice %44 {offsets = [0, 7, 0], sizes = [8, 8, 128], strides = [1, 1, 1]} : vector<8x24x128xbf16> to vector<8x8x128xbf16>
    %c0_44 = arith.constant 0 : index
    %c0_45 = arith.constant 0 : index
    %46 = vector.load %arg8[%c0_44, %c0_45] : memref<64x128xf32, #tpu.memory_space<vmem>>, vector<64x128xf32>
    %47 = vector.shape_cast %45 : vector<8x8x128xbf16> to vector<64x128xbf16>
    %c3 = arith.constant 3 : index
    %c0_46 = arith.constant 0 : index
    %c0_47 = arith.constant 0 : index
    %48 = vector.load %arg4[%c3, %c0_46, %c0_47] : memref<9x128x128xbf16, #tpu.memory_space<vmem>>, vector<1x128x128xbf16>
    %49 = vector.shape_cast %48 : vector<1x128x128xbf16> to vector<128x128xbf16>
    %cst_48 = arith.constant dense<0.000000e+00> : vector<64x128xf32>
    %50 = tpu.matmul %47, %49, %cst_48 {dimension_numbers = #tpu.dot_dimension_numbers<[1], [0], [0], [1], [0, 0, 1, 1], [], []>} : vector<64x128xbf16>, vector<128x128xbf16>, vector<64x128xf32> -> vector<64x128xf32>
    %51 = arith.addf %46, %50 : vector<64x128xf32>
    %c0_49 = arith.constant 0 : index
    %c0_50 = arith.constant 0 : index
    %52 = vector.load %arg8[%c0_49, %c0_50] : memref<64x128xf32, #tpu.memory_space<vmem>>, vector<64x128xf32>
    tpu.vector_store %arg8[%c0_49, %c0_50], %51 {strides = array<i32>} : memref<64x128xf32, #tpu.memory_space<vmem>>, vector<64x128xf32>,
    %53 = vector.extract_strided_slice %44 {offsets = [0, 8, 0], sizes = [8, 8, 128], strides = [1, 1, 1]} : vector<8x24x128xbf16> to vector<8x8x128xbf16>
    %c0_51 = arith.constant 0 : index
    %c0_52 = arith.constant 0 : index
    %54 = vector.load %arg8[%c0_51, %c0_52] : memref<64x128xf32, #tpu.memory_space<vmem>>, vector<64x128xf32>
    %55 = vector.shape_cast %53 : vector<8x8x128xbf16> to vector<64x128xbf16>
    %c4 = arith.constant 4 : index
    %c0_53 = arith.constant 0 : index
    %c0_54 = arith.constant 0 : index
    %56 = vector.load %arg4[%c4, %c0_53, %c0_54] : memref<9x128x128xbf16, #tpu.memory_space<vmem>>, vector<1x128x128xbf16>
    %57 = vector.shape_cast %56 : vector<1x128x128xbf16> to vector<128x128xbf16>
    %cst_55 = arith.constant dense<0.000000e+00> : vector<64x128xf32>
    %58 = tpu.matmul %55, %57, %cst_55 {dimension_numbers = #tpu.dot_dimension_numbers<[1], [0], [0], [1], [0, 0, 1, 1], [], []>} : vector<64x128xbf16>, vector<128x128xbf16>, vector<64x128xf32> -> vector<64x128xf32>
    %59 = arith.addf %54, %58 : vector<64x128xf32>
    %c0_56 = arith.constant 0 : index
    %c0_57 = arith.constant 0 : index
    %60 = vector.load %arg8[%c0_56, %c0_57] : memref<64x128xf32, #tpu.memory_space<vmem>>, vector<64x128xf32>
    tpu.vector_store %arg8[%c0_56, %c0_57], %59 {strides = array<i32>} : memref<64x128xf32, #tpu.memory_space<vmem>>, vector<64x128xf32>,
    %61 = vector.extract_strided_slice %44 {offsets = [0, 9, 0], sizes = [8, 8, 128], strides = [1, 1, 1]} : vector<8x24x128xbf16> to vector<8x8x128xbf16>
    %c0_58 = arith.constant 0 : index
    %c0_59 = arith.constant 0 : index
    %62 = vector.load %arg8[%c0_58, %c0_59] : memref<64x128xf32, #tpu.memory_space<vmem>>, vector<64x128xf32>
    %63 = vector.shape_cast %61 : vector<8x8x128xbf16> to vector<64x128xbf16>
    %c5 = arith.constant 5 : index
    %c0_60 = arith.constant 0 : index
    %c0_61 = arith.constant 0 : index
    %64 = vector.load %arg4[%c5, %c0_60, %c0_61] : memref<9x128x128xbf16, #tpu.memory_space<vmem>>, vector<1x128x128xbf16>
    %65 = vector.shape_cast %64 : vector<1x128x128xbf16> to vector<128x128xbf16>
    %cst_62 = arith.constant dense<0.000000e+00> : vector<64x128xf32>
    %66 = tpu.matmul %63, %65, %cst_62 {dimension_numbers = #tpu.dot_dimension_numbers<[1], [0], [0], [1], [0, 0, 1, 1], [], []>} : vector<64x128xbf16>, vector<128x128xbf16>, vector<64x128xf32> -> vector<64x128xf32>
    %67 = arith.addf %62, %66 : vector<64x128xf32>
    %c0_63 = arith.constant 0 : index
    %c0_64 = arith.constant 0 : index
    %68 = vector.load %arg8[%c0_63, %c0_64] : memref<64x128xf32, #tpu.memory_space<vmem>>, vector<64x128xf32>
    tpu.vector_store %arg8[%c0_63, %c0_64], %67 {strides = array<i32>} : memref<64x128xf32, #tpu.memory_space<vmem>>, vector<64x128xf32>,
    %c2_65 = arith.constant 2 : index
    %c0_66 = arith.constant 0 : index
    %c0_67 = arith.constant 0 : index
    %69 = vector.load %arg7[%c2_65, %c0_66, %c0_67] : memref<10x24x128xbf16, #tpu.memory_space<vmem>>, vector<8x24x128xbf16>
    %70 = vector.extract_strided_slice %69 {offsets = [0, 7, 0], sizes = [8, 8, 128], strides = [1, 1, 1]} : vector<8x24x128xbf16> to vector<8x8x128xbf16>
    %c0_68 = arith.constant 0 : index
    %c0_69 = arith.constant 0 : index
    %71 = vector.load %arg8[%c0_68, %c0_69] : memref<64x128xf32, #tpu.memory_space<vmem>>, vector<64x128xf32>
    %72 = vector.shape_cast %70 : vector<8x8x128xbf16> to vector<64x128xbf16>
    %c6 = arith.constant 6 : index
    %c0_70 = arith.constant 0 : index
    %c0_71 = arith.constant 0 : index
    %73 = vector.load %arg4[%c6, %c0_70, %c0_71] : memref<9x128x128xbf16, #tpu.memory_space<vmem>>, vector<1x128x128xbf16>
    %74 = vector.shape_cast %73 : vector<1x128x128xbf16> to vector<128x128xbf16>
    %cst_72 = arith.constant dense<0.000000e+00> : vector<64x128xf32>
    %75 = tpu.matmul %72, %74, %cst_72 {dimension_numbers = #tpu.dot_dimension_numbers<[1], [0], [0], [1], [0, 0, 1, 1], [], []>} : vector<64x128xbf16>, vector<128x128xbf16>, vector<64x128xf32> -> vector<64x128xf32>
    %76 = arith.addf %71, %75 : vector<64x128xf32>
    %c0_73 = arith.constant 0 : index
    %c0_74 = arith.constant 0 : index
    %77 = vector.load %arg8[%c0_73, %c0_74] : memref<64x128xf32, #tpu.memory_space<vmem>>, vector<64x128xf32>
    tpu.vector_store %arg8[%c0_73, %c0_74], %76 {strides = array<i32>} : memref<64x128xf32, #tpu.memory_space<vmem>>, vector<64x128xf32>,
    %78 = vector.extract_strided_slice %69 {offsets = [0, 8, 0], sizes = [8, 8, 128], strides = [1, 1, 1]} : vector<8x24x128xbf16> to vector<8x8x128xbf16>
    %c0_75 = arith.constant 0 : index
    %c0_76 = arith.constant 0 : index
    %79 = vector.load %arg8[%c0_75, %c0_76] : memref<64x128xf32, #tpu.memory_space<vmem>>, vector<64x128xf32>
    %80 = vector.shape_cast %78 : vector<8x8x128xbf16> to vector<64x128xbf16>
    %c7 = arith.constant 7 : index
    %c0_77 = arith.constant 0 : index
    %c0_78 = arith.constant 0 : index
    %81 = vector.load %arg4[%c7, %c0_77, %c0_78] : memref<9x128x128xbf16, #tpu.memory_space<vmem>>, vector<1x128x128xbf16>
    %82 = vector.shape_cast %81 : vector<1x128x128xbf16> to vector<128x128xbf16>
    %cst_79 = arith.constant dense<0.000000e+00> : vector<64x128xf32>
    %83 = tpu.matmul %80, %82, %cst_79 {dimension_numbers = #tpu.dot_dimension_numbers<[1], [0], [0], [1], [0, 0, 1, 1], [], []>} : vector<64x128xbf16>, vector<128x128xbf16>, vector<64x128xf32> -> vector<64x128xf32>
    %84 = arith.addf %79, %83 : vector<64x128xf32>
    %c0_80 = arith.constant 0 : index
    %c0_81 = arith.constant 0 : index
    %85 = vector.load %arg8[%c0_80, %c0_81] : memref<64x128xf32, #tpu.memory_space<vmem>>, vector<64x128xf32>
    tpu.vector_store %arg8[%c0_80, %c0_81], %84 {strides = array<i32>} : memref<64x128xf32, #tpu.memory_space<vmem>>, vector<64x128xf32>,
    %86 = vector.extract_strided_slice %69 {offsets = [0, 9, 0], sizes = [8, 8, 128], strides = [1, 1, 1]} : vector<8x24x128xbf16> to vector<8x8x128xbf16>
    %c0_82 = arith.constant 0 : index
    %c0_83 = arith.constant 0 : index
    %87 = vector.load %arg8[%c0_82, %c0_83] : memref<64x128xf32, #tpu.memory_space<vmem>>, vector<64x128xf32>
    %88 = vector.shape_cast %86 : vector<8x8x128xbf16> to vector<64x128xbf16>
    %c8_84 = arith.constant 8 : index
    %c0_85 = arith.constant 0 : index
    %c0_86 = arith.constant 0 : index
    %89 = vector.load %arg4[%c8_84, %c0_85, %c0_86] : memref<9x128x128xbf16, #tpu.memory_space<vmem>>, vector<1x128x128xbf16>
    %90 = vector.shape_cast %89 : vector<1x128x128xbf16> to vector<128x128xbf16>
    %cst_87 = arith.constant dense<0.000000e+00> : vector<64x128xf32>
    %91 = tpu.matmul %88, %90, %cst_87 {dimension_numbers = #tpu.dot_dimension_numbers<[1], [0], [0], [1], [0, 0, 1, 1], [], []>} : vector<64x128xbf16>, vector<128x128xbf16>, vector<64x128xf32> -> vector<64x128xf32>
    %92 = arith.addf %87, %91 : vector<64x128xf32>
    %c0_88 = arith.constant 0 : index
    %c0_89 = arith.constant 0 : index
    %93 = vector.load %arg8[%c0_88, %c0_89] : memref<64x128xf32, #tpu.memory_space<vmem>>, vector<64x128xf32>
    tpu.vector_store %arg8[%c0_88, %c0_89], %92 {strides = array<i32>} : memref<64x128xf32, #tpu.memory_space<vmem>>, vector<64x128xf32>,
    %c0_90 = arith.constant 0 : index
    %c0_91 = arith.constant 0 : index
    %94 = vector.load %arg8[%c0_90, %c0_91] : memref<64x128xf32, #tpu.memory_space<vmem>>, vector<64x128xf32>
    %c0_92 = arith.constant 0 : index
    %c0_93 = arith.constant 0 : index
    %c0_94 = arith.constant 0 : index
    %c0_95 = arith.constant 0 : index
    %95 = vector.load %arg5[%c0_92, %c0_93, %c0_94, %c0_95] : memref<1x8x8x128xbf16, #tpu.memory_space<vmem>>, vector<1x8x8x128xbf16>
    %96 = vector.shape_cast %95 : vector<1x8x8x128xbf16> to vector<8x8x128xbf16>
    %97 = vector.shape_cast %96 : vector<8x8x128xbf16> to vector<64x128xbf16>
    %98 = arith.extf %97 : vector<64x128xbf16> to vector<64x128xf32>
    %99 = arith.addf %94, %98 : vector<64x128xf32>
    %100 = vector.shape_cast %99 : vector<64x128xf32> to vector<8x8x128xf32>
    %101 = arith.truncf %100 : vector<8x8x128xf32> to vector<8x8x128xbf16>
    %c0_96 = arith.constant 0 : index
    %c0_97 = arith.constant 0 : index
    %c0_98 = arith.constant 0 : index
    %c0_99 = arith.constant 0 : index
    %102 = vector.load %arg6[%c0_96, %c0_97, %c0_98, %c0_99] : memref<1x8x8x128xbf16, #tpu.memory_space<vmem>>, vector<1x8x8x128xbf16>
    %103 = vector.shape_cast %102 : vector<1x8x8x128xbf16> to vector<8x8x128xbf16>
    %104 = vector.shape_cast %101 : vector<8x8x128xbf16> to vector<1x8x8x128xbf16>
    tpu.vector_store %arg6[%c0_96, %c0_97, %c0_98, %c0_99], %104 {strides = array<i32>} : memref<1x8x8x128xbf16, #tpu.memory_space<vmem>>, vector<1x8x8x128xbf16>,
    return
  }
  func.func @transform_0(%arg0: i32) -> (i32, i32, i32, i32) {
    %c0_i32 = arith.constant 0 : i32
    %c0_i32_0 = arith.constant 0 : i32
    %c0_i32_1 = arith.constant 0 : i32
    %c0_i32_2 = arith.constant 0 : i32
    return %arg0, %c0_i32, %c0_i32_0, %c0_i32_1 : i32, i32, i32, i32
  }
  func.func @transform_1(%arg0: i32) -> (i32, i32) {
    %c0_i32 = arith.constant 0 : i32
    %c0_i32_0 = arith.constant 0 : i32
    %c0_i32_1 = arith.constant 0 : i32
    return %c0_i32, %c0_i32_0 : i32, i32
  }
  func.func @transform_2(%arg0: i32) -> (i32, i32) {
    %c0_i32 = arith.constant 0 : i32
    %c0_i32_0 = arith.constant 0 : i32
    %c0_i32_1 = arith.constant 0 : i32
    return %c0_i32, %c0_i32_0 : i32, i32
  }
  func.func @transform_3(%arg0: i32) -> (i32, i32, i32) {
    %c0_i32 = arith.constant 0 : i32
    %c0_i32_0 = arith.constant 0 : i32
    %c0_i32_1 = arith.constant 0 : i32
    %c0_i32_2 = arith.constant 0 : i32
    return %c0_i32, %c0_i32_0, %c0_i32_1 : i32, i32, i32
  }
  func.func @transform_4(%arg0: i32) -> (i32, i32, i32, i32) {
    %c0_i32 = arith.constant 0 : i32
    %c0_i32_0 = arith.constant 0 : i32
    %c0_i32_1 = arith.constant 0 : i32
    %c0_i32_2 = arith.constant 0 : i32
    return %arg0, %c0_i32, %c0_i32_0, %c0_i32_1 : i32, i32, i32, i32
  }
  func.func @transform_5(%arg0: i32) -> (i32, i32, i32, i32) {
    %c0_i32 = arith.constant 0 : i32
    %c0_i32_0 = arith.constant 0 : i32
    %c0_i32_1 = arith.constant 0 : i32
    %c0_i32_2 = arith.constant 0 : i32
    return %arg0, %c0_i32, %c0_i32_0, %c0_i32_1 : i32, i32, i32, i32
  }
}

</mosaic_0001>

<llo_original>
// kernel: network_block_forward.10
$region0: #{network_block_forward.10}
  #allocation0 [shape = 'u32[]', space=smem, size = 0x4, offset = 0x4, fixed_abs, tag = 'smem constant byte address 0x4 - core index']
  #allocation1 [shape = 'u32[72,128]{1,0:T(1,128)}', space=vmem, size = 0x9000, scoped, tag = 'internal scratch']
  %s0 = inlined_call_operand.vmem [shape: bf16[512,128], index: 0, kind: input, shape index: {}]
  %s1 = inlined_call_operand.vmem [shape: f32[1,8,128], index: 1, kind: output, shape index: {0}]
  %s2 = inlined_call_operand.vmem [shape: f32[1,8,128], index: 2, kind: output, shape index: {1}]
  %3 = xla_tuple %s1, %s2
  %s4 = sld [smem:[#allocation0]]
  $region22: #{network_block_forward.10} parent=0
    _
  %s6 = ssub.s32 1, %s4
  %s7 = scalar_select 0, %s6, %s4
  // Predicated region
  $region2: #{network_block_forward.10} parent=0 // pred_check
    _
  $region3: #{network_block_forward.10} parent=0 // pred_check_branch
    %9 = sbr.rel (0) target = $region5
  $region4: #{network_block_forward.10} parent=0 // pred_region
    _
  $region5: #{network_block_forward.10} parent=0 // pred_fallthru
    _
  %v10 = vld [vmem:[%s0] sm:$0xf]
  %v11 = vld [vmem:[%s0 + $0x4] sm:$0xf]
  %v12 = vld [vmem:[%s0 + $0x8] sm:$0xf]
  %v13 = vld [vmem:[%s0 + $0xc] sm:$0xf]
  %v14 = vld [vmem:[%s0 + $0x10] sm:$0xf]
  %v15 = vld [vmem:[%s0 + $0x14] sm:$0xf]
  %v16 = vld [vmem:[%s0 + $0x18] sm:$0xf]
  %v17 = vld [vmem:[%s0 + $0x1c] sm:$0xf]
  %v18 = vld [vmem:[%s0 + $0x20] sm:$0xf]
  %v19 = vld [vmem:[%s0 + $0x24] sm:$0xf]
  %v20 = vld [vmem:[%s0 + $0x28] sm:$0xf]
  %v21 = vld [vmem:[%s0 + $0x2c] sm:$0xf]
  %v22 = vld [vmem:[%s0 + $0x30] sm:$0xf]
  %v23 = vld [vmem:[%s0 + $0x34] sm:$0xf]
  %v24 = vld [vmem:[%s0 + $0x38] sm:$0xf]
  %v25 = vld [vmem:[%s0 + $0x3c] sm:$0xf]
  %v26 = vld [vmem:[%s0 + $0x40] sm:$0xf]
  %v27 = vld [vmem:[%s0 + $0x44] sm:$0xf]
  %v28 = vld [vmem:[%s0 + $0x48] sm:$0xf]
  %v29 = vld [vmem:[%s0 + $0x4c] sm:$0xf]
  %v30 = vld [vmem:[%s0 + $0x50] sm:$0xf]
  %v31 = vld [vmem:[%s0 + $0x54] sm:$0xf]
  %v32 = vld [vmem:[%s0 + $0x58] sm:$0xf]
  %v33 = vld [vmem:[%s0 + $0x5c] sm:$0xf]
  %v34 = vld [vmem:[%s0 + $0x60] sm:$0xf]
  %v35 = vld [vmem:[%s0 + $0x64] sm:$0xf]
  %v36 = vld [vmem:[%s0 + $0x68] sm:$0xf]
  %v37 = vld [vmem:[%s0 + $0x6c] sm:$0xf]
  %v38 = vld [vmem:[%s0 + $0x70] sm:$0xf]
  %v39 = vld [vmem:[%s0 + $0x74] sm:$0xf]
  %v40 = vld [vmem:[%s0 + $0x78] sm:$0xf]
  %v41 = vld [vmem:[%s0 + $0x7c] sm:$0xf]
  %v42 = vld [vmem:[%s0 + $0x80] sm:$0xf]
  %v43 = vld [vmem:[%s0 + $0x84] sm:$0xf]
  %v44 = vld [vmem:[%s0 + $0x88] sm:$0xf]
  %v45 = vld [vmem:[%s0 + $0x8c] sm:$0xf]
  %v46 = vld [vmem:[%s0 + $0x90] sm:$0xf]
  %v47 = vld [vmem:[%s0 + $0x94] sm:$0xf]
  %v48 = vld [vmem:[%s0 + $0x98] sm:$0xf]
  %v49 = vld [vmem:[%s0 + $0x9c] sm:$0xf]
  %v50 = vld [vmem:[%s0 + $0xa0] sm:$0xf]
  %v51 = vld [vmem:[%s0 + $0xa4] sm:$0xf]
  %v52 = vld [vmem:[%s0 + $0xa8] sm:$0xf]
  %v53 = vld [vmem:[%s0 + $0xac] sm:$0xf]
  %v54 = vld [vmem:[%s0 + $0xb0] sm:$0xf]
  %v55 = vld [vmem:[%s0 + $0xb4] sm:$0xf]
  %v56 = vld [vmem:[%s0 + $0xb8] sm:$0xf]
  %v57 = vld [vmem:[%s0 + $0xbc] sm:$0xf]
  %v58 = vld [vmem:[%s0 + $0xc0] sm:$0xf]
  %v59 = vld [vmem:[%s0 + $0xc4] sm:$0xf]
  %v60 = vld [vmem:[%s0 + $0xc8] sm:$0xf]
  %v61 = vld [vmem:[%s0 + $0xcc] sm:$0xf]
  %v62 = vld [vmem:[%s0 + $0xd0] sm:$0xf]
  %v63 = vld [vmem:[%s0 + $0xd4] sm:$0xf]
  %v64 = vld [vmem:[%s0 + $0xd8] sm:$0xf]
  %v65 = vld [vmem:[%s0 + $0xdc] sm:$0xf]
  %v66 = vld [vmem:[%s0 + $0xe0] sm:$0xf]
  %v67 = vld [vmem:[%s0 + $0xe4] sm:$0xf]
  %v68 = vld [vmem:[%s0 + $0xe8] sm:$0xf]
  %v69 = vld [vmem:[%s0 + $0xec] sm:$0xf]
  %v70 = vld [vmem:[%s0 + $0xf0] sm:$0xf]
  %v71 = vld [vmem:[%s0 + $0xf4] sm:$0xf]
  %v72 = vld [vmem:[%s0 + $0xf8] sm:$0xf]
  %v73 = vld [vmem:[%s0 + $0xfc] sm:$0xf]
  %v74 = vunpack.c.l.bf16 %v10
  %v75 = vunpack.c.l.bf16 %v11
  %v76 = vunpack.c.l.bf16 %v12
  %v77 = vunpack.c.l.bf16 %v13
  %v78 = vunpack.c.l.bf16 %v14
  %v79 = vunpack.c.l.bf16 %v15
  %v80 = vunpack.c.l.bf16 %v16
  %v81 = vunpack.c.l.bf16 %v17
  %v82 = vunpack.c.l.bf16 %v18
  %v83 = vunpack.c.l.bf16 %v19
  %v84 = vunpack.c.l.bf16 %v20
  %v85 = vunpack.c.l.bf16 %v21
  %v86 = vunpack.c.l.bf16 %v22
  %v87 = vunpack.c.l.bf16 %v23
  %v88 = vunpack.c.l.bf16 %v24
  %v89 = vunpack.c.l.bf16 %v25
  %v90 = vunpack.c.l.bf16 %v26
  %v91 = vunpack.c.l.bf16 %v27
  %v92 = vunpack.c.l.bf16 %v28
  %v93 = vunpack.c.l.bf16 %v29
  %v94 = vunpack.c.l.bf16 %v30
  %v95 = vunpack.c.l.bf16 %v31
  %v96 = vunpack.c.l.bf16 %v32
  %v97 = vunpack.c.l.bf16 %v33
  %v98 = vunpack.c.l.bf16 %v34
  %v99 = vunpack.c.l.bf16 %v35
  %v100 = vunpack.c.l.bf16 %v36
  %v101 = vunpack.c.l.bf16 %v37
  %v102 = vunpack.c.l.bf16 %v38
  %v103 = vunpack.c.l.bf16 %v39
  %v104 = vunpack.c.l.bf16 %v40
  %v105 = vunpack.c.l.bf16 %v41
  %v106 = vunpack.c.l.bf16 %v42
  %v107 = vunpack.c.l.bf16 %v43
  %v108 = vunpack.c.l.bf16 %v44
  %v109 = vunpack.c.l.bf16 %v45
  %v110 = vunpack.c.l.bf16 %v46
  %v111 = vunpack.c.l.bf16 %v47
  %v112 = vunpack.c.l.bf16 %v48
  %v113 = vunpack.c.l.bf16 %v49
  %v114 = vunpack.c.l.bf16 %v50
  %v115 = vunpack.c.l.bf16 %v51
  %v116 = vunpack.c.l.bf16 %v52
  %v117 = vunpack.c.l.bf16 %v53
  %v118 = vunpack.c.l.bf16 %v54
  %v119 = vunpack.c.l.bf16 %v55
  %v120 = vunpack.c.l.bf16 %v56
  %v121 = vunpack.c.l.bf16 %v57
  %v122 = vunpack.c.l.bf16 %v58
  %v123 = vunpack.c.l.bf16 %v59
  %v124 = vunpack.c.l.bf16 %v60
  %v125 = vunpack.c.l.bf16 %v61
  %v126 = vunpack.c.l.bf16 %v62
  %v127 = vunpack.c.l.bf16 %v63
  %v128 = vunpack.c.l.bf16 %v64
  %v129 = vunpack.c.l.bf16 %v65
  %v130 = vunpack.c.l.bf16 %v66
  %v131 = vunpack.c.l.bf16 %v67
  %v132 = vunpack.c.l.bf16 %v68
  %v133 = vunpack.c.l.bf16 %v69
  %v134 = vunpack.c.l.bf16 %v70
  %v135 = vunpack.c.l.bf16 %v71
  %v136 = vunpack.c.l.bf16 %v72
  %v137 = vunpack.c.l.bf16 %v73
  %v138 = vadd.f32 %v74, %v75
  %v139 = vadd.f32 %v138, %v76
  %v140 = vadd.f32 %v139, %v77
  %v141 = vadd.f32 %v140, %v78
  %v142 = vadd.f32 %v141, %v79
  %v143 = vadd.f32 %v142, %v80
  %v144 = vadd.f32 %v143, %v81
  %v145 = vadd.f32 %v144, %v82
  %v146 = vadd.f32 %v145, %v83
  %v147 = vadd.f32 %v146, %v84
  %v148 = vadd.f32 %v147, %v85
  %v149 = vadd.f32 %v148, %v86
  %v150 = vadd.f32 %v149, %v87
  %v151 = vadd.f32 %v150, %v88
  %v152 = vadd.f32 %v151, %v89
  %v153 = vadd.f32 %v152, %v90
  %v154 = vadd.f32 %v153, %v91
  %v155 = vadd.f32 %v154, %v92
  %v156 = vadd.f32 %v155, %v93
  %v157 = vadd.f32 %v156, %v94
  %v158 = vadd.f32 %v157, %v95
  %v159 = vadd.f32 %v158, %v96
  %v160 = vadd.f32 %v159, %v97
  %v161 = vadd.f32 %v160, %v98
  %v162 = vadd.f32 %v161, %v99
  %v163 = vadd.f32 %v162, %v100
  %v164 = vadd.f32 %v163, %v101
  %v165 = vadd.f32 %v164, %v102
  %v166 = vadd.f32 %v165, %v103
  %v167 = vadd.f32 %v166, %v104
  %v168 = vadd.f32 %v167, %v105
  %v169 = vadd.f32 %v168, %v106
  %v170 = vadd.f32 %v169, %v107
  %v171 = vadd.f32 %v170, %v108
  %v172 = vadd.f32 %v171, %v109
  %v173 = vadd.f32 %v172, %v110
  %v174 = vadd.f32 %v173, %v111
  %v175 = vadd.f32 %v174, %v112
  %v176 = vadd.f32 %v175, %v113
  %v177 = vadd.f32 %v176, %v114
  %v178 = vadd.f32 %v177, %v115
  %v179 = vadd.f32 %v178, %v116
  %v180 = vadd.f32 %v179, %v117
  %v181 = vadd.f32 %v180, %v118
  %v182 = vadd.f32 %v181, %v119
  %v183 = vadd.f32 %v182, %v120
  %v184 = vadd.f32 %v183, %v121
  %v185 = vadd.f32 %v184, %v122
  %v186 = vadd.f32 %v185, %v123
  %v187 = vadd.f32 %v186, %v124
  %v188 = vadd.f32 %v187, %v125
  %v189 = vadd.f32 %v188, %v126
  %v190 = vadd.f32 %v189, %v127
  %v191 = vadd.f32 %v190, %v128
  %v192 = vadd.f32 %v191, %v129
  %v193 = vadd.f32 %v192, %v130
  %v194 = vadd.f32 %v193, %v131
  %v195 = vadd.f32 %v194, %v132
  %v196 = vadd.f32 %v195, %v133
  %v197 = vadd.f32 %v196, %v134
  %v198 = vadd.f32 %v197, %v135
  %v199 = vadd.f32 %v198, %v136
  %v200 = vadd.f32 %v199, %v137
  %201 = vst [vmem:[%s1] sm:$0xff] %v200
  %v202 = vmul.f32 %v74, %v74
  %v203 = vmul.f32 %v75, %v75
  %v204 = vmul.f32 %v76, %v76
  %v205 = vmul.f32 %v77, %v77
  %v206 = vmul.f32 %v78, %v78
  %v207 = vmul.f32 %v79, %v79
  %v208 = vmul.f32 %v80, %v80
  %v209 = vmul.f32 %v81, %v81
  %v210 = vmul.f32 %v82, %v82
  %v211 = vmul.f32 %v83, %v83
  %v212 = vmul.f32 %v84, %v84
  %v213 = vmul.f32 %v85, %v85
  %v214 = vmul.f32 %v86, %v86
  %v215 = vmul.f32 %v87, %v87
  %v216 = vmul.f32 %v88, %v88
  %v217 = vmul.f32 %v89, %v89
  %v218 = vmul.f32 %v90, %v90
  %v219 = vmul.f32 %v91, %v91
  %v220 = vmul.f32 %v92, %v92
  %v221 = vmul.f32 %v93, %v93
  %v222 = vmul.f32 %v94, %v94
  %v223 = vmul.f32 %v95, %v95
  %v224 = vmul.f32 %v96, %v96
  %v225 = vmul.f32 %v97, %v97
  %v226 = vmul.f32 %v98, %v98
  %v227 = vmul.f32 %v99, %v99
  %v228 = vmul.f32 %v100, %v100
  %v229 = vmul.f32 %v101, %v101
  %v230 = vmul.f32 %v102, %v102
  %v231 = vmul.f32 %v103, %v103
  %v232 = vmul.f32 %v104, %v104
  %v233 = vmul.f32 %v105, %v105
  %v234 = vmul.f32 %v106, %v106
  %v235 = vmul.f32 %v107, %v107
  %v236 = vmul.f32 %v108, %v108
  %v237 = vmul.f32 %v109, %v109
  %v238 = vmul.f32 %v110, %v110
  %v239 = vmul.f32 %v111, %v111
  %v240 = vmul.f32 %v112, %v112
  %v241 = vmul.f32 %v113, %v113
  %v242 = vmul.f32 %v114, %v114
  %v243 = vmul.f32 %v115, %v115
  %v244 = vmul.f32 %v116, %v116
  %v245 = vmul.f32 %v117, %v117
  %v246 = vmul.f32 %v118, %v118
  %v247 = vmul.f32 %v119, %v119
  %v248 = vmul.f32 %v120, %v120
  %v249 = vmul.f32 %v121, %v121
  %v250 = vmul.f32 %v122, %v122
  %v251 = vmul.f32 %v123, %v123
  %v252 = vmul.f32 %v124, %v124
  %v253 = vmul.f32 %v125, %v125
  %v254 = vmul.f32 %v126, %v126
  %v255 = vmul.f32 %v127, %v127
  %v256 = vmul.f32 %v128, %v128
  %v257 = vmul.f32 %v129, %v129
  %v258 = vmul.f32 %v130, %v130
  %v259 = vmul.f32 %v131, %v131
  %v260 = vmul.f32 %v132, %v132
  %v261 = vmul.f32 %v133, %v133
  %v262 = vmul.f32 %v134, %v134
  %v263 = vmul.f32 %v135, %v135
  %v264 = vmul.f32 %v136, %v136
  %v265 = vmul.f32 %v137, %v137
  %v266 = vadd.f32 %v202, %v203
  %v267 = vadd.f32 %v266, %v204
  %v268 = vadd.f32 %v267, %v205
  %v269 = vadd.f32 %v268, %v206
  %v270 = vadd.f32 %v269, %v207
  %v271 = vadd.f32 %v270, %v208
  %v272 = vadd.f32 %v271, %v209
  %v273 = vadd.f32 %v272, %v210
  %v274 = vadd.f32 %v273, %v211
  %v275 = vadd.f32 %v274, %v212
  %v276 = vadd.f32 %v275, %v213
  %v277 = vadd.f32 %v276, %v214
  %v278 = vadd.f32 %v277, %v215
  %v279 = vadd.f32 %v278, %v216
  %v280 = vadd.f32 %v279, %v217
  %v281 = vadd.f32 %v280, %v218
  %v282 = vadd.f32 %v281, %v219
  %v283 = vadd.f32 %v282, %v220
  %v284 = vadd.f32 %v283, %v221
  %v285 = vadd.f32 %v284, %v222
  %v286 = vadd.f32 %v285, %v223
  %v287 = vadd.f32 %v286, %v224
  %v288 = vadd.f32 %v287, %v225
  %v289 = vadd.f32 %v288, %v226
  %v290 = vadd.f32 %v289, %v227
  %v291 = vadd.f32 %v290, %v228
  %v292 = vadd.f32 %v291, %v229
  %v293 = vadd.f32 %v292, %v230
  %v294 = vadd.f32 %v293, %v231
  %v295 = vadd.f32 %v294, %v232
  %v296 = vadd.f32 %v295, %v233
  %v297 = vadd.f32 %v296, %v234
  %v298 = vadd.f32 %v297, %v235
  %v299 = vadd.f32 %v298, %v236
  %v300 = vadd.f32 %v299, %v237
  %v301 = vadd.f32 %v300, %v238
  %v302 = vadd.f32 %v301, %v239
  %v303 = vadd.f32 %v302, %v240
  %v304 = vadd.f32 %v303, %v241
  %v305 = vadd.f32 %v304, %v242
  %v306 = vadd.f32 %v305, %v243
  %v307 = vadd.f32 %v306, %v244
  %v308 = vadd.f32 %v307, %v245
  %v309 = vadd.f32 %v308, %v246
  %v310 = vadd.f32 %v309, %v247
  %v311 = vadd.f32 %v310, %v248
  %v312 = vadd.f32 %v311, %v249
  %v313 = vadd.f32 %v312, %v250
  %v314 = vadd.f32 %v313, %v251
  %v315 = vadd.f32 %v314, %v252
  %v316 = vadd.f32 %v315, %v253
  %v317 = vadd.f32 %v316, %v254
  %v318 = vadd.f32 %v317, %v255
  %v319 = vadd.f32 %v318, %v256
  %v320 = vadd.f32 %v319, %v257
  %v321 = vadd.f32 %v320, %v258
  %v322 = vadd.f32 %v321, %v259
  %v323 = vadd.f32 %v322, %v260
  %v324 = vadd.f32 %v323, %v261
  %v325 = vadd.f32 %v324, %v262
  %v326 = vadd.f32 %v325, %v263
  %v327 = vadd.f32 %v326, %v264
  %v328 = vadd.f32 %v327, %v265
  %329 = vst [vmem:[%s2] sm:$0xff] %v328
  // Predicated region
  $region6: #{network_block_forward.10} parent=0 // pred_check
    _
  $region7: #{network_block_forward.10} parent=0 // pred_check_branch
    %331 = sbr.rel (0) target = $region9
  $region8: #{network_block_forward.10} parent=0 // pred_region
    _
  $region9: #{network_block_forward.10} parent=0 // pred_fallthru
    _
  // Predicated region
  $region10: #{network_block_forward.10} parent=0 // pred_check
    _
  $region11: #{network_block_forward.10} parent=0 // pred_check_branch
    %333 = sbr.rel (0) target = $region13
  $region12: #{network_block_forward.10} parent=0 // pred_region
    _
  $region13: #{network_block_forward.10} parent=0 // pred_fallthru
    _
  // Predicated region
  $region14: #{network_block_forward.10} parent=0 // pred_check
    _
  $region15: #{network_block_forward.10} parent=0 // pred_check_branch
    %335 = sbr.rel (0) target = $region17
  $region16: #{network_block_forward.10} parent=0 // pred_region
    _
  $region17: #{network_block_forward.10} parent=0 // pred_fallthru
    _
  // Predicated region
  $region18: #{network_block_forward.10} parent=0 // pred_check
    _
  $region19: #{network_block_forward.10} parent=0 // pred_check_branch
    %337 = sbr.rel (0) target = $region21
  $region20: #{network_block_forward.10} parent=0 // pred_region
    _
  $region21: #{network_block_forward.10} parent=0 // pred_fallthru
    _

// kernel: network_block_forward.13
$region0: #{network_block_forward.13}
  #allocation0 [shape = 'u32[]', space=smem, size = 0x4, offset = 0x4, fixed_abs, tag = 'smem constant byte address 0x4 - core index']
  #allocation1 [shape = 'u32[72,128]{1,0:T(1,128)}', space=vmem, size = 0x9000, scoped, tag = 'internal scratch']
  %s0 = inlined_call_operand.vmem [shape: bf16[128,128], index: 0, kind: input, shape index: {}]
  %s1 = inlined_call_operand.vmem [shape: bf16[128,128], index: 1, kind: input, shape index: {}]
  %s2 = inlined_call_operand.vmem [shape: bf16[128,128], index: 2, kind: output, shape index: {}]
  %s3 = sld [smem:[#allocation0]]
  $region18: #{network_block_forward.13} parent=0
    _
  %s5 = ssub.s32 1, %s3
  %s6 = scalar_select 0, %s5, %s3
  // Predicated region
  $region2: #{network_block_forward.13} parent=0 // pred_check
    _
  $region3: #{network_block_forward.13} parent=0 // pred_check_branch
    %8 = sbr.rel (0) target = $region5
  $region4: #{network_block_forward.13} parent=0 // pred_region
    _
  $region5: #{network_block_forward.13} parent=0 // pred_fallthru
    _
  // Predicated region
  $region6: #{network_block_forward.13} parent=0 // pred_check
    _
  $region7: #{network_block_forward.13} parent=0 // pred_check_branch
    %10 = sbr.rel (0) target = $region9
  $region8: #{network_block_forward.13} parent=0 // pred_region
    _
  $region9: #{network_block_forward.13} parent=0 // pred_fallthru
    _
  %v11 = vld [vmem:[%s0] sm:$0xf]
  %v12 = vld [vmem:[%s0 + $0x4] sm:$0xf]
  %v13 = vld [vmem:[%s0 + $0x8] sm:$0xf]
  %v14 = vld [vmem:[%s0 + $0xc] sm:$0xf]
  %v15 = vld [vmem:[%s0 + $0x10] sm:$0xf]
  %v16 = vld [vmem:[%s0 + $0x14] sm:$0xf]
  %v17 = vld [vmem:[%s0 + $0x18] sm:$0xf]
  %v18 = vld [vmem:[%s0 + $0x1c] sm:$0xf]
  %v19 = vld [vmem:[%s0 + $0x20] sm:$0xf]
  %v20 = vld [vmem:[%s0 + $0x24] sm:$0xf]
  %v21 = vld [vmem:[%s0 + $0x28] sm:$0xf]
  %v22 = vld [vmem:[%s0 + $0x2c] sm:$0xf]
  %v23 = vld [vmem:[%s0 + $0x30] sm:$0xf]
  %v24 = vld [vmem:[%s0 + $0x34] sm:$0xf]
  %v25 = vld [vmem:[%s0 + $0x38] sm:$0xf]
  %v26 = vld [vmem:[%s0 + $0x3c] sm:$0xf]
  %v27 = vld [vmem:[%s1] sm:$0xf]
  %v28 = vld [vmem:[%s1 + $0x4] sm:$0xf]
  %v29 = vld [vmem:[%s1 + $0x8] sm:$0xf]
  %v30 = vld [vmem:[%s1 + $0xc] sm:$0xf]
  %v31 = vld [vmem:[%s1 + $0x10] sm:$0xf]
  %v32 = vld [vmem:[%s1 + $0x14] sm:$0xf]
  %v33 = vld [vmem:[%s1 + $0x18] sm:$0xf]
  %v34 = vld [vmem:[%s1 + $0x1c] sm:$0xf]
  %v35 = vld [vmem:[%s1 + $0x20] sm:$0xf]
  %v36 = vld [vmem:[%s1 + $0x24] sm:$0xf]
  %v37 = vld [vmem:[%s1 + $0x28] sm:$0xf]
  %v38 = vld [vmem:[%s1 + $0x2c] sm:$0xf]
  %v39 = vld [vmem:[%s1 + $0x30] sm:$0xf]
  %v40 = vld [vmem:[%s1 + $0x34] sm:$0xf]
  %v41 = vld [vmem:[%s1 + $0x38] sm:$0xf]
  %v42 = vld [vmem:[%s1 + $0x3c] sm:$0xf]
  %v59 = vunpack.c.l.b16 %v11
  %v60 = vunpack.c.l.b16 %v12
  %v61 = vunpack.c.l.b16 %v13
  %v62 = vunpack.c.l.b16 %v14
  %v63 = vunpack.c.l.b16 %v15
  %v64 = vunpack.c.l.b16 %v16
  %v65 = vunpack.c.l.b16 %v17
  %v66 = vunpack.c.l.b16 %v18
  %v67 = vunpack.c.l.b16 %v19
  %v68 = vunpack.c.l.b16 %v20
  %v69 = vunpack.c.l.b16 %v21
  %v70 = vunpack.c.l.b16 %v22
  %v71 = vunpack.c.l.b16 %v23
  %v72 = vunpack.c.l.b16 %v24
  %v73 = vunpack.c.l.b16 %v25
  %v74 = vunpack.c.l.b16 %v26
  %v75 = vpack.c.b16 %v60, %v59
  %v76 = vpack.c.b16 %v62, %v61
  %v77 = vpack.c.b16 %v64, %v63
  %v78 = vpack.c.b16 %v66, %v65
  %v79 = vpack.c.b16 %v68, %v67
  %v80 = vpack.c.b16 %v70, %v69
  %v81 = vpack.c.b16 %v72, %v71
  %v82 = vpack.c.b16 %v74, %v73
  %v107 = vunpack.c.l.b16 %v27
  %v108 = vunpack.c.l.b16 %v28
  %v109 = vunpack.c.l.b16 %v29
  %v110 = vunpack.c.l.b16 %v30
  %v111 = vunpack.c.l.b16 %v31
  %v112 = vunpack.c.l.b16 %v32
  %v113 = vunpack.c.l.b16 %v33
  %v114 = vunpack.c.l.b16 %v34
  %v115 = vunpack.c.l.b16 %v35
  %v116 = vunpack.c.l.b16 %v36
  %v117 = vunpack.c.l.b16 %v37
  %v118 = vunpack.c.l.b16 %v38
  %v119 = vunpack.c.l.b16 %v39
  %v120 = vunpack.c.l.b16 %v40
  %v121 = vunpack.c.l.b16 %v41
  %v122 = vunpack.c.l.b16 %v42
  %v123 = vpack.c.b16 %v108, %v107
  %v124 = vpack.c.b16 %v110, %v109
  %v125 = vpack.c.b16 %v112, %v111
  %v126 = vpack.c.b16 %v114, %v113
  %v127 = vpack.c.b16 %v116, %v115
  %v128 = vpack.c.b16 %v118, %v117
  %v129 = vpack.c.b16 %v120, %v119
  %v130 = vpack.c.b16 %v122, %v121
  %139 = vmatpush.bf16.msra.mxu0 %v130
  %140 = vmatpush.bf16.msra.mxu0 %v129
  %141 = vmatpush.bf16.msra.mxu0 %v128
  %142 = vmatpush.bf16.msra.mxu0 %v127
  %143 = vmatpush.bf16.msra.mxu0 %v126
  %144 = vmatpush.bf16.msra.mxu0 %v125
  %145 = vmatpush.bf16.msra.mxu0 %v124
  %146 = vmatpush.bf16.msra.mxu0 %v123
  %147 = vmatmul.bf16.gmra.mxu0 %v75
  %v148 = vpop.f32.mrf.mxu0
  %v149 = vadd.f32 0.0, %v148
  %v150 = vpop.f32.mrf.mxu0
  %v151 = vadd.f32 0.0, %v150
  %152 = vmatmul.bf16.gmra.mxu0 %v76
  %v153 = vpop.f32.mrf.mxu0
  %v154 = vadd.f32 0.0, %v153
  %v155 = vpop.f32.mrf.mxu0
  %v156 = vadd.f32 0.0, %v155
  %157 = vmatmul.bf16.gmra.mxu0 %v77
  %v158 = vpop.f32.mrf.mxu0
  %v159 = vadd.f32 0.0, %v158
  %v160 = vpop.f32.mrf.mxu0
  %v161 = vadd.f32 0.0, %v160
  %162 = vmatmul.bf16.gmra.mxu0 %v78
  %v163 = vpop.f32.mrf.mxu0
  %v164 = vadd.f32 0.0, %v163
  %v165 = vpop.f32.mrf.mxu0
  %v166 = vadd.f32 0.0, %v165
  %167 = vmatmul.bf16.gmra.mxu0 %v79
  %v168 = vpop.f32.mrf.mxu0
  %v169 = vadd.f32 0.0, %v168
  %v170 = vpop.f32.mrf.mxu0
  %v171 = vadd.f32 0.0, %v170
  %172 = vmatmul.bf16.gmra.mxu0 %v80
  %v173 = vpop.f32.mrf.mxu0
  %v174 = vadd.f32 0.0, %v173
  %v175 = vpop.f32.mrf.mxu0
  %v176 = vadd.f32 0.0, %v175
  %177 = vmatmul.bf16.gmra.mxu0 %v81
  %v178 = vpop.f32.mrf.mxu0
  %v179 = vadd.f32 0.0, %v178
  %v180 = vpop.f32.mrf.mxu0
  %v181 = vadd.f32 0.0, %v180
  %182 = vmatmul.bf16.gmra.mxu0 %v82
  %v183 = vpop.f32.mrf.mxu0
  %v184 = vadd.f32 0.0, %v183
  %v185 = vpop.f32.mrf.mxu0
  %v186 = vadd.f32 0.0, %v185
  %187 = vdwg.mxu0
  %v188 = vpack.c.bf16 %v149, %v149
  %v189 = vpack.c.bf16 %v151, %v151
  %v190 = vpack.c.bf16 %v154, %v154
  %v191 = vpack.c.bf16 %v156, %v156
  %v192 = vpack.c.bf16 %v159, %v159
  %v193 = vpack.c.bf16 %v161, %v161
  %v194 = vpack.c.bf16 %v164, %v164
  %v195 = vpack.c.bf16 %v166, %v166
  %v196 = vpack.c.bf16 %v169, %v169
  %v197 = vpack.c.bf16 %v171, %v171
  %v198 = vpack.c.bf16 %v174, %v174
  %v199 = vpack.c.bf16 %v176, %v176
  %v200 = vpack.c.bf16 %v179, %v179
  %v201 = vpack.c.bf16 %v181, %v181
  %v202 = vpack.c.bf16 %v184, %v184
  %v203 = vpack.c.bf16 %v186, %v186
  %204 = vst [vmem:[%s2] sm:$0xf] %v188
  %205 = vst [vmem:[%s2 + $0x4] sm:$0xf] %v189
  %206 = vst [vmem:[%s2 + $0x8] sm:$0xf] %v190
  %207 = vst [vmem:[%s2 + $0xc] sm:$0xf] %v191
  %208 = vst [vmem:[%s2 + $0x10] sm:$0xf] %v192
  %209 = vst [vmem:[%s2 + $0x14] sm:$0xf] %v193
  %210 = vst [vmem:[%s2 + $0x18] sm:$0xf] %v194
  %211 = vst [vmem:[%s2 + $0x1c] sm:$0xf] %v195
  %212 = vst [vmem:[%s2 + $0x20] sm:$0xf] %v196
  %213 = vst [vmem:[%s2 + $0x24] sm:$0xf] %v197
  %214 = vst [vmem:[%s2 + $0x28] sm:$0xf] %v198
  %215 = vst [vmem:[%s2 + $0x2c] sm:$0xf] %v199
  %216 = vst [vmem:[%s2 + $0x30] sm:$0xf] %v200
  %217 = vst [vmem:[%s2 + $0x34] sm:$0xf] %v201
  %218 = vst [vmem:[%s2 + $0x38] sm:$0xf] %v202
  %219 = vst [vmem:[%s2 + $0x3c] sm:$0xf] %v203
  // Predicated region
  $region10: #{network_block_forward.13} parent=0 // pred_check
    _
  $region11: #{network_block_forward.13} parent=0 // pred_check_branch
    %221 = sbr.rel (0) target = $region13
  $region12: #{network_block_forward.13} parent=0 // pred_region
    _
  $region13: #{network_block_forward.13} parent=0 // pred_fallthru
    _
  // Predicated region
  $region14: #{network_block_forward.13} parent=0 // pred_check
    _
  $region15: #{network_block_forward.13} parent=0 // pred_check_branch
    %223 = sbr.rel (0) target = $region17
  $region16: #{network_block_forward.13} parent=0 // pred_region
    _
  $region17: #{network_block_forward.13} parent=0 // pred_fallthru
    _

// kernel: network_block_forward.11
$region0: #{network_block_forward.11}
  #allocation0 [shape = 'u32[]', space=smem, size = 0x4, offset = 0x4, fixed_abs, tag = 'smem constant byte address 0x4 - core index']
  #allocation1 [shape = 'u32[72,128]{1,0:T(1,128)}', space=vmem, size = 0x9000, scoped, tag = 'internal scratch']
  %s0 = inlined_call_operand.vmem [shape: bf16[512,128], index: 0, kind: input, shape index: {}]
  %s1 = inlined_call_operand.vmem [shape: f32[1,128], index: 1, kind: input, shape index: {}]
  %s2 = inlined_call_operand.vmem [shape: f32[1,128], index: 2, kind: input, shape index: {}]
  %s3 = inlined_call_operand.vmem [shape: bf16[512,128], index: 3, kind: output, shape index: {}]
  %s4 = sld [smem:[#allocation0]]
  $region22: #{network_block_forward.11} parent=0
    _
  %s6 = ssub.s32 1, %s4
  %s7 = scalar_select 0, %s6, %s4
  // Predicated region
  $region2: #{network_block_forward.11} parent=0 // pred_check
    _
  $region3: #{network_block_forward.11} parent=0 // pred_check_branch
    %9 = sbr.rel (0) target = $region5
  $region4: #{network_block_forward.11} parent=0 // pred_region
    _
  $region5: #{network_block_forward.11} parent=0 // pred_fallthru
    _
  // Predicated region
  $region6: #{network_block_forward.11} parent=0 // pred_check
    _
  $region7: #{network_block_forward.11} parent=0 // pred_check_branch
    %11 = sbr.rel (0) target = $region9
  $region8: #{network_block_forward.11} parent=0 // pred_region
    _
  $region9: #{network_block_forward.11} parent=0 // pred_fallthru
    _
  // Predicated region
  $region10: #{network_block_forward.11} parent=0 // pred_check
    _
  $region11: #{network_block_forward.11} parent=0 // pred_check_branch
    %13 = sbr.rel (0) target = $region13
  $region12: #{network_block_forward.11} parent=0 // pred_region
    _
  $region13: #{network_block_forward.11} parent=0 // pred_fallthru
    _
  %v14 = vld [vmem:[%s0] sm:$0xf]
  %v15 = vld [vmem:[%s0 + $0x4] sm:$0xf]
  %v16 = vld [vmem:[%s0 + $0x8] sm:$0xf]
  %v17 = vld [vmem:[%s0 + $0xc] sm:$0xf]
  %v18 = vld [vmem:[%s0 + $0x10] sm:$0xf]
  %v19 = vld [vmem:[%s0 + $0x14] sm:$0xf]
  %v20 = vld [vmem:[%s0 + $0x18] sm:$0xf]
  %v21 = vld [vmem:[%s0 + $0x1c] sm:$0xf]
  %v22 = vld [vmem:[%s0 + $0x20] sm:$0xf]
  %v23 = vld [vmem:[%s0 + $0x24] sm:$0xf]
  %v24 = vld [vmem:[%s0 + $0x28] sm:$0xf]
  %v25 = vld [vmem:[%s0 + $0x2c] sm:$0xf]
  %v26 = vld [vmem:[%s0 + $0x30] sm:$0xf]
  %v27 = vld [vmem:[%s0 + $0x34] sm:$0xf]
  %v28 = vld [vmem:[%s0 + $0x38] sm:$0xf]
  %v29 = vld [vmem:[%s0 + $0x3c] sm:$0xf]
  %v30 = vld [vmem:[%s0 + $0x40] sm:$0xf]
  %v31 = vld [vmem:[%s0 + $0x44] sm:$0xf]
  %v32 = vld [vmem:[%s0 + $0x48] sm:$0xf]
  %v33 = vld [vmem:[%s0 + $0x4c] sm:$0xf]
  %v34 = vld [vmem:[%s0 + $0x50] sm:$0xf]
  %v35 = vld [vmem:[%s0 + $0x54] sm:$0xf]
  %v36 = vld [vmem:[%s0 + $0x58] sm:$0xf]
  %v37 = vld [vmem:[%s0 + $0x5c] sm:$0xf]
  %v38 = vld [vmem:[%s0 + $0x60] sm:$0xf]
  %v39 = vld [vmem:[%s0 + $0x64] sm:$0xf]
  %v40 = vld [vmem:[%s0 + $0x68] sm:$0xf]
  %v41 = vld [vmem:[%s0 + $0x6c] sm:$0xf]
  %v42 = vld [vmem:[%s0 + $0x70] sm:$0xf]
  %v43 = vld [vmem:[%s0 + $0x74] sm:$0xf]
  %v44 = vld [vmem:[%s0 + $0x78] sm:$0xf]
  %v45 = vld [vmem:[%s0 + $0x7c] sm:$0xf]
  %v46 = vld [vmem:[%s0 + $0x80] sm:$0xf]
  %v47 = vld [vmem:[%s0 + $0x84] sm:$0xf]
  %v48 = vld [vmem:[%s0 + $0x88] sm:$0xf]
  %v49 = vld [vmem:[%s0 + $0x8c] sm:$0xf]
  %v50 = vld [vmem:[%s0 + $0x90] sm:$0xf]
  %v51 = vld [vmem:[%s0 + $0x94] sm:$0xf]
  %v52 = vld [vmem:[%s0 + $0x98] sm:$0xf]
  %v53 = vld [vmem:[%s0 + $0x9c] sm:$0xf]
  %v54 = vld [vmem:[%s0 + $0xa0] sm:$0xf]
  %v55 = vld [vmem:[%s0 + $0xa4] sm:$0xf]
  %v56 = vld [vmem:[%s0 + $0xa8] sm:$0xf]
  %v57 = vld [vmem:[%s0 + $0xac] sm:$0xf]
  %v58 = vld [vmem:[%s0 + $0xb0] sm:$0xf]
  %v59 = vld [vmem:[%s0 + $0xb4] sm:$0xf]
  %v60 = vld [vmem:[%s0 + $0xb8] sm:$0xf]
  %v61 = vld [vmem:[%s0 + $0xbc] sm:$0xf]
  %v62 = vld [vmem:[%s0 + $0xc0] sm:$0xf]
  %v63 = vld [vmem:[%s0 + $0xc4] sm:$0xf]
  %v64 = vld [vmem:[%s0 + $0xc8] sm:$0xf]
  %v65 = vld [vmem:[%s0 + $0xcc] sm:$0xf]
  %v66 = vld [vmem:[%s0 + $0xd0] sm:$0xf]
  %v67 = vld [vmem:[%s0 + $0xd4] sm:$0xf]
  %v68 = vld [vmem:[%s0 + $0xd8] sm:$0xf]
  %v69 = vld [vmem:[%s0 + $0xdc] sm:$0xf]
  %v70 = vld [vmem:[%s0 + $0xe0] sm:$0xf]
  %v71 = vld [vmem:[%s0 + $0xe4] sm:$0xf]
  %v72 = vld [vmem:[%s0 + $0xe8] sm:$0xf]
  %v73 = vld [vmem:[%s0 + $0xec] sm:$0xf]
  %v74 = vld [vmem:[%s0 + $0xf0] sm:$0xf]
  %v75 = vld [vmem:[%s0 + $0xf4] sm:$0xf]
  %v76 = vld [vmem:[%s0 + $0xf8] sm:$0xf]
  %v77 = vld [vmem:[%s0 + $0xfc] sm:$0xf]
  %v78 = vunpack.c.l.bf16 %v14
  %v79 = vunpack.c.l.bf16 %v15
  %v80 = vunpack.c.l.bf16 %v16
  %v81 = vunpack.c.l.bf16 %v17
  %v82 = vunpack.c.l.bf16 %v18
  %v83 = vunpack.c.l.bf16 %v19
  %v84 = vunpack.c.l.bf16 %v20
  %v85 = vunpack.c.l.bf16 %v21
  %v86 = vunpack.c.l.bf16 %v22
  %v87 = vunpack.c.l.bf16 %v23
  %v88 = vunpack.c.l.bf16 %v24
  %v89 = vunpack.c.l.bf16 %v25
  %v90 = vunpack.c.l.bf16 %v26
  %v91 = vunpack.c.l.bf16 %v27
  %v92 = vunpack.c.l.bf16 %v28
  %v93 = vunpack.c.l.bf16 %v29
  %v94 = vunpack.c.l.bf16 %v30
  %v95 = vunpack.c.l.bf16 %v31
  %v96 = vunpack.c.l.bf16 %v32
  %v97 = vunpack.c.l.bf16 %v33
  %v98 = vunpack.c.l.bf16 %v34
  %v99 = vunpack.c.l.bf16 %v35
  %v100 = vunpack.c.l.bf16 %v36
  %v101 = vunpack.c.l.bf16 %v37
  %v102 = vunpack.c.l.bf16 %v38
  %v103 = vunpack.c.l.bf16 %v39
  %v104 = vunpack.c.l.bf16 %v40
  %v105 = vunpack.c.l.bf16 %v41
  %v106 = vunpack.c.l.bf16 %v42
  %v107 = vunpack.c.l.bf16 %v43
  %v108 = vunpack.c.l.bf16 %v44
  %v109 = vunpack.c.l.bf16 %v45
  %v110 = vunpack.c.l.bf16 %v46
  %v111 = vunpack.c.l.bf16 %v47
  %v112 = vunpack.c.l.bf16 %v48
  %v113 = vunpack.c.l.bf16 %v49
  %v114 = vunpack.c.l.bf16 %v50
  %v115 = vunpack.c.l.bf16 %v51
  %v116 = vunpack.c.l.bf16 %v52
  %v117 = vunpack.c.l.bf16 %v53
  %v118 = vunpack.c.l.bf16 %v54
  %v119 = vunpack.c.l.bf16 %v55
  %v120 = vunpack.c.l.bf16 %v56
  %v121 = vunpack.c.l.bf16 %v57
  %v122 = vunpack.c.l.bf16 %v58
  %v123 = vunpack.c.l.bf16 %v59
  %v124 = vunpack.c.l.bf16 %v60
  %v125 = vunpack.c.l.bf16 %v61
  %v126 = vunpack.c.l.bf16 %v62
  %v127 = vunpack.c.l.bf16 %v63
  %v128 = vunpack.c.l.bf16 %v64
  %v129 = vunpack.c.l.bf16 %v65
  %v130 = vunpack.c.l.bf16 %v66
  %v131 = vunpack.c.l.bf16 %v67
  %v132 = vunpack.c.l.bf16 %v68
  %v133 = vunpack.c.l.bf16 %v69
  %v134 = vunpack.c.l.bf16 %v70
  %v135 = vunpack.c.l.bf16 %v71
  %v136 = vunpack.c.l.bf16 %v72
  %v137 = vunpack.c.l.bf16 %v73
  %v138 = vunpack.c.l.bf16 %v74
  %v139 = vunpack.c.l.bf16 %v75
  %v140 = vunpack.c.l.bf16 %v76
  %v141 = vunpack.c.l.bf16 %v77
  %v142 = vld [vmem:[%s1] sm:$0x1]
  %v144 = vperm.slane %v142, 0
  %v146 = vmul.f32 %v78, %v144
  %v147 = vmul.f32 %v79, %v144
  %v148 = vmul.f32 %v80, %v144
  %v149 = vmul.f32 %v81, %v144
  %v150 = vmul.f32 %v82, %v144
  %v151 = vmul.f32 %v83, %v144
  %v152 = vmul.f32 %v84, %v144
  %v153 = vmul.f32 %v85, %v144
  %v154 = vmul.f32 %v86, %v144
  %v155 = vmul.f32 %v87, %v144
  %v156 = vmul.f32 %v88, %v144
  %v157 = vmul.f32 %v89, %v144
  %v158 = vmul.f32 %v90, %v144
  %v159 = vmul.f32 %v91, %v144
  %v160 = vmul.f32 %v92, %v144
  %v161 = vmul.f32 %v93, %v144
  %v162 = vmul.f32 %v94, %v144
  %v163 = vmul.f32 %v95, %v144
  %v164 = vmul.f32 %v96, %v144
  %v165 = vmul.f32 %v97, %v144
  %v166 = vmul.f32 %v98, %v144
  %v167 = vmul.f32 %v99, %v144
  %v168 = vmul.f32 %v100, %v144
  %v169 = vmul.f32 %v101, %v144
  %v170 = vmul.f32 %v102, %v144
  %v171 = vmul.f32 %v103, %v144
  %v172 = vmul.f32 %v104, %v144
  %v173 = vmul.f32 %v105, %v144
  %v174 = vmul.f32 %v106, %v144
  %v175 = vmul.f32 %v107, %v144
  %v176 = vmul.f32 %v108, %v144
  %v177 = vmul.f32 %v109, %v144
  %v178 = vmul.f32 %v110, %v144
  %v179 = vmul.f32 %v111, %v144
  %v180 = vmul.f32 %v112, %v144
  %v181 = vmul.f32 %v113, %v144
  %v182 = vmul.f32 %v114, %v144
  %v183 = vmul.f32 %v115, %v144
  %v184 = vmul.f32 %v116, %v144
  %v185 = vmul.f32 %v117, %v144
  %v186 = vmul.f32 %v118, %v144
  %v187 = vmul.f32 %v119, %v144
  %v188 = vmul.f32 %v120, %v144
  %v189 = vmul.f32 %v121, %v144
  %v190 = vmul.f32 %v122, %v144
  %v191 = vmul.f32 %v123, %v144
  %v192 = vmul.f32 %v124, %v144
  %v193 = vmul.f32 %v125, %v144
  %v194 = vmul.f32 %v126, %v144
  %v195 = vmul.f32 %v127, %v144
  %v196 = vmul.f32 %v128, %v144
  %v197 = vmul.f32 %v129, %v144
  %v198 = vmul.f32 %v130, %v144
  %v199 = vmul.f32 %v131, %v144
  %v200 = vmul.f32 %v132, %v144
  %v201 = vmul.f32 %v133, %v144
  %v202 = vmul.f32 %v134, %v144
  %v203 = vmul.f32 %v135, %v144
  %v204 = vmul.f32 %v136, %v144
  %v205 = vmul.f32 %v137, %v144
  %v206 = vmul.f32 %v138, %v144
  %v207 = vmul.f32 %v139, %v144
  %v208 = vmul.f32 %v140, %v144
  %v209 = vmul.f32 %v141, %v144
  %v210 = vld [vmem:[%s2] sm:$0x1]
  %v212 = vperm.slane %v210, 0
  %v214 = vadd.f32 %v146, %v212
  %v215 = vadd.f32 %v147, %v212
  %v216 = vadd.f32 %v148, %v212
  %v217 = vadd.f32 %v149, %v212
  %v218 = vadd.f32 %v150, %v212
  %v219 = vadd.f32 %v151, %v212
  %v220 = vadd.f32 %v152, %v212
  %v221 = vadd.f32 %v153, %v212
  %v222 = vadd.f32 %v154, %v212
  %v223 = vadd.f32 %v155, %v212
  %v224 = vadd.f32 %v156, %v212
  %v225 = vadd.f32 %v157, %v212
  %v226 = vadd.f32 %v158, %v212
  %v227 = vadd.f32 %v159, %v212
  %v228 = vadd.f32 %v160, %v212
  %v229 = vadd.f32 %v161, %v212
  %v230 = vadd.f32 %v162, %v212
  %v231 = vadd.f32 %v163, %v212
  %v232 = vadd.f32 %v164, %v212
  %v233 = vadd.f32 %v165, %v212
  %v234 = vadd.f32 %v166, %v212
  %v235 = vadd.f32 %v167, %v212
  %v236 = vadd.f32 %v168, %v212
  %v237 = vadd.f32 %v169, %v212
  %v238 = vadd.f32 %v170, %v212
  %v239 = vadd.f32 %v171, %v212
  %v240 = vadd.f32 %v172, %v212
  %v241 = vadd.f32 %v173, %v212
  %v242 = vadd.f32 %v174, %v212
  %v243 = vadd.f32 %v175, %v212
  %v244 = vadd.f32 %v176, %v212
  %v245 = vadd.f32 %v177, %v212
  %v246 = vadd.f32 %v178, %v212
  %v247 = vadd.f32 %v179, %v212
  %v248 = vadd.f32 %v180, %v212
  %v249 = vadd.f32 %v181, %v212
  %v250 = vadd.f32 %v182, %v212
  %v251 = vadd.f32 %v183, %v212
  %v252 = vadd.f32 %v184, %v212
  %v253 = vadd.f32 %v185, %v212
  %v254 = vadd.f32 %v186, %v212
  %v255 = vadd.f32 %v187, %v212
  %v256 = vadd.f32 %v188, %v212
  %v257 = vadd.f32 %v189, %v212
  %v258 = vadd.f32 %v190, %v212
  %v259 = vadd.f32 %v191, %v212
  %v260 = vadd.f32 %v192, %v212
  %v261 = vadd.f32 %v193, %v212
  %v262 = vadd.f32 %v194, %v212
  %v263 = vadd.f32 %v195, %v212
  %v264 = vadd.f32 %v196, %v212
  %v265 = vadd.f32 %v197, %v212
  %v266 = vadd.f32 %v198, %v212
  %v267 = vadd.f32 %v199, %v212
  %v268 = vadd.f32 %v200, %v212
  %v269 = vadd.f32 %v201, %v212
  %v270 = vadd.f32 %v202, %v212
  %v271 = vadd.f32 %v203, %v212
  %v272 = vadd.f32 %v204, %v212
  %v273 = vadd.f32 %v205, %v212
  %v274 = vadd.f32 %v206, %v212
  %v275 = vadd.f32 %v207, %v212
  %v276 = vadd.f32 %v208, %v212
  %v277 = vadd.f32 %v209, %v212
  %v278 = vmax.f32 %v214, 0.0
  %v279 = vmax.f32 %v215, 0.0
  %v280 = vmax.f32 %v216, 0.0
  %v281 = vmax.f32 %v217, 0.0
  %v282 = vmax.f32 %v218, 0.0
  %v283 = vmax.f32 %v219, 0.0
  %v284 = vmax.f32 %v220, 0.0
  %v285 = vmax.f32 %v221, 0.0
  %v286 = vmax.f32 %v222, 0.0
  %v287 = vmax.f32 %v223, 0.0
  %v288 = vmax.f32 %v224, 0.0
  %v289 = vmax.f32 %v225, 0.0
  %v290 = vmax.f32 %v226, 0.0
  %v291 = vmax.f32 %v227, 0.0
  %v292 = vmax.f32 %v228, 0.0
  %v293 = vmax.f32 %v229, 0.0
  %v294 = vmax.f32 %v230, 0.0
  %v295 = vmax.f32 %v231, 0.0
  %v296 = vmax.f32 %v232, 0.0
  %v297 = vmax.f32 %v233, 0.0
  %v298 = vmax.f32 %v234, 0.0
  %v299 = vmax.f32 %v235, 0.0
  %v300 = vmax.f32 %v236, 0.0
  %v301 = vmax.f32 %v237, 0.0
  %v302 = vmax.f32 %v238, 0.0
  %v303 = vmax.f32 %v239, 0.0
  %v304 = vmax.f32 %v240, 0.0
  %v305 = vmax.f32 %v241, 0.0
  %v306 = vmax.f32 %v242, 0.0
  %v307 = vmax.f32 %v243, 0.0
  %v308 = vmax.f32 %v244, 0.0
  %v309 = vmax.f32 %v245, 0.0
  %v310 = vmax.f32 %v246, 0.0
  %v311 = vmax.f32 %v247, 0.0
  %v312 = vmax.f32 %v248, 0.0
  %v313 = vmax.f32 %v249, 0.0
  %v314 = vmax.f32 %v250, 0.0
  %v315 = vmax.f32 %v251, 0.0
  %v316 = vmax.f32 %v252, 0.0
  %v317 = vmax.f32 %v253, 0.0
  %v318 = vmax.f32 %v254, 0.0
  %v319 = vmax.f32 %v255, 0.0
  %v320 = vmax.f32 %v256, 0.0
  %v321 = vmax.f32 %v257, 0.0
  %v322 = vmax.f32 %v258, 0.0
  %v323 = vmax.f32 %v259, 0.0
  %v324 = vmax.f32 %v260, 0.0
  %v325 = vmax.f32 %v261, 0.0
  %v326 = vmax.f32 %v262, 0.0
  %v327 = vmax.f32 %v263, 0.0
  %v328 = vmax.f32 %v264, 0.0
  %v329 = vmax.f32 %v265, 0.0
  %v330 = vmax.f32 %v266, 0.0
  %v331 = vmax.f32 %v267, 0.0
  %v332 = vmax.f32 %v268, 0.0
  %v333 = vmax.f32 %v269, 0.0
  %v334 = vmax.f32 %v270, 0.0
  %v335 = vmax.f32 %v271, 0.0
  %v336 = vmax.f32 %v272, 0.0
  %v337 = vmax.f32 %v273, 0.0
  %v338 = vmax.f32 %v274, 0.0
  %v339 = vmax.f32 %v275, 0.0
  %v340 = vmax.f32 %v276, 0.0
  %v341 = vmax.f32 %v277, 0.0
  %v342 = vpack.c.bf16 %v278, %v278
  %v343 = vpack.c.bf16 %v279, %v279
  %v344 = vpack.c.bf16 %v280, %v280
  %v345 = vpack.c.bf16 %v281, %v281
  %v346 = vpack.c.bf16 %v282, %v282
  %v347 = vpack.c.bf16 %v283, %v283
  %v348 = vpack.c.bf16 %v284, %v284
  %v349 = vpack.c.bf16 %v285, %v285
  %v350 = vpack.c.bf16 %v286, %v286
  %v351 = vpack.c.bf16 %v287, %v287
  %v352 = vpack.c.bf16 %v288, %v288
  %v353 = vpack.c.bf16 %v289, %v289
  %v354 = vpack.c.bf16 %v290, %v290
  %v355 = vpack.c.bf16 %v291, %v291
  %v356 = vpack.c.bf16 %v292, %v292
  %v357 = vpack.c.bf16 %v293, %v293
  %v358 = vpack.c.bf16 %v294, %v294
  %v359 = vpack.c.bf16 %v295, %v295
  %v360 = vpack.c.bf16 %v296, %v296
  %v361 = vpack.c.bf16 %v297, %v297
  %v362 = vpack.c.bf16 %v298, %v298
  %v363 = vpack.c.bf16 %v299, %v299
  %v364 = vpack.c.bf16 %v300, %v300
  %v365 = vpack.c.bf16 %v301, %v301
  %v366 = vpack.c.bf16 %v302, %v302
  %v367 = vpack.c.bf16 %v303, %v303
  %v368 = vpack.c.bf16 %v304, %v304
  %v369 = vpack.c.bf16 %v305, %v305
  %v370 = vpack.c.bf16 %v306, %v306
  %v371 = vpack.c.bf16 %v307, %v307
  %v372 = vpack.c.bf16 %v308, %v308
  %v373 = vpack.c.bf16 %v309, %v309
  %v374 = vpack.c.bf16 %v310, %v310
  %v375 = vpack.c.bf16 %v311, %v311
  %v376 = vpack.c.bf16 %v312, %v312
  %v377 = vpack.c.bf16 %v313, %v313
  %v378 = vpack.c.bf16 %v314, %v314
  %v379 = vpack.c.bf16 %v315, %v315
  %v380 = vpack.c.bf16 %v316, %v316
  %v381 = vpack.c.bf16 %v317, %v317
  %v382 = vpack.c.bf16 %v318, %v318
  %v383 = vpack.c.bf16 %v319, %v319
  %v384 = vpack.c.bf16 %v320, %v320
  %v385 = vpack.c.bf16 %v321, %v321
  %v386 = vpack.c.bf16 %v322, %v322
  %v387 = vpack.c.bf16 %v323, %v323
  %v388 = vpack.c.bf16 %v324, %v324
  %v389 = vpack.c.bf16 %v325, %v325
  %v390 = vpack.c.bf16 %v326, %v326
  %v391 = vpack.c.bf16 %v327, %v327
  %v392 = vpack.c.bf16 %v328, %v328
  %v393 = vpack.c.bf16 %v329, %v329
  %v394 = vpack.c.bf16 %v330, %v330
  %v395 = vpack.c.bf16 %v331, %v331
  %v396 = vpack.c.bf16 %v332, %v332
  %v397 = vpack.c.bf16 %v333, %v333
  %v398 = vpack.c.bf16 %v334, %v334
  %v399 = vpack.c.bf16 %v335, %v335
  %v400 = vpack.c.bf16 %v336, %v336
  %v401 = vpack.c.bf16 %v337, %v337
  %v402 = vpack.c.bf16 %v338, %v338
  %v403 = vpack.c.bf16 %v339, %v339
  %v404 = vpack.c.bf16 %v340, %v340
  %v405 = vpack.c.bf16 %v341, %v341
  %406 = vst [vmem:[%s3] sm:$0xf] %v342
  %407 = vst [vmem:[%s3 + $0x4] sm:$0xf] %v343
  %408 = vst [vmem:[%s3 + $0x8] sm:$0xf] %v344
  %409 = vst [vmem:[%s3 + $0xc] sm:$0xf] %v345
  %410 = vst [vmem:[%s3 + $0x10] sm:$0xf] %v346
  %411 = vst [vmem:[%s3 + $0x14] sm:$0xf] %v347
  %412 = vst [vmem:[%s3 + $0x18] sm:$0xf] %v348
  %413 = vst [vmem:[%s3 + $0x1c] sm:$0xf] %v349
  %414 = vst [vmem:[%s3 + $0x20] sm:$0xf] %v350
  %415 = vst [vmem:[%s3 + $0x24] sm:$0xf] %v351
  %416 = vst [vmem:[%s3 + $0x28] sm:$0xf] %v352
  %417 = vst [vmem:[%s3 + $0x2c] sm:$0xf] %v353
  %418 = vst [vmem:[%s3 + $0x30] sm:$0xf] %v354
  %419 = vst [vmem:[%s3 + $0x34] sm:$0xf] %v355
  %420 = vst [vmem:[%s3 + $0x38] sm:$0xf] %v356
  %421 = vst [vmem:[%s3 + $0x3c] sm:$0xf] %v357
  %422 = vst [vmem:[%s3 + $0x40] sm:$0xf] %v358
  %423 = vst [vmem:[%s3 + $0x44] sm:$0xf] %v359
  %424 = vst [vmem:[%s3 + $0x48] sm:$0xf] %v360
  %425 = vst [vmem:[%s3 + $0x4c] sm:$0xf] %v361
  %426 = vst [vmem:[%s3 + $0x50] sm:$0xf] %v362
  %427 = vst [vmem:[%s3 + $0x54] sm:$0xf] %v363
  %428 = vst [vmem:[%s3 + $0x58] sm:$0xf] %v364
  %429 = vst [vmem:[%s3 + $0x5c] sm:$0xf] %v365
  %430 = vst [vmem:[%s3 + $0x60] sm:$0xf] %v366
  %431 = vst [vmem:[%s3 + $0x64] sm:$0xf] %v367
  %432 = vst [vmem:[%s3 + $0x68] sm:$0xf] %v368
  %433 = vst [vmem:[%s3 + $0x6c] sm:$0xf] %v369
  %434 = vst [vmem:[%s3 + $0x70] sm:$0xf] %v370
  %435 = vst [vmem:[%s3 + $0x74] sm:$0xf] %v371
  %436 = vst [vmem:[%s3 + $0x78] sm:$0xf] %v372
  %437 = vst [vmem:[%s3 + $0x7c] sm:$0xf] %v373
  %438 = vst [vmem:[%s3 + $0x80] sm:$0xf] %v374
  %439 = vst [vmem:[%s3 + $0x84] sm:$0xf] %v375
  %440 = vst [vmem:[%s3 + $0x88] sm:$0xf] %v376
  %441 = vst [vmem:[%s3 + $0x8c] sm:$0xf] %v377
  %442 = vst [vmem:[%s3 + $0x90] sm:$0xf] %v378
  %443 = vst [vmem:[%s3 + $0x94] sm:$0xf] %v379
  %444 = vst [vmem:[%s3 + $0x98] sm:$0xf] %v380
  %445 = vst [vmem:[%s3 + $0x9c] sm:$0xf] %v381
  %446 = vst [vmem:[%s3 + $0xa0] sm:$0xf] %v382
  %447 = vst [vmem:[%s3 + $0xa4] sm:$0xf] %v383
  %448 = vst [vmem:[%s3 + $0xa8] sm:$0xf] %v384
  %449 = vst [vmem:[%s3 + $0xac] sm:$0xf] %v385
  %450 = vst [vmem:[%s3 + $0xb0] sm:$0xf] %v386
  %451 = vst [vmem:[%s3 + $0xb4] sm:$0xf] %v387
  %452 = vst [vmem:[%s3 + $0xb8] sm:$0xf] %v388
  %453 = vst [vmem:[%s3 + $0xbc] sm:$0xf] %v389
  %454 = vst [vmem:[%s3 + $0xc0] sm:$0xf] %v390
  %455 = vst [vmem:[%s3 + $0xc4] sm:$0xf] %v391
  %456 = vst [vmem:[%s3 + $0xc8] sm:$0xf] %v392
  %457 = vst [vmem:[%s3 + $0xcc] sm:$0xf] %v393
  %458 = vst [vmem:[%s3 + $0xd0] sm:$0xf] %v394
  %459 = vst [vmem:[%s3 + $0xd4] sm:$0xf] %v395
  %460 = vst [vmem:[%s3 + $0xd8] sm:$0xf] %v396
  %461 = vst [vmem:[%s3 + $0xdc] sm:$0xf] %v397
  %462 = vst [vmem:[%s3 + $0xe0] sm:$0xf] %v398
  %463 = vst [vmem:[%s3 + $0xe4] sm:$0xf] %v399
  %464 = vst [vmem:[%s3 + $0xe8] sm:$0xf] %v400
  %465 = vst [vmem:[%s3 + $0xec] sm:$0xf] %v401
  %466 = vst [vmem:[%s3 + $0xf0] sm:$0xf] %v402
  %467 = vst [vmem:[%s3 + $0xf4] sm:$0xf] %v403
  %468 = vst [vmem:[%s3 + $0xf8] sm:$0xf] %v404
  %469 = vst [vmem:[%s3 + $0xfc] sm:$0xf] %v405
  // Predicated region
  $region14: #{network_block_forward.11} parent=0 // pred_check
    _
  $region15: #{network_block_forward.11} parent=0 // pred_check_branch
    %471 = sbr.rel (0) target = $region17
  $region16: #{network_block_forward.11} parent=0 // pred_region
    _
  $region17: #{network_block_forward.11} parent=0 // pred_fallthru
    _
  // Predicated region
  $region18: #{network_block_forward.11} parent=0 // pred_check
    _
  $region19: #{network_block_forward.11} parent=0 // pred_check_branch
    %473 = sbr.rel (0) target = $region21
  $region20: #{network_block_forward.11} parent=0 // pred_region
    _
  $region21: #{network_block_forward.11} parent=0 // pred_fallthru
    _

// kernel: network_block_forward.14
$region0: #{network_block_forward.14}
  #allocation0 [shape = 'u32[]', space=smem, size = 0x4, offset = 0x4, fixed_abs, tag = 'smem constant byte address 0x4 - core index']
  #allocation1 [shape = 'u32[72,128]{1,0:T(1,128)}', space=vmem, size = 0x9000, scoped, tag = 'internal scratch']
  %s0 = inlined_call_operand.vmem [shape: bf16[128,128], index: 0, kind: input, shape index: {}]
  %s1 = inlined_call_operand.vmem [shape: f32[1,8,128], index: 1, kind: output, shape index: {0}]
  %s2 = inlined_call_operand.vmem [shape: f32[1,8,128], index: 2, kind: output, shape index: {1}]
  %3 = xla_tuple %s1, %s2
  %s4 = sld [smem:[#allocation0]]
  $region22: #{network_block_forward.14} parent=0
    _
  %s6 = ssub.s32 1, %s4
  %s7 = scalar_select 0, %s6, %s4
  // Predicated region
  $region2: #{network_block_forward.14} parent=0 // pred_check
    _
  $region3: #{network_block_forward.14} parent=0 // pred_check_branch
    %9 = sbr.rel (0) target = $region5
  $region4: #{network_block_forward.14} parent=0 // pred_region
    _
  $region5: #{network_block_forward.14} parent=0 // pred_fallthru
    _
  %v10 = vld [vmem:[%s0] sm:$0xf]
  %v11 = vld [vmem:[%s0 + $0x4] sm:$0xf]
  %v12 = vld [vmem:[%s0 + $0x8] sm:$0xf]
  %v13 = vld [vmem:[%s0 + $0xc] sm:$0xf]
  %v14 = vld [vmem:[%s0 + $0x10] sm:$0xf]
  %v15 = vld [vmem:[%s0 + $0x14] sm:$0xf]
  %v16 = vld [vmem:[%s0 + $0x18] sm:$0xf]
  %v17 = vld [vmem:[%s0 + $0x1c] sm:$0xf]
  %v18 = vld [vmem:[%s0 + $0x20] sm:$0xf]
  %v19 = vld [vmem:[%s0 + $0x24] sm:$0xf]
  %v20 = vld [vmem:[%s0 + $0x28] sm:$0xf]
  %v21 = vld [vmem:[%s0 + $0x2c] sm:$0xf]
  %v22 = vld [vmem:[%s0 + $0x30] sm:$0xf]
  %v23 = vld [vmem:[%s0 + $0x34] sm:$0xf]
  %v24 = vld [vmem:[%s0 + $0x38] sm:$0xf]
  %v25 = vld [vmem:[%s0 + $0x3c] sm:$0xf]
  %v26 = vunpack.c.l.bf16 %v10
  %v27 = vunpack.c.l.bf16 %v11
  %v28 = vunpack.c.l.bf16 %v12
  %v29 = vunpack.c.l.bf16 %v13
  %v30 = vunpack.c.l.bf16 %v14
  %v31 = vunpack.c.l.bf16 %v15
  %v32 = vunpack.c.l.bf16 %v16
  %v33 = vunpack.c.l.bf16 %v17
  %v34 = vunpack.c.l.bf16 %v18
  %v35 = vunpack.c.l.bf16 %v19
  %v36 = vunpack.c.l.bf16 %v20
  %v37 = vunpack.c.l.bf16 %v21
  %v38 = vunpack.c.l.bf16 %v22
  %v39 = vunpack.c.l.bf16 %v23
  %v40 = vunpack.c.l.bf16 %v24
  %v41 = vunpack.c.l.bf16 %v25
  %v42 = vadd.f32 %v26, %v27
  %v43 = vadd.f32 %v42, %v28
  %v44 = vadd.f32 %v43, %v29
  %v45 = vadd.f32 %v44, %v30
  %v46 = vadd.f32 %v45, %v31
  %v47 = vadd.f32 %v46, %v32
  %v48 = vadd.f32 %v47, %v33
  %v49 = vadd.f32 %v48, %v34
  %v50 = vadd.f32 %v49, %v35
  %v51 = vadd.f32 %v50, %v36
  %v52 = vadd.f32 %v51, %v37
  %v53 = vadd.f32 %v52, %v38
  %v54 = vadd.f32 %v53, %v39
  %v55 = vadd.f32 %v54, %v40
  %v56 = vadd.f32 %v55, %v41
  %57 = vst [vmem:[%s1] sm:$0xff] %v56
  %v58 = vmul.f32 %v26, %v26
  %v59 = vmul.f32 %v27, %v27
  %v60 = vmul.f32 %v28, %v28
  %v61 = vmul.f32 %v29, %v29
  %v62 = vmul.f32 %v30, %v30
  %v63 = vmul.f32 %v31, %v31
  %v64 = vmul.f32 %v32, %v32
  %v65 = vmul.f32 %v33, %v33
  %v66 = vmul.f32 %v34, %v34
  %v67 = vmul.f32 %v35, %v35
  %v68 = vmul.f32 %v36, %v36
  %v69 = vmul.f32 %v37, %v37
  %v70 = vmul.f32 %v38, %v38
  %v71 = vmul.f32 %v39, %v39
  %v72 = vmul.f32 %v40, %v40
  %v73 = vmul.f32 %v41, %v41
  %v74 = vadd.f32 %v58, %v59
  %v75 = vadd.f32 %v74, %v60
  %v76 = vadd.f32 %v75, %v61
  %v77 = vadd.f32 %v76, %v62
  %v78 = vadd.f32 %v77, %v63
  %v79 = vadd.f32 %v78, %v64
  %v80 = vadd.f32 %v79, %v65
  %v81 = vadd.f32 %v80, %v66
  %v82 = vadd.f32 %v81, %v67
  %v83 = vadd.f32 %v82, %v68
  %v84 = vadd.f32 %v83, %v69
  %v85 = vadd.f32 %v84, %v70
  %v86 = vadd.f32 %v85, %v71
  %v87 = vadd.f32 %v86, %v72
  %v88 = vadd.f32 %v87, %v73
  %89 = vst [vmem:[%s2] sm:$0xff] %v88
  // Predicated region
  $region6: #{network_block_forward.14} parent=0 // pred_check
    _
  $region7: #{network_block_forward.14} parent=0 // pred_check_branch
    %91 = sbr.rel (0) target = $region9
  $region8: #{network_block_forward.14} parent=0 // pred_region
    _
  $region9: #{network_block_forward.14} parent=0 // pred_fallthru
    _
  // Predicated region
  $region10: #{network_block_forward.14} parent=0 // pred_check
    _
  $region11: #{network_block_forward.14} parent=0 // pred_check_branch
    %93 = sbr.rel (0) target = $region13
  $region12: #{network_block_forward.14} parent=0 // pred_region
    _
  $region13: #{network_block_forward.14} parent=0 // pred_fallthru
    _
  // Predicated region
  $region14: #{network_block_forward.14} parent=0 // pred_check
    _
  $region15: #{network_block_forward.14} parent=0 // pred_check_branch
    %95 = sbr.rel (0) target = $region17
  $region16: #{network_block_forward.14} parent=0 // pred_region
    _
  $region17: #{network_block_forward.14} parent=0 // pred_fallthru
    _
  // Predicated region
  $region18: #{network_block_forward.14} parent=0 // pred_check
    _
  $region19: #{network_block_forward.14} parent=0 // pred_check_branch
    %97 = sbr.rel (0) target = $region21
  $region20: #{network_block_forward.14} parent=0 // pred_region
    _
  $region21: #{network_block_forward.14} parent=0 // pred_fallthru
    _

// kernel: network_block_forward.12
$region0: #{network_block_forward.12}
  #allocation0 [shape = 'u32[]', space=smem, size = 0x4, offset = 0x4, fixed_abs, tag = 'smem constant byte address 0x4 - core index']
  #allocation1 [shape = 'u32[72,128]{1,0:T(1,128)}', space=vmem, size = 0x9000, scoped, tag = 'internal scratch']
  %s0 = inlined_call_operand.vmem [shape: bf16[128,1152], index: 0, kind: input, shape index: {}]
  %s1 = inlined_call_operand.vmem [shape: bf16[1152,128], index: 1, kind: input, shape index: {}]
  %s2 = inlined_call_operand.vmem [shape: bf16[128,128], index: 2, kind: output, shape index: {}]
  %s3 = sld [smem:[#allocation0]]
  $region18: #{network_block_forward.12} parent=0
    _
  %s5 = ssub.s32 1, %s3
  %s6 = scalar_select 0, %s5, %s3
  // Predicated region
  $region2: #{network_block_forward.12} parent=0 // pred_check
    _
  $region3: #{network_block_forward.12} parent=0 // pred_check_branch
    %8 = sbr.rel (0) target = $region5
  $region4: #{network_block_forward.12} parent=0 // pred_region
    _
  $region5: #{network_block_forward.12} parent=0 // pred_fallthru
    _
  // Predicated region
  $region6: #{network_block_forward.12} parent=0 // pred_check
    _
  $region7: #{network_block_forward.12} parent=0 // pred_check_branch
    %10 = sbr.rel (0) target = $region9
  $region8: #{network_block_forward.12} parent=0 // pred_region
    _
  $region9: #{network_block_forward.12} parent=0 // pred_fallthru
    _
  %v11 = vld [vmem:[%s0] sm:$0xff]
  %v12 = vld [vmem:[%s0 + $0x8] sm:$0xff]
  %v13 = vld [vmem:[%s0 + $0x10] sm:$0xff]
  %v14 = vld [vmem:[%s0 + $0x18] sm:$0xff]
  %v15 = vld [vmem:[%s0 + $0x20] sm:$0xf]
  %v16 = vld [vmem:[%s0 + $0x24] sm:$0xff]
  %v17 = vld [vmem:[%s0 + $0x2c] sm:$0xff]
  %v18 = vld [vmem:[%s0 + $0x34] sm:$0xff]
  %v19 = vld [vmem:[%s0 + $0x3c] sm:$0xff]
  %v20 = vld [vmem:[%s0 + $0x44] sm:$0xf]
  %v21 = vld [vmem:[%s0 + $0x48] sm:$0xff]
  %v22 = vld [vmem:[%s0 + $0x50] sm:$0xff]
  %v23 = vld [vmem:[%s0 + $0x58] sm:$0xff]
  %v24 = vld [vmem:[%s0 + $0x60] sm:$0xff]
  %v25 = vld [vmem:[%s0 + $0x68] sm:$0xf]
  %v26 = vld [vmem:[%s0 + $0x6c] sm:$0xff]
  %v27 = vld [vmem:[%s0 + $0x74] sm:$0xff]
  %v28 = vld [vmem:[%s0 + $0x7c] sm:$0xff]
  %v29 = vld [vmem:[%s0 + $0x84] sm:$0xff]
  %v30 = vld [vmem:[%s0 + $0x8c] sm:$0xf]
  %v31 = vld [vmem:[%s0 + $0x90] sm:$0xff]
  %v32 = vld [vmem:[%s0 + $0x98] sm:$0xff]
  %v33 = vld [vmem:[%s0 + $0xa0] sm:$0xff]
  %v34 = vld [vmem:[%s0 + $0xa8] sm:$0xff]
  %v35 = vld [vmem:[%s0 + $0xb0] sm:$0xf]
  %v36 = vld [vmem:[%s0 + $0xb4] sm:$0xff]
  %v37 = vld [vmem:[%s0 + $0xbc] sm:$0xff]
  %v38 = vld [vmem:[%s0 + $0xc4] sm:$0xff]
  %v39 = vld [vmem:[%s0 + $0xcc] sm:$0xff]
  %v40 = vld [vmem:[%s0 + $0xd4] sm:$0xf]
  %v41 = vld [vmem:[%s0 + $0xd8] sm:$0xff]
  %v42 = vld [vmem:[%s0 + $0xe0] sm:$0xff]
  %v43 = vld [vmem:[%s0 + $0xe8] sm:$0xff]
  %v44 = vld [vmem:[%s0 + $0xf0] sm:$0xff]
  %v45 = vld [vmem:[%s0 + $0xf8] sm:$0xf]
  %v46 = vld [vmem:[%s0 + $0xfc] sm:$0xff]
  %v47 = vld [vmem:[%s0 + $0x104] sm:$0xff]
  %v48 = vld [vmem:[%s0 + $0x10c] sm:$0xff]
  %v49 = vld [vmem:[%s0 + $0x114] sm:$0xff]
  %v50 = vld [vmem:[%s0 + $0x11c] sm:$0xf]
  %v51 = vld [vmem:[%s0 + $0x120] sm:$0xff]
  %v52 = vld [vmem:[%s0 + $0x128] sm:$0xff]
  %v53 = vld [vmem:[%s0 + $0x130] sm:$0xff]
  %v54 = vld [vmem:[%s0 + $0x138] sm:$0xff]
  %v55 = vld [vmem:[%s0 + $0x140] sm:$0xf]
  %v56 = vld [vmem:[%s0 + $0x144] sm:$0xff]
  %v57 = vld [vmem:[%s0 + $0x14c] sm:$0xff]
  %v58 = vld [vmem:[%s0 + $0x154] sm:$0xff]
  %v59 = vld [vmem:[%s0 + $0x15c] sm:$0xff]
  %v60 = vld [vmem:[%s0 + $0x164] sm:$0xf]
  %v61 = vld [vmem:[%s0 + $0x168] sm:$0xff]
  %v62 = vld [vmem:[%s0 + $0x170] sm:$0xff]
  %v63 = vld [vmem:[%s0 + $0x178] sm:$0xff]
  %v64 = vld [vmem:[%s0 + $0x180] sm:$0xff]
  %v65 = vld [vmem:[%s0 + $0x188] sm:$0xf]
  %v66 = vld [vmem:[%s0 + $0x18c] sm:$0xff]
  %v67 = vld [vmem:[%s0 + $0x194] sm:$0xff]
  %v68 = vld [vmem:[%s0 + $0x19c] sm:$0xff]
  %v69 = vld [vmem:[%s0 + $0x1a4] sm:$0xff]
  %v70 = vld [vmem:[%s0 + $0x1ac] sm:$0xf]
  %v71 = vld [vmem:[%s0 + $0x1b0] sm:$0xff]
  %v72 = vld [vmem:[%s0 + $0x1b8] sm:$0xff]
  %v73 = vld [vmem:[%s0 + $0x1c0] sm:$0xff]
  %v74 = vld [vmem:[%s0 + $0x1c8] sm:$0xff]
  %v75 = vld [vmem:[%s0 + $0x1d0] sm:$0xf]
  %v76 = vld [vmem:[%s0 + $0x1d4] sm:$0xff]
  %v77 = vld [vmem:[%s0 + $0x1dc] sm:$0xff]
  %v78 = vld [vmem:[%s0 + $0x1e4] sm:$0xff]
  %v79 = vld [vmem:[%s0 + $0x1ec] sm:$0xff]
  %v80 = vld [vmem:[%s0 + $0x1f4] sm:$0xf]
  %v81 = vld [vmem:[%s0 + $0x1f8] sm:$0xff]
  %v82 = vld [vmem:[%s0 + $0x200] sm:$0xff]
  %v83 = vld [vmem:[%s0 + $0x208] sm:$0xff]
  %v84 = vld [vmem:[%s0 + $0x210] sm:$0xff]
  %v85 = vld [vmem:[%s0 + $0x218] sm:$0xf]
  %v86 = vld [vmem:[%s0 + $0x21c] sm:$0xff]
  %v87 = vld [vmem:[%s0 + $0x224] sm:$0xff]
  %v88 = vld [vmem:[%s0 + $0x22c] sm:$0xff]
  %v89 = vld [vmem:[%s0 + $0x234] sm:$0xff]
  %v90 = vld [vmem:[%s0 + $0x23c] sm:$0xf]
  %v91 = vld [vmem:[%s1] sm:$0xf]
  %v92 = vld [vmem:[%s1 + $0x4] sm:$0xf]
  %v93 = vld [vmem:[%s1 + $0x8] sm:$0xf]
  %v94 = vld [vmem:[%s1 + $0xc] sm:$0xf]
  %v95 = vld [vmem:[%s1 + $0x10] sm:$0xf]
  %v96 = vld [vmem:[%s1 + $0x14] sm:$0xf]
  %v97 = vld [vmem:[%s1 + $0x18] sm:$0xf]
  %v98 = vld [vmem:[%s1 + $0x1c] sm:$0xf]
  %v99 = vld [vmem:[%s1 + $0x20] sm:$0xf]
  %v100 = vld [vmem:[%s1 + $0x24] sm:$0xf]
  %v101 = vld [vmem:[%s1 + $0x28] sm:$0xf]
  %v102 = vld [vmem:[%s1 + $0x2c] sm:$0xf]
  %v103 = vld [vmem:[%s1 + $0x30] sm:$0xf]
  %v104 = vld [vmem:[%s1 + $0x34] sm:$0xf]
  %v105 = vld [vmem:[%s1 + $0x38] sm:$0xf]
  %v106 = vld [vmem:[%s1 + $0x3c] sm:$0xf]
  %v107 = vld [vmem:[%s1 + $0x40] sm:$0xf]
  %v108 = vld [vmem:[%s1 + $0x44] sm:$0xf]
  %v109 = vld [vmem:[%s1 + $0x48] sm:$0xf]
  %v110 = vld [vmem:[%s1 + $0x4c] sm:$0xf]
  %v111 = vld [vmem:[%s1 + $0x50] sm:$0xf]
  %v112 = vld [vmem:[%s1 + $0x54] sm:$0xf]
  %v113 = vld [vmem:[%s1 + $0x58] sm:$0xf]
  %v114 = vld [vmem:[%s1 + $0x5c] sm:$0xf]
  %v115 = vld [vmem:[%s1 + $0x60] sm:$0xf]
  %v116 = vld [vmem:[%s1 + $0x64] sm:$0xf]
  %v117 = vld [vmem:[%s1 + $0x68] sm:$0xf]
  %v118 = vld [vmem:[%s1 + $0x6c] sm:$0xf]
  %v119 = vld [vmem:[%s1 + $0x70] sm:$0xf]
  %v120 = vld [vmem:[%s1 + $0x74] sm:$0xf]
  %v121 = vld [vmem:[%s1 + $0x78] sm:$0xf]
  %v122 = vld [vmem:[%s1 + $0x7c] sm:$0xf]
  %v123 = vld [vmem:[%s1 + $0x80] sm:$0xf]
  %v124 = vld [vmem:[%s1 + $0x84] sm:$0xf]
  %v125 = vld [vmem:[%s1 + $0x88] sm:$0xf]
  %v126 = vld [vmem:[%s1 + $0x8c] sm:$0xf]
  %v127 = vld [vmem:[%s1 + $0x90] sm:$0xf]
  %v128 = vld [vmem:[%s1 + $0x94] sm:$0xf]
  %v129 = vld [vmem:[%s1 + $0x98] sm:$0xf]
  %v130 = vld [vmem:[%s1 + $0x9c] sm:$0xf]
  %v131 = vld [vmem:[%s1 + $0xa0] sm:$0xf]
  %v132 = vld [vmem:[%s1 + $0xa4] sm:$0xf]
  %v133 = vld [vmem:[%s1 + $0xa8] sm:$0xf]
  %v134 = vld [vmem:[%s1 + $0xac] sm:$0xf]
  %v135 = vld [vmem:[%s1 + $0xb0] sm:$0xf]
  %v136 = vld [vmem:[%s1 + $0xb4] sm:$0xf]
  %v137 = vld [vmem:[%s1 + $0xb8] sm:$0xf]
  %v138 = vld [vmem:[%s1 + $0xbc] sm:$0xf]
  %v139 = vld [vmem:[%s1 + $0xc0] sm:$0xf]
  %v140 = vld [vmem:[%s1 + $0xc4] sm:$0xf]
  %v141 = vld [vmem:[%s1 + $0xc8] sm:$0xf]
  %v142 = vld [vmem:[%s1 + $0xcc] sm:$0xf]
  %v143 = vld [vmem:[%s1 + $0xd0] sm:$0xf]
  %v144 = vld [vmem:[%s1 + $0xd4] sm:$0xf]
  %v145 = vld [vmem:[%s1 + $0xd8] sm:$0xf]
  %v146 = vld [vmem:[%s1 + $0xdc] sm:$0xf]
  %v147 = vld [vmem:[%s1 + $0xe0] sm:$0xf]
  %v148 = vld [vmem:[%s1 + $0xe4] sm:$0xf]
  %v149 = vld [vmem:[%s1 + $0xe8] sm:$0xf]
  %v150 = vld [vmem:[%s1 + $0xec] sm:$0xf]
  %v151 = vld [vmem:[%s1 + $0xf0] sm:$0xf]
  %v152 = vld [vmem:[%s1 + $0xf4] sm:$0xf]
  %v153 = vld [vmem:[%s1 + $0xf8] sm:$0xf]
  %v154 = vld [vmem:[%s1 + $0xfc] sm:$0xf]
  %v155 = vld [vmem:[%s1 + $0x100] sm:$0xf]
  %v156 = vld [vmem:[%s1 + $0x104] sm:$0xf]
  %v157 = vld [vmem:[%s1 + $0x108] sm:$0xf]
  %v158 = vld [vmem:[%s1 + $0x10c] sm:$0xf]
  %v159 = vld [vmem:[%s1 + $0x110] sm:$0xf]
  %v160 = vld [vmem:[%s1 + $0x114] sm:$0xf]
  %v161 = vld [vmem:[%s1 + $0x118] sm:$0xf]
  %v162 = vld [vmem:[%s1 + $0x11c] sm:$0xf]
  %v163 = vld [vmem:[%s1 + $0x120] sm:$0xf]
  %v164 = vld [vmem:[%s1 + $0x124] sm:$0xf]
  %v165 = vld [vmem:[%s1 + $0x128] sm:$0xf]
  %v166 = vld [vmem:[%s1 + $0x12c] sm:$0xf]
  %v167 = vld [vmem:[%s1 + $0x130] sm:$0xf]
  %v168 = vld [vmem:[%s1 + $0x134] sm:$0xf]
  %v169 = vld [vmem:[%s1 + $0x138] sm:$0xf]
  %v170 = vld [vmem:[%s1 + $0x13c] sm:$0xf]
  %v171 = vld [vmem:[%s1 + $0x140] sm:$0xf]
  %v172 = vld [vmem:[%s1 + $0x144] sm:$0xf]
  %v173 = vld [vmem:[%s1 + $0x148] sm:$0xf]
  %v174 = vld [vmem:[%s1 + $0x14c] sm:$0xf]
  %v175 = vld [vmem:[%s1 + $0x150] sm:$0xf]
  %v176 = vld [vmem:[%s1 + $0x154] sm:$0xf]
  %v177 = vld [vmem:[%s1 + $0x158] sm:$0xf]
  %v178 = vld [vmem:[%s1 + $0x15c] sm:$0xf]
  %v179 = vld [vmem:[%s1 + $0x160] sm:$0xf]
  %v180 = vld [vmem:[%s1 + $0x164] sm:$0xf]
  %v181 = vld [vmem:[%s1 + $0x168] sm:$0xf]
  %v182 = vld [vmem:[%s1 + $0x16c] sm:$0xf]
  %v183 = vld [vmem:[%s1 + $0x170] sm:$0xf]
  %v184 = vld [vmem:[%s1 + $0x174] sm:$0xf]
  %v185 = vld [vmem:[%s1 + $0x178] sm:$0xf]
  %v186 = vld [vmem:[%s1 + $0x17c] sm:$0xf]
  %v187 = vld [vmem:[%s1 + $0x180] sm:$0xf]
  %v188 = vld [vmem:[%s1 + $0x184] sm:$0xf]
  %v189 = vld [vmem:[%s1 + $0x188] sm:$0xf]
  %v190 = vld [vmem:[%s1 + $0x18c] sm:$0xf]
  %v191 = vld [vmem:[%s1 + $0x190] sm:$0xf]
  %v192 = vld [vmem:[%s1 + $0x194] sm:$0xf]
  %v193 = vld [vmem:[%s1 + $0x198] sm:$0xf]
  %v194 = vld [vmem:[%s1 + $0x19c] sm:$0xf]
  %v195 = vld [vmem:[%s1 + $0x1a0] sm:$0xf]
  %v196 = vld [vmem:[%s1 + $0x1a4] sm:$0xf]
  %v197 = vld [vmem:[%s1 + $0x1a8] sm:$0xf]
  %v198 = vld [vmem:[%s1 + $0x1ac] sm:$0xf]
  %v199 = vld [vmem:[%s1 + $0x1b0] sm:$0xf]
  %v200 = vld [vmem:[%s1 + $0x1b4] sm:$0xf]
  %v201 = vld [vmem:[%s1 + $0x1b8] sm:$0xf]
  %v202 = vld [vmem:[%s1 + $0x1bc] sm:$0xf]
  %v203 = vld [vmem:[%s1 + $0x1c0] sm:$0xf]
  %v204 = vld [vmem:[%s1 + $0x1c4] sm:$0xf]
  %v205 = vld [vmem:[%s1 + $0x1c8] sm:$0xf]
  %v206 = vld [vmem:[%s1 + $0x1cc] sm:$0xf]
  %v207 = vld [vmem:[%s1 + $0x1d0] sm:$0xf]
  %v208 = vld [vmem:[%s1 + $0x1d4] sm:$0xf]
  %v209 = vld [vmem:[%s1 + $0x1d8] sm:$0xf]
  %v210 = vld [vmem:[%s1 + $0x1dc] sm:$0xf]
  %v211 = vld [vmem:[%s1 + $0x1e0] sm:$0xf]
  %v212 = vld [vmem:[%s1 + $0x1e4] sm:$0xf]
  %v213 = vld [vmem:[%s1 + $0x1e8] sm:$0xf]
  %v214 = vld [vmem:[%s1 + $0x1ec] sm:$0xf]
  %v215 = vld [vmem:[%s1 + $0x1f0] sm:$0xf]
  %v216 = vld [vmem:[%s1 + $0x1f4] sm:$0xf]
  %v217 = vld [vmem:[%s1 + $0x1f8] sm:$0xf]
  %v218 = vld [vmem:[%s1 + $0x1fc] sm:$0xf]
  %v219 = vld [vmem:[%s1 + $0x200] sm:$0xf]
  %v220 = vld [vmem:[%s1 + $0x204] sm:$0xf]
  %v221 = vld [vmem:[%s1 + $0x208] sm:$0xf]
  %v222 = vld [vmem:[%s1 + $0x20c] sm:$0xf]
  %v223 = vld [vmem:[%s1 + $0x210] sm:$0xf]
  %v224 = vld [vmem:[%s1 + $0x214] sm:$0xf]
  %v225 = vld [vmem:[%s1 + $0x218] sm:$0xf]
  %v226 = vld [vmem:[%s1 + $0x21c] sm:$0xf]
  %v227 = vld [vmem:[%s1 + $0x220] sm:$0xf]
  %v228 = vld [vmem:[%s1 + $0x224] sm:$0xf]
  %v229 = vld [vmem:[%s1 + $0x228] sm:$0xf]
  %v230 = vld [vmem:[%s1 + $0x22c] sm:$0xf]
  %v231 = vld [vmem:[%s1 + $0x230] sm:$0xf]
  %v232 = vld [vmem:[%s1 + $0x234] sm:$0xf]
  %v233 = vld [vmem:[%s1 + $0x238] sm:$0xf]
  %v234 = vld [vmem:[%s1 + $0x23c] sm:$0xf]
  %v315 = vunpack.c.l.b16 %v11
  %v316 = vunpack.c.h.b16 %v11
  %v317 = vunpack.c.l.b16 %v12
  %v318 = vunpack.c.h.b16 %v12
  %v319 = vunpack.c.l.b16 %v13
  %v320 = vunpack.c.h.b16 %v13
  %v321 = vunpack.c.l.b16 %v14
  %v322 = vunpack.c.h.b16 %v14
  %v323 = vunpack.c.l.b16 %v15
  %v324 = vunpack.c.l.b16 %v16
  %v325 = vunpack.c.h.b16 %v16
  %v326 = vunpack.c.l.b16 %v17
  %v327 = vunpack.c.h.b16 %v17
  %v328 = vunpack.c.l.b16 %v18
  %v329 = vunpack.c.h.b16 %v18
  %v330 = vunpack.c.l.b16 %v19
  %v331 = vunpack.c.h.b16 %v19
  %v332 = vunpack.c.l.b16 %v20
  %v333 = vunpack.c.l.b16 %v21
  %v334 = vunpack.c.h.b16 %v21
  %v335 = vunpack.c.l.b16 %v22
  %v336 = vunpack.c.h.b16 %v22
  %v337 = vunpack.c.l.b16 %v23
  %v338 = vunpack.c.h.b16 %v23
  %v339 = vunpack.c.l.b16 %v24
  %v340 = vunpack.c.h.b16 %v24
  %v341 = vunpack.c.l.b16 %v25
  %v342 = vunpack.c.l.b16 %v26
  %v343 = vunpack.c.h.b16 %v26
  %v344 = vunpack.c.l.b16 %v27
  %v345 = vunpack.c.h.b16 %v27
  %v346 = vunpack.c.l.b16 %v28
  %v347 = vunpack.c.h.b16 %v28
  %v348 = vunpack.c.l.b16 %v29
  %v349 = vunpack.c.h.b16 %v29
  %v350 = vunpack.c.l.b16 %v30
  %v351 = vunpack.c.l.b16 %v31
  %v352 = vunpack.c.h.b16 %v31
  %v353 = vunpack.c.l.b16 %v32
  %v354 = vunpack.c.h.b16 %v32
  %v355 = vunpack.c.l.b16 %v33
  %v356 = vunpack.c.h.b16 %v33
  %v357 = vunpack.c.l.b16 %v34
  %v358 = vunpack.c.h.b16 %v34
  %v359 = vunpack.c.l.b16 %v35
  %v360 = vunpack.c.l.b16 %v36
  %v361 = vunpack.c.h.b16 %v36
  %v362 = vunpack.c.l.b16 %v37
  %v363 = vunpack.c.h.b16 %v37
  %v364 = vunpack.c.l.b16 %v38
  %v365 = vunpack.c.h.b16 %v38
  %v366 = vunpack.c.l.b16 %v39
  %v367 = vunpack.c.h.b16 %v39
  %v368 = vunpack.c.l.b16 %v40
  %v369 = vunpack.c.l.b16 %v41
  %v370 = vunpack.c.h.b16 %v41
  %v371 = vunpack.c.l.b16 %v42
  %v372 = vunpack.c.h.b16 %v42
  %v373 = vunpack.c.l.b16 %v43
  %v374 = vunpack.c.h.b16 %v43
  %v375 = vunpack.c.l.b16 %v44
  %v376 = vunpack.c.h.b16 %v44
  %v377 = vunpack.c.l.b16 %v45
  %v378 = vunpack.c.l.b16 %v46
  %v379 = vunpack.c.h.b16 %v46
  %v380 = vunpack.c.l.b16 %v47
  %v381 = vunpack.c.h.b16 %v47
  %v382 = vunpack.c.l.b16 %v48
  %v383 = vunpack.c.h.b16 %v48
  %v384 = vunpack.c.l.b16 %v49
  %v385 = vunpack.c.h.b16 %v49
  %v386 = vunpack.c.l.b16 %v50
  %v387 = vunpack.c.l.b16 %v51
  %v388 = vunpack.c.h.b16 %v51
  %v389 = vunpack.c.l.b16 %v52
  %v390 = vunpack.c.h.b16 %v52
  %v391 = vunpack.c.l.b16 %v53
  %v392 = vunpack.c.h.b16 %v53
  %v393 = vunpack.c.l.b16 %v54
  %v394 = vunpack.c.h.b16 %v54
  %v395 = vunpack.c.l.b16 %v55
  %v396 = vunpack.c.l.b16 %v56
  %v397 = vunpack.c.h.b16 %v56
  %v398 = vunpack.c.l.b16 %v57
  %v399 = vunpack.c.h.b16 %v57
  %v400 = vunpack.c.l.b16 %v58
  %v401 = vunpack.c.h.b16 %v58
  %v402 = vunpack.c.l.b16 %v59
  %v403 = vunpack.c.h.b16 %v59
  %v404 = vunpack.c.l.b16 %v60
  %v405 = vunpack.c.l.b16 %v61
  %v406 = vunpack.c.h.b16 %v61
  %v407 = vunpack.c.l.b16 %v62
  %v408 = vunpack.c.h.b16 %v62
  %v409 = vunpack.c.l.b16 %v63
  %v410 = vunpack.c.h.b16 %v63
  %v411 = vunpack.c.l.b16 %v64
  %v412 = vunpack.c.h.b16 %v64
  %v413 = vunpack.c.l.b16 %v65
  %v414 = vunpack.c.l.b16 %v66
  %v415 = vunpack.c.h.b16 %v66
  %v416 = vunpack.c.l.b16 %v67
  %v417 = vunpack.c.h.b16 %v67
  %v418 = vunpack.c.l.b16 %v68
  %v419 = vunpack.c.h.b16 %v68
  %v420 = vunpack.c.l.b16 %v69
  %v421 = vunpack.c.h.b16 %v69
  %v422 = vunpack.c.l.b16 %v70
  %v423 = vunpack.c.l.b16 %v71
  %v424 = vunpack.c.h.b16 %v71
  %v425 = vunpack.c.l.b16 %v72
  %v426 = vunpack.c.h.b16 %v72
  %v427 = vunpack.c.l.b16 %v73
  %v428 = vunpack.c.h.b16 %v73
  %v429 = vunpack.c.l.b16 %v74
  %v430 = vunpack.c.h.b16 %v74
  %v431 = vunpack.c.l.b16 %v75
  %v432 = vunpack.c.l.b16 %v76
  %v433 = vunpack.c.h.b16 %v76
  %v434 = vunpack.c.l.b16 %v77
  %v435 = vunpack.c.h.b16 %v77
  %v436 = vunpack.c.l.b16 %v78
  %v437 = vunpack.c.h.b16 %v78
  %v438 = vunpack.c.l.b16 %v79
  %v439 = vunpack.c.h.b16 %v79
  %v440 = vunpack.c.l.b16 %v80
  %v441 = vunpack.c.l.b16 %v81
  %v442 = vunpack.c.h.b16 %v81
  %v443 = vunpack.c.l.b16 %v82
  %v444 = vunpack.c.h.b16 %v82
  %v445 = vunpack.c.l.b16 %v83
  %v446 = vunpack.c.h.b16 %v83
  %v447 = vunpack.c.l.b16 %v84
  %v448 = vunpack.c.h.b16 %v84
  %v449 = vunpack.c.l.b16 %v85
  %v450 = vunpack.c.l.b16 %v86
  %v451 = vunpack.c.h.b16 %v86
  %v452 = vunpack.c.l.b16 %v87
  %v453 = vunpack.c.h.b16 %v87
  %v454 = vunpack.c.l.b16 %v88
  %v455 = vunpack.c.h.b16 %v88
  %v456 = vunpack.c.l.b16 %v89
  %v457 = vunpack.c.h.b16 %v89
  %v458 = vunpack.c.l.b16 %v90
  %v459 = vpack.c.b16 %v324, %v315
  %v460 = vpack.c.b16 %v325, %v316
  %v461 = vpack.c.b16 %v326, %v317
  %v462 = vpack.c.b16 %v327, %v318
  %v463 = vpack.c.b16 %v328, %v319
  %v464 = vpack.c.b16 %v329, %v320
  %v465 = vpack.c.b16 %v330, %v321
  %v466 = vpack.c.b16 %v331, %v322
  %v467 = vpack.c.b16 %v332, %v323
  %v468 = vpack.c.b16 %v342, %v333
  %v469 = vpack.c.b16 %v343, %v334
  %v470 = vpack.c.b16 %v344, %v335
  %v471 = vpack.c.b16 %v345, %v336
  %v472 = vpack.c.b16 %v346, %v337
  %v473 = vpack.c.b16 %v347, %v338
  %v474 = vpack.c.b16 %v348, %v339
  %v475 = vpack.c.b16 %v349, %v340
  %v476 = vpack.c.b16 %v350, %v341
  %v477 = vpack.c.b16 %v360, %v351
  %v478 = vpack.c.b16 %v361, %v352
  %v479 = vpack.c.b16 %v362, %v353
  %v480 = vpack.c.b16 %v363, %v354
  %v481 = vpack.c.b16 %v364, %v355
  %v482 = vpack.c.b16 %v365, %v356
  %v483 = vpack.c.b16 %v366, %v357
  %v484 = vpack.c.b16 %v367, %v358
  %v485 = vpack.c.b16 %v368, %v359
  %v486 = vpack.c.b16 %v378, %v369
  %v487 = vpack.c.b16 %v379, %v370
  %v488 = vpack.c.b16 %v380, %v371
  %v489 = vpack.c.b16 %v381, %v372
  %v490 = vpack.c.b16 %v382, %v373
  %v491 = vpack.c.b16 %v383, %v374
  %v492 = vpack.c.b16 %v384, %v375
  %v493 = vpack.c.b16 %v385, %v376
  %v494 = vpack.c.b16 %v386, %v377
  %v495 = vpack.c.b16 %v396, %v387
  %v496 = vpack.c.b16 %v397, %v388
  %v497 = vpack.c.b16 %v398, %v389
  %v498 = vpack.c.b16 %v399, %v390
  %v499 = vpack.c.b16 %v400, %v391
  %v500 = vpack.c.b16 %v401, %v392
  %v501 = vpack.c.b16 %v402, %v393
  %v502 = vpack.c.b16 %v403, %v394
  %v503 = vpack.c.b16 %v404, %v395
  %v504 = vpack.c.b16 %v414, %v405
  %v505 = vpack.c.b16 %v415, %v406
  %v506 = vpack.c.b16 %v416, %v407
  %v507 = vpack.c.b16 %v417, %v408
  %v508 = vpack.c.b16 %v418, %v409
  %v509 = vpack.c.b16 %v419, %v410
  %v510 = vpack.c.b16 %v420, %v411
  %v511 = vpack.c.b16 %v421, %v412
  %v512 = vpack.c.b16 %v422, %v413
  %v513 = vpack.c.b16 %v432, %v423
  %v514 = vpack.c.b16 %v433, %v424
  %v515 = vpack.c.b16 %v434, %v425
  %v516 = vpack.c.b16 %v435, %v426
  %v517 = vpack.c.b16 %v436, %v427
  %v518 = vpack.c.b16 %v437, %v428
  %v519 = vpack.c.b16 %v438, %v429
  %v520 = vpack.c.b16 %v439, %v430
  %v521 = vpack.c.b16 %v440, %v431
  %v522 = vpack.c.b16 %v450, %v441
  %v523 = vpack.c.b16 %v451, %v442
  %v524 = vpack.c.b16 %v452, %v443
  %v525 = vpack.c.b16 %v453, %v444
  %v526 = vpack.c.b16 %v454, %v445
  %v527 = vpack.c.b16 %v455, %v446
  %v528 = vpack.c.b16 %v456, %v447
  %v529 = vpack.c.b16 %v457, %v448
  %v530 = vpack.c.b16 %v458, %v449
  %v747 = vunpack.c.l.b16 %v91
  %v748 = vunpack.c.l.b16 %v92
  %v749 = vunpack.c.l.b16 %v93
  %v750 = vunpack.c.l.b16 %v94
  %v751 = vunpack.c.l.b16 %v95
  %v752 = vunpack.c.l.b16 %v96
  %v753 = vunpack.c.l.b16 %v97
  %v754 = vunpack.c.l.b16 %v98
  %v755 = vunpack.c.l.b16 %v99
  %v756 = vunpack.c.l.b16 %v100
  %v757 = vunpack.c.l.b16 %v101
  %v758 = vunpack.c.l.b16 %v102
  %v759 = vunpack.c.l.b16 %v103
  %v760 = vunpack.c.l.b16 %v104
  %v761 = vunpack.c.l.b16 %v105
  %v762 = vunpack.c.l.b16 %v106
  %v763 = vunpack.c.l.b16 %v107
  %v764 = vunpack.c.l.b16 %v108
  %v765 = vunpack.c.l.b16 %v109
  %v766 = vunpack.c.l.b16 %v110
  %v767 = vunpack.c.l.b16 %v111
  %v768 = vunpack.c.l.b16 %v112
  %v769 = vunpack.c.l.b16 %v113
  %v770 = vunpack.c.l.b16 %v114
  %v771 = vunpack.c.l.b16 %v115
  %v772 = vunpack.c.l.b16 %v116
  %v773 = vunpack.c.l.b16 %v117
  %v774 = vunpack.c.l.b16 %v118
  %v775 = vunpack.c.l.b16 %v119
  %v776 = vunpack.c.l.b16 %v120
  %v777 = vunpack.c.l.b16 %v121
  %v778 = vunpack.c.l.b16 %v122
  %v779 = vunpack.c.l.b16 %v123
  %v780 = vunpack.c.l.b16 %v124
  %v781 = vunpack.c.l.b16 %v125
  %v782 = vunpack.c.l.b16 %v126
  %v783 = vunpack.c.l.b16 %v127
  %v784 = vunpack.c.l.b16 %v128
  %v785 = vunpack.c.l.b16 %v129
  %v786 = vunpack.c.l.b16 %v130
  %v787 = vunpack.c.l.b16 %v131
  %v788 = vunpack.c.l.b16 %v132
  %v789 = vunpack.c.l.b16 %v133
  %v790 = vunpack.c.l.b16 %v134
  %v791 = vunpack.c.l.b16 %v135
  %v792 = vunpack.c.l.b16 %v136
  %v793 = vunpack.c.l.b16 %v137
  %v794 = vunpack.c.l.b16 %v138
  %v795 = vunpack.c.l.b16 %v139
  %v796 = vunpack.c.l.b16 %v140
  %v797 = vunpack.c.l.b16 %v141
  %v798 = vunpack.c.l.b16 %v142
  %v799 = vunpack.c.l.b16 %v143
  %v800 = vunpack.c.l.b16 %v144
  %v801 = vunpack.c.l.b16 %v145
  %v802 = vunpack.c.l.b16 %v146
  %v803 = vunpack.c.l.b16 %v147
  %v804 = vunpack.c.l.b16 %v148
  %v805 = vunpack.c.l.b16 %v149
  %v806 = vunpack.c.l.b16 %v150
  %v807 = vunpack.c.l.b16 %v151
  %v808 = vunpack.c.l.b16 %v152
  %v809 = vunpack.c.l.b16 %v153
  %v810 = vunpack.c.l.b16 %v154
  %v811 = vunpack.c.l.b16 %v155
  %v812 = vunpack.c.l.b16 %v156
  %v813 = vunpack.c.l.b16 %v157
  %v814 = vunpack.c.l.b16 %v158
  %v815 = vunpack.c.l.b16 %v159
  %v816 = vunpack.c.l.b16 %v160
  %v817 = vunpack.c.l.b16 %v161
  %v818 = vunpack.c.l.b16 %v162
  %v819 = vunpack.c.l.b16 %v163
  %v820 = vunpack.c.l.b16 %v164
  %v821 = vunpack.c.l.b16 %v165
  %v822 = vunpack.c.l.b16 %v166
  %v823 = vunpack.c.l.b16 %v167
  %v824 = vunpack.c.l.b16 %v168
  %v825 = vunpack.c.l.b16 %v169
  %v826 = vunpack.c.l.b16 %v170
  %v827 = vunpack.c.l.b16 %v171
  %v828 = vunpack.c.l.b16 %v172
  %v829 = vunpack.c.l.b16 %v173
  %v830 = vunpack.c.l.b16 %v174
  %v831 = vunpack.c.l.b16 %v175
  %v832 = vunpack.c.l.b16 %v176
  %v833 = vunpack.c.l.b16 %v177
  %v834 = vunpack.c.l.b16 %v178
  %v835 = vunpack.c.l.b16 %v179
  %v836 = vunpack.c.l.b16 %v180
  %v837 = vunpack.c.l.b16 %v181
  %v838 = vunpack.c.l.b16 %v182
  %v839 = vunpack.c.l.b16 %v183
  %v840 = vunpack.c.l.b16 %v184
  %v841 = vunpack.c.l.b16 %v185
  %v842 = vunpack.c.l.b16 %v186
  %v843 = vunpack.c.l.b16 %v187
  %v844 = vunpack.c.l.b16 %v188
  %v845 = vunpack.c.l.b16 %v189
  %v846 = vunpack.c.l.b16 %v190
  %v847 = vunpack.c.l.b16 %v191
  %v848 = vunpack.c.l.b16 %v192
  %v849 = vunpack.c.l.b16 %v193
  %v850 = vunpack.c.l.b16 %v194
  %v851 = vunpack.c.l.b16 %v195
  %v852 = vunpack.c.l.b16 %v196
  %v853 = vunpack.c.l.b16 %v197
  %v854 = vunpack.c.l.b16 %v198
  %v855 = vunpack.c.l.b16 %v199
  %v856 = vunpack.c.l.b16 %v200
  %v857 = vunpack.c.l.b16 %v201
  %v858 = vunpack.c.l.b16 %v202
  %v859 = vunpack.c.l.b16 %v203
  %v860 = vunpack.c.l.b16 %v204
  %v861 = vunpack.c.l.b16 %v205
  %v862 = vunpack.c.l.b16 %v206
  %v863 = vunpack.c.l.b16 %v207
  %v864 = vunpack.c.l.b16 %v208
  %v865 = vunpack.c.l.b16 %v209
  %v866 = vunpack.c.l.b16 %v210
  %v867 = vunpack.c.l.b16 %v211
  %v868 = vunpack.c.l.b16 %v212
  %v869 = vunpack.c.l.b16 %v213
  %v870 = vunpack.c.l.b16 %v214
  %v871 = vunpack.c.l.b16 %v215
  %v872 = vunpack.c.l.b16 %v216
  %v873 = vunpack.c.l.b16 %v217
  %v874 = vunpack.c.l.b16 %v218
  %v875 = vunpack.c.l.b16 %v219
  %v876 = vunpack.c.l.b16 %v220
  %v877 = vunpack.c.l.b16 %v221
  %v878 = vunpack.c.l.b16 %v222
  %v879 = vunpack.c.l.b16 %v223
  %v880 = vunpack.c.l.b16 %v224
  %v881 = vunpack.c.l.b16 %v225
  %v882 = vunpack.c.l.b16 %v226
  %v883 = vunpack.c.l.b16 %v227
  %v884 = vunpack.c.l.b16 %v228
  %v885 = vunpack.c.l.b16 %v229
  %v886 = vunpack.c.l.b16 %v230
  %v887 = vunpack.c.l.b16 %v231
  %v888 = vunpack.c.l.b16 %v232
  %v889 = vunpack.c.l.b16 %v233
  %v890 = vunpack.c.l.b16 %v234
  %v891 = vpack.c.b16 %v748, %v747
  %v892 = vpack.c.b16 %v750, %v749
  %v893 = vpack.c.b16 %v752, %v751
  %v894 = vpack.c.b16 %v754, %v753
  %v895 = vpack.c.b16 %v756, %v755
  %v896 = vpack.c.b16 %v758, %v757
  %v897 = vpack.c.b16 %v760, %v759
  %v898 = vpack.c.b16 %v762, %v761
  %v899 = vpack.c.b16 %v764, %v763
  %v900 = vpack.c.b16 %v766, %v765
  %v901 = vpack.c.b16 %v768, %v767
  %v902 = vpack.c.b16 %v770, %v769
  %v903 = vpack.c.b16 %v772, %v771
  %v904 = vpack.c.b16 %v774, %v773
  %v905 = vpack.c.b16 %v776, %v775
  %v906 = vpack.c.b16 %v778, %v777
  %v907 = vpack.c.b16 %v780, %v779
  %v908 = vpack.c.b16 %v782, %v781
  %v909 = vpack.c.b16 %v784, %v783
  %v910 = vpack.c.b16 %v786, %v785
  %v911 = vpack.c.b16 %v788, %v787
  %v912 = vpack.c.b16 %v790, %v789
  %v913 = vpack.c.b16 %v792, %v791
  %v914 = vpack.c.b16 %v794, %v793
  %v915 = vpack.c.b16 %v796, %v795
  %v916 = vpack.c.b16 %v798, %v797
  %v917 = vpack.c.b16 %v800, %v799
  %v918 = vpack.c.b16 %v802, %v801
  %v919 = vpack.c.b16 %v804, %v803
  %v920 = vpack.c.b16 %v806, %v805
  %v921 = vpack.c.b16 %v808, %v807
  %v922 = vpack.c.b16 %v810, %v809
  %v923 = vpack.c.b16 %v812, %v811
  %v924 = vpack.c.b16 %v814, %v813
  %v925 = vpack.c.b16 %v816, %v815
  %v926 = vpack.c.b16 %v818, %v817
  %v927 = vpack.c.b16 %v820, %v819
  %v928 = vpack.c.b16 %v822, %v821
  %v929 = vpack.c.b16 %v824, %v823
  %v930 = vpack.c.b16 %v826, %v825
  %v931 = vpack.c.b16 %v828, %v827
  %v932 = vpack.c.b16 %v830, %v829
  %v933 = vpack.c.b16 %v832, %v831
  %v934 = vpack.c.b16 %v834, %v833
  %v935 = vpack.c.b16 %v836, %v835
  %v936 = vpack.c.b16 %v838, %v837
  %v937 = vpack.c.b16 %v840, %v839
  %v938 = vpack.c.b16 %v842, %v841
  %v939 = vpack.c.b16 %v844, %v843
  %v940 = vpack.c.b16 %v846, %v845
  %v941 = vpack.c.b16 %v848, %v847
  %v942 = vpack.c.b16 %v850, %v849
  %v943 = vpack.c.b16 %v852, %v851
  %v944 = vpack.c.b16 %v854, %v853
  %v945 = vpack.c.b16 %v856, %v855
  %v946 = vpack.c.b16 %v858, %v857
  %v947 = vpack.c.b16 %v860, %v859
  %v948 = vpack.c.b16 %v862, %v861
  %v949 = vpack.c.b16 %v864, %v863
  %v950 = vpack.c.b16 %v866, %v865
  %v951 = vpack.c.b16 %v868, %v867
  %v952 = vpack.c.b16 %v870, %v869
  %v953 = vpack.c.b16 %v872, %v871
  %v954 = vpack.c.b16 %v874, %v873
  %v955 = vpack.c.b16 %v876, %v875
  %v956 = vpack.c.b16 %v878, %v877
  %v957 = vpack.c.b16 %v880, %v879
  %v958 = vpack.c.b16 %v882, %v881
  %v959 = vpack.c.b16 %v884, %v883
  %v960 = vpack.c.b16 %v886, %v885
  %v961 = vpack.c.b16 %v888, %v887
  %v962 = vpack.c.b16 %v890, %v889
  %1035 = vmatpush.bf16.msra.mxu0 %v898
  %1036 = vmatpush.bf16.msra.mxu0 %v897
  %1037 = vmatpush.bf16.msra.mxu0 %v896
  %1038 = vmatpush.bf16.msra.mxu0 %v895
  %1039 = vmatpush.bf16.msra.mxu0 %v894
  %1040 = vmatpush.bf16.msra.mxu0 %v893
  %1041 = vmatpush.bf16.msra.mxu0 %v892
  %1042 = vmatpush.bf16.msra.mxu0 %v891
  %1043 = vmatmul.bf16.gmra.mxu0 %v459
  %v1044 = vpop.f32.mrf.mxu0
  %v1045 = vadd.f32 0.0, %v1044
  %v1046 = vpop.f32.mrf.mxu0
  %v1047 = vadd.f32 0.0, %v1046
  %1048 = vmatmul.bf16.gmra.mxu0 %v468
  %v1049 = vpop.f32.mrf.mxu0
  %v1050 = vadd.f32 0.0, %v1049
  %v1051 = vpop.f32.mrf.mxu0
  %v1052 = vadd.f32 0.0, %v1051
  %1053 = vmatmul.bf16.gmra.mxu0 %v477
  %v1054 = vpop.f32.mrf.mxu0
  %v1055 = vadd.f32 0.0, %v1054
  %v1056 = vpop.f32.mrf.mxu0
  %v1057 = vadd.f32 0.0, %v1056
  %1058 = vmatmul.bf16.gmra.mxu0 %v486
  %v1059 = vpop.f32.mrf.mxu0
  %v1060 = vadd.f32 0.0, %v1059
  %v1061 = vpop.f32.mrf.mxu0
  %v1062 = vadd.f32 0.0, %v1061
  %1063 = vmatmul.bf16.gmra.mxu0 %v495
  %v1064 = vpop.f32.mrf.mxu0
  %v1065 = vadd.f32 0.0, %v1064
  %v1066 = vpop.f32.mrf.mxu0
  %v1067 = vadd.f32 0.0, %v1066
  %1068 = vmatmul.bf16.gmra.mxu0 %v504
  %v1069 = vpop.f32.mrf.mxu0
  %v1070 = vadd.f32 0.0, %v1069
  %v1071 = vpop.f32.mrf.mxu0
  %v1072 = vadd.f32 0.0, %v1071
  %1073 = vmatmul.bf16.gmra.mxu0 %v513
  %v1074 = vpop.f32.mrf.mxu0
  %v1075 = vadd.f32 0.0, %v1074
  %v1076 = vpop.f32.mrf.mxu0
  %v1077 = vadd.f32 0.0, %v1076
  %1078 = vmatmul.bf16.gmra.mxu0 %v522
  %v1079 = vpop.f32.mrf.mxu0
  %v1080 = vadd.f32 0.0, %v1079
  %v1081 = vpop.f32.mrf.mxu0
  %v1082 = vadd.f32 0.0, %v1081
  %1083 = vdwg.mxu0
  %1084 = vmatpush.bf16.msra.mxu0 %v906
  %1085 = vmatpush.bf16.msra.mxu0 %v905
  %1086 = vmatpush.bf16.msra.mxu0 %v904
  %1087 = vmatpush.bf16.msra.mxu0 %v903
  %1088 = vmatpush.bf16.msra.mxu0 %v902
  %1089 = vmatpush.bf16.msra.mxu0 %v901
  %1090 = vmatpush.bf16.msra.mxu0 %v900
  %1091 = vmatpush.bf16.msra.mxu0 %v899
  %1092 = vmatmul.bf16.gmra.mxu0 %v460
  %v1093 = vpop.f32.mrf.mxu0
  %v1094 = vadd.f32 %v1045, %v1093
  %v1095 = vpop.f32.mrf.mxu0
  %v1096 = vadd.f32 %v1047, %v1095
  %1097 = vmatmul.bf16.gmra.mxu0 %v469
  %v1098 = vpop.f32.mrf.mxu0
  %v1099 = vadd.f32 %v1050, %v1098
  %v1100 = vpop.f32.mrf.mxu0
  %v1101 = vadd.f32 %v1052, %v1100
  %1102 = vmatmul.bf16.gmra.mxu0 %v478
  %v1103 = vpop.f32.mrf.mxu0
  %v1104 = vadd.f32 %v1055, %v1103
  %v1105 = vpop.f32.mrf.mxu0
  %v1106 = vadd.f32 %v1057, %v1105
  %1107 = vmatmul.bf16.gmra.mxu0 %v487
  %v1108 = vpop.f32.mrf.mxu0
  %v1109 = vadd.f32 %v1060, %v1108
  %v1110 = vpop.f32.mrf.mxu0
  %v1111 = vadd.f32 %v1062, %v1110
  %1112 = vmatmul.bf16.gmra.mxu0 %v496
  %v1113 = vpop.f32.mrf.mxu0
  %v1114 = vadd.f32 %v1065, %v1113
  %v1115 = vpop.f32.mrf.mxu0
  %v1116 = vadd.f32 %v1067, %v1115
  %1117 = vmatmul.bf16.gmra.mxu0 %v505
  %v1118 = vpop.f32.mrf.mxu0
  %v1119 = vadd.f32 %v1070, %v1118
  %v1120 = vpop.f32.mrf.mxu0
  %v1121 = vadd.f32 %v1072, %v1120
  %1122 = vmatmul.bf16.gmra.mxu0 %v514
  %v1123 = vpop.f32.mrf.mxu0
  %v1124 = vadd.f32 %v1075, %v1123
  %v1125 = vpop.f32.mrf.mxu0
  %v1126 = vadd.f32 %v1077, %v1125
  %1127 = vmatmul.bf16.gmra.mxu0 %v523
  %v1128 = vpop.f32.mrf.mxu0
  %v1129 = vadd.f32 %v1080, %v1128
  %v1130 = vpop.f32.mrf.mxu0
  %v1131 = vadd.f32 %v1082, %v1130
  %1132 = vdwg.mxu0
  %1133 = vmatpush.bf16.msra.mxu0 %v914
  %1134 = vmatpush.bf16.msra.mxu0 %v913
  %1135 = vmatpush.bf16.msra.mxu0 %v912
  %1136 = vmatpush.bf16.msra.mxu0 %v911
  %1137 = vmatpush.bf16.msra.mxu0 %v910
  %1138 = vmatpush.bf16.msra.mxu0 %v909
  %1139 = vmatpush.bf16.msra.mxu0 %v908
  %1140 = vmatpush.bf16.msra.mxu0 %v907
  %1141 = vmatmul.bf16.gmra.mxu0 %v461
  %v1142 = vpop.f32.mrf.mxu0
  %v1143 = vadd.f32 %v1094, %v1142
  %v1144 = vpop.f32.mrf.mxu0
  %v1145 = vadd.f32 %v1096, %v1144
  %1146 = vmatmul.bf16.gmra.mxu0 %v470
  %v1147 = vpop.f32.mrf.mxu0
  %v1148 = vadd.f32 %v1099, %v1147
  %v1149 = vpop.f32.mrf.mxu0
  %v1150 = vadd.f32 %v1101, %v1149
  %1151 = vmatmul.bf16.gmra.mxu0 %v479
  %v1152 = vpop.f32.mrf.mxu0
  %v1153 = vadd.f32 %v1104, %v1152
  %v1154 = vpop.f32.mrf.mxu0
  %v1155 = vadd.f32 %v1106, %v1154
  %1156 = vmatmul.bf16.gmra.mxu0 %v488
  %v1157 = vpop.f32.mrf.mxu0
  %v1158 = vadd.f32 %v1109, %v1157
  %v1159 = vpop.f32.mrf.mxu0
  %v1160 = vadd.f32 %v1111, %v1159
  %1161 = vmatmul.bf16.gmra.mxu0 %v497
  %v1162 = vpop.f32.mrf.mxu0
  %v1163 = vadd.f32 %v1114, %v1162
  %v1164 = vpop.f32.mrf.mxu0
  %v1165 = vadd.f32 %v1116, %v1164
  %1166 = vmatmul.bf16.gmra.mxu0 %v506
  %v1167 = vpop.f32.mrf.mxu0
  %v1168 = vadd.f32 %v1119, %v1167
  %v1169 = vpop.f32.mrf.mxu0
  %v1170 = vadd.f32 %v1121, %v1169
  %1171 = vmatmul.bf16.gmra.mxu0 %v515
  %v1172 = vpop.f32.mrf.mxu0
  %v1173 = vadd.f32 %v1124, %v1172
  %v1174 = vpop.f32.mrf.mxu0
  %v1175 = vadd.f32 %v1126, %v1174
  %1176 = vmatmul.bf16.gmra.mxu0 %v524
  %v1177 = vpop.f32.mrf.mxu0
  %v1178 = vadd.f32 %v1129, %v1177
  %v1179 = vpop.f32.mrf.mxu0
  %v1180 = vadd.f32 %v1131, %v1179
  %1181 = vdwg.mxu0
  %1182 = vmatpush.bf16.msra.mxu0 %v922
  %1183 = vmatpush.bf16.msra.mxu0 %v921
  %1184 = vmatpush.bf16.msra.mxu0 %v920
  %1185 = vmatpush.bf16.msra.mxu0 %v919
  %1186 = vmatpush.bf16.msra.mxu0 %v918
  %1187 = vmatpush.bf16.msra.mxu0 %v917
  %1188 = vmatpush.bf16.msra.mxu0 %v916
  %1189 = vmatpush.bf16.msra.mxu0 %v915
  %1190 = vmatmul.bf16.gmra.mxu0 %v462
  %v1191 = vpop.f32.mrf.mxu0
  %v1192 = vadd.f32 %v1143, %v1191
  %v1193 = vpop.f32.mrf.mxu0
  %v1194 = vadd.f32 %v1145, %v1193
  %1195 = vmatmul.bf16.gmra.mxu0 %v471
  %v1196 = vpop.f32.mrf.mxu0
  %v1197 = vadd.f32 %v1148, %v1196
  %v1198 = vpop.f32.mrf.mxu0
  %v1199 = vadd.f32 %v1150, %v1198
  %1200 = vmatmul.bf16.gmra.mxu0 %v480
  %v1201 = vpop.f32.mrf.mxu0
  %v1202 = vadd.f32 %v1153, %v1201
  %v1203 = vpop.f32.mrf.mxu0
  %v1204 = vadd.f32 %v1155, %v1203
  %1205 = vmatmul.bf16.gmra.mxu0 %v489
  %v1206 = vpop.f32.mrf.mxu0
  %v1207 = vadd.f32 %v1158, %v1206
  %v1208 = vpop.f32.mrf.mxu0
  %v1209 = vadd.f32 %v1160, %v1208
  %1210 = vmatmul.bf16.gmra.mxu0 %v498
  %v1211 = vpop.f32.mrf.mxu0
  %v1212 = vadd.f32 %v1163, %v1211
  %v1213 = vpop.f32.mrf.mxu0
  %v1214 = vadd.f32 %v1165, %v1213
  %1215 = vmatmul.bf16.gmra.mxu0 %v507
  %v1216 = vpop.f32.mrf.mxu0
  %v1217 = vadd.f32 %v1168, %v1216
  %v1218 = vpop.f32.mrf.mxu0
  %v1219 = vadd.f32 %v1170, %v1218
  %1220 = vmatmul.bf16.gmra.mxu0 %v516
  %v1221 = vpop.f32.mrf.mxu0
  %v1222 = vadd.f32 %v1173, %v1221
  %v1223 = vpop.f32.mrf.mxu0
  %v1224 = vadd.f32 %v1175, %v1223
  %1225 = vmatmul.bf16.gmra.mxu0 %v525
  %v1226 = vpop.f32.mrf.mxu0
  %v1227 = vadd.f32 %v1178, %v1226
  %v1228 = vpop.f32.mrf.mxu0
  %v1229 = vadd.f32 %v1180, %v1228
  %1230 = vdwg.mxu0
  %1231 = vmatpush.bf16.msra.mxu0 %v930
  %1232 = vmatpush.bf16.msra.mxu0 %v929
  %1233 = vmatpush.bf16.msra.mxu0 %v928
  %1234 = vmatpush.bf16.msra.mxu0 %v927
  %1235 = vmatpush.bf16.msra.mxu0 %v926
  %1236 = vmatpush.bf16.msra.mxu0 %v925
  %1237 = vmatpush.bf16.msra.mxu0 %v924
  %1238 = vmatpush.bf16.msra.mxu0 %v923
  %1239 = vmatmul.bf16.gmra.mxu0 %v463
  %v1240 = vpop.f32.mrf.mxu0
  %v1241 = vadd.f32 %v1192, %v1240
  %v1242 = vpop.f32.mrf.mxu0
  %v1243 = vadd.f32 %v1194, %v1242
  %1244 = vmatmul.bf16.gmra.mxu0 %v472
  %v1245 = vpop.f32.mrf.mxu0
  %v1246 = vadd.f32 %v1197, %v1245
  %v1247 = vpop.f32.mrf.mxu0
  %v1248 = vadd.f32 %v1199, %v1247
  %1249 = vmatmul.bf16.gmra.mxu0 %v481
  %v1250 = vpop.f32.mrf.mxu0
  %v1251 = vadd.f32 %v1202, %v1250
  %v1252 = vpop.f32.mrf.mxu0
  %v1253 = vadd.f32 %v1204, %v1252
  %1254 = vmatmul.bf16.gmra.mxu0 %v490
  %v1255 = vpop.f32.mrf.mxu0
  %v1256 = vadd.f32 %v1207, %v1255
  %v1257 = vpop.f32.mrf.mxu0
  %v1258 = vadd.f32 %v1209, %v1257
  %1259 = vmatmul.bf16.gmra.mxu0 %v499
  %v1260 = vpop.f32.mrf.mxu0
  %v1261 = vadd.f32 %v1212, %v1260
  %v1262 = vpop.f32.mrf.mxu0
  %v1263 = vadd.f32 %v1214, %v1262
  %1264 = vmatmul.bf16.gmra.mxu0 %v508
  %v1265 = vpop.f32.mrf.mxu0
  %v1266 = vadd.f32 %v1217, %v1265
  %v1267 = vpop.f32.mrf.mxu0
  %v1268 = vadd.f32 %v1219, %v1267
  %1269 = vmatmul.bf16.gmra.mxu0 %v517
  %v1270 = vpop.f32.mrf.mxu0
  %v1271 = vadd.f32 %v1222, %v1270
  %v1272 = vpop.f32.mrf.mxu0
  %v1273 = vadd.f32 %v1224, %v1272
  %1274 = vmatmul.bf16.gmra.mxu0 %v526
  %v1275 = vpop.f32.mrf.mxu0
  %v1276 = vadd.f32 %v1227, %v1275
  %v1277 = vpop.f32.mrf.mxu0
  %v1278 = vadd.f32 %v1229, %v1277
  %1279 = vdwg.mxu0
  %1280 = vmatpush.bf16.msra.mxu0 %v938
  %1281 = vmatpush.bf16.msra.mxu0 %v937
  %1282 = vmatpush.bf16.msra.mxu0 %v936
  %1283 = vmatpush.bf16.msra.mxu0 %v935
  %1284 = vmatpush.bf16.msra.mxu0 %v934
  %1285 = vmatpush.bf16.msra.mxu0 %v933
  %1286 = vmatpush.bf16.msra.mxu0 %v932
  %1287 = vmatpush.bf16.msra.mxu0 %v931
  %1288 = vmatmul.bf16.gmra.mxu0 %v464
  %v1289 = vpop.f32.mrf.mxu0
  %v1290 = vadd.f32 %v1241, %v1289
  %v1291 = vpop.f32.mrf.mxu0
  %v1292 = vadd.f32 %v1243, %v1291
  %1293 = vmatmul.bf16.gmra.mxu0 %v473
  %v1294 = vpop.f32.mrf.mxu0
  %v1295 = vadd.f32 %v1246, %v1294
  %v1296 = vpop.f32.mrf.mxu0
  %v1297 = vadd.f32 %v1248, %v1296
  %1298 = vmatmul.bf16.gmra.mxu0 %v482
  %v1299 = vpop.f32.mrf.mxu0
  %v1300 = vadd.f32 %v1251, %v1299
  %v1301 = vpop.f32.mrf.mxu0
  %v1302 = vadd.f32 %v1253, %v1301
  %1303 = vmatmul.bf16.gmra.mxu0 %v491
  %v1304 = vpop.f32.mrf.mxu0
  %v1305 = vadd.f32 %v1256, %v1304
  %v1306 = vpop.f32.mrf.mxu0
  %v1307 = vadd.f32 %v1258, %v1306
  %1308 = vmatmul.bf16.gmra.mxu0 %v500
  %v1309 = vpop.f32.mrf.mxu0
  %v1310 = vadd.f32 %v1261, %v1309
  %v1311 = vpop.f32.mrf.mxu0
  %v1312 = vadd.f32 %v1263, %v1311
  %1313 = vmatmul.bf16.gmra.mxu0 %v509
  %v1314 = vpop.f32.mrf.mxu0
  %v1315 = vadd.f32 %v1266, %v1314
  %v1316 = vpop.f32.mrf.mxu0
  %v1317 = vadd.f32 %v1268, %v1316
  %1318 = vmatmul.bf16.gmra.mxu0 %v518
  %v1319 = vpop.f32.mrf.mxu0
  %v1320 = vadd.f32 %v1271, %v1319
  %v1321 = vpop.f32.mrf.mxu0
  %v1322 = vadd.f32 %v1273, %v1321
  %1323 = vmatmul.bf16.gmra.mxu0 %v527
  %v1324 = vpop.f32.mrf.mxu0
  %v1325 = vadd.f32 %v1276, %v1324
  %v1326 = vpop.f32.mrf.mxu0
  %v1327 = vadd.f32 %v1278, %v1326
  %1328 = vdwg.mxu0
  %1329 = vmatpush.bf16.msra.mxu0 %v946
  %1330 = vmatpush.bf16.msra.mxu0 %v945
  %1331 = vmatpush.bf16.msra.mxu0 %v944
  %1332 = vmatpush.bf16.msra.mxu0 %v943
  %1333 = vmatpush.bf16.msra.mxu0 %v942
  %1334 = vmatpush.bf16.msra.mxu0 %v941
  %1335 = vmatpush.bf16.msra.mxu0 %v940
  %1336 = vmatpush.bf16.msra.mxu0 %v939
  %1337 = vmatmul.bf16.gmra.mxu0 %v465
  %v1338 = vpop.f32.mrf.mxu0
  %v1339 = vadd.f32 %v1290, %v1338
  %v1340 = vpop.f32.mrf.mxu0
  %v1341 = vadd.f32 %v1292, %v1340
  %1342 = vmatmul.bf16.gmra.mxu0 %v474
  %v1343 = vpop.f32.mrf.mxu0
  %v1344 = vadd.f32 %v1295, %v1343
  %v1345 = vpop.f32.mrf.mxu0
  %v1346 = vadd.f32 %v1297, %v1345
  %1347 = vmatmul.bf16.gmra.mxu0 %v483
  %v1348 = vpop.f32.mrf.mxu0
  %v1349 = vadd.f32 %v1300, %v1348
  %v1350 = vpop.f32.mrf.mxu0
  %v1351 = vadd.f32 %v1302, %v1350
  %1352 = vmatmul.bf16.gmra.mxu0 %v492
  %v1353 = vpop.f32.mrf.mxu0
  %v1354 = vadd.f32 %v1305, %v1353
  %v1355 = vpop.f32.mrf.mxu0
  %v1356 = vadd.f32 %v1307, %v1355
  %1357 = vmatmul.bf16.gmra.mxu0 %v501
  %v1358 = vpop.f32.mrf.mxu0
  %v1359 = vadd.f32 %v1310, %v1358
  %v1360 = vpop.f32.mrf.mxu0
  %v1361 = vadd.f32 %v1312, %v1360
  %1362 = vmatmul.bf16.gmra.mxu0 %v510
  %v1363 = vpop.f32.mrf.mxu0
  %v1364 = vadd.f32 %v1315, %v1363
  %v1365 = vpop.f32.mrf.mxu0
  %v1366 = vadd.f32 %v1317, %v1365
  %1367 = vmatmul.bf16.gmra.mxu0 %v519
  %v1368 = vpop.f32.mrf.mxu0
  %v1369 = vadd.f32 %v1320, %v1368
  %v1370 = vpop.f32.mrf.mxu0
  %v1371 = vadd.f32 %v1322, %v1370
  %1372 = vmatmul.bf16.gmra.mxu0 %v528
  %v1373 = vpop.f32.mrf.mxu0
  %v1374 = vadd.f32 %v1325, %v1373
  %v1375 = vpop.f32.mrf.mxu0
  %v1376 = vadd.f32 %v1327, %v1375
  %1377 = vdwg.mxu0
  %1378 = vmatpush.bf16.msra.mxu0 %v954
  %1379 = vmatpush.bf16.msra.mxu0 %v953
  %1380 = vmatpush.bf16.msra.mxu0 %v952
  %1381 = vmatpush.bf16.msra.mxu0 %v951
  %1382 = vmatpush.bf16.msra.mxu0 %v950
  %1383 = vmatpush.bf16.msra.mxu0 %v949
  %1384 = vmatpush.bf16.msra.mxu0 %v948
  %1385 = vmatpush.bf16.msra.mxu0 %v947
  %1386 = vmatmul.bf16.gmra.mxu0 %v466
  %v1387 = vpop.f32.mrf.mxu0
  %v1388 = vadd.f32 %v1339, %v1387
  %v1389 = vpop.f32.mrf.mxu0
  %v1390 = vadd.f32 %v1341, %v1389
  %1391 = vmatmul.bf16.gmra.mxu0 %v475
  %v1392 = vpop.f32.mrf.mxu0
  %v1393 = vadd.f32 %v1344, %v1392
  %v1394 = vpop.f32.mrf.mxu0
  %v1395 = vadd.f32 %v1346, %v1394
  %1396 = vmatmul.bf16.gmra.mxu0 %v484
  %v1397 = vpop.f32.mrf.mxu0
  %v1398 = vadd.f32 %v1349, %v1397
  %v1399 = vpop.f32.mrf.mxu0
  %v1400 = vadd.f32 %v1351, %v1399
  %1401 = vmatmul.bf16.gmra.mxu0 %v493
  %v1402 = vpop.f32.mrf.mxu0
  %v1403 = vadd.f32 %v1354, %v1402
  %v1404 = vpop.f32.mrf.mxu0
  %v1405 = vadd.f32 %v1356, %v1404
  %1406 = vmatmul.bf16.gmra.mxu0 %v502
  %v1407 = vpop.f32.mrf.mxu0
  %v1408 = vadd.f32 %v1359, %v1407
  %v1409 = vpop.f32.mrf.mxu0
  %v1410 = vadd.f32 %v1361, %v1409
  %1411 = vmatmul.bf16.gmra.mxu0 %v511
  %v1412 = vpop.f32.mrf.mxu0
  %v1413 = vadd.f32 %v1364, %v1412
  %v1414 = vpop.f32.mrf.mxu0
  %v1415 = vadd.f32 %v1366, %v1414
  %1416 = vmatmul.bf16.gmra.mxu0 %v520
  %v1417 = vpop.f32.mrf.mxu0
  %v1418 = vadd.f32 %v1369, %v1417
  %v1419 = vpop.f32.mrf.mxu0
  %v1420 = vadd.f32 %v1371, %v1419
  %1421 = vmatmul.bf16.gmra.mxu0 %v529
  %v1422 = vpop.f32.mrf.mxu0
  %v1423 = vadd.f32 %v1374, %v1422
  %v1424 = vpop.f32.mrf.mxu0
  %v1425 = vadd.f32 %v1376, %v1424
  %1426 = vdwg.mxu0
  %1427 = vmatpush.bf16.msra.mxu0 %v962
  %1428 = vmatpush.bf16.msra.mxu0 %v961
  %1429 = vmatpush.bf16.msra.mxu0 %v960
  %1430 = vmatpush.bf16.msra.mxu0 %v959
  %1431 = vmatpush.bf16.msra.mxu0 %v958
  %1432 = vmatpush.bf16.msra.mxu0 %v957
  %1433 = vmatpush.bf16.msra.mxu0 %v956
  %1434 = vmatpush.bf16.msra.mxu0 %v955
  %1435 = vmatmul.bf16.gmra.mxu0 %v467
  %v1436 = vpop.f32.mrf.mxu0
  %v1437 = vadd.f32 %v1388, %v1436
  %v1438 = vpop.f32.mrf.mxu0
  %v1439 = vadd.f32 %v1390, %v1438
  %1440 = vmatmul.bf16.gmra.mxu0 %v476
  %v1441 = vpop.f32.mrf.mxu0
  %v1442 = vadd.f32 %v1393, %v1441
  %v1443 = vpop.f32.mrf.mxu0
  %v1444 = vadd.f32 %v1395, %v1443
  %1445 = vmatmul.bf16.gmra.mxu0 %v485
  %v1446 = vpop.f32.mrf.mxu0
  %v1447 = vadd.f32 %v1398, %v1446
  %v1448 = vpop.f32.mrf.mxu0
  %v1449 = vadd.f32 %v1400, %v1448
  %1450 = vmatmul.bf16.gmra.mxu0 %v494
  %v1451 = vpop.f32.mrf.mxu0
  %v1452 = vadd.f32 %v1403, %v1451
  %v1453 = vpop.f32.mrf.mxu0
  %v1454 = vadd.f32 %v1405, %v1453
  %1455 = vmatmul.bf16.gmra.mxu0 %v503
  %v1456 = vpop.f32.mrf.mxu0
  %v1457 = vadd.f32 %v1408, %v1456
  %v1458 = vpop.f32.mrf.mxu0
  %v1459 = vadd.f32 %v1410, %v1458
  %1460 = vmatmul.bf16.gmra.mxu0 %v512
  %v1461 = vpop.f32.mrf.mxu0
  %v1462 = vadd.f32 %v1413, %v1461
  %v1463 = vpop.f32.mrf.mxu0
  %v1464 = vadd.f32 %v1415, %v1463
  %1465 = vmatmul.bf16.gmra.mxu0 %v521
  %v1466 = vpop.f32.mrf.mxu0
  %v1467 = vadd.f32 %v1418, %v1466
  %v1468 = vpop.f32.mrf.mxu0
  %v1469 = vadd.f32 %v1420, %v1468
  %1470 = vmatmul.bf16.gmra.mxu0 %v530
  %v1471 = vpop.f32.mrf.mxu0
  %v1472 = vadd.f32 %v1423, %v1471
  %v1473 = vpop.f32.mrf.mxu0
  %v1474 = vadd.f32 %v1425, %v1473
  %1475 = vdwg.mxu0
  %v1476 = vpack.c.bf16 %v1437, %v1437
  %v1477 = vpack.c.bf16 %v1439, %v1439
  %v1478 = vpack.c.bf16 %v1442, %v1442
  %v1479 = vpack.c.bf16 %v1444, %v1444
  %v1480 = vpack.c.bf16 %v1447, %v1447
  %v1481 = vpack.c.bf16 %v1449, %v1449
  %v1482 = vpack.c.bf16 %v1452, %v1452
  %v1483 = vpack.c.bf16 %v1454, %v1454
  %v1484 = vpack.c.bf16 %v1457, %v1457
  %v1485 = vpack.c.bf16 %v1459, %v1459
  %v1486 = vpack.c.bf16 %v1462, %v1462
  %v1487 = vpack.c.bf16 %v1464, %v1464
  %v1488 = vpack.c.bf16 %v1467, %v1467
  %v1489 = vpack.c.bf16 %v1469, %v1469
  %v1490 = vpack.c.bf16 %v1472, %v1472
  %v1491 = vpack.c.bf16 %v1474, %v1474
  %1492 = vst [vmem:[%s2] sm:$0xf] %v1476
  %1493 = vst [vmem:[%s2 + $0x4] sm:$0xf] %v1477
  %1494 = vst [vmem:[%s2 + $0x8] sm:$0xf] %v1478
  %1495 = vst [vmem:[%s2 + $0xc] sm:$0xf] %v1479
  %1496 = vst [vmem:[%s2 + $0x10] sm:$0xf] %v1480
  %1497 = vst [vmem:[%s2 + $0x14] sm:$0xf] %v1481
  %1498 = vst [vmem:[%s2 + $0x18] sm:$0xf] %v1482
  %1499 = vst [vmem:[%s2 + $0x1c] sm:$0xf] %v1483
  %1500 = vst [vmem:[%s2 + $0x20] sm:$0xf] %v1484
  %1501 = vst [vmem:[%s2 + $0x24] sm:$0xf] %v1485
  %1502 = vst [vmem:[%s2 + $0x28] sm:$0xf] %v1486
  %1503 = vst [vmem:[%s2 + $0x2c] sm:$0xf] %v1487
  %1504 = vst [vmem:[%s2 + $0x30] sm:$0xf] %v1488
  %1505 = vst [vmem:[%s2 + $0x34] sm:$0xf] %v1489
  %1506 = vst [vmem:[%s2 + $0x38] sm:$0xf] %v1490
  %1507 = vst [vmem:[%s2 + $0x3c] sm:$0xf] %v1491
  // Predicated region
  $region10: #{network_block_forward.12} parent=0 // pred_check
    _
  $region11: #{network_block_forward.12} parent=0 // pred_check_branch
    %1509 = sbr.rel (0) target = $region13
  $region12: #{network_block_forward.12} parent=0 // pred_region
    _
  $region13: #{network_block_forward.12} parent=0 // pred_fallthru
    _
  // Predicated region
  $region14: #{network_block_forward.12} parent=0 // pred_check
    _
  $region15: #{network_block_forward.12} parent=0 // pred_check_branch
    %1511 = sbr.rel (0) target = $region17
  $region16: #{network_block_forward.12} parent=0 // pred_region
    _
  $region17: #{network_block_forward.12} parent=0 // pred_fallthru
    _

// kernel: network_block_forward.15
$region0: #{network_block_forward.15}
  #allocation0 [shape = 'u32[]', space=smem, size = 0x4, offset = 0x4, fixed_abs, tag = 'smem constant byte address 0x4 - core index']
  #allocation1 [shape = 'u32[72,128]{1,0:T(1,128)}', space=vmem, size = 0x9000, scoped, tag = 'internal scratch']
  #allocation2 [shape = 'bf16[10,24,128]{2,1,0:T(8,128)(2,1)}', space=vmem, size = 0xf000, scoped, tag = 'scratch operand']
  #allocation3 [shape = 'f32[64,128]{1,0:T(8,128)}', space=vmem, size = 0x8000, scoped, tag = 'scratch operand']
  %s0 = inlined_call_operand.vmem [shape: bf16[2,8,8,128], index: 0, kind: input, shape index: {}]
  %s1 = inlined_call_operand.vmem [shape: f32[1,128], index: 1, kind: input, shape index: {}]
  %s2 = inlined_call_operand.vmem [shape: f32[1,128], index: 2, kind: input, shape index: {}]
  %s3 = inlined_call_operand.vmem [shape: bf16[9,128,128], index: 3, kind: input, shape index: {}]
  %s4 = inlined_call_operand.vmem [shape: bf16[2,8,8,128], index: 4, kind: input, shape index: {}]
  %s5 = inlined_call_operand.vmem [shape: bf16[2,8,8,128], index: 5, kind: output, shape index: {}]
  %s6 = sld [smem:[#allocation0]]
  $region53: #{network_block_forward.15} parent=0
    _
  %s8 = ssub.s32 1, %s6
  %s9 = scalar_select 0, %s8, %s6
  loop: start=0, step=1, limit=4
  $region2: #{network_block_forward.15} parent=0 // loop_pre_header
    _
  $region3: #{network_block_forward.15} parent=0 // loop_header
    %s11 = sphi 0, %s15
    %p12 = scmp.ge.s32.totalorder %s11, 4
    %s21 = sphi 0, %s23
    %s24 = sphi 0, %s21
    %s25 = sphi 0, %s24
    %s41 = sphi 0, %s25
    %s45 = sphi 0, %s45
    %s47 = sphi 0, %s45
    %s48 = sphi 0, %s47
    %s62 = sphi 0, %s48
    %s66 = sphi 0, %s66
    %s68 = sphi 0, %s66
    %s69 = sphi 0, %s68
    %s83 = sphi 0, %s69
    %s87 = sphi 0, %s87
    %s89 = sphi 0, %s87
    %s90 = sphi 0, %s89
    %s104 = sphi 0, %s90
    %s110 = sphi 0, %s112
    %s113 = sphi 0, %s110
    %s114 = sphi 0, %s113
    %s130 = sphi 0, %s114
    %s136 = sphi 0, %s138
    %s139 = sphi 0, %s136
    %s140 = sphi 0, %s139
    %s156 = sphi 0, %s140
  $region4: #{network_block_forward.15} parent=0 // loop_header_branch
    %14 = sbr.rel (%p12) target = $region8
  $region5: #{network_block_forward.15} parent=0 // loop_body
    %s16 = ssub.s32 %s11, 1
    %s17 = ssub.s32 %s11, 2
    %s18 = sadd.s32 %s11, 1
    %s19 = ssub.s32 %s11, %s18
    %p20 = scmp.eq.s32.totalorder %s19, 0
    %s22 = sadd.s32 %s21, 1
    %s23 = scalar_select %p20, %s21, %s22
    %p26 = pneg %p20
    %p27 = scmp.eq.s32.totalorder %s11, 1
    %p28 = por %p26, %p27
    %p29 = scmp.ne.s32.totalorder %s21, %s24
    %p30 = scmp.eq.s32.totalorder %s11, 0
    %p31 = por %p29, %p30
    %p32 = scmp.ne.s32.totalorder %s21, %s24
    %p33 = scmp.eq.s32.totalorder %s16, 1
    %p34 = por %p32, %p33
    %p35 = scmp.ne.s32.totalorder %s24, %s25
    %p36 = scmp.eq.s32.totalorder %s16, 0
    %p37 = por %p35, %p36
    %p38 = scmp.ne.s32.totalorder %s24, %s25
    %p39 = scmp.eq.s32.totalorder %s17, 1
    %p40 = por %p38, %p39
    %p42 = scmp.ne.s32.totalorder %s25, %s41
    %p43 = scmp.eq.s32.totalorder %s17, 0
    %p44 = por %p42, %p43
    %s46 = sadd.s32 %s45, 1
    %p49 = scmp.eq.s32.totalorder %s11, 1
    %p50 = scmp.ne.s32.totalorder %s45, %s47
    %p51 = scmp.eq.s32.totalorder %s11, 0
    %p52 = por %p50, %p51
    %p53 = scmp.ne.s32.totalorder %s45, %s47
    %p54 = scmp.eq.s32.totalorder %s16, 1
    %p55 = por %p53, %p54
    %p56 = scmp.ne.s32.totalorder %s47, %s48
    %p57 = scmp.eq.s32.totalorder %s16, 0
    %p58 = por %p56, %p57
    %p59 = scmp.ne.s32.totalorder %s47, %s48
    %p60 = scmp.eq.s32.totalorder %s17, 1
    %p61 = por %p59, %p60
    %p63 = scmp.ne.s32.totalorder %s48, %s62
    %p64 = scmp.eq.s32.totalorder %s17, 0
    %p65 = por %p63, %p64
    %s67 = sadd.s32 %s66, 1
    %p70 = scmp.eq.s32.totalorder %s11, 1
    %p71 = scmp.ne.s32.totalorder %s66, %s68
    %p72 = scmp.eq.s32.totalorder %s11, 0
    %p73 = por %p71, %p72
    %p74 = scmp.ne.s32.totalorder %s66, %s68
    %p75 = scmp.eq.s32.totalorder %s16, 1
    %p76 = por %p74, %p75
    %p77 = scmp.ne.s32.totalorder %s68, %s69
    %p78 = scmp.eq.s32.totalorder %s16, 0
    %p79 = por %p77, %p78
    %p80 = scmp.ne.s32.totalorder %s68, %s69
    %p81 = scmp.eq.s32.totalorder %s17, 1
    %p82 = por %p80, %p81
    %p84 = scmp.ne.s32.totalorder %s69, %s83
    %p85 = scmp.eq.s32.totalorder %s17, 0
    %p86 = por %p84, %p85
    %s88 = sadd.s32 %s87, 1
    %p91 = scmp.eq.s32.totalorder %s11, 1
    %p92 = scmp.ne.s32.totalorder %s87, %s89
    %p93 = scmp.eq.s32.totalorder %s11, 0
    %p94 = por %p92, %p93
    %p95 = scmp.ne.s32.totalorder %s87, %s89
    %p96 = scmp.eq.s32.totalorder %s16, 1
    %p97 = por %p95, %p96
    %p98 = scmp.ne.s32.totalorder %s89, %s90
    %p99 = scmp.eq.s32.totalorder %s16, 0
    %p100 = por %p98, %p99
    %p101 = scmp.ne.s32.totalorder %s89, %s90
    %p102 = scmp.eq.s32.totalorder %s17, 1
    %p103 = por %p101, %p102
    %p105 = scmp.ne.s32.totalorder %s90, %s104
    %p106 = scmp.eq.s32.totalorder %s17, 0
    %p107 = por %p105, %p106
    %s108 = ssub.s32 %s11, %s18
    %p109 = scmp.eq.s32.totalorder %s108, 0
    %s111 = sadd.s32 %s110, 1
    %s112 = scalar_select %p109, %s110, %s111
    %p115 = pneg %p109
    %p116 = scmp.eq.s32.totalorder %s11, 1
    %p117 = por %p115, %p116
    %p118 = scmp.ne.s32.totalorder %s110, %s113
    %p119 = scmp.eq.s32.totalorder %s11, 0
    %p120 = por %p118, %p119
    %p121 = scmp.ne.s32.totalorder %s110, %s113
    %p122 = scmp.eq.s32.totalorder %s16, 1
    %p123 = por %p121, %p122
    %p124 = scmp.ne.s32.totalorder %s113, %s114
    %p125 = scmp.eq.s32.totalorder %s16, 0
    %p126 = por %p124, %p125
    %p127 = scmp.ne.s32.totalorder %s113, %s114
    %p128 = scmp.eq.s32.totalorder %s17, 1
    %p129 = por %p127, %p128
    %p131 = scmp.ne.s32.totalorder %s114, %s130
    %p132 = scmp.eq.s32.totalorder %s17, 0
    %p133 = por %p131, %p132
    %s134 = ssub.s32 %s11, %s18
    %p135 = scmp.eq.s32.totalorder %s134, 0
    %s137 = sadd.s32 %s136, 1
    %s138 = scalar_select %p135, %s136, %s137
    %p141 = pneg %p135
    %p142 = scmp.eq.s32.totalorder %s11, 1
    %p143 = por %p141, %p142
    %p144 = scmp.ne.s32.totalorder %s136, %s139
    %p145 = scmp.eq.s32.totalorder %s11, 0
    %p146 = por %p144, %p145
    %p147 = scmp.ne.s32.totalorder %s136, %s139
    %p148 = scmp.eq.s32.totalorder %s16, 1
    %p149 = por %p147, %p148
    %p150 = scmp.ne.s32.totalorder %s139, %s140
    %p151 = scmp.eq.s32.totalorder %s16, 0
    %p152 = por %p150, %p151
    %p153 = scmp.ne.s32.totalorder %s139, %s140
    %p154 = scmp.eq.s32.totalorder %s17, 1
    %p155 = por %p153, %p154
    %p157 = scmp.ne.s32.totalorder %s140, %s156
    %p158 = scmp.eq.s32.totalorder %s17, 0
    %p159 = por %p157, %p158
    %p160 = scmp.le.s32.totalorder 1, %s11
    %p161 = scmp.lt.s32.totalorder %s11, 3
    %p162 = pnand %p160, %p161
    %p163 = pneg %p162
    // Predicated region
    $region9: #{network_block_forward.15} parent=5 // pred_check
      _
    $region10: #{network_block_forward.15} parent=5 // pred_check_branch
      %165 = sbr.rel (%p162) target = $region12
    $region11: #{network_block_forward.15} parent=5 // pred_region
      %s166 = ssub.s32 %s11, 1
      // Predicated region
      $region13: #{network_block_forward.15} parent=11 // pred_check
        %p167 = pneg %p58
      $region14: #{network_block_forward.15} parent=11 // pred_check_branch
        %169 = sbr.rel (%p167) target = $region16
      $region15: #{network_block_forward.15} parent=11 // pred_region
        _
      $region16: #{network_block_forward.15} parent=11 // pred_fallthru
        _
      // Predicated region
      $region17: #{network_block_forward.15} parent=11 // pred_check
        %p170 = pneg %p79
      $region18: #{network_block_forward.15} parent=11 // pred_check_branch
        %172 = sbr.rel (%p170) target = $region20
      $region19: #{network_block_forward.15} parent=11 // pred_region
        _
      $region20: #{network_block_forward.15} parent=11 // pred_fallthru
        _
      // Predicated region
      $region21: #{network_block_forward.15} parent=11 // pred_check
        %p173 = pneg %p100
      $region22: #{network_block_forward.15} parent=11 // pred_check_branch
        %175 = sbr.rel (%p173) target = $region24
      $region23: #{network_block_forward.15} parent=11 // pred_region
        _
      $region24: #{network_block_forward.15} parent=11 // pred_fallthru
        _
    $region12: #{network_block_forward.15} parent=5 // pred_fallthru
      _
    %p176 = scmp.lt.s32.totalorder %s11, 2
    // Predicated region
    $region25: #{network_block_forward.15} parent=5 // pred_check
      %p177 = pneg %p176
    $region26: #{network_block_forward.15} parent=5 // pred_check_branch
      %179 = sbr.rel (%p177) target = $region28
    $region27: #{network_block_forward.15} parent=5 // pred_region
      // Predicated region
      $region29: #{network_block_forward.15} parent=27 // pred_check
        %p180 = pneg %p31
      $region30: #{network_block_forward.15} parent=27 // pred_check_branch
        %182 = sbr.rel (%p180) target = $region32
      $region31: #{network_block_forward.15} parent=27 // pred_region
        %p183 = scmp.lt.s32.totalorder %s11, 1
        %s184 = scalar_select %p183, %s11, 1
        %s185 = smul.addr %s184, 8
        %s186 = smul.addr %s185, 4
        %s187 = scalar_lea.vmem %s0, %s186
      $region32: #{network_block_forward.15} parent=27 // pred_fallthru
        _
      // Predicated region
      $region33: #{network_block_forward.15} parent=27 // pred_check
        %p188 = pneg %p120
      $region34: #{network_block_forward.15} parent=27 // pred_check_branch
        %190 = sbr.rel (%p188) target = $region36
      $region35: #{network_block_forward.15} parent=27 // pred_region
        %p191 = scmp.lt.s32.totalorder %s11, 1
        %s192 = scalar_select %p191, %s11, 1
        %s193 = smul.addr %s192, 8
        %s194 = smul.addr %s193, 4
        %s195 = scalar_lea.vmem %s4, %s194
      $region36: #{network_block_forward.15} parent=27 // pred_fallthru
        _
    $region28: #{network_block_forward.15} parent=5 // pred_fallthru
      _
    %p196 = scmp.le.s32.totalorder 1, %s11
    %p197 = scmp.lt.s32.totalorder %s11, 3
    %p198 = pnand %p196, %p197
    %p199 = pneg %p198
    // Predicated region
    $region37: #{network_block_forward.15} parent=5 // pred_check
      _
    $region38: #{network_block_forward.15} parent=5 // pred_check_branch
      %201 = sbr.rel (%p198) target = $region40
    $region39: #{network_block_forward.15} parent=5 // pred_region
      %s202 = ssub.s32 %s11, 1
      %p203 = scmp.lt.s32.totalorder %s16, 1
      %s204 = scalar_select %p203, %s16, 1
      %s205 = smul.addr %s204, 8
      %s206 = smul.addr %s205, 4
      %s207 = scalar_lea.vmem %s0, %s206
      %p208 = pneg %p37
      %p209 = pneg %p34
      %p210 = pneg %p58
      %p211 = pneg %p55
      %p212 = pneg %p79
      %p213 = pneg %p76
      %p214 = pneg %p100
      %p215 = pneg %p97
      %p216 = scmp.lt.s32.totalorder %s16, 1
      %s217 = scalar_select %p216, %s16, 1
      %s218 = smul.addr %s217, 8
      %s219 = smul.addr %s218, 4
      %s220 = scalar_lea.vmem %s4, %s219
      %p221 = pneg %p126
      %p222 = pneg %p123
      %p223 = pneg %p152
      %p224 = pneg %p149
      %p225 = scmp.lt.s32.totalorder %s16, 1
      %s226 = scalar_select %p225, %s16, 1
      %s227 = smul.addr %s226, 8
      %s228 = smul.addr %s227, 4
      %s229 = scalar_lea.vmem %s5, %s228
      %p230 = scmp.lt.s32.totalorder %s16, 1
      %s231 = scalar_select %p230, %s16, 1
      %s232 = smul.addr %s231, 8
      %s233 = smul.addr %s232, 4
      %s234 = scalar_lea.vmem %s0, %s233
      %p235 = scmp.lt.s32.totalorder %s16, 1
      %s236 = scalar_select %p235, %s16, 1
      %s237 = smul.addr %s236, 8
      %s238 = smul.addr %s237, 4
      %s239 = scalar_lea.vmem %s4, %s238
      %p240 = scmp.lt.s32.totalorder %s16, 1
      %s241 = scalar_select %p240, %s16, 1
      %s242 = smul.addr %s241, 8
      %s243 = smul.addr %s242, 4
      %s244 = scalar_lea.vmem %s5, %s243
      %246 = vst [vmem:[#allocation2] sm:$0xf] 0
      %247 = vst [vmem:[#allocation2 + $0x4] sm:$0xf] 0
      %248 = vst [vmem:[#allocation2 + $0x8] sm:$0xf] 0
      %249 = vst [vmem:[#allocation2 + $0xc] sm:$0xf] 0
      %250 = vst [vmem:[#allocation2 + $0x10] sm:$0xf] 0
      %251 = vst [vmem:[#allocation2 + $0x14] sm:$0xf] 0
      %252 = vst [vmem:[#allocation2 + $0x18] sm:$0xf] 0
      %253 = vst [vmem:[#allocation2 + $0x1c] sm:$0xf] 0
      %254 = vst [vmem:[#allocation2 + $0x20] sm:$0xf] 0
      %255 = vst [vmem:[#allocation2 + $0x24] sm:$0xf] 0
      %256 = vst [vmem:[#allocation2 + $0x28] sm:$0xf] 0
      %257 = vst [vmem:[#allocation2 + $0x2c] sm:$0xf] 0
      %258 = vst [vmem:[#allocation2 + $0x30] sm:$0xf] 0
      %259 = vst [vmem:[#allocation2 + $0x34] sm:$0xf] 0
      %260 = vst [vmem:[#allocation2 + $0x38] sm:$0xf] 0
      %261 = vst [vmem:[#allocation2 + $0x3c] sm:$0xf] 0
      %262 = vst [vmem:[#allocation2 + $0x40] sm:$0xf] 0
      %263 = vst [vmem:[#allocation2 + $0x44] sm:$0xf] 0
      %264 = vst [vmem:[#allocation2 + $0x48] sm:$0xf] 0
      %265 = vst [vmem:[#allocation2 + $0x4c] sm:$0xf] 0
      %266 = vst [vmem:[#allocation2 + $0x50] sm:$0xf] 0
      %267 = vst [vmem:[#allocation2 + $0x54] sm:$0xf] 0
      %268 = vst [vmem:[#allocation2 + $0x58] sm:$0xf] 0
      %269 = vst [vmem:[#allocation2 + $0x5c] sm:$0xf] 0
      %270 = vst [vmem:[#allocation2 + $0x60] sm:$0xf] 0
      %271 = vst [vmem:[#allocation2 + $0x64] sm:$0xf] 0
      %272 = vst [vmem:[#allocation2 + $0x68] sm:$0xf] 0
      %273 = vst [vmem:[#allocation2 + $0x6c] sm:$0xf] 0
      %274 = vst [vmem:[#allocation2 + $0x70] sm:$0xf] 0
      %275 = vst [vmem:[#allocation2 + $0x74] sm:$0xf] 0
      %v276 = vld [vmem:[%s234] sm:$0xf]
      %v277 = vld [vmem:[%s234 + $0x4] sm:$0xf]
      %v278 = vld [vmem:[%s234 + $0x8] sm:$0xf]
      %v279 = vld [vmem:[%s234 + $0xc] sm:$0xf]
      %v280 = vld [vmem:[%s234 + $0x10] sm:$0xf]
      %v281 = vld [vmem:[%s234 + $0x14] sm:$0xf]
      %v282 = vld [vmem:[%s234 + $0x18] sm:$0xf]
      %v283 = vld [vmem:[%s234 + $0x1c] sm:$0xf]
      %v284 = vunpack.c.l.bf16 %v276
      %v285 = vunpack.c.l.bf16 %v277
      %v286 = vunpack.c.l.bf16 %v278
      %v287 = vunpack.c.l.bf16 %v279
      %v288 = vunpack.c.l.bf16 %v280
      %v289 = vunpack.c.l.bf16 %v281
      %v290 = vunpack.c.l.bf16 %v282
      %v291 = vunpack.c.l.bf16 %v283
      %v292 = vld [vmem:[%s1] sm:$0x1]
      %v293 = vld [vmem:[%s2] sm:$0x1]
      %v295 = vperm.slane %v292, 0
      %v297 = vmul.f32 %v284, %v295
      %v298 = vmul.f32 %v285, %v295
      %v299 = vmul.f32 %v286, %v295
      %v300 = vmul.f32 %v287, %v295
      %v301 = vmul.f32 %v288, %v295
      %v302 = vmul.f32 %v289, %v295
      %v303 = vmul.f32 %v290, %v295
      %v304 = vmul.f32 %v291, %v295
      %v306 = vperm.slane %v293, 0
      %v308 = vadd.f32 %v297, %v306
      %v309 = vadd.f32 %v298, %v306
      %v310 = vadd.f32 %v299, %v306
      %v311 = vadd.f32 %v300, %v306
      %v312 = vadd.f32 %v301, %v306
      %v313 = vadd.f32 %v302, %v306
      %v314 = vadd.f32 %v303, %v306
      %v315 = vadd.f32 %v304, %v306
      %v316 = vmax.f32 %v308, 0.0
      %v317 = vmax.f32 %v309, 0.0
      %v318 = vmax.f32 %v310, 0.0
      %v319 = vmax.f32 %v311, 0.0
      %v320 = vmax.f32 %v312, 0.0
      %v321 = vmax.f32 %v313, 0.0
      %v322 = vmax.f32 %v314, 0.0
      %v323 = vmax.f32 %v315, 0.0
      %v324 = vpack.c.bf16 %v316, %v316
      %v325 = vpack.c.bf16 %v317, %v317
      %v326 = vpack.c.bf16 %v318, %v318
      %v327 = vpack.c.bf16 %v319, %v319
      %v328 = vpack.c.bf16 %v320, %v320
      %v329 = vpack.c.bf16 %v321, %v321
      %v330 = vpack.c.bf16 %v322, %v322
      %v331 = vpack.c.bf16 %v323, %v323
      %s332 = scalar_lea.vmem [#allocation2], 12
      %333 = vst [vmem:[%s332 + $0x4] sm:$0xf] %v324
      %334 = vst [vmem:[%s332 + $0x10] sm:$0xf] %v325
      %335 = vst [vmem:[%s332 + $0x1c] sm:$0xf] %v326
      %336 = vst [vmem:[%s332 + $0x28] sm:$0xf] %v327
      %337 = vst [vmem:[%s332 + $0x34] sm:$0xf] %v328
      %338 = vst [vmem:[%s332 + $0x40] sm:$0xf] %v329
      %339 = vst [vmem:[%s332 + $0x4c] sm:$0xf] %v330
      %340 = vst [vmem:[%s332 + $0x58] sm:$0xf] %v331
      %341 = vst [vmem:[#allocation3] sm:$0xff] 0.0
      %342 = vst [vmem:[#allocation3 + $0x8] sm:$0xff] 0.0
      %343 = vst [vmem:[#allocation3 + $0x10] sm:$0xff] 0.0
      %344 = vst [vmem:[#allocation3 + $0x18] sm:$0xff] 0.0
      %345 = vst [vmem:[#allocation3 + $0x20] sm:$0xff] 0.0
      %346 = vst [vmem:[#allocation3 + $0x28] sm:$0xff] 0.0
      %347 = vst [vmem:[#allocation3 + $0x30] sm:$0xff] 0.0
      %348 = vst [vmem:[#allocation3 + $0x38] sm:$0xff] 0.0
      %v349 = vld [vmem:[#allocation2] sm:$0xf]
      %v350 = vld [vmem:[#allocation2 + $0x4] sm:$0xf]
      %v351 = vld [vmem:[#allocation2 + $0x8] sm:$0xf]
      %v352 = vld [vmem:[#allocation2 + $0xc] sm:$0xf]
      %v353 = vld [vmem:[#allocation2 + $0x10] sm:$0xf]
      %v354 = vld [vmem:[#allocation2 + $0x14] sm:$0xf]
      %v355 = vld [vmem:[#allocation2 + $0x18] sm:$0xf]
      %v356 = vld [vmem:[#allocation2 + $0x1c] sm:$0xf]
      %v357 = vld [vmem:[#allocation2 + $0x20] sm:$0xf]
      %v358 = vld [vmem:[#allocation2 + $0x24] sm:$0xf]
      %v359 = vld [vmem:[#allocation2 + $0x28] sm:$0xf]
      %v360 = vld [vmem:[#allocation2 + $0x2c] sm:$0xf]
      %v361 = vld [vmem:[#allocation2 + $0x30] sm:$0xf]
      %v362 = vld [vmem:[#allocation2 + $0x34] sm:$0xf]
      %v363 = vld [vmem:[#allocation2 + $0x38] sm:$0xf]
      %v364 = vld [vmem:[#allocation2 + $0x3c] sm:$0xf]
      %v365 = vld [vmem:[#allocation2 + $0x40] sm:$0xf]
      %v366 = vld [vmem:[#allocation2 + $0x44] sm:$0xf]
      %v367 = vld [vmem:[#allocation2 + $0x48] sm:$0xf]
      %v368 = vld [vmem:[#allocation2 + $0x4c] sm:$0xf]
      %v369 = vld [vmem:[#allocation2 + $0x50] sm:$0xf]
      %v370 = vld [vmem:[#allocation2 + $0x54] sm:$0xf]
      %v371 = vld [vmem:[#allocation2 + $0x58] sm:$0xf]
      %v372 = vld [vmem:[#allocation2 + $0x5c] sm:$0xf]
      %v373 = vld [vmem:[#allocation3] sm:$0xff]
      %v374 = vld [vmem:[#allocation3 + $0x8] sm:$0xff]
      %v375 = vld [vmem:[#allocation3 + $0x10] sm:$0xff]
      %v376 = vld [vmem:[#allocation3 + $0x18] sm:$0xff]
      %v377 = vld [vmem:[#allocation3 + $0x20] sm:$0xff]
      %v378 = vld [vmem:[#allocation3 + $0x28] sm:$0xff]
      %v379 = vld [vmem:[#allocation3 + $0x30] sm:$0xff]
      %v380 = vld [vmem:[#allocation3 + $0x38] sm:$0xff]
      %vm381 = vsmask.f32 256
      %vm382 = vsmask.f32 4368
      %vm383 = vmor %vm381, %vm382
      %v385 = vshrl.u32 %v349, 16
      %v387 = vrot.slane %v385, 7
      %v388 = vrot.slane %v387, 4
      %v390 = vshrl.u32 %v350, 16
      %v392 = vrot.slane %v390, 7
      %v393 = vshll.u32 %v350, 16
      %v395 = vor.u32 %v392, %v393
      %v396 = vsel %vm383, %v388, %v395
      %v398 = vshrl.u32 %v352, 16
      %v400 = vrot.slane %v398, 7
      %v401 = vrot.slane %v400, 4
      %v403 = vshrl.u32 %v353, 16
      %v405 = vrot.slane %v403, 7
      %v406 = vshll.u32 %v353, 16
      %v408 = vor.u32 %v405, %v406
      %v409 = vsel %vm383, %v401, %v408
      %v411 = vshrl.u32 %v355, 16
      %v413 = vrot.slane %v411, 7
      %v414 = vrot.slane %v413, 4
      %v416 = vshrl.u32 %v356, 16
      %v418 = vrot.slane %v416, 7
      %v419 = vshll.u32 %v356, 16
      %v421 = vor.u32 %v418, %v419
      %v422 = vsel %vm383, %v414, %v421
      %v424 = vshrl.u32 %v358, 16
      %v426 = vrot.slane %v424, 7
      %v427 = vrot.slane %v426, 4
      %v429 = vshrl.u32 %v359, 16
      %v431 = vrot.slane %v429, 7
      %v432 = vshll.u32 %v359, 16
      %v434 = vor.u32 %v431, %v432
      %v435 = vsel %vm383, %v427, %v434
      %v437 = vshrl.u32 %v361, 16
      %v439 = vrot.slane %v437, 7
      %v440 = vrot.slane %v439, 4
      %v442 = vshrl.u32 %v362, 16
      %v444 = vrot.slane %v442, 7
      %v445 = vshll.u32 %v362, 16
      %v447 = vor.u32 %v444, %v445
      %v448 = vsel %vm383, %v440, %v447
      %v450 = vshrl.u32 %v364, 16
      %v452 = vrot.slane %v450, 7
      %v453 = vrot.slane %v452, 4
      %v455 = vshrl.u32 %v365, 16
      %v457 = vrot.slane %v455, 7
      %v458 = vshll.u32 %v365, 16
      %v460 = vor.u32 %v457, %v458
      %v461 = vsel %vm383, %v453, %v460
      %v463 = vshrl.u32 %v367, 16
      %v465 = vrot.slane %v463, 7
      %v466 = vrot.slane %v465, 4
      %v468 = vshrl.u32 %v368, 16
      %v470 = vrot.slane %v468, 7
      %v471 = vshll.u32 %v368, 16
      %v473 = vor.u32 %v470, %v471
      %v474 = vsel %vm383, %v466, %v473
      %v476 = vshrl.u32 %v370, 16
      %v478 = vrot.slane %v476, 7
      %v479 = vrot.slane %v478, 4
      %v481 = vshrl.u32 %v371, 16
      %v483 = vrot.slane %v481, 7
      %v484 = vshll.u32 %v371, 16
      %v486 = vor.u32 %v483, %v484
      %v487 = vsel %vm383, %v479, %v486
      %v488 = vld [vmem:[%s3] sm:$0xf]
      %v489 = vld [vmem:[%s3 + $0x4] sm:$0xf]
      %v490 = vld [vmem:[%s3 + $0x8] sm:$0xf]
      %v491 = vld [vmem:[%s3 + $0xc] sm:$0xf]
      %v492 = vld [vmem:[%s3 + $0x10] sm:$0xf]
      %v493 = vld [vmem:[%s3 + $0x14] sm:$0xf]
      %v494 = vld [vmem:[%s3 + $0x18] sm:$0xf]
      %v495 = vld [vmem:[%s3 + $0x1c] sm:$0xf]
      %v496 = vld [vmem:[%s3 + $0x20] sm:$0xf]
      %v497 = vld [vmem:[%s3 + $0x24] sm:$0xf]
      %v498 = vld [vmem:[%s3 + $0x28] sm:$0xf]
      %v499 = vld [vmem:[%s3 + $0x2c] sm:$0xf]
      %v500 = vld [vmem:[%s3 + $0x30] sm:$0xf]
      %v501 = vld [vmem:[%s3 + $0x34] sm:$0xf]
      %v502 = vld [vmem:[%s3 + $0x38] sm:$0xf]
      %v503 = vld [vmem:[%s3 + $0x3c] sm:$0xf]
      %v504 = vunpack.c.l.b16 %v396
      %v505 = vunpack.c.l.b16 %v409
      %v506 = vunpack.c.l.b16 %v422
      %v507 = vunpack.c.l.b16 %v435
      %v508 = vunpack.c.l.b16 %v448
      %v509 = vunpack.c.l.b16 %v461
      %v510 = vunpack.c.l.b16 %v474
      %v511 = vunpack.c.l.b16 %v487
      %v512 = vpack.c.b16 %v505, %v504
      %v513 = vpack.c.b16 %v507, %v506
      %v514 = vpack.c.b16 %v509, %v508
      %v515 = vpack.c.b16 %v511, %v510
      %v536 = vunpack.c.l.b16 %v488
      %v537 = vunpack.c.l.b16 %v489
      %v538 = vunpack.c.l.b16 %v490
      %v539 = vunpack.c.l.b16 %v491
      %v540 = vunpack.c.l.b16 %v492
      %v541 = vunpack.c.l.b16 %v493
      %v542 = vunpack.c.l.b16 %v494
      %v543 = vunpack.c.l.b16 %v495
      %v544 = vunpack.c.l.b16 %v496
      %v545 = vunpack.c.l.b16 %v497
      %v546 = vunpack.c.l.b16 %v498
      %v547 = vunpack.c.l.b16 %v499
      %v548 = vunpack.c.l.b16 %v500
      %v549 = vunpack.c.l.b16 %v501
      %v550 = vunpack.c.l.b16 %v502
      %v551 = vunpack.c.l.b16 %v503
      %v552 = vpack.c.b16 %v537, %v536
      %v553 = vpack.c.b16 %v539, %v538
      %v554 = vpack.c.b16 %v541, %v540
      %v555 = vpack.c.b16 %v543, %v542
      %v556 = vpack.c.b16 %v545, %v544
      %v557 = vpack.c.b16 %v547, %v546
      %v558 = vpack.c.b16 %v549, %v548
      %v559 = vpack.c.b16 %v551, %v550
      %568 = vmatpush.bf16.msra.mxu0 %v559
      %569 = vmatpush.bf16.msra.mxu0 %v558
      %570 = vmatpush.bf16.msra.mxu0 %v557
      %571 = vmatpush.bf16.msra.mxu0 %v556
      %572 = vmatpush.bf16.msra.mxu0 %v555
      %573 = vmatpush.bf16.msra.mxu0 %v554
      %574 = vmatpush.bf16.msra.mxu0 %v553
      %575 = vmatpush.bf16.msra.mxu0 %v552
      %576 = vmatmul.bf16.gmra.mxu0 %v512
      %v577 = vpop.f32.mrf.mxu0
      %v578 = vadd.f32 0.0, %v577
      %v579 = vpop.f32.mrf.mxu0
      %v580 = vadd.f32 0.0, %v579
      %581 = vmatmul.bf16.gmra.mxu0 %v513
      %v582 = vpop.f32.mrf.mxu0
      %v583 = vadd.f32 0.0, %v582
      %v584 = vpop.f32.mrf.mxu0
      %v585 = vadd.f32 0.0, %v584
      %586 = vmatmul.bf16.gmra.mxu0 %v514
      %v587 = vpop.f32.mrf.mxu0
      %v588 = vadd.f32 0.0, %v587
      %v589 = vpop.f32.mrf.mxu0
      %v590 = vadd.f32 0.0, %v589
      %591 = vmatmul.bf16.gmra.mxu0 %v515
      %v592 = vpop.f32.mrf.mxu0
      %v593 = vadd.f32 0.0, %v592
      %v594 = vpop.f32.mrf.mxu0
      %v595 = vadd.f32 0.0, %v594
      %596 = vdwg.mxu0
      %v597 = vadd.f32 %v373, %v578
      %v598 = vadd.f32 %v374, %v580
      %v599 = vadd.f32 %v375, %v583
      %v600 = vadd.f32 %v376, %v585
      %v601 = vadd.f32 %v377, %v588
      %v602 = vadd.f32 %v378, %v590
      %v603 = vadd.f32 %v379, %v593
      %v604 = vadd.f32 %v380, %v595
      %605 = vst [vmem:[#allocation3] sm:$0xff] %v597
      %606 = vst [vmem:[#allocation3 + $0x8] sm:$0xff] %v598
      %607 = vst [vmem:[#allocation3 + $0x10] sm:$0xff] %v599
      %608 = vst [vmem:[#allocation3 + $0x18] sm:$0xff] %v600
      %609 = vst [vmem:[#allocation3 + $0x20] sm:$0xff] %v601
      %610 = vst [vmem:[#allocation3 + $0x28] sm:$0xff] %v602
      %611 = vst [vmem:[#allocation3 + $0x30] sm:$0xff] %v603
      %612 = vst [vmem:[#allocation3 + $0x38] sm:$0xff] %v604
      %v613 = vld [vmem:[#allocation3] sm:$0xff]
      %v614 = vld [vmem:[#allocation3 + $0x8] sm:$0xff]
      %v615 = vld [vmem:[#allocation3 + $0x10] sm:$0xff]
      %v616 = vld [vmem:[#allocation3 + $0x18] sm:$0xff]
      %v617 = vld [vmem:[#allocation3 + $0x20] sm:$0xff]
      %v618 = vld [vmem:[#allocation3 + $0x28] sm:$0xff]
      %v619 = vld [vmem:[#allocation3 + $0x30] sm:$0xff]
      %v620 = vld [vmem:[#allocation3 + $0x38] sm:$0xff]
      %s621 = scalar_lea.vmem %s3, 64
      %v622 = vld [vmem:[%s621] sm:$0xf]
      %v623 = vld [vmem:[%s621 + $0x4] sm:$0xf]
      %v624 = vld [vmem:[%s621 + $0x8] sm:$0xf]
      %v625 = vld [vmem:[%s621 + $0xc] sm:$0xf]
      %v626 = vld [vmem:[%s621 + $0x10] sm:$0xf]
      %v627 = vld [vmem:[%s621 + $0x14] sm:$0xf]
      %v628 = vld [vmem:[%s621 + $0x18] sm:$0xf]
      %v629 = vld [vmem:[%s621 + $0x1c] sm:$0xf]
      %v630 = vld [vmem:[%s621 + $0x20] sm:$0xf]
      %v631 = vld [vmem:[%s621 + $0x24] sm:$0xf]
      %v632 = vld [vmem:[%s621 + $0x28] sm:$0xf]
      %v633 = vld [vmem:[%s621 + $0x2c] sm:$0xf]
      %v634 = vld [vmem:[%s621 + $0x30] sm:$0xf]
      %v635 = vld [vmem:[%s621 + $0x34] sm:$0xf]
      %v636 = vld [vmem:[%s621 + $0x38] sm:$0xf]
      %v637 = vld [vmem:[%s621 + $0x3c] sm:$0xf]
      %v646 = vunpack.c.l.b16 %v350
      %v647 = vunpack.c.l.b16 %v353
      %v648 = vunpack.c.l.b16 %v356
      %v649 = vunpack.c.l.b16 %v359
      %v650 = vunpack.c.l.b16 %v362
      %v651 = vunpack.c.l.b16 %v365
      %v652 = vunpack.c.l.b16 %v368
      %v653 = vunpack.c.l.b16 %v371
      %v654 = vpack.c.b16 %v647, %v646
      %v655 = vpack.c.b16 %v649, %v648
      %v656 = vpack.c.b16 %v651, %v650
      %v657 = vpack.c.b16 %v653, %v652
      %v678 = vunpack.c.l.b16 %v622
      %v679 = vunpack.c.l.b16 %v623
      %v680 = vunpack.c.l.b16 %v624
      %v681 = vunpack.c.l.b16 %v625
      %v682 = vunpack.c.l.b16 %v626
      %v683 = vunpack.c.l.b16 %v627
      %v684 = vunpack.c.l.b16 %v628
      %v685 = vunpack.c.l.b16 %v629
      %v686 = vunpack.c.l.b16 %v630
      %v687 = vunpack.c.l.b16 %v631
      %v688 = vunpack.c.l.b16 %v632
      %v689 = vunpack.c.l.b16 %v633
      %v690 = vunpack.c.l.b16 %v634
      %v691 = vunpack.c.l.b16 %v635
      %v692 = vunpack.c.l.b16 %v636
      %v693 = vunpack.c.l.b16 %v637
      %v694 = vpack.c.b16 %v679, %v678
      %v695 = vpack.c.b16 %v681, %v680
      %v696 = vpack.c.b16 %v683, %v682
      %v697 = vpack.c.b16 %v685, %v684
      %v698 = vpack.c.b16 %v687, %v686
      %v699 = vpack.c.b16 %v689, %v688
      %v700 = vpack.c.b16 %v691, %v690
      %v701 = vpack.c.b16 %v693, %v692
      %710 = vmatpush.bf16.msra.mxu0 %v701
      %711 = vmatpush.bf16.msra.mxu0 %v700
      %712 = vmatpush.bf16.msra.mxu0 %v699
      %713 = vmatpush.bf16.msra.mxu0 %v698
      %714 = vmatpush.bf16.msra.mxu0 %v697
      %715 = vmatpush.bf16.msra.mxu0 %v696
      %716 = vmatpush.bf16.msra.mxu0 %v695
      %717 = vmatpush.bf16.msra.mxu0 %v694
      %718 = vmatmul.bf16.gmra.mxu0 %v654
      %v719 = vpop.f32.mrf.mxu0
      %v720 = vadd.f32 0.0, %v719
      %v721 = vpop.f32.mrf.mxu0
      %v722 = vadd.f32 0.0, %v721
      %723 = vmatmul.bf16.gmra.mxu0 %v655
      %v724 = vpop.f32.mrf.mxu0
      %v725 = vadd.f32 0.0, %v724
      %v726 = vpop.f32.mrf.mxu0
      %v727 = vadd.f32 0.0, %v726
      %728 = vmatmul.bf16.gmra.mxu0 %v656
      %v729 = vpop.f32.mrf.mxu0
      %v730 = vadd.f32 0.0, %v729
      %v731 = vpop.f32.mrf.mxu0
      %v732 = vadd.f32 0.0, %v731
      %733 = vmatmul.bf16.gmra.mxu0 %v657
      %v734 = vpop.f32.mrf.mxu0
      %v735 = vadd.f32 0.0, %v734
      %v736 = vpop.f32.mrf.mxu0
      %v737 = vadd.f32 0.0, %v736
      %738 = vdwg.mxu0
      %v739 = vadd.f32 %v613, %v720
      %v740 = vadd.f32 %v614, %v722
      %v741 = vadd.f32 %v615, %v725
      %v742 = vadd.f32 %v616, %v727
      %v743 = vadd.f32 %v617, %v730
      %v744 = vadd.f32 %v618, %v732
      %v745 = vadd.f32 %v619, %v735
      %v746 = vadd.f32 %v620, %v737
      %747 = vst [vmem:[#allocation3] sm:$0xff] %v739
      %748 = vst [vmem:[#allocation3 + $0x8] sm:$0xff] %v740
      %749 = vst [vmem:[#allocation3 + $0x10] sm:$0xff] %v741
      %750 = vst [vmem:[#allocation3 + $0x18] sm:$0xff] %v742
      %751 = vst [vmem:[#allocation3 + $0x20] sm:$0xff] %v743
      %752 = vst [vmem:[#allocation3 + $0x28] sm:$0xff] %v744
      %753 = vst [vmem:[#allocation3 + $0x30] sm:$0xff] %v745
      %754 = vst [vmem:[#allocation3 + $0x38] sm:$0xff] %v746
      %v755 = vld [vmem:[#allocation3] sm:$0xff]
      %v756 = vld [vmem:[#allocation3 + $0x8] sm:$0xff]
      %v757 = vld [vmem:[#allocation3 + $0x10] sm:$0xff]
      %v758 = vld [vmem:[#allocation3 + $0x18] sm:$0xff]
      %v759 = vld [vmem:[#allocation3 + $0x20] sm:$0xff]
      %v760 = vld [vmem:[#allocation3 + $0x28] sm:$0xff]
      %v761 = vld [vmem:[#allocation3 + $0x30] sm:$0xff]
      %v762 = vld [vmem:[#allocation3 + $0x38] sm:$0xff]
      %vm763 = vsmask.f32 3328
      %vm764 = vsmask.f32 7440
      %vm765 = vmor %vm763, %vm764
      %v766 = vrot.slane %v390, 4
      %v767 = vrot.slane %v393, 5
      %v768 = vor.u32 %v766, %v767
      %v769 = vrot.slane %v768, 4
      %v771 = vshll.u32 %v351, 16
      %v773 = vrot.slane %v771, 5
      %v774 = vsel %vm765, %v769, %v773
      %v775 = vrot.slane %v403, 4
      %v776 = vrot.slane %v406, 5
      %v777 = vor.u32 %v775, %v776
      %v778 = vrot.slane %v777, 4
      %v780 = vshll.u32 %v354, 16
      %v782 = vrot.slane %v780, 5
      %v783 = vsel %vm765, %v778, %v782
      %v784 = vrot.slane %v416, 4
      %v785 = vrot.slane %v419, 5
      %v786 = vor.u32 %v784, %v785
      %v787 = vrot.slane %v786, 4
      %v789 = vshll.u32 %v357, 16
      %v791 = vrot.slane %v789, 5
      %v792 = vsel %vm765, %v787, %v791
      %v793 = vrot.slane %v429, 4
      %v794 = vrot.slane %v432, 5
      %v795 = vor.u32 %v793, %v794
      %v796 = vrot.slane %v795, 4
      %v798 = vshll.u32 %v360, 16
      %v800 = vrot.slane %v798, 5
      %v801 = vsel %vm765, %v796, %v800
      %v802 = vrot.slane %v442, 4
      %v803 = vrot.slane %v445, 5
      %v804 = vor.u32 %v802, %v803
      %v805 = vrot.slane %v804, 4
      %v807 = vshll.u32 %v363, 16
      %v809 = vrot.slane %v807, 5
      %v810 = vsel %vm765, %v805, %v809
      %v811 = vrot.slane %v455, 4
      %v812 = vrot.slane %v458, 5
      %v813 = vor.u32 %v811, %v812
      %v814 = vrot.slane %v813, 4
      %v816 = vshll.u32 %v366, 16
      %v818 = vrot.slane %v816, 5
      %v819 = vsel %vm765, %v814, %v818
      %v820 = vrot.slane %v468, 4
      %v821 = vrot.slane %v471, 5
      %v822 = vor.u32 %v820, %v821
      %v823 = vrot.slane %v822, 4
      %v825 = vshll.u32 %v369, 16
      %v827 = vrot.slane %v825, 5
      %v828 = vsel %vm765, %v823, %v827
      %v829 = vrot.slane %v481, 4
      %v830 = vrot.slane %v484, 5
      %v831 = vor.u32 %v829, %v830
      %v832 = vrot.slane %v831, 4
      %v834 = vshll.u32 %v372, 16
      %v836 = vrot.slane %v834, 5
      %v837 = vsel %vm765, %v832, %v836
      %s838 = scalar_lea.vmem %s3, 128
      %v839 = vld [vmem:[%s838] sm:$0xf]
      %v840 = vld [vmem:[%s838 + $0x4] sm:$0xf]
      %v841 = vld [vmem:[%s838 + $0x8] sm:$0xf]
      %v842 = vld [vmem:[%s838 + $0xc] sm:$0xf]
      %v843 = vld [vmem:[%s838 + $0x10] sm:$0xf]
      %v844 = vld [vmem:[%s838 + $0x14] sm:$0xf]
      %v845 = vld [vmem:[%s838 + $0x18] sm:$0xf]
      %v846 = vld [vmem:[%s838 + $0x1c] sm:$0xf]
      %v847 = vld [vmem:[%s838 + $0x20] sm:$0xf]
      %v848 = vld [vmem:[%s838 + $0x24] sm:$0xf]
      %v849 = vld [vmem:[%s838 + $0x28] sm:$0xf]
      %v850 = vld [vmem:[%s838 + $0x2c] sm:$0xf]
      %v851 = vld [vmem:[%s838 + $0x30] sm:$0xf]
      %v852 = vld [vmem:[%s838 + $0x34] sm:$0xf]
      %v853 = vld [vmem:[%s838 + $0x38] sm:$0xf]
      %v854 = vld [vmem:[%s838 + $0x3c] sm:$0xf]
      %v855 = vunpack.c.l.b16 %v774
      %v856 = vunpack.c.l.b16 %v783
      %v857 = vunpack.c.l.b16 %v792
      %v858 = vunpack.c.l.b16 %v801
      %v859 = vunpack.c.l.b16 %v810
      %v860 = vunpack.c.l.b16 %v819
      %v861 = vunpack.c.l.b16 %v828
      %v862 = vunpack.c.l.b16 %v837
      %v863 = vpack.c.b16 %v856, %v855
      %v864 = vpack.c.b16 %v858, %v857
      %v865 = vpack.c.b16 %v860, %v859
      %v866 = vpack.c.b16 %v862, %v861
      %v887 = vunpack.c.l.b16 %v839
      %v888 = vunpack.c.l.b16 %v840
      %v889 = vunpack.c.l.b16 %v841
      %v890 = vunpack.c.l.b16 %v842
      %v891 = vunpack.c.l.b16 %v843
      %v892 = vunpack.c.l.b16 %v844
      %v893 = vunpack.c.l.b16 %v845
      %v894 = vunpack.c.l.b16 %v846
      %v895 = vunpack.c.l.b16 %v847
      %v896 = vunpack.c.l.b16 %v848
      %v897 = vunpack.c.l.b16 %v849
      %v898 = vunpack.c.l.b16 %v850
      %v899 = vunpack.c.l.b16 %v851
      %v900 = vunpack.c.l.b16 %v852
      %v901 = vunpack.c.l.b16 %v853
      %v902 = vunpack.c.l.b16 %v854
      %v903 = vpack.c.b16 %v888, %v887
      %v904 = vpack.c.b16 %v890, %v889
      %v905 = vpack.c.b16 %v892, %v891
      %v906 = vpack.c.b16 %v894, %v893
      %v907 = vpack.c.b16 %v896, %v895
      %v908 = vpack.c.b16 %v898, %v897
      %v909 = vpack.c.b16 %v900, %v899
      %v910 = vpack.c.b16 %v902, %v901
      %919 = vmatpush.bf16.msra.mxu0 %v910
      %920 = vmatpush.bf16.msra.mxu0 %v909
      %921 = vmatpush.bf16.msra.mxu0 %v908
      %922 = vmatpush.bf16.msra.mxu0 %v907
      %923 = vmatpush.bf16.msra.mxu0 %v906
      %924 = vmatpush.bf16.msra.mxu0 %v905
      %925 = vmatpush.bf16.msra.mxu0 %v904
      %926 = vmatpush.bf16.msra.mxu0 %v903
      %927 = vmatmul.bf16.gmra.mxu0 %v863
      %v928 = vpop.f32.mrf.mxu0
      %v929 = vadd.f32 0.0, %v928
      %v930 = vpop.f32.mrf.mxu0
      %v931 = vadd.f32 0.0, %v930
      %932 = vmatmul.bf16.gmra.mxu0 %v864
      %v933 = vpop.f32.mrf.mxu0
      %v934 = vadd.f32 0.0, %v933
      %v935 = vpop.f32.mrf.mxu0
      %v936 = vadd.f32 0.0, %v935
      %937 = vmatmul.bf16.gmra.mxu0 %v865
      %v938 = vpop.f32.mrf.mxu0
      %v939 = vadd.f32 0.0, %v938
      %v940 = vpop.f32.mrf.mxu0
      %v941 = vadd.f32 0.0, %v940
      %942 = vmatmul.bf16.gmra.mxu0 %v866
      %v943 = vpop.f32.mrf.mxu0
      %v944 = vadd.f32 0.0, %v943
      %v945 = vpop.f32.mrf.mxu0
      %v946 = vadd.f32 0.0, %v945
      %947 = vdwg.mxu0
      %v948 = vadd.f32 %v755, %v929
      %v949 = vadd.f32 %v756, %v931
      %v950 = vadd.f32 %v757, %v934
      %v951 = vadd.f32 %v758, %v936
      %v952 = vadd.f32 %v759, %v939
      %v953 = vadd.f32 %v760, %v941
      %v954 = vadd.f32 %v761, %v944
      %v955 = vadd.f32 %v762, %v946
      %956 = vst [vmem:[#allocation3] sm:$0xff] %v948
      %957 = vst [vmem:[#allocation3 + $0x8] sm:$0xff] %v949
      %958 = vst [vmem:[#allocation3 + $0x10] sm:$0xff] %v950
      %959 = vst [vmem:[#allocation3 + $0x18] sm:$0xff] %v951
      %960 = vst [vmem:[#allocation3 + $0x20] sm:$0xff] %v952
      %961 = vst [vmem:[#allocation3 + $0x28] sm:$0xff] %v953
      %962 = vst [vmem:[#allocation3 + $0x30] sm:$0xff] %v954
      %963 = vst [vmem:[#allocation3 + $0x38] sm:$0xff] %v955
      %v964 = vld [vmem:[%s332] sm:$0xf]
      %v965 = vld [vmem:[%s332 + $0x4] sm:$0xf]
      %v966 = vld [vmem:[%s332 + $0x8] sm:$0xf]
      %v967 = vld [vmem:[%s332 + $0xc] sm:$0xf]
      %v968 = vld [vmem:[%s332 + $0x10] sm:$0xf]
      %v969 = vld [vmem:[%s332 + $0x14] sm:$0xf]
      %v970 = vld [vmem:[%s332 + $0x18] sm:$0xf]
      %v971 = vld [vmem:[%s332 + $0x1c] sm:$0xf]
      %v972 = vld [vmem:[%s332 + $0x20] sm:$0xf]
      %v973 = vld [vmem:[%s332 + $0x24] sm:$0xf]
      %v974 = vld [vmem:[%s332 + $0x28] sm:$0xf]
      %v975 = vld [vmem:[%s332 + $0x2c] sm:$0xf]
      %v976 = vld [vmem:[%s332 + $0x30] sm:$0xf]
      %v977 = vld [vmem:[%s332 + $0x34] sm:$0xf]
      %v978 = vld [vmem:[%s332 + $0x38] sm:$0xf]
      %v979 = vld [vmem:[%s332 + $0x3c] sm:$0xf]
      %v980 = vld [vmem:[%s332 + $0x40] sm:$0xf]
      %v981 = vld [vmem:[%s332 + $0x44] sm:$0xf]
      %v982 = vld [vmem:[%s332 + $0x48] sm:$0xf]
      %v983 = vld [vmem:[%s332 + $0x4c] sm:$0xf]
      %v984 = vld [vmem:[%s332 + $0x50] sm:$0xf]
      %v985 = vld [vmem:[%s332 + $0x54] sm:$0xf]
      %v986 = vld [vmem:[%s332 + $0x58] sm:$0xf]
      %v987 = vld [vmem:[%s332 + $0x5c] sm:$0xf]
      %v988 = vld [vmem:[#allocation3] sm:$0xff]
      %v989 = vld [vmem:[#allocation3 + $0x8] sm:$0xff]
      %v990 = vld [vmem:[#allocation3 + $0x10] sm:$0xff]
      %v991 = vld [vmem:[#allocation3 + $0x18] sm:$0xff]
      %v992 = vld [vmem:[#allocation3 + $0x20] sm:$0xff]
      %v993 = vld [vmem:[#allocation3 + $0x28] sm:$0xff]
      %v994 = vld [vmem:[#allocation3 + $0x30] sm:$0xff]
      %v995 = vld [vmem:[#allocation3 + $0x38] sm:$0xff]
      %v997 = vshrl.u32 %v964, 16
      %v999 = vrot.slane %v997, 7
      %v1000 = vrot.slane %v999, 4
      %v1002 = vshrl.u32 %v965, 16
      %v1004 = vrot.slane %v1002, 7
      %v1005 = vshll.u32 %v965, 16
      %v1007 = vor.u32 %v1004, %v1005
      %v1008 = vsel %vm383, %v1000, %v1007
      %v1010 = vshrl.u32 %v967, 16
      %v1012 = vrot.slane %v1010, 7
      %v1013 = vrot.slane %v1012, 4
      %v1015 = vshrl.u32 %v968, 16
      %v1017 = vrot.slane %v1015, 7
      %v1018 = vshll.u32 %v968, 16
      %v1020 = vor.u32 %v1017, %v1018
      %v1021 = vsel %vm383, %v1013, %v1020
      %v1023 = vshrl.u32 %v970, 16
      %v1025 = vrot.slane %v1023, 7
      %v1026 = vrot.slane %v1025, 4
      %v1028 = vshrl.u32 %v971, 16
      %v1030 = vrot.slane %v1028, 7
      %v1031 = vshll.u32 %v971, 16
      %v1033 = vor.u32 %v1030, %v1031
      %v1034 = vsel %vm383, %v1026, %v1033
      %v1036 = vshrl.u32 %v973, 16
      %v1038 = vrot.slane %v1036, 7
      %v1039 = vrot.slane %v1038, 4
      %v1041 = vshrl.u32 %v974, 16
      %v1043 = vrot.slane %v1041, 7
      %v1044 = vshll.u32 %v974, 16
      %v1046 = vor.u32 %v1043, %v1044
      %v1047 = vsel %vm383, %v1039, %v1046
      %v1049 = vshrl.u32 %v976, 16
      %v1051 = vrot.slane %v1049, 7
      %v1052 = vrot.slane %v1051, 4
      %v1054 = vshrl.u32 %v977, 16
      %v1056 = vrot.slane %v1054, 7
      %v1057 = vshll.u32 %v977, 16
      %v1059 = vor.u32 %v1056, %v1057
      %v1060 = vsel %vm383, %v1052, %v1059
      %v1062 = vshrl.u32 %v979, 16
      %v1064 = vrot.slane %v1062, 7
      %v1065 = vrot.slane %v1064, 4
      %v1067 = vshrl.u32 %v980, 16
      %v1069 = vrot.slane %v1067, 7
      %v1070 = vshll.u32 %v980, 16
      %v1072 = vor.u32 %v1069, %v1070
      %v1073 = vsel %vm383, %v1065, %v1072
      %v1075 = vshrl.u32 %v982, 16
      %v1077 = vrot.slane %v1075, 7
      %v1078 = vrot.slane %v1077, 4
      %v1080 = vshrl.u32 %v983, 16
      %v1082 = vrot.slane %v1080, 7
      %v1083 = vshll.u32 %v983, 16
      %v1085 = vor.u32 %v1082, %v1083
      %v1086 = vsel %vm383, %v1078, %v1085
      %v1088 = vshrl.u32 %v985, 16
      %v1090 = vrot.slane %v1088, 7
      %v1091 = vrot.slane %v1090, 4
      %v1093 = vshrl.u32 %v986, 16
      %v1095 = vrot.slane %v1093, 7
      %v1096 = vshll.u32 %v986, 16
      %v1098 = vor.u32 %v1095, %v1096
      %v1099 = vsel %vm383, %v1091, %v1098
      %s1100 = scalar_lea.vmem %s3, 192
      %v1101 = vld [vmem:[%s1100] sm:$0xf]
      %v1102 = vld [vmem:[%s1100 + $0x4] sm:$0xf]
      %v1103 = vld [vmem:[%s1100 + $0x8] sm:$0xf]
      %v1104 = vld [vmem:[%s1100 + $0xc] sm:$0xf]
      %v1105 = vld [vmem:[%s1100 + $0x10] sm:$0xf]
      %v1106 = vld [vmem:[%s1100 + $0x14] sm:$0xf]
      %v1107 = vld [vmem:[%s1100 + $0x18] sm:$0xf]
      %v1108 = vld [vmem:[%s1100 + $0x1c] sm:$0xf]
      %v1109 = vld [vmem:[%s1100 + $0x20] sm:$0xf]
      %v1110 = vld [vmem:[%s1100 + $0x24] sm:$0xf]
      %v1111 = vld [vmem:[%s1100 + $0x28] sm:$0xf]
      %v1112 = vld [vmem:[%s1100 + $0x2c] sm:$0xf]
      %v1113 = vld [vmem:[%s1100 + $0x30] sm:$0xf]
      %v1114 = vld [vmem:[%s1100 + $0x34] sm:$0xf]
      %v1115 = vld [vmem:[%s1100 + $0x38] sm:$0xf]
      %v1116 = vld [vmem:[%s1100 + $0x3c] sm:$0xf]
      %v1117 = vunpack.c.l.b16 %v1008
      %v1118 = vunpack.c.l.b16 %v1021
      %v1119 = vunpack.c.l.b16 %v1034
      %v1120 = vunpack.c.l.b16 %v1047
      %v1121 = vunpack.c.l.b16 %v1060
      %v1122 = vunpack.c.l.b16 %v1073
      %v1123 = vunpack.c.l.b16 %v1086
      %v1124 = vunpack.c.l.b16 %v1099
      %v1125 = vpack.c.b16 %v1118, %v1117
      %v1126 = vpack.c.b16 %v1120, %v1119
      %v1127 = vpack.c.b16 %v1122, %v1121
      %v1128 = vpack.c.b16 %v1124, %v1123
      %v1149 = vunpack.c.l.b16 %v1101
      %v1150 = vunpack.c.l.b16 %v1102
      %v1151 = vunpack.c.l.b16 %v1103
      %v1152 = vunpack.c.l.b16 %v1104
      %v1153 = vunpack.c.l.b16 %v1105
      %v1154 = vunpack.c.l.b16 %v1106
      %v1155 = vunpack.c.l.b16 %v1107
      %v1156 = vunpack.c.l.b16 %v1108
      %v1157 = vunpack.c.l.b16 %v1109
      %v1158 = vunpack.c.l.b16 %v1110
      %v1159 = vunpack.c.l.b16 %v1111
      %v1160 = vunpack.c.l.b16 %v1112
      %v1161 = vunpack.c.l.b16 %v1113
      %v1162 = vunpack.c.l.b16 %v1114
      %v1163 = vunpack.c.l.b16 %v1115
      %v1164 = vunpack.c.l.b16 %v1116
      %v1165 = vpack.c.b16 %v1150, %v1149
      %v1166 = vpack.c.b16 %v1152, %v1151
      %v1167 = vpack.c.b16 %v1154, %v1153
      %v1168 = vpack.c.b16 %v1156, %v1155
      %v1169 = vpack.c.b16 %v1158, %v1157
      %v1170 = vpack.c.b16 %v1160, %v1159
      %v1171 = vpack.c.b16 %v1162, %v1161
      %v1172 = vpack.c.b16 %v1164, %v1163
      %1181 = vmatpush.bf16.msra.mxu0 %v1172
      %1182 = vmatpush.bf16.msra.mxu0 %v1171
      %1183 = vmatpush.bf16.msra.mxu0 %v1170
      %1184 = vmatpush.bf16.msra.mxu0 %v1169
      %1185 = vmatpush.bf16.msra.mxu0 %v1168
      %1186 = vmatpush.bf16.msra.mxu0 %v1167
      %1187 = vmatpush.bf16.msra.mxu0 %v1166
      %1188 = vmatpush.bf16.msra.mxu0 %v1165
      %1189 = vmatmul.bf16.gmra.mxu0 %v1125
      %v1190 = vpop.f32.mrf.mxu0
      %v1191 = vadd.f32 0.0, %v1190
      %v1192 = vpop.f32.mrf.mxu0
      %v1193 = vadd.f32 0.0, %v1192
      %1194 = vmatmul.bf16.gmra.mxu0 %v1126
      %v1195 = vpop.f32.mrf.mxu0
      %v1196 = vadd.f32 0.0, %v1195
      %v1197 = vpop.f32.mrf.mxu0
      %v1198 = vadd.f32 0.0, %v1197
      %1199 = vmatmul.bf16.gmra.mxu0 %v1127
      %v1200 = vpop.f32.mrf.mxu0
      %v1201 = vadd.f32 0.0, %v1200
      %v1202 = vpop.f32.mrf.mxu0
      %v1203 = vadd.f32 0.0, %v1202
      %1204 = vmatmul.bf16.gmra.mxu0 %v1128
      %v1205 = vpop.f32.mrf.mxu0
      %v1206 = vadd.f32 0.0, %v1205
      %v1207 = vpop.f32.mrf.mxu0
      %v1208 = vadd.f32 0.0, %v1207
      %1209 = vdwg.mxu0
      %v1210 = vadd.f32 %v988, %v1191
      %v1211 = vadd.f32 %v989, %v1193
      %v1212 = vadd.f32 %v990, %v1196
      %v1213 = vadd.f32 %v991, %v1198
      %v1214 = vadd.f32 %v992, %v1201
      %v1215 = vadd.f32 %v993, %v1203
      %v1216 = vadd.f32 %v994, %v1206
      %v1217 = vadd.f32 %v995, %v1208
      %1218 = vst [vmem:[#allocation3] sm:$0xff] %v1210
      %1219 = vst [vmem:[#allocation3 + $0x8] sm:$0xff] %v1211
      %1220 = vst [vmem:[#allocation3 + $0x10] sm:$0xff] %v1212
      %1221 = vst [vmem:[#allocation3 + $0x18] sm:$0xff] %v1213
      %1222 = vst [vmem:[#allocation3 + $0x20] sm:$0xff] %v1214
      %1223 = vst [vmem:[#allocation3 + $0x28] sm:$0xff] %v1215
      %1224 = vst [vmem:[#allocation3 + $0x30] sm:$0xff] %v1216
      %1225 = vst [vmem:[#allocation3 + $0x38] sm:$0xff] %v1217
      %v1226 = vld [vmem:[#allocation3] sm:$0xff]
      %v1227 = vld [vmem:[#allocation3 + $0x8] sm:$0xff]
      %v1228 = vld [vmem:[#allocation3 + $0x10] sm:$0xff]
      %v1229 = vld [vmem:[#allocation3 + $0x18] sm:$0xff]
      %v1230 = vld [vmem:[#allocation3 + $0x20] sm:$0xff]
      %v1231 = vld [vmem:[#allocation3 + $0x28] sm:$0xff]
      %v1232 = vld [vmem:[#allocation3 + $0x30] sm:$0xff]
      %v1233 = vld [vmem:[#allocation3 + $0x38] sm:$0xff]
      %s1234 = scalar_lea.vmem %s3, 256
      %v1235 = vld [vmem:[%s1234] sm:$0xf]
      %v1236 = vld [vmem:[%s1234 + $0x4] sm:$0xf]
      %v1237 = vld [vmem:[%s1234 + $0x8] sm:$0xf]
      %v1238 = vld [vmem:[%s1234 + $0xc] sm:$0xf]
      %v1239 = vld [vmem:[%s1234 + $0x10] sm:$0xf]
      %v1240 = vld [vmem:[%s1234 + $0x14] sm:$0xf]
      %v1241 = vld [vmem:[%s1234 + $0x18] sm:$0xf]
      %v1242 = vld [vmem:[%s1234 + $0x1c] sm:$0xf]
      %v1243 = vld [vmem:[%s1234 + $0x20] sm:$0xf]
      %v1244 = vld [vmem:[%s1234 + $0x24] sm:$0xf]
      %v1245 = vld [vmem:[%s1234 + $0x28] sm:$0xf]
      %v1246 = vld [vmem:[%s1234 + $0x2c] sm:$0xf]
      %v1247 = vld [vmem:[%s1234 + $0x30] sm:$0xf]
      %v1248 = vld [vmem:[%s1234 + $0x34] sm:$0xf]
      %v1249 = vld [vmem:[%s1234 + $0x38] sm:$0xf]
      %v1250 = vld [vmem:[%s1234 + $0x3c] sm:$0xf]
      %v1259 = vunpack.c.l.b16 %v965
      %v1260 = vunpack.c.l.b16 %v968
      %v1261 = vunpack.c.l.b16 %v971
      %v1262 = vunpack.c.l.b16 %v974
      %v1263 = vunpack.c.l.b16 %v977
      %v1264 = vunpack.c.l.b16 %v980
      %v1265 = vunpack.c.l.b16 %v983
      %v1266 = vunpack.c.l.b16 %v986
      %v1267 = vpack.c.b16 %v1260, %v1259
      %v1268 = vpack.c.b16 %v1262, %v1261
      %v1269 = vpack.c.b16 %v1264, %v1263
      %v1270 = vpack.c.b16 %v1266, %v1265
      %v1291 = vunpack.c.l.b16 %v1235
      %v1292 = vunpack.c.l.b16 %v1236
      %v1293 = vunpack.c.l.b16 %v1237
      %v1294 = vunpack.c.l.b16 %v1238
      %v1295 = vunpack.c.l.b16 %v1239
      %v1296 = vunpack.c.l.b16 %v1240
      %v1297 = vunpack.c.l.b16 %v1241
      %v1298 = vunpack.c.l.b16 %v1242
      %v1299 = vunpack.c.l.b16 %v1243
      %v1300 = vunpack.c.l.b16 %v1244
      %v1301 = vunpack.c.l.b16 %v1245
      %v1302 = vunpack.c.l.b16 %v1246
      %v1303 = vunpack.c.l.b16 %v1247
      %v1304 = vunpack.c.l.b16 %v1248
      %v1305 = vunpack.c.l.b16 %v1249
      %v1306 = vunpack.c.l.b16 %v1250
      %v1307 = vpack.c.b16 %v1292, %v1291
      %v1308 = vpack.c.b16 %v1294, %v1293
      %v1309 = vpack.c.b16 %v1296, %v1295
      %v1310 = vpack.c.b16 %v1298, %v1297
      %v1311 = vpack.c.b16 %v1300, %v1299
      %v1312 = vpack.c.b16 %v1302, %v1301
      %v1313 = vpack.c.b16 %v1304, %v1303
      %v1314 = vpack.c.b16 %v1306, %v1305
      %1323 = vmatpush.bf16.msra.mxu0 %v1314
      %1324 = vmatpush.bf16.msra.mxu0 %v1313
      %1325 = vmatpush.bf16.msra.mxu0 %v1312
      %1326 = vmatpush.bf16.msra.mxu0 %v1311
      %1327 = vmatpush.bf16.msra.mxu0 %v1310
      %1328 = vmatpush.bf16.msra.mxu0 %v1309
      %1329 = vmatpush.bf16.msra.mxu0 %v1308
      %1330 = vmatpush.bf16.msra.mxu0 %v1307
      %1331 = vmatmul.bf16.gmra.mxu0 %v1267
      %v1332 = vpop.f32.mrf.mxu0
      %v1333 = vadd.f32 0.0, %v1332
      %v1334 = vpop.f32.mrf.mxu0
      %v1335 = vadd.f32 0.0, %v1334
      %1336 = vmatmul.bf16.gmra.mxu0 %v1268
      %v1337 = vpop.f32.mrf.mxu0
      %v1338 = vadd.f32 0.0, %v1337
      %v1339 = vpop.f32.mrf.mxu0
      %v1340 = vadd.f32 0.0, %v1339
      %1341 = vmatmul.bf16.gmra.mxu0 %v1269
      %v1342 = vpop.f32.mrf.mxu0
      %v1343 = vadd.f32 0.0, %v1342
      %v1344 = vpop.f32.mrf.mxu0
      %v1345 = vadd.f32 0.0, %v1344
      %1346 = vmatmul.bf16.gmra.mxu0 %v1270
      %v1347 = vpop.f32.mrf.mxu0
      %v1348 = vadd.f32 0.0, %v1347
      %v1349 = vpop.f32.mrf.mxu0
      %v1350 = vadd.f32 0.0, %v1349
      %1351 = vdwg.mxu0
      %v1352 = vadd.f32 %v1226, %v1333
      %v1353 = vadd.f32 %v1227, %v1335
      %v1354 = vadd.f32 %v1228, %v1338
      %v1355 = vadd.f32 %v1229, %v1340
      %v1356 = vadd.f32 %v1230, %v1343
      %v1357 = vadd.f32 %v1231, %v1345
      %v1358 = vadd.f32 %v1232, %v1348
      %v1359 = vadd.f32 %v1233, %v1350
      %1360 = vst [vmem:[#allocation3] sm:$0xff] %v1352
      %1361 = vst [vmem:[#allocation3 + $0x8] sm:$0xff] %v1353
      %1362 = vst [vmem:[#allocation3 + $0x10] sm:$0xff] %v1354
      %1363 = vst [vmem:[#allocation3 + $0x18] sm:$0xff] %v1355
      %1364 = vst [vmem:[#allocation3 + $0x20] sm:$0xff] %v1356
      %1365 = vst [vmem:[#allocation3 + $0x28] sm:$0xff] %v1357
      %1366 = vst [vmem:[#allocation3 + $0x30] sm:$0xff] %v1358
      %1367 = vst [vmem:[#allocation3 + $0x38] sm:$0xff] %v1359
      %v1368 = vld [vmem:[#allocation3] sm:$0xff]
      %v1369 = vld [vmem:[#allocation3 + $0x8] sm:$0xff]
      %v1370 = vld [vmem:[#allocation3 + $0x10] sm:$0xff]
      %v1371 = vld [vmem:[#allocation3 + $0x18] sm:$0xff]
      %v1372 = vld [vmem:[#allocation3 + $0x20] sm:$0xff]
      %v1373 = vld [vmem:[#allocation3 + $0x28] sm:$0xff]
      %v1374 = vld [vmem:[#allocation3 + $0x30] sm:$0xff]
      %v1375 = vld [vmem:[#allocation3 + $0x38] sm:$0xff]
      %v1376 = vrot.slane %v1002, 4
      %v1377 = vrot.slane %v1005, 5
      %v1378 = vor.u32 %v1376, %v1377
      %v1379 = vrot.slane %v1378, 4
      %v1381 = vshll.u32 %v966, 16
      %v1383 = vrot.slane %v1381, 5
      %v1384 = vsel %vm765, %v1379, %v1383
      %v1385 = vrot.slane %v1015, 4
      %v1386 = vrot.slane %v1018, 5
      %v1387 = vor.u32 %v1385, %v1386
      %v1388 = vrot.slane %v1387, 4
      %v1390 = vshll.u32 %v969, 16
      %v1392 = vrot.slane %v1390, 5
      %v1393 = vsel %vm765, %v1388, %v1392
      %v1394 = vrot.slane %v1028, 4
      %v1395 = vrot.slane %v1031, 5
      %v1396 = vor.u32 %v1394, %v1395
      %v1397 = vrot.slane %v1396, 4
      %v1399 = vshll.u32 %v972, 16
      %v1401 = vrot.slane %v1399, 5
      %v1402 = vsel %vm765, %v1397, %v1401
      %v1403 = vrot.slane %v1041, 4
      %v1404 = vrot.slane %v1044, 5
      %v1405 = vor.u32 %v1403, %v1404
      %v1406 = vrot.slane %v1405, 4
      %v1408 = vshll.u32 %v975, 16
      %v1410 = vrot.slane %v1408, 5
      %v1411 = vsel %vm765, %v1406, %v1410
      %v1412 = vrot.slane %v1054, 4
      %v1413 = vrot.slane %v1057, 5
      %v1414 = vor.u32 %v1412, %v1413
      %v1415 = vrot.slane %v1414, 4
      %v1417 = vshll.u32 %v978, 16
      %v1419 = vrot.slane %v1417, 5
      %v1420 = vsel %vm765, %v1415, %v1419
      %v1421 = vrot.slane %v1067, 4
      %v1422 = vrot.slane %v1070, 5
      %v1423 = vor.u32 %v1421, %v1422
      %v1424 = vrot.slane %v1423, 4
      %v1426 = vshll.u32 %v981, 16
      %v1428 = vrot.slane %v1426, 5
      %v1429 = vsel %vm765, %v1424, %v1428
      %v1430 = vrot.slane %v1080, 4
      %v1431 = vrot.slane %v1083, 5
      %v1432 = vor.u32 %v1430, %v1431
      %v1433 = vrot.slane %v1432, 4
      %v1435 = vshll.u32 %v984, 16
      %v1437 = vrot.slane %v1435, 5
      %v1438 = vsel %vm765, %v1433, %v1437
      %v1439 = vrot.slane %v1093, 4
      %v1440 = vrot.slane %v1096, 5
      %v1441 = vor.u32 %v1439, %v1440
      %v1442 = vrot.slane %v1441, 4
      %v1444 = vshll.u32 %v987, 16
      %v1446 = vrot.slane %v1444, 5
      %v1447 = vsel %vm765, %v1442, %v1446
      %s1448 = scalar_lea.vmem %s3, 320
      %v1449 = vld [vmem:[%s1448] sm:$0xf]
      %v1450 = vld [vmem:[%s1448 + $0x4] sm:$0xf]
      %v1451 = vld [vmem:[%s1448 + $0x8] sm:$0xf]
      %v1452 = vld [vmem:[%s1448 + $0xc] sm:$0xf]
      %v1453 = vld [vmem:[%s1448 + $0x10] sm:$0xf]
      %v1454 = vld [vmem:[%s1448 + $0x14] sm:$0xf]
      %v1455 = vld [vmem:[%s1448 + $0x18] sm:$0xf]
      %v1456 = vld [vmem:[%s1448 + $0x1c] sm:$0xf]
      %v1457 = vld [vmem:[%s1448 + $0x20] sm:$0xf]
      %v1458 = vld [vmem:[%s1448 + $0x24] sm:$0xf]
      %v1459 = vld [vmem:[%s1448 + $0x28] sm:$0xf]
      %v1460 = vld [vmem:[%s1448 + $0x2c] sm:$0xf]
      %v1461 = vld [vmem:[%s1448 + $0x30] sm:$0xf]
      %v1462 = vld [vmem:[%s1448 + $0x34] sm:$0xf]
      %v1463 = vld [vmem:[%s1448 + $0x38] sm:$0xf]
      %v1464 = vld [vmem:[%s1448 + $0x3c] sm:$0xf]
      %v1465 = vunpack.c.l.b16 %v1384
      %v1466 = vunpack.c.l.b16 %v1393
      %v1467 = vunpack.c.l.b16 %v1402
      %v1468 = vunpack.c.l.b16 %v1411
      %v1469 = vunpack.c.l.b16 %v1420
      %v1470 = vunpack.c.l.b16 %v1429
      %v1471 = vunpack.c.l.b16 %v1438
      %v1472 = vunpack.c.l.b16 %v1447
      %v1473 = vpack.c.b16 %v1466, %v1465
      %v1474 = vpack.c.b16 %v1468, %v1467
      %v1475 = vpack.c.b16 %v1470, %v1469
      %v1476 = vpack.c.b16 %v1472, %v1471
      %v1497 = vunpack.c.l.b16 %v1449
      %v1498 = vunpack.c.l.b16 %v1450
      %v1499 = vunpack.c.l.b16 %v1451
      %v1500 = vunpack.c.l.b16 %v1452
      %v1501 = vunpack.c.l.b16 %v1453
      %v1502 = vunpack.c.l.b16 %v1454
      %v1503 = vunpack.c.l.b16 %v1455
      %v1504 = vunpack.c.l.b16 %v1456
      %v1505 = vunpack.c.l.b16 %v1457
      %v1506 = vunpack.c.l.b16 %v1458
      %v1507 = vunpack.c.l.b16 %v1459
      %v1508 = vunpack.c.l.b16 %v1460
      %v1509 = vunpack.c.l.b16 %v1461
      %v1510 = vunpack.c.l.b16 %v1462
      %v1511 = vunpack.c.l.b16 %v1463
      %v1512 = vunpack.c.l.b16 %v1464
      %v1513 = vpack.c.b16 %v1498, %v1497
      %v1514 = vpack.c.b16 %v1500, %v1499
      %v1515 = vpack.c.b16 %v1502, %v1501
      %v1516 = vpack.c.b16 %v1504, %v1503
      %v1517 = vpack.c.b16 %v1506, %v1505
      %v1518 = vpack.c.b16 %v1508, %v1507
      %v1519 = vpack.c.b16 %v1510, %v1509
      %v1520 = vpack.c.b16 %v1512, %v1511
      %1529 = vmatpush.bf16.msra.mxu0 %v1520
      %1530 = vmatpush.bf16.msra.mxu0 %v1519
      %1531 = vmatpush.bf16.msra.mxu0 %v1518
      %1532 = vmatpush.bf16.msra.mxu0 %v1517
      %1533 = vmatpush.bf16.msra.mxu0 %v1516
      %1534 = vmatpush.bf16.msra.mxu0 %v1515
      %1535 = vmatpush.bf16.msra.mxu0 %v1514
      %1536 = vmatpush.bf16.msra.mxu0 %v1513
      %1537 = vmatmul.bf16.gmra.mxu0 %v1473
      %v1538 = vpop.f32.mrf.mxu0
      %v1539 = vadd.f32 0.0, %v1538
      %v1540 = vpop.f32.mrf.mxu0
      %v1541 = vadd.f32 0.0, %v1540
      %1542 = vmatmul.bf16.gmra.mxu0 %v1474
      %v1543 = vpop.f32.mrf.mxu0
      %v1544 = vadd.f32 0.0, %v1543
      %v1545 = vpop.f32.mrf.mxu0
      %v1546 = vadd.f32 0.0, %v1545
      %1547 = vmatmul.bf16.gmra.mxu0 %v1475
      %v1548 = vpop.f32.mrf.mxu0
      %v1549 = vadd.f32 0.0, %v1548
      %v1550 = vpop.f32.mrf.mxu0
      %v1551 = vadd.f32 0.0, %v1550
      %1552 = vmatmul.bf16.gmra.mxu0 %v1476
      %v1553 = vpop.f32.mrf.mxu0
      %v1554 = vadd.f32 0.0, %v1553
      %v1555 = vpop.f32.mrf.mxu0
      %v1556 = vadd.f32 0.0, %v1555
      %1557 = vdwg.mxu0
      %v1558 = vadd.f32 %v1368, %v1539
      %v1559 = vadd.f32 %v1369, %v1541
      %v1560 = vadd.f32 %v1370, %v1544
      %v1561 = vadd.f32 %v1371, %v1546
      %v1562 = vadd.f32 %v1372, %v1549
      %v1563 = vadd.f32 %v1373, %v1551
      %v1564 = vadd.f32 %v1374, %v1554
      %v1565 = vadd.f32 %v1375, %v1556
      %1566 = vst [vmem:[#allocation3] sm:$0xff] %v1558
      %1567 = vst [vmem:[#allocation3 + $0x8] sm:$0xff] %v1559
      %1568 = vst [vmem:[#allocation3 + $0x10] sm:$0xff] %v1560
      %1569 = vst [vmem:[#allocation3 + $0x18] sm:$0xff] %v1561
      %1570 = vst [vmem:[#allocation3 + $0x20] sm:$0xff] %v1562
      %1571 = vst [vmem:[#allocation3 + $0x28] sm:$0xff] %v1563
      %1572 = vst [vmem:[#allocation3 + $0x30] sm:$0xff] %v1564
      %1573 = vst [vmem:[#allocation3 + $0x38] sm:$0xff] %v1565
      %s1574 = scalar_lea.vmem [#allocation2], 24
      %v1575 = vld [vmem:[%s1574] sm:$0xf]
      %v1576 = vld [vmem:[%s1574 + $0x4] sm:$0xf]
      %v1577 = vld [vmem:[%s1574 + $0x8] sm:$0xf]
      %v1578 = vld [vmem:[%s1574 + $0xc] sm:$0xf]
      %v1579 = vld [vmem:[%s1574 + $0x10] sm:$0xf]
      %v1580 = vld [vmem:[%s1574 + $0x14] sm:$0xf]
      %v1581 = vld [vmem:[%s1574 + $0x18] sm:$0xf]
      %v1582 = vld [vmem:[%s1574 + $0x1c] sm:$0xf]
      %v1583 = vld [vmem:[%s1574 + $0x20] sm:$0xf]
      %v1584 = vld [vmem:[%s1574 + $0x24] sm:$0xf]
      %v1585 = vld [vmem:[%s1574 + $0x28] sm:$0xf]
      %v1586 = vld [vmem:[%s1574 + $0x2c] sm:$0xf]
      %v1587 = vld [vmem:[%s1574 + $0x30] sm:$0xf]
      %v1588 = vld [vmem:[%s1574 + $0x34] sm:$0xf]
      %v1589 = vld [vmem:[%s1574 + $0x38] sm:$0xf]
      %v1590 = vld [vmem:[%s1574 + $0x3c] sm:$0xf]
      %v1591 = vld [vmem:[%s1574 + $0x40] sm:$0xf]
      %v1592 = vld [vmem:[%s1574 + $0x44] sm:$0xf]
      %v1593 = vld [vmem:[%s1574 + $0x48] sm:$0xf]
      %v1594 = vld [vmem:[%s1574 + $0x4c] sm:$0xf]
      %v1595 = vld [vmem:[%s1574 + $0x50] sm:$0xf]
      %v1596 = vld [vmem:[%s1574 + $0x54] sm:$0xf]
      %v1597 = vld [vmem:[%s1574 + $0x58] sm:$0xf]
      %v1598 = vld [vmem:[%s1574 + $0x5c] sm:$0xf]
      %v1599 = vld [vmem:[#allocation3] sm:$0xff]
      %v1600 = vld [vmem:[#allocation3 + $0x8] sm:$0xff]
      %v1601 = vld [vmem:[#allocation3 + $0x10] sm:$0xff]
      %v1602 = vld [vmem:[#allocation3 + $0x18] sm:$0xff]
      %v1603 = vld [vmem:[#allocation3 + $0x20] sm:$0xff]
      %v1604 = vld [vmem:[#allocation3 + $0x28] sm:$0xff]
      %v1605 = vld [vmem:[#allocation3 + $0x30] sm:$0xff]
      %v1606 = vld [vmem:[#allocation3 + $0x38] sm:$0xff]
      %v1608 = vshrl.u32 %v1575, 16
      %v1610 = vrot.slane %v1608, 7
      %v1611 = vrot.slane %v1610, 4
      %v1613 = vshrl.u32 %v1576, 16
      %v1615 = vrot.slane %v1613, 7
      %v1616 = vshll.u32 %v1576, 16
      %v1618 = vor.u32 %v1615, %v1616
      %v1619 = vsel %vm383, %v1611, %v1618
      %v1621 = vshrl.u32 %v1578, 16
      %v1623 = vrot.slane %v1621, 7
      %v1624 = vrot.slane %v1623, 4
      %v1626 = vshrl.u32 %v1579, 16
      %v1628 = vrot.slane %v1626, 7
      %v1629 = vshll.u32 %v1579, 16
      %v1631 = vor.u32 %v1628, %v1629
      %v1632 = vsel %vm383, %v1624, %v1631
      %v1634 = vshrl.u32 %v1581, 16
      %v1636 = vrot.slane %v1634, 7
      %v1637 = vrot.slane %v1636, 4
      %v1639 = vshrl.u32 %v1582, 16
      %v1641 = vrot.slane %v1639, 7
      %v1642 = vshll.u32 %v1582, 16
      %v1644 = vor.u32 %v1641, %v1642
      %v1645 = vsel %vm383, %v1637, %v1644
      %v1647 = vshrl.u32 %v1584, 16
      %v1649 = vrot.slane %v1647, 7
      %v1650 = vrot.slane %v1649, 4
      %v1652 = vshrl.u32 %v1585, 16
      %v1654 = vrot.slane %v1652, 7
      %v1655 = vshll.u32 %v1585, 16
      %v1657 = vor.u32 %v1654, %v1655
      %v1658 = vsel %vm383, %v1650, %v1657
      %v1660 = vshrl.u32 %v1587, 16
      %v1662 = vrot.slane %v1660, 7
      %v1663 = vrot.slane %v1662, 4
      %v1665 = vshrl.u32 %v1588, 16
      %v1667 = vrot.slane %v1665, 7
      %v1668 = vshll.u32 %v1588, 16
      %v1670 = vor.u32 %v1667, %v1668
      %v1671 = vsel %vm383, %v1663, %v1670
      %v1673 = vshrl.u32 %v1590, 16
      %v1675 = vrot.slane %v1673, 7
      %v1676 = vrot.slane %v1675, 4
      %v1678 = vshrl.u32 %v1591, 16
      %v1680 = vrot.slane %v1678, 7
      %v1681 = vshll.u32 %v1591, 16
      %v1683 = vor.u32 %v1680, %v1681
      %v1684 = vsel %vm383, %v1676, %v1683
      %v1686 = vshrl.u32 %v1593, 16
      %v1688 = vrot.slane %v1686, 7
      %v1689 = vrot.slane %v1688, 4
      %v1691 = vshrl.u32 %v1594, 16
      %v1693 = vrot.slane %v1691, 7
      %v1694 = vshll.u32 %v1594, 16
      %v1696 = vor.u32 %v1693, %v1694
      %v1697 = vsel %vm383, %v1689, %v1696
      %v1699 = vshrl.u32 %v1596, 16
      %v1701 = vrot.slane %v1699, 7
      %v1702 = vrot.slane %v1701, 4
      %v1704 = vshrl.u32 %v1597, 16
      %v1706 = vrot.slane %v1704, 7
      %v1707 = vshll.u32 %v1597, 16
      %v1709 = vor.u32 %v1706, %v1707
      %v1710 = vsel %vm383, %v1702, %v1709
      %s1711 = scalar_lea.vmem %s3, 384
      %v1712 = vld [vmem:[%s1711] sm:$0xf]
      %v1713 = vld [vmem:[%s1711 + $0x4] sm:$0xf]
      %v1714 = vld [vmem:[%s1711 + $0x8] sm:$0xf]
      %v1715 = vld [vmem:[%s1711 + $0xc] sm:$0xf]
      %v1716 = vld [vmem:[%s1711 + $0x10] sm:$0xf]
      %v1717 = vld [vmem:[%s1711 + $0x14] sm:$0xf]
      %v1718 = vld [vmem:[%s1711 + $0x18] sm:$0xf]
      %v1719 = vld [vmem:[%s1711 + $0x1c] sm:$0xf]
      %v1720 = vld [vmem:[%s1711 + $0x20] sm:$0xf]
      %v1721 = vld [vmem:[%s1711 + $0x24] sm:$0xf]
      %v1722 = vld [vmem:[%s1711 + $0x28] sm:$0xf]
      %v1723 = vld [vmem:[%s1711 + $0x2c] sm:$0xf]
      %v1724 = vld [vmem:[%s1711 + $0x30] sm:$0xf]
      %v1725 = vld [vmem:[%s1711 + $0x34] sm:$0xf]
      %v1726 = vld [vmem:[%s1711 + $0x38] sm:$0xf]
      %v1727 = vld [vmem:[%s1711 + $0x3c] sm:$0xf]
      %v1728 = vunpack.c.l.b16 %v1619
      %v1729 = vunpack.c.l.b16 %v1632
      %v1730 = vunpack.c.l.b16 %v1645
      %v1731 = vunpack.c.l.b16 %v1658
      %v1732 = vunpack.c.l.b16 %v1671
      %v1733 = vunpack.c.l.b16 %v1684
      %v1734 = vunpack.c.l.b16 %v1697
      %v1735 = vunpack.c.l.b16 %v1710
      %v1736 = vpack.c.b16 %v1729, %v1728
      %v1737 = vpack.c.b16 %v1731, %v1730
      %v1738 = vpack.c.b16 %v1733, %v1732
      %v1739 = vpack.c.b16 %v1735, %v1734
      %v1760 = vunpack.c.l.b16 %v1712
      %v1761 = vunpack.c.l.b16 %v1713
      %v1762 = vunpack.c.l.b16 %v1714
      %v1763 = vunpack.c.l.b16 %v1715
      %v1764 = vunpack.c.l.b16 %v1716
      %v1765 = vunpack.c.l.b16 %v1717
      %v1766 = vunpack.c.l.b16 %v1718
      %v1767 = vunpack.c.l.b16 %v1719
      %v1768 = vunpack.c.l.b16 %v1720
      %v1769 = vunpack.c.l.b16 %v1721
      %v1770 = vunpack.c.l.b16 %v1722
      %v1771 = vunpack.c.l.b16 %v1723
      %v1772 = vunpack.c.l.b16 %v1724
      %v1773 = vunpack.c.l.b16 %v1725
      %v1774 = vunpack.c.l.b16 %v1726
      %v1775 = vunpack.c.l.b16 %v1727
      %v1776 = vpack.c.b16 %v1761, %v1760
      %v1777 = vpack.c.b16 %v1763, %v1762
      %v1778 = vpack.c.b16 %v1765, %v1764
      %v1779 = vpack.c.b16 %v1767, %v1766
      %v1780 = vpack.c.b16 %v1769, %v1768
      %v1781 = vpack.c.b16 %v1771, %v1770
      %v1782 = vpack.c.b16 %v1773, %v1772
      %v1783 = vpack.c.b16 %v1775, %v1774
      %1792 = vmatpush.bf16.msra.mxu0 %v1783
      %1793 = vmatpush.bf16.msra.mxu0 %v1782
      %1794 = vmatpush.bf16.msra.mxu0 %v1781
      %1795 = vmatpush.bf16.msra.mxu0 %v1780
      %1796 = vmatpush.bf16.msra.mxu0 %v1779
      %1797 = vmatpush.bf16.msra.mxu0 %v1778
      %1798 = vmatpush.bf16.msra.mxu0 %v1777
      %1799 = vmatpush.bf16.msra.mxu0 %v1776
      %1800 = vmatmul.bf16.gmra.mxu0 %v1736
      %v1801 = vpop.f32.mrf.mxu0
      %v1802 = vadd.f32 0.0, %v1801
      %v1803 = vpop.f32.mrf.mxu0
      %v1804 = vadd.f32 0.0, %v1803
      %1805 = vmatmul.bf16.gmra.mxu0 %v1737
      %v1806 = vpop.f32.mrf.mxu0
      %v1807 = vadd.f32 0.0, %v1806
      %v1808 = vpop.f32.mrf.mxu0
      %v1809 = vadd.f32 0.0, %v1808
      %1810 = vmatmul.bf16.gmra.mxu0 %v1738
      %v1811 = vpop.f32.mrf.mxu0
      %v1812 = vadd.f32 0.0, %v1811
      %v1813 = vpop.f32.mrf.mxu0
      %v1814 = vadd.f32 0.0, %v1813
      %1815 = vmatmul.bf16.gmra.mxu0 %v1739
      %v1816 = vpop.f32.mrf.mxu0
      %v1817 = vadd.f32 0.0, %v1816
      %v1818 = vpop.f32.mrf.mxu0
      %v1819 = vadd.f32 0.0, %v1818
      %1820 = vdwg.mxu0
      %v1821 = vadd.f32 %v1599, %v1802
      %v1822 = vadd.f32 %v1600, %v1804
      %v1823 = vadd.f32 %v1601, %v1807
      %v1824 = vadd.f32 %v1602, %v1809
      %v1825 = vadd.f32 %v1603, %v1812
      %v1826 = vadd.f32 %v1604, %v1814
      %v1827 = vadd.f32 %v1605, %v1817
      %v1828 = vadd.f32 %v1606, %v1819
      %1829 = vst [vmem:[#allocation3] sm:$0xff] %v1821
      %1830 = vst [vmem:[#allocation3 + $0x8] sm:$0xff] %v1822
      %1831 = vst [vmem:[#allocation3 + $0x10] sm:$0xff] %v1823
      %1832 = vst [vmem:[#allocation3 + $0x18] sm:$0xff] %v1824
      %1833 = vst [vmem:[#allocation3 + $0x20] sm:$0xff] %v1825
      %1834 = vst [vmem:[#allocation3 + $0x28] sm:$0xff] %v1826
      %1835 = vst [vmem:[#allocation3 + $0x30] sm:$0xff] %v1827
      %1836 = vst [vmem:[#allocation3 + $0x38] sm:$0xff] %v1828
      %v1837 = vld [vmem:[#allocation3] sm:$0xff]
      %v1838 = vld [vmem:[#allocation3 + $0x8] sm:$0xff]
      %v1839 = vld [vmem:[#allocation3 + $0x10] sm:$0xff]
      %v1840 = vld [vmem:[#allocation3 + $0x18] sm:$0xff]
      %v1841 = vld [vmem:[#allocation3 + $0x20] sm:$0xff]
      %v1842 = vld [vmem:[#allocation3 + $0x28] sm:$0xff]
      %v1843 = vld [vmem:[#allocation3 + $0x30] sm:$0xff]
      %v1844 = vld [vmem:[#allocation3 + $0x38] sm:$0xff]
      %s1845 = scalar_lea.vmem %s3, 448
      %v1846 = vld [vmem:[%s1845] sm:$0xf]
      %v1847 = vld [vmem:[%s1845 + $0x4] sm:$0xf]
      %v1848 = vld [vmem:[%s1845 + $0x8] sm:$0xf]
      %v1849 = vld [vmem:[%s1845 + $0xc] sm:$0xf]
      %v1850 = vld [vmem:[%s1845 + $0x10] sm:$0xf]
      %v1851 = vld [vmem:[%s1845 + $0x14] sm:$0xf]
      %v1852 = vld [vmem:[%s1845 + $0x18] sm:$0xf]
      %v1853 = vld [vmem:[%s1845 + $0x1c] sm:$0xf]
      %v1854 = vld [vmem:[%s1845 + $0x20] sm:$0xf]
      %v1855 = vld [vmem:[%s1845 + $0x24] sm:$0xf]
      %v1856 = vld [vmem:[%s1845 + $0x28] sm:$0xf]
      %v1857 = vld [vmem:[%s1845 + $0x2c] sm:$0xf]
      %v1858 = vld [vmem:[%s1845 + $0x30] sm:$0xf]
      %v1859 = vld [vmem:[%s1845 + $0x34] sm:$0xf]
      %v1860 = vld [vmem:[%s1845 + $0x38] sm:$0xf]
      %v1861 = vld [vmem:[%s1845 + $0x3c] sm:$0xf]
      %v1870 = vunpack.c.l.b16 %v1576
      %v1871 = vunpack.c.l.b16 %v1579
      %v1872 = vunpack.c.l.b16 %v1582
      %v1873 = vunpack.c.l.b16 %v1585
      %v1874 = vunpack.c.l.b16 %v1588
      %v1875 = vunpack.c.l.b16 %v1591
      %v1876 = vunpack.c.l.b16 %v1594
      %v1877 = vunpack.c.l.b16 %v1597
      %v1878 = vpack.c.b16 %v1871, %v1870
      %v1879 = vpack.c.b16 %v1873, %v1872
      %v1880 = vpack.c.b16 %v1875, %v1874
      %v1881 = vpack.c.b16 %v1877, %v1876
      %v1902 = vunpack.c.l.b16 %v1846
      %v1903 = vunpack.c.l.b16 %v1847
      %v1904 = vunpack.c.l.b16 %v1848
      %v1905 = vunpack.c.l.b16 %v1849
      %v1906 = vunpack.c.l.b16 %v1850
      %v1907 = vunpack.c.l.b16 %v1851
      %v1908 = vunpack.c.l.b16 %v1852
      %v1909 = vunpack.c.l.b16 %v1853
      %v1910 = vunpack.c.l.b16 %v1854
      %v1911 = vunpack.c.l.b16 %v1855
      %v1912 = vunpack.c.l.b16 %v1856
      %v1913 = vunpack.c.l.b16 %v1857
      %v1914 = vunpack.c.l.b16 %v1858
      %v1915 = vunpack.c.l.b16 %v1859
      %v1916 = vunpack.c.l.b16 %v1860
      %v1917 = vunpack.c.l.b16 %v1861
      %v1918 = vpack.c.b16 %v1903, %v1902
      %v1919 = vpack.c.b16 %v1905, %v1904
      %v1920 = vpack.c.b16 %v1907, %v1906
      %v1921 = vpack.c.b16 %v1909, %v1908
      %v1922 = vpack.c.b16 %v1911, %v1910
      %v1923 = vpack.c.b16 %v1913, %v1912
      %v1924 = vpack.c.b16 %v1915, %v1914
      %v1925 = vpack.c.b16 %v1917, %v1916
      %1934 = vmatpush.bf16.msra.mxu0 %v1925
      %1935 = vmatpush.bf16.msra.mxu0 %v1924
      %1936 = vmatpush.bf16.msra.mxu0 %v1923
      %1937 = vmatpush.bf16.msra.mxu0 %v1922
      %1938 = vmatpush.bf16.msra.mxu0 %v1921
      %1939 = vmatpush.bf16.msra.mxu0 %v1920
      %1940 = vmatpush.bf16.msra.mxu0 %v1919
      %1941 = vmatpush.bf16.msra.mxu0 %v1918
      %1942 = vmatmul.bf16.gmra.mxu0 %v1878
      %v1943 = vpop.f32.mrf.mxu0
      %v1944 = vadd.f32 0.0, %v1943
      %v1945 = vpop.f32.mrf.mxu0
      %v1946 = vadd.f32 0.0, %v1945
      %1947 = vmatmul.bf16.gmra.mxu0 %v1879
      %v1948 = vpop.f32.mrf.mxu0
      %v1949 = vadd.f32 0.0, %v1948
      %v1950 = vpop.f32.mrf.mxu0
      %v1951 = vadd.f32 0.0, %v1950
      %1952 = vmatmul.bf16.gmra.mxu0 %v1880
      %v1953 = vpop.f32.mrf.mxu0
      %v1954 = vadd.f32 0.0, %v1953
      %v1955 = vpop.f32.mrf.mxu0
      %v1956 = vadd.f32 0.0, %v1955
      %1957 = vmatmul.bf16.gmra.mxu0 %v1881
      %v1958 = vpop.f32.mrf.mxu0
      %v1959 = vadd.f32 0.0, %v1958
      %v1960 = vpop.f32.mrf.mxu0
      %v1961 = vadd.f32 0.0, %v1960
      %1962 = vdwg.mxu0
      %v1963 = vadd.f32 %v1837, %v1944
      %v1964 = vadd.f32 %v1838, %v1946
      %v1965 = vadd.f32 %v1839, %v1949
      %v1966 = vadd.f32 %v1840, %v1951
      %v1967 = vadd.f32 %v1841, %v1954
      %v1968 = vadd.f32 %v1842, %v1956
      %v1969 = vadd.f32 %v1843, %v1959
      %v1970 = vadd.f32 %v1844, %v1961
      %1971 = vst [vmem:[#allocation3] sm:$0xff] %v1963
      %1972 = vst [vmem:[#allocation3 + $0x8] sm:$0xff] %v1964
      %1973 = vst [vmem:[#allocation3 + $0x10] sm:$0xff] %v1965
      %1974 = vst [vmem:[#allocation3 + $0x18] sm:$0xff] %v1966
      %1975 = vst [vmem:[#allocation3 + $0x20] sm:$0xff] %v1967
      %1976 = vst [vmem:[#allocation3 + $0x28] sm:$0xff] %v1968
      %1977 = vst [vmem:[#allocation3 + $0x30] sm:$0xff] %v1969
      %1978 = vst [vmem:[#allocation3 + $0x38] sm:$0xff] %v1970
      %v1979 = vld [vmem:[#allocation3] sm:$0xff]
      %v1980 = vld [vmem:[#allocation3 + $0x8] sm:$0xff]
      %v1981 = vld [vmem:[#allocation3 + $0x10] sm:$0xff]
      %v1982 = vld [vmem:[#allocation3 + $0x18] sm:$0xff]
      %v1983 = vld [vmem:[#allocation3 + $0x20] sm:$0xff]
      %v1984 = vld [vmem:[#allocation3 + $0x28] sm:$0xff]
      %v1985 = vld [vmem:[#allocation3 + $0x30] sm:$0xff]
      %v1986 = vld [vmem:[#allocation3 + $0x38] sm:$0xff]
      %v1987 = vrot.slane %v1613, 4
      %v1988 = vrot.slane %v1616, 5
      %v1989 = vor.u32 %v1987, %v1988
      %v1990 = vrot.slane %v1989, 4
      %v1992 = vshll.u32 %v1577, 16
      %v1994 = vrot.slane %v1992, 5
      %v1995 = vsel %vm765, %v1990, %v1994
      %v1996 = vrot.slane %v1626, 4
      %v1997 = vrot.slane %v1629, 5
      %v1998 = vor.u32 %v1996, %v1997
      %v1999 = vrot.slane %v1998, 4
      %v2001 = vshll.u32 %v1580, 16
      %v2003 = vrot.slane %v2001, 5
      %v2004 = vsel %vm765, %v1999, %v2003
      %v2005 = vrot.slane %v1639, 4
      %v2006 = vrot.slane %v1642, 5
      %v2007 = vor.u32 %v2005, %v2006
      %v2008 = vrot.slane %v2007, 4
      %v2010 = vshll.u32 %v1583, 16
      %v2012 = vrot.slane %v2010, 5
      %v2013 = vsel %vm765, %v2008, %v2012
      %v2014 = vrot.slane %v1652, 4
      %v2015 = vrot.slane %v1655, 5
      %v2016 = vor.u32 %v2014, %v2015
      %v2017 = vrot.slane %v2016, 4
      %v2019 = vshll.u32 %v1586, 16
      %v2021 = vrot.slane %v2019, 5
      %v2022 = vsel %vm765, %v2017, %v2021
      %v2023 = vrot.slane %v1665, 4
      %v2024 = vrot.slane %v1668, 5
      %v2025 = vor.u32 %v2023, %v2024
      %v2026 = vrot.slane %v2025, 4
      %v2028 = vshll.u32 %v1589, 16
      %v2030 = vrot.slane %v2028, 5
      %v2031 = vsel %vm765, %v2026, %v2030
      %v2032 = vrot.slane %v1678, 4
      %v2033 = vrot.slane %v1681, 5
      %v2034 = vor.u32 %v2032, %v2033
      %v2035 = vrot.slane %v2034, 4
      %v2037 = vshll.u32 %v1592, 16
      %v2039 = vrot.slane %v2037, 5
      %v2040 = vsel %vm765, %v2035, %v2039
      %v2041 = vrot.slane %v1691, 4
      %v2042 = vrot.slane %v1694, 5
      %v2043 = vor.u32 %v2041, %v2042
      %v2044 = vrot.slane %v2043, 4
      %v2046 = vshll.u32 %v1595, 16
      %v2048 = vrot.slane %v2046, 5
      %v2049 = vsel %vm765, %v2044, %v2048
      %v2050 = vrot.slane %v1704, 4
      %v2051 = vrot.slane %v1707, 5
      %v2052 = vor.u32 %v2050, %v2051
      %v2053 = vrot.slane %v2052, 4
      %v2055 = vshll.u32 %v1598, 16
      %v2057 = vrot.slane %v2055, 5
      %v2058 = vsel %vm765, %v2053, %v2057
      %s2059 = scalar_lea.vmem %s3, 512
      %v2060 = vld [vmem:[%s2059] sm:$0xf]
      %v2061 = vld [vmem:[%s2059 + $0x4] sm:$0xf]
      %v2062 = vld [vmem:[%s2059 + $0x8] sm:$0xf]
      %v2063 = vld [vmem:[%s2059 + $0xc] sm:$0xf]
      %v2064 = vld [vmem:[%s2059 + $0x10] sm:$0xf]
      %v2065 = vld [vmem:[%s2059 + $0x14] sm:$0xf]
      %v2066 = vld [vmem:[%s2059 + $0x18] sm:$0xf]
      %v2067 = vld [vmem:[%s2059 + $0x1c] sm:$0xf]
      %v2068 = vld [vmem:[%s2059 + $0x20] sm:$0xf]
      %v2069 = vld [vmem:[%s2059 + $0x24] sm:$0xf]
      %v2070 = vld [vmem:[%s2059 + $0x28] sm:$0xf]
      %v2071 = vld [vmem:[%s2059 + $0x2c] sm:$0xf]
      %v2072 = vld [vmem:[%s2059 + $0x30] sm:$0xf]
      %v2073 = vld [vmem:[%s2059 + $0x34] sm:$0xf]
      %v2074 = vld [vmem:[%s2059 + $0x38] sm:$0xf]
      %v2075 = vld [vmem:[%s2059 + $0x3c] sm:$0xf]
      %v2076 = vunpack.c.l.b16 %v1995
      %v2077 = vunpack.c.l.b16 %v2004
      %v2078 = vunpack.c.l.b16 %v2013
      %v2079 = vunpack.c.l.b16 %v2022
      %v2080 = vunpack.c.l.b16 %v2031
      %v2081 = vunpack.c.l.b16 %v2040
      %v2082 = vunpack.c.l.b16 %v2049
      %v2083 = vunpack.c.l.b16 %v2058
      %v2084 = vpack.c.b16 %v2077, %v2076
      %v2085 = vpack.c.b16 %v2079, %v2078
      %v2086 = vpack.c.b16 %v2081, %v2080
      %v2087 = vpack.c.b16 %v2083, %v2082
      %v2108 = vunpack.c.l.b16 %v2060
      %v2109 = vunpack.c.l.b16 %v2061
      %v2110 = vunpack.c.l.b16 %v2062
      %v2111 = vunpack.c.l.b16 %v2063
      %v2112 = vunpack.c.l.b16 %v2064
      %v2113 = vunpack.c.l.b16 %v2065
      %v2114 = vunpack.c.l.b16 %v2066
      %v2115 = vunpack.c.l.b16 %v2067
      %v2116 = vunpack.c.l.b16 %v2068
      %v2117 = vunpack.c.l.b16 %v2069
      %v2118 = vunpack.c.l.b16 %v2070
      %v2119 = vunpack.c.l.b16 %v2071
      %v2120 = vunpack.c.l.b16 %v2072
      %v2121 = vunpack.c.l.b16 %v2073
      %v2122 = vunpack.c.l.b16 %v2074
      %v2123 = vunpack.c.l.b16 %v2075
      %v2124 = vpack.c.b16 %v2109, %v2108
      %v2125 = vpack.c.b16 %v2111, %v2110
      %v2126 = vpack.c.b16 %v2113, %v2112
      %v2127 = vpack.c.b16 %v2115, %v2114
      %v2128 = vpack.c.b16 %v2117, %v2116
      %v2129 = vpack.c.b16 %v2119, %v2118
      %v2130 = vpack.c.b16 %v2121, %v2120
      %v2131 = vpack.c.b16 %v2123, %v2122
      %2140 = vmatpush.bf16.msra.mxu0 %v2131
      %2141 = vmatpush.bf16.msra.mxu0 %v2130
      %2142 = vmatpush.bf16.msra.mxu0 %v2129
      %2143 = vmatpush.bf16.msra.mxu0 %v2128
      %2144 = vmatpush.bf16.msra.mxu0 %v2127
      %2145 = vmatpush.bf16.msra.mxu0 %v2126
      %2146 = vmatpush.bf16.msra.mxu0 %v2125
      %2147 = vmatpush.bf16.msra.mxu0 %v2124
      %2148 = vmatmul.bf16.gmra.mxu0 %v2084
      %v2149 = vpop.f32.mrf.mxu0
      %v2150 = vadd.f32 0.0, %v2149
      %v2151 = vpop.f32.mrf.mxu0
      %v2152 = vadd.f32 0.0, %v2151
      %2153 = vmatmul.bf16.gmra.mxu0 %v2085
      %v2154 = vpop.f32.mrf.mxu0
      %v2155 = vadd.f32 0.0, %v2154
      %v2156 = vpop.f32.mrf.mxu0
      %v2157 = vadd.f32 0.0, %v2156
      %2158 = vmatmul.bf16.gmra.mxu0 %v2086
      %v2159 = vpop.f32.mrf.mxu0
      %v2160 = vadd.f32 0.0, %v2159
      %v2161 = vpop.f32.mrf.mxu0
      %v2162 = vadd.f32 0.0, %v2161
      %2163 = vmatmul.bf16.gmra.mxu0 %v2087
      %v2164 = vpop.f32.mrf.mxu0
      %v2165 = vadd.f32 0.0, %v2164
      %v2166 = vpop.f32.mrf.mxu0
      %v2167 = vadd.f32 0.0, %v2166
      %2168 = vdwg.mxu0
      %v2169 = vadd.f32 %v1979, %v2150
      %v2170 = vadd.f32 %v1980, %v2152
      %v2171 = vadd.f32 %v1981, %v2155
      %v2172 = vadd.f32 %v1982, %v2157
      %v2173 = vadd.f32 %v1983, %v2160
      %v2174 = vadd.f32 %v1984, %v2162
      %v2175 = vadd.f32 %v1985, %v2165
      %v2176 = vadd.f32 %v1986, %v2167
      %2177 = vst [vmem:[#allocation3] sm:$0xff] %v2169
      %2178 = vst [vmem:[#allocation3 + $0x8] sm:$0xff] %v2170
      %2179 = vst [vmem:[#allocation3 + $0x10] sm:$0xff] %v2171
      %2180 = vst [vmem:[#allocation3 + $0x18] sm:$0xff] %v2172
      %2181 = vst [vmem:[#allocation3 + $0x20] sm:$0xff] %v2173
      %2182 = vst [vmem:[#allocation3 + $0x28] sm:$0xff] %v2174
      %2183 = vst [vmem:[#allocation3 + $0x30] sm:$0xff] %v2175
      %2184 = vst [vmem:[#allocation3 + $0x38] sm:$0xff] %v2176
      %v2185 = vld [vmem:[#allocation3] sm:$0xff]
      %v2186 = vld [vmem:[#allocation3 + $0x8] sm:$0xff]
      %v2187 = vld [vmem:[#allocation3 + $0x10] sm:$0xff]
      %v2188 = vld [vmem:[#allocation3 + $0x18] sm:$0xff]
      %v2189 = vld [vmem:[#allocation3 + $0x20] sm:$0xff]
      %v2190 = vld [vmem:[#allocation3 + $0x28] sm:$0xff]
      %v2191 = vld [vmem:[#allocation3 + $0x30] sm:$0xff]
      %v2192 = vld [vmem:[#allocation3 + $0x38] sm:$0xff]
      %v2193 = vld [vmem:[%s239] sm:$0xf]
      %v2194 = vld [vmem:[%s239 + $0x4] sm:$0xf]
      %v2195 = vld [vmem:[%s239 + $0x8] sm:$0xf]
      %v2196 = vld [vmem:[%s239 + $0xc] sm:$0xf]
      %v2197 = vld [vmem:[%s239 + $0x10] sm:$0xf]
      %v2198 = vld [vmem:[%s239 + $0x14] sm:$0xf]
      %v2199 = vld [vmem:[%s239 + $0x18] sm:$0xf]
      %v2200 = vld [vmem:[%s239 + $0x1c] sm:$0xf]
      %v2201 = vunpack.c.l.bf16 %v2193
      %v2202 = vunpack.c.l.bf16 %v2194
      %v2203 = vunpack.c.l.bf16 %v2195
      %v2204 = vunpack.c.l.bf16 %v2196
      %v2205 = vunpack.c.l.bf16 %v2197
      %v2206 = vunpack.c.l.bf16 %v2198
      %v2207 = vunpack.c.l.bf16 %v2199
      %v2208 = vunpack.c.l.bf16 %v2200
      %v2209 = vadd.f32 %v2185, %v2201
      %v2210 = vadd.f32 %v2186, %v2202
      %v2211 = vadd.f32 %v2187, %v2203
      %v2212 = vadd.f32 %v2188, %v2204
      %v2213 = vadd.f32 %v2189, %v2205
      %v2214 = vadd.f32 %v2190, %v2206
      %v2215 = vadd.f32 %v2191, %v2207
      %v2216 = vadd.f32 %v2192, %v2208
      %v2217 = vpack.c.bf16 %v2209, %v2209
      %v2218 = vpack.c.bf16 %v2210, %v2210
      %v2219 = vpack.c.bf16 %v2211, %v2211
      %v2220 = vpack.c.bf16 %v2212, %v2212
      %v2221 = vpack.c.bf16 %v2213, %v2213
      %v2222 = vpack.c.bf16 %v2214, %v2214
      %v2223 = vpack.c.bf16 %v2215, %v2215
      %v2224 = vpack.c.bf16 %v2216, %v2216
      %2225 = vst [vmem:[%s244] sm:$0xf] %v2217
      %2226 = vst [vmem:[%s244 + $0x4] sm:$0xf] %v2218
      %2227 = vst [vmem:[%s244 + $0x8] sm:$0xf] %v2219
      %2228 = vst [vmem:[%s244 + $0xc] sm:$0xf] %v2220
      %2229 = vst [vmem:[%s244 + $0x10] sm:$0xf] %v2221
      %2230 = vst [vmem:[%s244 + $0x14] sm:$0xf] %v2222
      %2231 = vst [vmem:[%s244 + $0x18] sm:$0xf] %v2223
      %2232 = vst [vmem:[%s244 + $0x1c] sm:$0xf] %v2224
      %p2233 = scmp.lt.s32.totalorder %s16, 1
      %s2234 = scalar_select %p2233, %s16, 1
      %s2235 = smul.addr %s2234, 8
      %s2236 = smul.addr %s2235, 4
      %s2237 = scalar_lea.vmem %s5, %s2236
      // Predicated region
      $region41: #{network_block_forward.15} parent=39 // pred_check
        %p2238 = pneg %p149
      $region42: #{network_block_forward.15} parent=39 // pred_check_branch
        %2240 = sbr.rel (%p2238) target = $region44
      $region43: #{network_block_forward.15} parent=39 // pred_region
        _
      $region44: #{network_block_forward.15} parent=39 // pred_fallthru
        _
    $region40: #{network_block_forward.15} parent=5 // pred_fallthru
      _
    %p2241 = scmp.le.s32.totalorder 2, %s11
    // Predicated region
    $region45: #{network_block_forward.15} parent=5 // pred_check
      %p2242 = pneg %p2241
    $region46: #{network_block_forward.15} parent=5 // pred_check_branch
      %2244 = sbr.rel (%p2242) target = $region48
    $region47: #{network_block_forward.15} parent=5 // pred_region
      %s2245 = ssub.s32 %s11, 2
      // Predicated region
      $region49: #{network_block_forward.15} parent=47 // pred_check
        %p2246 = pneg %p155
      $region50: #{network_block_forward.15} parent=47 // pred_check_branch
        %2248 = sbr.rel (%p2246) target = $region52
      $region51: #{network_block_forward.15} parent=47 // pred_region
        %p2249 = scmp.lt.s32.totalorder %s17, 1
        %s2250 = scalar_select %p2249, %s17, 1
        %s2251 = smul.addr %s2250, 8
        %s2252 = smul.addr %s2251, 4
        %s2253 = scalar_lea.vmem %s5, %s2252
      $region52: #{network_block_forward.15} parent=47 // pred_fallthru
        _
    $region48: #{network_block_forward.15} parent=5 // pred_fallthru
      _
  $region6: #{network_block_forward.15} parent=0 // loop_footer
    %s15 = sadd.s32 1, %s11
  $region7: #{network_block_forward.15} parent=0 // loop_footer_branch
    %10 = sbr.rel target = $region3
  $region8: #{network_block_forward.15} parent=0 // loop_exit
    _

// kernel: network_block_forward.17
$region0: #{network_block_forward.17}
  #allocation0 [shape = 'u32[]', space=smem, size = 0x4, offset = 0x4, fixed_abs, tag = 'smem constant byte address 0x4 - core index']
  #allocation1 [shape = 'u32[72,128]{1,0:T(1,128)}', space=vmem, size = 0x9000, scoped, tag = 'internal scratch']
  #allocation2 [shape = 'bf16[10,24,128]{2,1,0:T(8,128)(2,1)}', space=vmem, size = 0xf000, scoped, tag = 'scratch operand']
  #allocation3 [shape = 'f32[64,128]{1,0:T(8,128)}', space=vmem, size = 0x8000, scoped, tag = 'scratch operand']
  %s0 = inlined_call_operand.vmem [shape: bf16[2,8,8,128], index: 0, kind: input, shape index: {}]
  %s1 = inlined_call_operand.vmem [shape: f32[1,128], index: 1, kind: input, shape index: {}]
  %s2 = inlined_call_operand.vmem [shape: f32[1,128], index: 2, kind: input, shape index: {}]
  %s3 = inlined_call_operand.vmem [shape: bf16[9,128,128], index: 3, kind: input, shape index: {}]
  %s4 = inlined_call_operand.vmem [shape: bf16[2,8,8,128], index: 4, kind: output, shape index: {}]
  %s5 = sld [smem:[#allocation0]]
  $region49: #{network_block_forward.17} parent=0
    _
  %s7 = ssub.s32 1, %s5
  %s8 = scalar_select 0, %s7, %s5
  loop: start=0, step=1, limit=4
  $region2: #{network_block_forward.17} parent=0 // loop_pre_header
    _
  $region3: #{network_block_forward.17} parent=0 // loop_header
    %s10 = sphi 0, %s14
    %p11 = scmp.ge.s32.totalorder %s10, 4
    %s20 = sphi 0, %s22
    %s23 = sphi 0, %s20
    %s24 = sphi 0, %s23
    %s40 = sphi 0, %s24
    %s44 = sphi 0, %s44
    %s46 = sphi 0, %s44
    %s47 = sphi 0, %s46
    %s61 = sphi 0, %s47
    %s65 = sphi 0, %s65
    %s67 = sphi 0, %s65
    %s68 = sphi 0, %s67
    %s82 = sphi 0, %s68
    %s86 = sphi 0, %s86
    %s88 = sphi 0, %s86
    %s89 = sphi 0, %s88
    %s103 = sphi 0, %s89
    %s109 = sphi 0, %s111
    %s112 = sphi 0, %s109
    %s113 = sphi 0, %s112
    %s129 = sphi 0, %s113
  $region4: #{network_block_forward.17} parent=0 // loop_header_branch
    %13 = sbr.rel (%p11) target = $region8
  $region5: #{network_block_forward.17} parent=0 // loop_body
    %s15 = ssub.s32 %s10, 1
    %s16 = ssub.s32 %s10, 2
    %s17 = sadd.s32 %s10, 1
    %s18 = ssub.s32 %s10, %s17
    %p19 = scmp.eq.s32.totalorder %s18, 0
    %s21 = sadd.s32 %s20, 1
    %s22 = scalar_select %p19, %s20, %s21
    %p25 = pneg %p19
    %p26 = scmp.eq.s32.totalorder %s10, 1
    %p27 = por %p25, %p26
    %p28 = scmp.ne.s32.totalorder %s20, %s23
    %p29 = scmp.eq.s32.totalorder %s10, 0
    %p30 = por %p28, %p29
    %p31 = scmp.ne.s32.totalorder %s20, %s23
    %p32 = scmp.eq.s32.totalorder %s15, 1
    %p33 = por %p31, %p32
    %p34 = scmp.ne.s32.totalorder %s23, %s24
    %p35 = scmp.eq.s32.totalorder %s15, 0
    %p36 = por %p34, %p35
    %p37 = scmp.ne.s32.totalorder %s23, %s24
    %p38 = scmp.eq.s32.totalorder %s16, 1
    %p39 = por %p37, %p38
    %p41 = scmp.ne.s32.totalorder %s24, %s40
    %p42 = scmp.eq.s32.totalorder %s16, 0
    %p43 = por %p41, %p42
    %s45 = sadd.s32 %s44, 1
    %p48 = scmp.eq.s32.totalorder %s10, 1
    %p49 = scmp.ne.s32.totalorder %s44, %s46
    %p50 = scmp.eq.s32.totalorder %s10, 0
    %p51 = por %p49, %p50
    %p52 = scmp.ne.s32.totalorder %s44, %s46
    %p53 = scmp.eq.s32.totalorder %s15, 1
    %p54 = por %p52, %p53
    %p55 = scmp.ne.s32.totalorder %s46, %s47
    %p56 = scmp.eq.s32.totalorder %s15, 0
    %p57 = por %p55, %p56
    %p58 = scmp.ne.s32.totalorder %s46, %s47
    %p59 = scmp.eq.s32.totalorder %s16, 1
    %p60 = por %p58, %p59
    %p62 = scmp.ne.s32.totalorder %s47, %s61
    %p63 = scmp.eq.s32.totalorder %s16, 0
    %p64 = por %p62, %p63
    %s66 = sadd.s32 %s65, 1
    %p69 = scmp.eq.s32.totalorder %s10, 1
    %p70 = scmp.ne.s32.totalorder %s65, %s67
    %p71 = scmp.eq.s32.totalorder %s10, 0
    %p72 = por %p70, %p71
    %p73 = scmp.ne.s32.totalorder %s65, %s67
    %p74 = scmp.eq.s32.totalorder %s15, 1
    %p75 = por %p73, %p74
    %p76 = scmp.ne.s32.totalorder %s67, %s68
    %p77 = scmp.eq.s32.totalorder %s15, 0
    %p78 = por %p76, %p77
    %p79 = scmp.ne.s32.totalorder %s67, %s68
    %p80 = scmp.eq.s32.totalorder %s16, 1
    %p81 = por %p79, %p80
    %p83 = scmp.ne.s32.totalorder %s68, %s82
    %p84 = scmp.eq.s32.totalorder %s16, 0
    %p85 = por %p83, %p84
    %s87 = sadd.s32 %s86, 1
    %p90 = scmp.eq.s32.totalorder %s10, 1
    %p91 = scmp.ne.s32.totalorder %s86, %s88
    %p92 = scmp.eq.s32.totalorder %s10, 0
    %p93 = por %p91, %p92
    %p94 = scmp.ne.s32.totalorder %s86, %s88
    %p95 = scmp.eq.s32.totalorder %s15, 1
    %p96 = por %p94, %p95
    %p97 = scmp.ne.s32.totalorder %s88, %s89
    %p98 = scmp.eq.s32.totalorder %s15, 0
    %p99 = por %p97, %p98
    %p100 = scmp.ne.s32.totalorder %s88, %s89
    %p101 = scmp.eq.s32.totalorder %s16, 1
    %p102 = por %p100, %p101
    %p104 = scmp.ne.s32.totalorder %s89, %s103
    %p105 = scmp.eq.s32.totalorder %s16, 0
    %p106 = por %p104, %p105
    %s107 = ssub.s32 %s10, %s17
    %p108 = scmp.eq.s32.totalorder %s107, 0
    %s110 = sadd.s32 %s109, 1
    %s111 = scalar_select %p108, %s109, %s110
    %p114 = pneg %p108
    %p115 = scmp.eq.s32.totalorder %s10, 1
    %p116 = por %p114, %p115
    %p117 = scmp.ne.s32.totalorder %s109, %s112
    %p118 = scmp.eq.s32.totalorder %s10, 0
    %p119 = por %p117, %p118
    %p120 = scmp.ne.s32.totalorder %s109, %s112
    %p121 = scmp.eq.s32.totalorder %s15, 1
    %p122 = por %p120, %p121
    %p123 = scmp.ne.s32.totalorder %s112, %s113
    %p124 = scmp.eq.s32.totalorder %s15, 0
    %p125 = por %p123, %p124
    %p126 = scmp.ne.s32.totalorder %s112, %s113
    %p127 = scmp.eq.s32.totalorder %s16, 1
    %p128 = por %p126, %p127
    %p130 = scmp.ne.s32.totalorder %s113, %s129
    %p131 = scmp.eq.s32.totalorder %s16, 0
    %p132 = por %p130, %p131
    %p133 = scmp.le.s32.totalorder 1, %s10
    %p134 = scmp.lt.s32.totalorder %s10, 3
    %p135 = pnand %p133, %p134
    %p136 = pneg %p135
    // Predicated region
    $region9: #{network_block_forward.17} parent=5 // pred_check
      _
    $region10: #{network_block_forward.17} parent=5 // pred_check_branch
      %138 = sbr.rel (%p135) target = $region12
    $region11: #{network_block_forward.17} parent=5 // pred_region
      %s139 = ssub.s32 %s10, 1
      // Predicated region
      $region13: #{network_block_forward.17} parent=11 // pred_check
        %p140 = pneg %p57
      $region14: #{network_block_forward.17} parent=11 // pred_check_branch
        %142 = sbr.rel (%p140) target = $region16
      $region15: #{network_block_forward.17} parent=11 // pred_region
        _
      $region16: #{network_block_forward.17} parent=11 // pred_fallthru
        _
      // Predicated region
      $region17: #{network_block_forward.17} parent=11 // pred_check
        %p143 = pneg %p78
      $region18: #{network_block_forward.17} parent=11 // pred_check_branch
        %145 = sbr.rel (%p143) target = $region20
      $region19: #{network_block_forward.17} parent=11 // pred_region
        _
      $region20: #{network_block_forward.17} parent=11 // pred_fallthru
        _
      // Predicated region
      $region21: #{network_block_forward.17} parent=11 // pred_check
        %p146 = pneg %p99
      $region22: #{network_block_forward.17} parent=11 // pred_check_branch
        %148 = sbr.rel (%p146) target = $region24
      $region23: #{network_block_forward.17} parent=11 // pred_region
        _
      $region24: #{network_block_forward.17} parent=11 // pred_fallthru
        _
    $region12: #{network_block_forward.17} parent=5 // pred_fallthru
      _
    %p149 = scmp.lt.s32.totalorder %s10, 2
    // Predicated region
    $region25: #{network_block_forward.17} parent=5 // pred_check
      %p150 = pneg %p149
    $region26: #{network_block_forward.17} parent=5 // pred_check_branch
      %152 = sbr.rel (%p150) target = $region28
    $region27: #{network_block_forward.17} parent=5 // pred_region
      // Predicated region
      $region29: #{network_block_forward.17} parent=27 // pred_check
        %p153 = pneg %p30
      $region30: #{network_block_forward.17} parent=27 // pred_check_branch
        %155 = sbr.rel (%p153) target = $region32
      $region31: #{network_block_forward.17} parent=27 // pred_region
        %p156 = scmp.lt.s32.totalorder %s10, 1
        %s157 = scalar_select %p156, %s10, 1
        %s158 = smul.addr %s157, 8
        %s159 = smul.addr %s158, 4
        %s160 = scalar_lea.vmem %s0, %s159
      $region32: #{network_block_forward.17} parent=27 // pred_fallthru
        _
    $region28: #{network_block_forward.17} parent=5 // pred_fallthru
      _
    %p161 = scmp.le.s32.totalorder 1, %s10
    %p162 = scmp.lt.s32.totalorder %s10, 3
    %p163 = pnand %p161, %p162
    %p164 = pneg %p163
    // Predicated region
    $region33: #{network_block_forward.17} parent=5 // pred_check
      _
    $region34: #{network_block_forward.17} parent=5 // pred_check_branch
      %166 = sbr.rel (%p163) target = $region36
    $region35: #{network_block_forward.17} parent=5 // pred_region
      %s167 = ssub.s32 %s10, 1
      %p168 = scmp.lt.s32.totalorder %s15, 1
      %s169 = scalar_select %p168, %s15, 1
      %s170 = smul.addr %s169, 8
      %s171 = smul.addr %s170, 4
      %s172 = scalar_lea.vmem %s0, %s171
      %p173 = pneg %p36
      %p174 = pneg %p33
      %p175 = pneg %p57
      %p176 = pneg %p54
      %p177 = pneg %p78
      %p178 = pneg %p75
      %p179 = pneg %p99
      %p180 = pneg %p96
      %p181 = pneg %p125
      %p182 = pneg %p122
      %p183 = scmp.lt.s32.totalorder %s15, 1
      %s184 = scalar_select %p183, %s15, 1
      %s185 = smul.addr %s184, 8
      %s186 = smul.addr %s185, 4
      %s187 = scalar_lea.vmem %s4, %s186
      %p188 = scmp.lt.s32.totalorder %s15, 1
      %s189 = scalar_select %p188, %s15, 1
      %s190 = smul.addr %s189, 8
      %s191 = smul.addr %s190, 4
      %s192 = scalar_lea.vmem %s0, %s191
      %p193 = scmp.lt.s32.totalorder %s15, 1
      %s194 = scalar_select %p193, %s15, 1
      %s195 = smul.addr %s194, 8
      %s196 = smul.addr %s195, 4
      %s197 = scalar_lea.vmem %s4, %s196
      %199 = vst [vmem:[#allocation2] sm:$0xf] 0
      %200 = vst [vmem:[#allocation2 + $0x4] sm:$0xf] 0
      %201 = vst [vmem:[#allocation2 + $0x8] sm:$0xf] 0
      %202 = vst [vmem:[#allocation2 + $0xc] sm:$0xf] 0
      %203 = vst [vmem:[#allocation2 + $0x10] sm:$0xf] 0
      %204 = vst [vmem:[#allocation2 + $0x14] sm:$0xf] 0
      %205 = vst [vmem:[#allocation2 + $0x18] sm:$0xf] 0
      %206 = vst [vmem:[#allocation2 + $0x1c] sm:$0xf] 0
      %207 = vst [vmem:[#allocation2 + $0x20] sm:$0xf] 0
      %208 = vst [vmem:[#allocation2 + $0x24] sm:$0xf] 0
      %209 = vst [vmem:[#allocation2 + $0x28] sm:$0xf] 0
      %210 = vst [vmem:[#allocation2 + $0x2c] sm:$0xf] 0
      %211 = vst [vmem:[#allocation2 + $0x30] sm:$0xf] 0
      %212 = vst [vmem:[#allocation2 + $0x34] sm:$0xf] 0
      %213 = vst [vmem:[#allocation2 + $0x38] sm:$0xf] 0
      %214 = vst [vmem:[#allocation2 + $0x3c] sm:$0xf] 0
      %215 = vst [vmem:[#allocation2 + $0x40] sm:$0xf] 0
      %216 = vst [vmem:[#allocation2 + $0x44] sm:$0xf] 0
      %217 = vst [vmem:[#allocation2 + $0x48] sm:$0xf] 0
      %218 = vst [vmem:[#allocation2 + $0x4c] sm:$0xf] 0
      %219 = vst [vmem:[#allocation2 + $0x50] sm:$0xf] 0
      %220 = vst [vmem:[#allocation2 + $0x54] sm:$0xf] 0
      %221 = vst [vmem:[#allocation2 + $0x58] sm:$0xf] 0
      %222 = vst [vmem:[#allocation2 + $0x5c] sm:$0xf] 0
      %223 = vst [vmem:[#allocation2 + $0x60] sm:$0xf] 0
      %224 = vst [vmem:[#allocation2 + $0x64] sm:$0xf] 0
      %225 = vst [vmem:[#allocation2 + $0x68] sm:$0xf] 0
      %226 = vst [vmem:[#allocation2 + $0x6c] sm:$0xf] 0
      %227 = vst [vmem:[#allocation2 + $0x70] sm:$0xf] 0
      %228 = vst [vmem:[#allocation2 + $0x74] sm:$0xf] 0
      %v229 = vld [vmem:[%s192] sm:$0xf]
      %v230 = vld [vmem:[%s192 + $0x4] sm:$0xf]
      %v231 = vld [vmem:[%s192 + $0x8] sm:$0xf]
      %v232 = vld [vmem:[%s192 + $0xc] sm:$0xf]
      %v233 = vld [vmem:[%s192 + $0x10] sm:$0xf]
      %v234 = vld [vmem:[%s192 + $0x14] sm:$0xf]
      %v235 = vld [vmem:[%s192 + $0x18] sm:$0xf]
      %v236 = vld [vmem:[%s192 + $0x1c] sm:$0xf]
      %v237 = vunpack.c.l.bf16 %v229
      %v238 = vunpack.c.l.bf16 %v230
      %v239 = vunpack.c.l.bf16 %v231
      %v240 = vunpack.c.l.bf16 %v232
      %v241 = vunpack.c.l.bf16 %v233
      %v242 = vunpack.c.l.bf16 %v234
      %v243 = vunpack.c.l.bf16 %v235
      %v244 = vunpack.c.l.bf16 %v236
      %v245 = vld [vmem:[%s1] sm:$0x1]
      %v246 = vld [vmem:[%s2] sm:$0x1]
      %v248 = vperm.slane %v245, 0
      %v250 = vmul.f32 %v237, %v248
      %v251 = vmul.f32 %v238, %v248
      %v252 = vmul.f32 %v239, %v248
      %v253 = vmul.f32 %v240, %v248
      %v254 = vmul.f32 %v241, %v248
      %v255 = vmul.f32 %v242, %v248
      %v256 = vmul.f32 %v243, %v248
      %v257 = vmul.f32 %v244, %v248
      %v259 = vperm.slane %v246, 0
      %v261 = vadd.f32 %v250, %v259
      %v262 = vadd.f32 %v251, %v259
      %v263 = vadd.f32 %v252, %v259
      %v264 = vadd.f32 %v253, %v259
      %v265 = vadd.f32 %v254, %v259
      %v266 = vadd.f32 %v255, %v259
      %v267 = vadd.f32 %v256, %v259
      %v268 = vadd.f32 %v257, %v259
      %v269 = vmax.f32 %v261, 0.0
      %v270 = vmax.f32 %v262, 0.0
      %v271 = vmax.f32 %v263, 0.0
      %v272 = vmax.f32 %v264, 0.0
      %v273 = vmax.f32 %v265, 0.0
      %v274 = vmax.f32 %v266, 0.0
      %v275 = vmax.f32 %v267, 0.0
      %v276 = vmax.f32 %v268, 0.0
      %v277 = vpack.c.bf16 %v269, %v269
      %v278 = vpack.c.bf16 %v270, %v270
      %v279 = vpack.c.bf16 %v271, %v271
      %v280 = vpack.c.bf16 %v272, %v272
      %v281 = vpack.c.bf16 %v273, %v273
      %v282 = vpack.c.bf16 %v274, %v274
      %v283 = vpack.c.bf16 %v275, %v275
      %v284 = vpack.c.bf16 %v276, %v276
      %s285 = scalar_lea.vmem [#allocation2], 12
      %286 = vst [vmem:[%s285 + $0x4] sm:$0xf] %v277
      %287 = vst [vmem:[%s285 + $0x10] sm:$0xf] %v278
      %288 = vst [vmem:[%s285 + $0x1c] sm:$0xf] %v279
      %289 = vst [vmem:[%s285 + $0x28] sm:$0xf] %v280
      %290 = vst [vmem:[%s285 + $0x34] sm:$0xf] %v281
      %291 = vst [vmem:[%s285 + $0x40] sm:$0xf] %v282
      %292 = vst [vmem:[%s285 + $0x4c] sm:$0xf] %v283
      %293 = vst [vmem:[%s285 + $0x58] sm:$0xf] %v284
      %294 = vst [vmem:[#allocation3] sm:$0xff] 0.0
      %295 = vst [vmem:[#allocation3 + $0x8] sm:$0xff] 0.0
      %296 = vst [vmem:[#allocation3 + $0x10] sm:$0xff] 0.0
      %297 = vst [vmem:[#allocation3 + $0x18] sm:$0xff] 0.0
      %298 = vst [vmem:[#allocation3 + $0x20] sm:$0xff] 0.0
      %299 = vst [vmem:[#allocation3 + $0x28] sm:$0xff] 0.0
      %300 = vst [vmem:[#allocation3 + $0x30] sm:$0xff] 0.0
      %301 = vst [vmem:[#allocation3 + $0x38] sm:$0xff] 0.0
      %v302 = vld [vmem:[#allocation2] sm:$0xf]
      %v303 = vld [vmem:[#allocation2 + $0x4] sm:$0xf]
      %v304 = vld [vmem:[#allocation2 + $0x8] sm:$0xf]
      %v305 = vld [vmem:[#allocation2 + $0xc] sm:$0xf]
      %v306 = vld [vmem:[#allocation2 + $0x10] sm:$0xf]
      %v307 = vld [vmem:[#allocation2 + $0x14] sm:$0xf]
      %v308 = vld [vmem:[#allocation2 + $0x18] sm:$0xf]
      %v309 = vld [vmem:[#allocation2 + $0x1c] sm:$0xf]
      %v310 = vld [vmem:[#allocation2 + $0x20] sm:$0xf]
      %v311 = vld [vmem:[#allocation2 + $0x24] sm:$0xf]
      %v312 = vld [vmem:[#allocation2 + $0x28] sm:$0xf]
      %v313 = vld [vmem:[#allocation2 + $0x2c] sm:$0xf]
      %v314 = vld [vmem:[#allocation2 + $0x30] sm:$0xf]
      %v315 = vld [vmem:[#allocation2 + $0x34] sm:$0xf]
      %v316 = vld [vmem:[#allocation2 + $0x38] sm:$0xf]
      %v317 = vld [vmem:[#allocation2 + $0x3c] sm:$0xf]
      %v318 = vld [vmem:[#allocation2 + $0x40] sm:$0xf]
      %v319 = vld [vmem:[#allocation2 + $0x44] sm:$0xf]
      %v320 = vld [vmem:[#allocation2 + $0x48] sm:$0xf]
      %v321 = vld [vmem:[#allocation2 + $0x4c] sm:$0xf]
      %v322 = vld [vmem:[#allocation2 + $0x50] sm:$0xf]
      %v323 = vld [vmem:[#allocation2 + $0x54] sm:$0xf]
      %v324 = vld [vmem:[#allocation2 + $0x58] sm:$0xf]
      %v325 = vld [vmem:[#allocation2 + $0x5c] sm:$0xf]
      %v326 = vld [vmem:[#allocation3] sm:$0xff]
      %v327 = vld [vmem:[#allocation3 + $0x8] sm:$0xff]
      %v328 = vld [vmem:[#allocation3 + $0x10] sm:$0xff]
      %v329 = vld [vmem:[#allocation3 + $0x18] sm:$0xff]
      %v330 = vld [vmem:[#allocation3 + $0x20] sm:$0xff]
      %v331 = vld [vmem:[#allocation3 + $0x28] sm:$0xff]
      %v332 = vld [vmem:[#allocation3 + $0x30] sm:$0xff]
      %v333 = vld [vmem:[#allocation3 + $0x38] sm:$0xff]
      %vm334 = vsmask.f32 256
      %vm335 = vsmask.f32 4368
      %vm336 = vmor %vm334, %vm335
      %v338 = vshrl.u32 %v302, 16
      %v340 = vrot.slane %v338, 7
      %v341 = vrot.slane %v340, 4
      %v343 = vshrl.u32 %v303, 16
      %v345 = vrot.slane %v343, 7
      %v346 = vshll.u32 %v303, 16
      %v348 = vor.u32 %v345, %v346
      %v349 = vsel %vm336, %v341, %v348
      %v351 = vshrl.u32 %v305, 16
      %v353 = vrot.slane %v351, 7
      %v354 = vrot.slane %v353, 4
      %v356 = vshrl.u32 %v306, 16
      %v358 = vrot.slane %v356, 7
      %v359 = vshll.u32 %v306, 16
      %v361 = vor.u32 %v358, %v359
      %v362 = vsel %vm336, %v354, %v361
      %v364 = vshrl.u32 %v308, 16
      %v366 = vrot.slane %v364, 7
      %v367 = vrot.slane %v366, 4
      %v369 = vshrl.u32 %v309, 16
      %v371 = vrot.slane %v369, 7
      %v372 = vshll.u32 %v309, 16
      %v374 = vor.u32 %v371, %v372
      %v375 = vsel %vm336, %v367, %v374
      %v377 = vshrl.u32 %v311, 16
      %v379 = vrot.slane %v377, 7
      %v380 = vrot.slane %v379, 4
      %v382 = vshrl.u32 %v312, 16
      %v384 = vrot.slane %v382, 7
      %v385 = vshll.u32 %v312, 16
      %v387 = vor.u32 %v384, %v385
      %v388 = vsel %vm336, %v380, %v387
      %v390 = vshrl.u32 %v314, 16
      %v392 = vrot.slane %v390, 7
      %v393 = vrot.slane %v392, 4
      %v395 = vshrl.u32 %v315, 16
      %v397 = vrot.slane %v395, 7
      %v398 = vshll.u32 %v315, 16
      %v400 = vor.u32 %v397, %v398
      %v401 = vsel %vm336, %v393, %v400
      %v403 = vshrl.u32 %v317, 16
      %v405 = vrot.slane %v403, 7
      %v406 = vrot.slane %v405, 4
      %v408 = vshrl.u32 %v318, 16
      %v410 = vrot.slane %v408, 7
      %v411 = vshll.u32 %v318, 16
      %v413 = vor.u32 %v410, %v411
      %v414 = vsel %vm336, %v406, %v413
      %v416 = vshrl.u32 %v320, 16
      %v418 = vrot.slane %v416, 7
      %v419 = vrot.slane %v418, 4
      %v421 = vshrl.u32 %v321, 16
      %v423 = vrot.slane %v421, 7
      %v424 = vshll.u32 %v321, 16
      %v426 = vor.u32 %v423, %v424
      %v427 = vsel %vm336, %v419, %v426
      %v429 = vshrl.u32 %v323, 16
      %v431 = vrot.slane %v429, 7
      %v432 = vrot.slane %v431, 4
      %v434 = vshrl.u32 %v324, 16
      %v436 = vrot.slane %v434, 7
      %v437 = vshll.u32 %v324, 16
      %v439 = vor.u32 %v436, %v437
      %v440 = vsel %vm336, %v432, %v439
      %v441 = vld [vmem:[%s3] sm:$0xf]
      %v442 = vld [vmem:[%s3 + $0x4] sm:$0xf]
      %v443 = vld [vmem:[%s3 + $0x8] sm:$0xf]
      %v444 = vld [vmem:[%s3 + $0xc] sm:$0xf]
      %v445 = vld [vmem:[%s3 + $0x10] sm:$0xf]
      %v446 = vld [vmem:[%s3 + $0x14] sm:$0xf]
      %v447 = vld [vmem:[%s3 + $0x18] sm:$0xf]
      %v448 = vld [vmem:[%s3 + $0x1c] sm:$0xf]
      %v449 = vld [vmem:[%s3 + $0x20] sm:$0xf]
      %v450 = vld [vmem:[%s3 + $0x24] sm:$0xf]
      %v451 = vld [vmem:[%s3 + $0x28] sm:$0xf]
      %v452 = vld [vmem:[%s3 + $0x2c] sm:$0xf]
      %v453 = vld [vmem:[%s3 + $0x30] sm:$0xf]
      %v454 = vld [vmem:[%s3 + $0x34] sm:$0xf]
      %v455 = vld [vmem:[%s3 + $0x38] sm:$0xf]
      %v456 = vld [vmem:[%s3 + $0x3c] sm:$0xf]
      %v457 = vunpack.c.l.b16 %v349
      %v458 = vunpack.c.l.b16 %v362
      %v459 = vunpack.c.l.b16 %v375
      %v460 = vunpack.c.l.b16 %v388
      %v461 = vunpack.c.l.b16 %v401
      %v462 = vunpack.c.l.b16 %v414
      %v463 = vunpack.c.l.b16 %v427
      %v464 = vunpack.c.l.b16 %v440
      %v465 = vpack.c.b16 %v458, %v457
      %v466 = vpack.c.b16 %v460, %v459
      %v467 = vpack.c.b16 %v462, %v461
      %v468 = vpack.c.b16 %v464, %v463
      %v489 = vunpack.c.l.b16 %v441
      %v490 = vunpack.c.l.b16 %v442
      %v491 = vunpack.c.l.b16 %v443
      %v492 = vunpack.c.l.b16 %v444
      %v493 = vunpack.c.l.b16 %v445
      %v494 = vunpack.c.l.b16 %v446
      %v495 = vunpack.c.l.b16 %v447
      %v496 = vunpack.c.l.b16 %v448
      %v497 = vunpack.c.l.b16 %v449
      %v498 = vunpack.c.l.b16 %v450
      %v499 = vunpack.c.l.b16 %v451
      %v500 = vunpack.c.l.b16 %v452
      %v501 = vunpack.c.l.b16 %v453
      %v502 = vunpack.c.l.b16 %v454
      %v503 = vunpack.c.l.b16 %v455
      %v504 = vunpack.c.l.b16 %v456
      %v505 = vpack.c.b16 %v490, %v489
      %v506 = vpack.c.b16 %v492, %v491
      %v507 = vpack.c.b16 %v494, %v493
      %v508 = vpack.c.b16 %v496, %v495
      %v509 = vpack.c.b16 %v498, %v497
      %v510 = vpack.c.b16 %v500, %v499
      %v511 = vpack.c.b16 %v502, %v501
      %v512 = vpack.c.b16 %v504, %v503
      %521 = vmatpush.bf16.msra.mxu0 %v512
      %522 = vmatpush.bf16.msra.mxu0 %v511
      %523 = vmatpush.bf16.msra.mxu0 %v510
      %524 = vmatpush.bf16.msra.mxu0 %v509
      %525 = vmatpush.bf16.msra.mxu0 %v508
      %526 = vmatpush.bf16.msra.mxu0 %v507
      %527 = vmatpush.bf16.msra.mxu0 %v506
      %528 = vmatpush.bf16.msra.mxu0 %v505
      %529 = vmatmul.bf16.gmra.mxu0 %v465
      %v530 = vpop.f32.mrf.mxu0
      %v531 = vadd.f32 0.0, %v530
      %v532 = vpop.f32.mrf.mxu0
      %v533 = vadd.f32 0.0, %v532
      %534 = vmatmul.bf16.gmra.mxu0 %v466
      %v535 = vpop.f32.mrf.mxu0
      %v536 = vadd.f32 0.0, %v535
      %v537 = vpop.f32.mrf.mxu0
      %v538 = vadd.f32 0.0, %v537
      %539 = vmatmul.bf16.gmra.mxu0 %v467
      %v540 = vpop.f32.mrf.mxu0
      %v541 = vadd.f32 0.0, %v540
      %v542 = vpop.f32.mrf.mxu0
      %v543 = vadd.f32 0.0, %v542
      %544 = vmatmul.bf16.gmra.mxu0 %v468
      %v545 = vpop.f32.mrf.mxu0
      %v546 = vadd.f32 0.0, %v545
      %v547 = vpop.f32.mrf.mxu0
      %v548 = vadd.f32 0.0, %v547
      %549 = vdwg.mxu0
      %v550 = vadd.f32 %v326, %v531
      %v551 = vadd.f32 %v327, %v533
      %v552 = vadd.f32 %v328, %v536
      %v553 = vadd.f32 %v329, %v538
      %v554 = vadd.f32 %v330, %v541
      %v555 = vadd.f32 %v331, %v543
      %v556 = vadd.f32 %v332, %v546
      %v557 = vadd.f32 %v333, %v548
      %558 = vst [vmem:[#allocation3] sm:$0xff] %v550
      %559 = vst [vmem:[#allocation3 + $0x8] sm:$0xff] %v551
      %560 = vst [vmem:[#allocation3 + $0x10] sm:$0xff] %v552
      %561 = vst [vmem:[#allocation3 + $0x18] sm:$0xff] %v553
      %562 = vst [vmem:[#allocation3 + $0x20] sm:$0xff] %v554
      %563 = vst [vmem:[#allocation3 + $0x28] sm:$0xff] %v555
      %564 = vst [vmem:[#allocation3 + $0x30] sm:$0xff] %v556
      %565 = vst [vmem:[#allocation3 + $0x38] sm:$0xff] %v557
      %v566 = vld [vmem:[#allocation3] sm:$0xff]
      %v567 = vld [vmem:[#allocation3 + $0x8] sm:$0xff]
      %v568 = vld [vmem:[#allocation3 + $0x10] sm:$0xff]
      %v569 = vld [vmem:[#allocation3 + $0x18] sm:$0xff]
      %v570 = vld [vmem:[#allocation3 + $0x20] sm:$0xff]
      %v571 = vld [vmem:[#allocation3 + $0x28] sm:$0xff]
      %v572 = vld [vmem:[#allocation3 + $0x30] sm:$0xff]
      %v573 = vld [vmem:[#allocation3 + $0x38] sm:$0xff]
      %s574 = scalar_lea.vmem %s3, 64
      %v575 = vld [vmem:[%s574] sm:$0xf]
      %v576 = vld [vmem:[%s574 + $0x4] sm:$0xf]
      %v577 = vld [vmem:[%s574 + $0x8] sm:$0xf]
      %v578 = vld [vmem:[%s574 + $0xc] sm:$0xf]
      %v579 = vld [vmem:[%s574 + $0x10] sm:$0xf]
      %v580 = vld [vmem:[%s574 + $0x14] sm:$0xf]
      %v581 = vld [vmem:[%s574 + $0x18] sm:$0xf]
      %v582 = vld [vmem:[%s574 + $0x1c] sm:$0xf]
      %v583 = vld [vmem:[%s574 + $0x20] sm:$0xf]
      %v584 = vld [vmem:[%s574 + $0x24] sm:$0xf]
      %v585 = vld [vmem:[%s574 + $0x28] sm:$0xf]
      %v586 = vld [vmem:[%s574 + $0x2c] sm:$0xf]
      %v587 = vld [vmem:[%s574 + $0x30] sm:$0xf]
      %v588 = vld [vmem:[%s574 + $0x34] sm:$0xf]
      %v589 = vld [vmem:[%s574 + $0x38] sm:$0xf]
      %v590 = vld [vmem:[%s574 + $0x3c] sm:$0xf]
      %v599 = vunpack.c.l.b16 %v303
      %v600 = vunpack.c.l.b16 %v306
      %v601 = vunpack.c.l.b16 %v309
      %v602 = vunpack.c.l.b16 %v312
      %v603 = vunpack.c.l.b16 %v315
      %v604 = vunpack.c.l.b16 %v318
      %v605 = vunpack.c.l.b16 %v321
      %v606 = vunpack.c.l.b16 %v324
      %v607 = vpack.c.b16 %v600, %v599
      %v608 = vpack.c.b16 %v602, %v601
      %v609 = vpack.c.b16 %v604, %v603
      %v610 = vpack.c.b16 %v606, %v605
      %v631 = vunpack.c.l.b16 %v575
      %v632 = vunpack.c.l.b16 %v576
      %v633 = vunpack.c.l.b16 %v577
      %v634 = vunpack.c.l.b16 %v578
      %v635 = vunpack.c.l.b16 %v579
      %v636 = vunpack.c.l.b16 %v580
      %v637 = vunpack.c.l.b16 %v581
      %v638 = vunpack.c.l.b16 %v582
      %v639 = vunpack.c.l.b16 %v583
      %v640 = vunpack.c.l.b16 %v584
      %v641 = vunpack.c.l.b16 %v585
      %v642 = vunpack.c.l.b16 %v586
      %v643 = vunpack.c.l.b16 %v587
      %v644 = vunpack.c.l.b16 %v588
      %v645 = vunpack.c.l.b16 %v589
      %v646 = vunpack.c.l.b16 %v590
      %v647 = vpack.c.b16 %v632, %v631
      %v648 = vpack.c.b16 %v634, %v633
      %v649 = vpack.c.b16 %v636, %v635
      %v650 = vpack.c.b16 %v638, %v637
      %v651 = vpack.c.b16 %v640, %v639
      %v652 = vpack.c.b16 %v642, %v641
      %v653 = vpack.c.b16 %v644, %v643
      %v654 = vpack.c.b16 %v646, %v645
      %663 = vmatpush.bf16.msra.mxu0 %v654
      %664 = vmatpush.bf16.msra.mxu0 %v653
      %665 = vmatpush.bf16.msra.mxu0 %v652
      %666 = vmatpush.bf16.msra.mxu0 %v651
      %667 = vmatpush.bf16.msra.mxu0 %v650
      %668 = vmatpush.bf16.msra.mxu0 %v649
      %669 = vmatpush.bf16.msra.mxu0 %v648
      %670 = vmatpush.bf16.msra.mxu0 %v647
      %671 = vmatmul.bf16.gmra.mxu0 %v607
      %v672 = vpop.f32.mrf.mxu0
      %v673 = vadd.f32 0.0, %v672
      %v674 = vpop.f32.mrf.mxu0
      %v675 = vadd.f32 0.0, %v674
      %676 = vmatmul.bf16.gmra.mxu0 %v608
      %v677 = vpop.f32.mrf.mxu0
      %v678 = vadd.f32 0.0, %v677
      %v679 = vpop.f32.mrf.mxu0
      %v680 = vadd.f32 0.0, %v679
      %681 = vmatmul.bf16.gmra.mxu0 %v609
      %v682 = vpop.f32.mrf.mxu0
      %v683 = vadd.f32 0.0, %v682
      %v684 = vpop.f32.mrf.mxu0
      %v685 = vadd.f32 0.0, %v684
      %686 = vmatmul.bf16.gmra.mxu0 %v610
      %v687 = vpop.f32.mrf.mxu0
      %v688 = vadd.f32 0.0, %v687
      %v689 = vpop.f32.mrf.mxu0
      %v690 = vadd.f32 0.0, %v689
      %691 = vdwg.mxu0
      %v692 = vadd.f32 %v566, %v673
      %v693 = vadd.f32 %v567, %v675
      %v694 = vadd.f32 %v568, %v678
      %v695 = vadd.f32 %v569, %v680
      %v696 = vadd.f32 %v570, %v683
      %v697 = vadd.f32 %v571, %v685
      %v698 = vadd.f32 %v572, %v688
      %v699 = vadd.f32 %v573, %v690
      %700 = vst [vmem:[#allocation3] sm:$0xff] %v692
      %701 = vst [vmem:[#allocation3 + $0x8] sm:$0xff] %v693
      %702 = vst [vmem:[#allocation3 + $0x10] sm:$0xff] %v694
      %703 = vst [vmem:[#allocation3 + $0x18] sm:$0xff] %v695
      %704 = vst [vmem:[#allocation3 + $0x20] sm:$0xff] %v696
      %705 = vst [vmem:[#allocation3 + $0x28] sm:$0xff] %v697
      %706 = vst [vmem:[#allocation3 + $0x30] sm:$0xff] %v698
      %707 = vst [vmem:[#allocation3 + $0x38] sm:$0xff] %v699
      %v708 = vld [vmem:[#allocation3] sm:$0xff]
      %v709 = vld [vmem:[#allocation3 + $0x8] sm:$0xff]
      %v710 = vld [vmem:[#allocation3 + $0x10] sm:$0xff]
      %v711 = vld [vmem:[#allocation3 + $0x18] sm:$0xff]
      %v712 = vld [vmem:[#allocation3 + $0x20] sm:$0xff]
      %v713 = vld [vmem:[#allocation3 + $0x28] sm:$0xff]
      %v714 = vld [vmem:[#allocation3 + $0x30] sm:$0xff]
      %v715 = vld [vmem:[#allocation3 + $0x38] sm:$0xff]
      %vm716 = vsmask.f32 3328
      %vm717 = vsmask.f32 7440
      %vm718 = vmor %vm716, %vm717
      %v719 = vrot.slane %v343, 4
      %v720 = vrot.slane %v346, 5
      %v721 = vor.u32 %v719, %v720
      %v722 = vrot.slane %v721, 4
      %v724 = vshll.u32 %v304, 16
      %v726 = vrot.slane %v724, 5
      %v727 = vsel %vm718, %v722, %v726
      %v728 = vrot.slane %v356, 4
      %v729 = vrot.slane %v359, 5
      %v730 = vor.u32 %v728, %v729
      %v731 = vrot.slane %v730, 4
      %v733 = vshll.u32 %v307, 16
      %v735 = vrot.slane %v733, 5
      %v736 = vsel %vm718, %v731, %v735
      %v737 = vrot.slane %v369, 4
      %v738 = vrot.slane %v372, 5
      %v739 = vor.u32 %v737, %v738
      %v740 = vrot.slane %v739, 4
      %v742 = vshll.u32 %v310, 16
      %v744 = vrot.slane %v742, 5
      %v745 = vsel %vm718, %v740, %v744
      %v746 = vrot.slane %v382, 4
      %v747 = vrot.slane %v385, 5
      %v748 = vor.u32 %v746, %v747
      %v749 = vrot.slane %v748, 4
      %v751 = vshll.u32 %v313, 16
      %v753 = vrot.slane %v751, 5
      %v754 = vsel %vm718, %v749, %v753
      %v755 = vrot.slane %v395, 4
      %v756 = vrot.slane %v398, 5
      %v757 = vor.u32 %v755, %v756
      %v758 = vrot.slane %v757, 4
      %v760 = vshll.u32 %v316, 16
      %v762 = vrot.slane %v760, 5
      %v763 = vsel %vm718, %v758, %v762
      %v764 = vrot.slane %v408, 4
      %v765 = vrot.slane %v411, 5
      %v766 = vor.u32 %v764, %v765
      %v767 = vrot.slane %v766, 4
      %v769 = vshll.u32 %v319, 16
      %v771 = vrot.slane %v769, 5
      %v772 = vsel %vm718, %v767, %v771
      %v773 = vrot.slane %v421, 4
      %v774 = vrot.slane %v424, 5
      %v775 = vor.u32 %v773, %v774
      %v776 = vrot.slane %v775, 4
      %v778 = vshll.u32 %v322, 16
      %v780 = vrot.slane %v778, 5
      %v781 = vsel %vm718, %v776, %v780
      %v782 = vrot.slane %v434, 4
      %v783 = vrot.slane %v437, 5
      %v784 = vor.u32 %v782, %v783
      %v785 = vrot.slane %v784, 4
      %v787 = vshll.u32 %v325, 16
      %v789 = vrot.slane %v787, 5
      %v790 = vsel %vm718, %v785, %v789
      %s791 = scalar_lea.vmem %s3, 128
      %v792 = vld [vmem:[%s791] sm:$0xf]
      %v793 = vld [vmem:[%s791 + $0x4] sm:$0xf]
      %v794 = vld [vmem:[%s791 + $0x8] sm:$0xf]
      %v795 = vld [vmem:[%s791 + $0xc] sm:$0xf]
      %v796 = vld [vmem:[%s791 + $0x10] sm:$0xf]
      %v797 = vld [vmem:[%s791 + $0x14] sm:$0xf]
      %v798 = vld [vmem:[%s791 + $0x18] sm:$0xf]
      %v799 = vld [vmem:[%s791 + $0x1c] sm:$0xf]
      %v800 = vld [vmem:[%s791 + $0x20] sm:$0xf]
      %v801 = vld [vmem:[%s791 + $0x24] sm:$0xf]
      %v802 = vld [vmem:[%s791 + $0x28] sm:$0xf]
      %v803 = vld [vmem:[%s791 + $0x2c] sm:$0xf]
      %v804 = vld [vmem:[%s791 + $0x30] sm:$0xf]
      %v805 = vld [vmem:[%s791 + $0x34] sm:$0xf]
      %v806 = vld [vmem:[%s791 + $0x38] sm:$0xf]
      %v807 = vld [vmem:[%s791 + $0x3c] sm:$0xf]
      %v808 = vunpack.c.l.b16 %v727
      %v809 = vunpack.c.l.b16 %v736
      %v810 = vunpack.c.l.b16 %v745
      %v811 = vunpack.c.l.b16 %v754
      %v812 = vunpack.c.l.b16 %v763
      %v813 = vunpack.c.l.b16 %v772
      %v814 = vunpack.c.l.b16 %v781
      %v815 = vunpack.c.l.b16 %v790
      %v816 = vpack.c.b16 %v809, %v808
      %v817 = vpack.c.b16 %v811, %v810
      %v818 = vpack.c.b16 %v813, %v812
      %v819 = vpack.c.b16 %v815, %v814
      %v840 = vunpack.c.l.b16 %v792
      %v841 = vunpack.c.l.b16 %v793
      %v842 = vunpack.c.l.b16 %v794
      %v843 = vunpack.c.l.b16 %v795
      %v844 = vunpack.c.l.b16 %v796
      %v845 = vunpack.c.l.b16 %v797
      %v846 = vunpack.c.l.b16 %v798
      %v847 = vunpack.c.l.b16 %v799
      %v848 = vunpack.c.l.b16 %v800
      %v849 = vunpack.c.l.b16 %v801
      %v850 = vunpack.c.l.b16 %v802
      %v851 = vunpack.c.l.b16 %v803
      %v852 = vunpack.c.l.b16 %v804
      %v853 = vunpack.c.l.b16 %v805
      %v854 = vunpack.c.l.b16 %v806
      %v855 = vunpack.c.l.b16 %v807
      %v856 = vpack.c.b16 %v841, %v840
      %v857 = vpack.c.b16 %v843, %v842
      %v858 = vpack.c.b16 %v845, %v844
      %v859 = vpack.c.b16 %v847, %v846
      %v860 = vpack.c.b16 %v849, %v848
      %v861 = vpack.c.b16 %v851, %v850
      %v862 = vpack.c.b16 %v853, %v852
      %v863 = vpack.c.b16 %v855, %v854
      %872 = vmatpush.bf16.msra.mxu0 %v863
      %873 = vmatpush.bf16.msra.mxu0 %v862
      %874 = vmatpush.bf16.msra.mxu0 %v861
      %875 = vmatpush.bf16.msra.mxu0 %v860
      %876 = vmatpush.bf16.msra.mxu0 %v859
      %877 = vmatpush.bf16.msra.mxu0 %v858
      %878 = vmatpush.bf16.msra.mxu0 %v857
      %879 = vmatpush.bf16.msra.mxu0 %v856
      %880 = vmatmul.bf16.gmra.mxu0 %v816
      %v881 = vpop.f32.mrf.mxu0
      %v882 = vadd.f32 0.0, %v881
      %v883 = vpop.f32.mrf.mxu0
      %v884 = vadd.f32 0.0, %v883
      %885 = vmatmul.bf16.gmra.mxu0 %v817
      %v886 = vpop.f32.mrf.mxu0
      %v887 = vadd.f32 0.0, %v886
      %v888 = vpop.f32.mrf.mxu0
      %v889 = vadd.f32 0.0, %v888
      %890 = vmatmul.bf16.gmra.mxu0 %v818
      %v891 = vpop.f32.mrf.mxu0
      %v892 = vadd.f32 0.0, %v891
      %v893 = vpop.f32.mrf.mxu0
      %v894 = vadd.f32 0.0, %v893
      %895 = vmatmul.bf16.gmra.mxu0 %v819
      %v896 = vpop.f32.mrf.mxu0
      %v897 = vadd.f32 0.0, %v896
      %v898 = vpop.f32.mrf.mxu0
      %v899 = vadd.f32 0.0, %v898
      %900 = vdwg.mxu0
      %v901 = vadd.f32 %v708, %v882
      %v902 = vadd.f32 %v709, %v884
      %v903 = vadd.f32 %v710, %v887
      %v904 = vadd.f32 %v711, %v889
      %v905 = vadd.f32 %v712, %v892
      %v906 = vadd.f32 %v713, %v894
      %v907 = vadd.f32 %v714, %v897
      %v908 = vadd.f32 %v715, %v899
      %909 = vst [vmem:[#allocation3] sm:$0xff] %v901
      %910 = vst [vmem:[#allocation3 + $0x8] sm:$0xff] %v902
      %911 = vst [vmem:[#allocation3 + $0x10] sm:$0xff] %v903
      %912 = vst [vmem:[#allocation3 + $0x18] sm:$0xff] %v904
      %913 = vst [vmem:[#allocation3 + $0x20] sm:$0xff] %v905
      %914 = vst [vmem:[#allocation3 + $0x28] sm:$0xff] %v906
      %915 = vst [vmem:[#allocation3 + $0x30] sm:$0xff] %v907
      %916 = vst [vmem:[#allocation3 + $0x38] sm:$0xff] %v908
      %v917 = vld [vmem:[%s285] sm:$0xf]
      %v918 = vld [vmem:[%s285 + $0x4] sm:$0xf]
      %v919 = vld [vmem:[%s285 + $0x8] sm:$0xf]
      %v920 = vld [vmem:[%s285 + $0xc] sm:$0xf]
      %v921 = vld [vmem:[%s285 + $0x10] sm:$0xf]
      %v922 = vld [vmem:[%s285 + $0x14] sm:$0xf]
      %v923 = vld [vmem:[%s285 + $0x18] sm:$0xf]
      %v924 = vld [vmem:[%s285 + $0x1c] sm:$0xf]
      %v925 = vld [vmem:[%s285 + $0x20] sm:$0xf]
      %v926 = vld [vmem:[%s285 + $0x24] sm:$0xf]
      %v927 = vld [vmem:[%s285 + $0x28] sm:$0xf]
      %v928 = vld [vmem:[%s285 + $0x2c] sm:$0xf]
      %v929 = vld [vmem:[%s285 + $0x30] sm:$0xf]
      %v930 = vld [vmem:[%s285 + $0x34] sm:$0xf]
      %v931 = vld [vmem:[%s285 + $0x38] sm:$0xf]
      %v932 = vld [vmem:[%s285 + $0x3c] sm:$0xf]
      %v933 = vld [vmem:[%s285 + $0x40] sm:$0xf]
      %v934 = vld [vmem:[%s285 + $0x44] sm:$0xf]
      %v935 = vld [vmem:[%s285 + $0x48] sm:$0xf]
      %v936 = vld [vmem:[%s285 + $0x4c] sm:$0xf]
      %v937 = vld [vmem:[%s285 + $0x50] sm:$0xf]
      %v938 = vld [vmem:[%s285 + $0x54] sm:$0xf]
      %v939 = vld [vmem:[%s285 + $0x58] sm:$0xf]
      %v940 = vld [vmem:[%s285 + $0x5c] sm:$0xf]
      %v941 = vld [vmem:[#allocation3] sm:$0xff]
      %v942 = vld [vmem:[#allocation3 + $0x8] sm:$0xff]
      %v943 = vld [vmem:[#allocation3 + $0x10] sm:$0xff]
      %v944 = vld [vmem:[#allocation3 + $0x18] sm:$0xff]
      %v945 = vld [vmem:[#allocation3 + $0x20] sm:$0xff]
      %v946 = vld [vmem:[#allocation3 + $0x28] sm:$0xff]
      %v947 = vld [vmem:[#allocation3 + $0x30] sm:$0xff]
      %v948 = vld [vmem:[#allocation3 + $0x38] sm:$0xff]
      %v950 = vshrl.u32 %v917, 16
      %v952 = vrot.slane %v950, 7
      %v953 = vrot.slane %v952, 4
      %v955 = vshrl.u32 %v918, 16
      %v957 = vrot.slane %v955, 7
      %v958 = vshll.u32 %v918, 16
      %v960 = vor.u32 %v957, %v958
      %v961 = vsel %vm336, %v953, %v960
      %v963 = vshrl.u32 %v920, 16
      %v965 = vrot.slane %v963, 7
      %v966 = vrot.slane %v965, 4
      %v968 = vshrl.u32 %v921, 16
      %v970 = vrot.slane %v968, 7
      %v971 = vshll.u32 %v921, 16
      %v973 = vor.u32 %v970, %v971
      %v974 = vsel %vm336, %v966, %v973
      %v976 = vshrl.u32 %v923, 16
      %v978 = vrot.slane %v976, 7
      %v979 = vrot.slane %v978, 4
      %v981 = vshrl.u32 %v924, 16
      %v983 = vrot.slane %v981, 7
      %v984 = vshll.u32 %v924, 16
      %v986 = vor.u32 %v983, %v984
      %v987 = vsel %vm336, %v979, %v986
      %v989 = vshrl.u32 %v926, 16
      %v991 = vrot.slane %v989, 7
      %v992 = vrot.slane %v991, 4
      %v994 = vshrl.u32 %v927, 16
      %v996 = vrot.slane %v994, 7
      %v997 = vshll.u32 %v927, 16
      %v999 = vor.u32 %v996, %v997
      %v1000 = vsel %vm336, %v992, %v999
      %v1002 = vshrl.u32 %v929, 16
      %v1004 = vrot.slane %v1002, 7
      %v1005 = vrot.slane %v1004, 4
      %v1007 = vshrl.u32 %v930, 16
      %v1009 = vrot.slane %v1007, 7
      %v1010 = vshll.u32 %v930, 16
      %v1012 = vor.u32 %v1009, %v1010
      %v1013 = vsel %vm336, %v1005, %v1012
      %v1015 = vshrl.u32 %v932, 16
      %v1017 = vrot.slane %v1015, 7
      %v1018 = vrot.slane %v1017, 4
      %v1020 = vshrl.u32 %v933, 16
      %v1022 = vrot.slane %v1020, 7
      %v1023 = vshll.u32 %v933, 16
      %v1025 = vor.u32 %v1022, %v1023
      %v1026 = vsel %vm336, %v1018, %v1025
      %v1028 = vshrl.u32 %v935, 16
      %v1030 = vrot.slane %v1028, 7
      %v1031 = vrot.slane %v1030, 4
      %v1033 = vshrl.u32 %v936, 16
      %v1035 = vrot.slane %v1033, 7
      %v1036 = vshll.u32 %v936, 16
      %v1038 = vor.u32 %v1035, %v1036
      %v1039 = vsel %vm336, %v1031, %v1038
      %v1041 = vshrl.u32 %v938, 16
      %v1043 = vrot.slane %v1041, 7
      %v1044 = vrot.slane %v1043, 4
      %v1046 = vshrl.u32 %v939, 16
      %v1048 = vrot.slane %v1046, 7
      %v1049 = vshll.u32 %v939, 16
      %v1051 = vor.u32 %v1048, %v1049
      %v1052 = vsel %vm336, %v1044, %v1051
      %s1053 = scalar_lea.vmem %s3, 192
      %v1054 = vld [vmem:[%s1053] sm:$0xf]
      %v1055 = vld [vmem:[%s1053 + $0x4] sm:$0xf]
      %v1056 = vld [vmem:[%s1053 + $0x8] sm:$0xf]
      %v1057 = vld [vmem:[%s1053 + $0xc] sm:$0xf]
      %v1058 = vld [vmem:[%s1053 + $0x10] sm:$0xf]
      %v1059 = vld [vmem:[%s1053 + $0x14] sm:$0xf]
      %v1060 = vld [vmem:[%s1053 + $0x18] sm:$0xf]
      %v1061 = vld [vmem:[%s1053 + $0x1c] sm:$0xf]
      %v1062 = vld [vmem:[%s1053 + $0x20] sm:$0xf]
      %v1063 = vld [vmem:[%s1053 + $0x24] sm:$0xf]
      %v1064 = vld [vmem:[%s1053 + $0x28] sm:$0xf]
      %v1065 = vld [vmem:[%s1053 + $0x2c] sm:$0xf]
      %v1066 = vld [vmem:[%s1053 + $0x30] sm:$0xf]
      %v1067 = vld [vmem:[%s1053 + $0x34] sm:$0xf]
      %v1068 = vld [vmem:[%s1053 + $0x38] sm:$0xf]
      %v1069 = vld [vmem:[%s1053 + $0x3c] sm:$0xf]
      %v1070 = vunpack.c.l.b16 %v961
      %v1071 = vunpack.c.l.b16 %v974
      %v1072 = vunpack.c.l.b16 %v987
      %v1073 = vunpack.c.l.b16 %v1000
      %v1074 = vunpack.c.l.b16 %v1013
      %v1075 = vunpack.c.l.b16 %v1026
      %v1076 = vunpack.c.l.b16 %v1039
      %v1077 = vunpack.c.l.b16 %v1052
      %v1078 = vpack.c.b16 %v1071, %v1070
      %v1079 = vpack.c.b16 %v1073, %v1072
      %v1080 = vpack.c.b16 %v1075, %v1074
      %v1081 = vpack.c.b16 %v1077, %v1076
      %v1102 = vunpack.c.l.b16 %v1054
      %v1103 = vunpack.c.l.b16 %v1055
      %v1104 = vunpack.c.l.b16 %v1056
      %v1105 = vunpack.c.l.b16 %v1057
      %v1106 = vunpack.c.l.b16 %v1058
      %v1107 = vunpack.c.l.b16 %v1059
      %v1108 = vunpack.c.l.b16 %v1060
      %v1109 = vunpack.c.l.b16 %v1061
      %v1110 = vunpack.c.l.b16 %v1062
      %v1111 = vunpack.c.l.b16 %v1063
      %v1112 = vunpack.c.l.b16 %v1064
      %v1113 = vunpack.c.l.b16 %v1065
      %v1114 = vunpack.c.l.b16 %v1066
      %v1115 = vunpack.c.l.b16 %v1067
      %v1116 = vunpack.c.l.b16 %v1068
      %v1117 = vunpack.c.l.b16 %v1069
      %v1118 = vpack.c.b16 %v1103, %v1102
      %v1119 = vpack.c.b16 %v1105, %v1104
      %v1120 = vpack.c.b16 %v1107, %v1106
      %v1121 = vpack.c.b16 %v1109, %v1108
      %v1122 = vpack.c.b16 %v1111, %v1110
      %v1123 = vpack.c.b16 %v1113, %v1112
      %v1124 = vpack.c.b16 %v1115, %v1114
      %v1125 = vpack.c.b16 %v1117, %v1116
      %1134 = vmatpush.bf16.msra.mxu0 %v1125
      %1135 = vmatpush.bf16.msra.mxu0 %v1124
      %1136 = vmatpush.bf16.msra.mxu0 %v1123
      %1137 = vmatpush.bf16.msra.mxu0 %v1122
      %1138 = vmatpush.bf16.msra.mxu0 %v1121
      %1139 = vmatpush.bf16.msra.mxu0 %v1120
      %1140 = vmatpush.bf16.msra.mxu0 %v1119
      %1141 = vmatpush.bf16.msra.mxu0 %v1118
      %1142 = vmatmul.bf16.gmra.mxu0 %v1078
      %v1143 = vpop.f32.mrf.mxu0
      %v1144 = vadd.f32 0.0, %v1143
      %v1145 = vpop.f32.mrf.mxu0
      %v1146 = vadd.f32 0.0, %v1145
      %1147 = vmatmul.bf16.gmra.mxu0 %v1079
      %v1148 = vpop.f32.mrf.mxu0
      %v1149 = vadd.f32 0.0, %v1148
      %v1150 = vpop.f32.mrf.mxu0
      %v1151 = vadd.f32 0.0, %v1150
      %1152 = vmatmul.bf16.gmra.mxu0 %v1080
      %v1153 = vpop.f32.mrf.mxu0
      %v1154 = vadd.f32 0.0, %v1153
      %v1155 = vpop.f32.mrf.mxu0
      %v1156 = vadd.f32 0.0, %v1155
      %1157 = vmatmul.bf16.gmra.mxu0 %v1081
      %v1158 = vpop.f32.mrf.mxu0
      %v1159 = vadd.f32 0.0, %v1158
      %v1160 = vpop.f32.mrf.mxu0
      %v1161 = vadd.f32 0.0, %v1160
      %1162 = vdwg.mxu0
      %v1163 = vadd.f32 %v941, %v1144
      %v1164 = vadd.f32 %v942, %v1146
      %v1165 = vadd.f32 %v943, %v1149
      %v1166 = vadd.f32 %v944, %v1151
      %v1167 = vadd.f32 %v945, %v1154
      %v1168 = vadd.f32 %v946, %v1156
      %v1169 = vadd.f32 %v947, %v1159
      %v1170 = vadd.f32 %v948, %v1161
      %1171 = vst [vmem:[#allocation3] sm:$0xff] %v1163
      %1172 = vst [vmem:[#allocation3 + $0x8] sm:$0xff] %v1164
      %1173 = vst [vmem:[#allocation3 + $0x10] sm:$0xff] %v1165
      %1174 = vst [vmem:[#allocation3 + $0x18] sm:$0xff] %v1166
      %1175 = vst [vmem:[#allocation3 + $0x20] sm:$0xff] %v1167
      %1176 = vst [vmem:[#allocation3 + $0x28] sm:$0xff] %v1168
      %1177 = vst [vmem:[#allocation3 + $0x30] sm:$0xff] %v1169
      %1178 = vst [vmem:[#allocation3 + $0x38] sm:$0xff] %v1170
      %v1179 = vld [vmem:[#allocation3] sm:$0xff]
      %v1180 = vld [vmem:[#allocation3 + $0x8] sm:$0xff]
      %v1181 = vld [vmem:[#allocation3 + $0x10] sm:$0xff]
      %v1182 = vld [vmem:[#allocation3 + $0x18] sm:$0xff]
      %v1183 = vld [vmem:[#allocation3 + $0x20] sm:$0xff]
      %v1184 = vld [vmem:[#allocation3 + $0x28] sm:$0xff]
      %v1185 = vld [vmem:[#allocation3 + $0x30] sm:$0xff]
      %v1186 = vld [vmem:[#allocation3 + $0x38] sm:$0xff]
      %s1187 = scalar_lea.vmem %s3, 256
      %v1188 = vld [vmem:[%s1187] sm:$0xf]
      %v1189 = vld [vmem:[%s1187 + $0x4] sm:$0xf]
      %v1190 = vld [vmem:[%s1187 + $0x8] sm:$0xf]
      %v1191 = vld [vmem:[%s1187 + $0xc] sm:$0xf]
      %v1192 = vld [vmem:[%s1187 + $0x10] sm:$0xf]
      %v1193 = vld [vmem:[%s1187 + $0x14] sm:$0xf]
      %v1194 = vld [vmem:[%s1187 + $0x18] sm:$0xf]
      %v1195 = vld [vmem:[%s1187 + $0x1c] sm:$0xf]
      %v1196 = vld [vmem:[%s1187 + $0x20] sm:$0xf]
      %v1197 = vld [vmem:[%s1187 + $0x24] sm:$0xf]
      %v1198 = vld [vmem:[%s1187 + $0x28] sm:$0xf]
      %v1199 = vld [vmem:[%s1187 + $0x2c] sm:$0xf]
      %v1200 = vld [vmem:[%s1187 + $0x30] sm:$0xf]
      %v1201 = vld [vmem:[%s1187 + $0x34] sm:$0xf]
      %v1202 = vld [vmem:[%s1187 + $0x38] sm:$0xf]
      %v1203 = vld [vmem:[%s1187 + $0x3c] sm:$0xf]
      %v1212 = vunpack.c.l.b16 %v918
      %v1213 = vunpack.c.l.b16 %v921
      %v1214 = vunpack.c.l.b16 %v924
      %v1215 = vunpack.c.l.b16 %v927
      %v1216 = vunpack.c.l.b16 %v930
      %v1217 = vunpack.c.l.b16 %v933
      %v1218 = vunpack.c.l.b16 %v936
      %v1219 = vunpack.c.l.b16 %v939
      %v1220 = vpack.c.b16 %v1213, %v1212
      %v1221 = vpack.c.b16 %v1215, %v1214
      %v1222 = vpack.c.b16 %v1217, %v1216
      %v1223 = vpack.c.b16 %v1219, %v1218
      %v1244 = vunpack.c.l.b16 %v1188
      %v1245 = vunpack.c.l.b16 %v1189
      %v1246 = vunpack.c.l.b16 %v1190
      %v1247 = vunpack.c.l.b16 %v1191
      %v1248 = vunpack.c.l.b16 %v1192
      %v1249 = vunpack.c.l.b16 %v1193
      %v1250 = vunpack.c.l.b16 %v1194
      %v1251 = vunpack.c.l.b16 %v1195
      %v1252 = vunpack.c.l.b16 %v1196
      %v1253 = vunpack.c.l.b16 %v1197
      %v1254 = vunpack.c.l.b16 %v1198
      %v1255 = vunpack.c.l.b16 %v1199
      %v1256 = vunpack.c.l.b16 %v1200
      %v1257 = vunpack.c.l.b16 %v1201
      %v1258 = vunpack.c.l.b16 %v1202
      %v1259 = vunpack.c.l.b16 %v1203
      %v1260 = vpack.c.b16 %v1245, %v1244
      %v1261 = vpack.c.b16 %v1247, %v1246
      %v1262 = vpack.c.b16 %v1249, %v1248
      %v1263 = vpack.c.b16 %v1251, %v1250
      %v1264 = vpack.c.b16 %v1253, %v1252
      %v1265 = vpack.c.b16 %v1255, %v1254
      %v1266 = vpack.c.b16 %v1257, %v1256
      %v1267 = vpack.c.b16 %v1259, %v1258
      %1276 = vmatpush.bf16.msra.mxu0 %v1267
      %1277 = vmatpush.bf16.msra.mxu0 %v1266
      %1278 = vmatpush.bf16.msra.mxu0 %v1265
      %1279 = vmatpush.bf16.msra.mxu0 %v1264
      %1280 = vmatpush.bf16.msra.mxu0 %v1263
      %1281 = vmatpush.bf16.msra.mxu0 %v1262
      %1282 = vmatpush.bf16.msra.mxu0 %v1261
      %1283 = vmatpush.bf16.msra.mxu0 %v1260
      %1284 = vmatmul.bf16.gmra.mxu0 %v1220
      %v1285 = vpop.f32.mrf.mxu0
      %v1286 = vadd.f32 0.0, %v1285
      %v1287 = vpop.f32.mrf.mxu0
      %v1288 = vadd.f32 0.0, %v1287
      %1289 = vmatmul.bf16.gmra.mxu0 %v1221
      %v1290 = vpop.f32.mrf.mxu0
      %v1291 = vadd.f32 0.0, %v1290
      %v1292 = vpop.f32.mrf.mxu0
      %v1293 = vadd.f32 0.0, %v1292
      %1294 = vmatmul.bf16.gmra.mxu0 %v1222
      %v1295 = vpop.f32.mrf.mxu0
      %v1296 = vadd.f32 0.0, %v1295
      %v1297 = vpop.f32.mrf.mxu0
      %v1298 = vadd.f32 0.0, %v1297
      %1299 = vmatmul.bf16.gmra.mxu0 %v1223
      %v1300 = vpop.f32.mrf.mxu0
      %v1301 = vadd.f32 0.0, %v1300
      %v1302 = vpop.f32.mrf.mxu0
      %v1303 = vadd.f32 0.0, %v1302
      %1304 = vdwg.mxu0
      %v1305 = vadd.f32 %v1179, %v1286
      %v1306 = vadd.f32 %v1180, %v1288
      %v1307 = vadd.f32 %v1181, %v1291
      %v1308 = vadd.f32 %v1182, %v1293
      %v1309 = vadd.f32 %v1183, %v1296
      %v1310 = vadd.f32 %v1184, %v1298
      %v1311 = vadd.f32 %v1185, %v1301
      %v1312 = vadd.f32 %v1186, %v1303
      %1313 = vst [vmem:[#allocation3] sm:$0xff] %v1305
      %1314 = vst [vmem:[#allocation3 + $0x8] sm:$0xff] %v1306
      %1315 = vst [vmem:[#allocation3 + $0x10] sm:$0xff] %v1307
      %1316 = vst [vmem:[#allocation3 + $0x18] sm:$0xff] %v1308
      %1317 = vst [vmem:[#allocation3 + $0x20] sm:$0xff] %v1309
      %1318 = vst [vmem:[#allocation3 + $0x28] sm:$0xff] %v1310
      %1319 = vst [vmem:[#allocation3 + $0x30] sm:$0xff] %v1311
      %1320 = vst [vmem:[#allocation3 + $0x38] sm:$0xff] %v1312
      %v1321 = vld [vmem:[#allocation3] sm:$0xff]
      %v1322 = vld [vmem:[#allocation3 + $0x8] sm:$0xff]
      %v1323 = vld [vmem:[#allocation3 + $0x10] sm:$0xff]
      %v1324 = vld [vmem:[#allocation3 + $0x18] sm:$0xff]
      %v1325 = vld [vmem:[#allocation3 + $0x20] sm:$0xff]
      %v1326 = vld [vmem:[#allocation3 + $0x28] sm:$0xff]
      %v1327 = vld [vmem:[#allocation3 + $0x30] sm:$0xff]
      %v1328 = vld [vmem:[#allocation3 + $0x38] sm:$0xff]
      %v1329 = vrot.slane %v955, 4
      %v1330 = vrot.slane %v958, 5
      %v1331 = vor.u32 %v1329, %v1330
      %v1332 = vrot.slane %v1331, 4
      %v1334 = vshll.u32 %v919, 16
      %v1336 = vrot.slane %v1334, 5
      %v1337 = vsel %vm718, %v1332, %v1336
      %v1338 = vrot.slane %v968, 4
      %v1339 = vrot.slane %v971, 5
      %v1340 = vor.u32 %v1338, %v1339
      %v1341 = vrot.slane %v1340, 4
      %v1343 = vshll.u32 %v922, 16
      %v1345 = vrot.slane %v1343, 5
      %v1346 = vsel %vm718, %v1341, %v1345
      %v1347 = vrot.slane %v981, 4
      %v1348 = vrot.slane %v984, 5
      %v1349 = vor.u32 %v1347, %v1348
      %v1350 = vrot.slane %v1349, 4
      %v1352 = vshll.u32 %v925, 16
      %v1354 = vrot.slane %v1352, 5
      %v1355 = vsel %vm718, %v1350, %v1354
      %v1356 = vrot.slane %v994, 4
      %v1357 = vrot.slane %v997, 5
      %v1358 = vor.u32 %v1356, %v1357
      %v1359 = vrot.slane %v1358, 4
      %v1361 = vshll.u32 %v928, 16
      %v1363 = vrot.slane %v1361, 5
      %v1364 = vsel %vm718, %v1359, %v1363
      %v1365 = vrot.slane %v1007, 4
      %v1366 = vrot.slane %v1010, 5
      %v1367 = vor.u32 %v1365, %v1366
      %v1368 = vrot.slane %v1367, 4
      %v1370 = vshll.u32 %v931, 16
      %v1372 = vrot.slane %v1370, 5
      %v1373 = vsel %vm718, %v1368, %v1372
      %v1374 = vrot.slane %v1020, 4
      %v1375 = vrot.slane %v1023, 5
      %v1376 = vor.u32 %v1374, %v1375
      %v1377 = vrot.slane %v1376, 4
      %v1379 = vshll.u32 %v934, 16
      %v1381 = vrot.slane %v1379, 5
      %v1382 = vsel %vm718, %v1377, %v1381
      %v1383 = vrot.slane %v1033, 4
      %v1384 = vrot.slane %v1036, 5
      %v1385 = vor.u32 %v1383, %v1384
      %v1386 = vrot.slane %v1385, 4
      %v1388 = vshll.u32 %v937, 16
      %v1390 = vrot.slane %v1388, 5
      %v1391 = vsel %vm718, %v1386, %v1390
      %v1392 = vrot.slane %v1046, 4
      %v1393 = vrot.slane %v1049, 5
      %v1394 = vor.u32 %v1392, %v1393
      %v1395 = vrot.slane %v1394, 4
      %v1397 = vshll.u32 %v940, 16
      %v1399 = vrot.slane %v1397, 5
      %v1400 = vsel %vm718, %v1395, %v1399
      %s1401 = scalar_lea.vmem %s3, 320
      %v1402 = vld [vmem:[%s1401] sm:$0xf]
      %v1403 = vld [vmem:[%s1401 + $0x4] sm:$0xf]
      %v1404 = vld [vmem:[%s1401 + $0x8] sm:$0xf]
      %v1405 = vld [vmem:[%s1401 + $0xc] sm:$0xf]
      %v1406 = vld [vmem:[%s1401 + $0x10] sm:$0xf]
      %v1407 = vld [vmem:[%s1401 + $0x14] sm:$0xf]
      %v1408 = vld [vmem:[%s1401 + $0x18] sm:$0xf]
      %v1409 = vld [vmem:[%s1401 + $0x1c] sm:$0xf]
      %v1410 = vld [vmem:[%s1401 + $0x20] sm:$0xf]
      %v1411 = vld [vmem:[%s1401 + $0x24] sm:$0xf]
      %v1412 = vld [vmem:[%s1401 + $0x28] sm:$0xf]
      %v1413 = vld [vmem:[%s1401 + $0x2c] sm:$0xf]
      %v1414 = vld [vmem:[%s1401 + $0x30] sm:$0xf]
      %v1415 = vld [vmem:[%s1401 + $0x34] sm:$0xf]
      %v1416 = vld [vmem:[%s1401 + $0x38] sm:$0xf]
      %v1417 = vld [vmem:[%s1401 + $0x3c] sm:$0xf]
      %v1418 = vunpack.c.l.b16 %v1337
      %v1419 = vunpack.c.l.b16 %v1346
      %v1420 = vunpack.c.l.b16 %v1355
      %v1421 = vunpack.c.l.b16 %v1364
      %v1422 = vunpack.c.l.b16 %v1373
      %v1423 = vunpack.c.l.b16 %v1382
      %v1424 = vunpack.c.l.b16 %v1391
      %v1425 = vunpack.c.l.b16 %v1400
      %v1426 = vpack.c.b16 %v1419, %v1418
      %v1427 = vpack.c.b16 %v1421, %v1420
      %v1428 = vpack.c.b16 %v1423, %v1422
      %v1429 = vpack.c.b16 %v1425, %v1424
      %v1450 = vunpack.c.l.b16 %v1402
      %v1451 = vunpack.c.l.b16 %v1403
      %v1452 = vunpack.c.l.b16 %v1404
      %v1453 = vunpack.c.l.b16 %v1405
      %v1454 = vunpack.c.l.b16 %v1406
      %v1455 = vunpack.c.l.b16 %v1407
      %v1456 = vunpack.c.l.b16 %v1408
      %v1457 = vunpack.c.l.b16 %v1409
      %v1458 = vunpack.c.l.b16 %v1410
      %v1459 = vunpack.c.l.b16 %v1411
      %v1460 = vunpack.c.l.b16 %v1412
      %v1461 = vunpack.c.l.b16 %v1413
      %v1462 = vunpack.c.l.b16 %v1414
      %v1463 = vunpack.c.l.b16 %v1415
      %v1464 = vunpack.c.l.b16 %v1416
      %v1465 = vunpack.c.l.b16 %v1417
      %v1466 = vpack.c.b16 %v1451, %v1450
      %v1467 = vpack.c.b16 %v1453, %v1452
      %v1468 = vpack.c.b16 %v1455, %v1454
      %v1469 = vpack.c.b16 %v1457, %v1456
      %v1470 = vpack.c.b16 %v1459, %v1458
      %v1471 = vpack.c.b16 %v1461, %v1460
      %v1472 = vpack.c.b16 %v1463, %v1462
      %v1473 = vpack.c.b16 %v1465, %v1464
      %1482 = vmatpush.bf16.msra.mxu0 %v1473
      %1483 = vmatpush.bf16.msra.mxu0 %v1472
      %1484 = vmatpush.bf16.msra.mxu0 %v1471
      %1485 = vmatpush.bf16.msra.mxu0 %v1470
      %1486 = vmatpush.bf16.msra.mxu0 %v1469
      %1487 = vmatpush.bf16.msra.mxu0 %v1468
      %1488 = vmatpush.bf16.msra.mxu0 %v1467
      %1489 = vmatpush.bf16.msra.mxu0 %v1466
      %1490 = vmatmul.bf16.gmra.mxu0 %v1426
      %v1491 = vpop.f32.mrf.mxu0
      %v1492 = vadd.f32 0.0, %v1491
      %v1493 = vpop.f32.mrf.mxu0
      %v1494 = vadd.f32 0.0, %v1493
      %1495 = vmatmul.bf16.gmra.mxu0 %v1427
      %v1496 = vpop.f32.mrf.mxu0
      %v1497 = vadd.f32 0.0, %v1496
      %v1498 = vpop.f32.mrf.mxu0
      %v1499 = vadd.f32 0.0, %v1498
      %1500 = vmatmul.bf16.gmra.mxu0 %v1428
      %v1501 = vpop.f32.mrf.mxu0
      %v1502 = vadd.f32 0.0, %v1501
      %v1503 = vpop.f32.mrf.mxu0
      %v1504 = vadd.f32 0.0, %v1503
      %1505 = vmatmul.bf16.gmra.mxu0 %v1429
      %v1506 = vpop.f32.mrf.mxu0
      %v1507 = vadd.f32 0.0, %v1506
      %v1508 = vpop.f32.mrf.mxu0
      %v1509 = vadd.f32 0.0, %v1508
      %1510 = vdwg.mxu0
      %v1511 = vadd.f32 %v1321, %v1492
      %v1512 = vadd.f32 %v1322, %v1494
      %v1513 = vadd.f32 %v1323, %v1497
      %v1514 = vadd.f32 %v1324, %v1499
      %v1515 = vadd.f32 %v1325, %v1502
      %v1516 = vadd.f32 %v1326, %v1504
      %v1517 = vadd.f32 %v1327, %v1507
      %v1518 = vadd.f32 %v1328, %v1509
      %1519 = vst [vmem:[#allocation3] sm:$0xff] %v1511
      %1520 = vst [vmem:[#allocation3 + $0x8] sm:$0xff] %v1512
      %1521 = vst [vmem:[#allocation3 + $0x10] sm:$0xff] %v1513
      %1522 = vst [vmem:[#allocation3 + $0x18] sm:$0xff] %v1514
      %1523 = vst [vmem:[#allocation3 + $0x20] sm:$0xff] %v1515
      %1524 = vst [vmem:[#allocation3 + $0x28] sm:$0xff] %v1516
      %1525 = vst [vmem:[#allocation3 + $0x30] sm:$0xff] %v1517
      %1526 = vst [vmem:[#allocation3 + $0x38] sm:$0xff] %v1518
      %s1527 = scalar_lea.vmem [#allocation2], 24
      %v1528 = vld [vmem:[%s1527] sm:$0xf]
      %v1529 = vld [vmem:[%s1527 + $0x4] sm:$0xf]
      %v1530 = vld [vmem:[%s1527 + $0x8] sm:$0xf]
      %v1531 = vld [vmem:[%s1527 + $0xc] sm:$0xf]
      %v1532 = vld [vmem:[%s1527 + $0x10] sm:$0xf]
      %v1533 = vld [vmem:[%s1527 + $0x14] sm:$0xf]
      %v1534 = vld [vmem:[%s1527 + $0x18] sm:$0xf]
      %v1535 = vld [vmem:[%s1527 + $0x1c] sm:$0xf]
      %v1536 = vld [vmem:[%s1527 + $0x20] sm:$0xf]
      %v1537 = vld [vmem:[%s1527 + $0x24] sm:$0xf]
      %v1538 = vld [vmem:[%s1527 + $0x28] sm:$0xf]
      %v1539 = vld [vmem:[%s1527 + $0x2c] sm:$0xf]
      %v1540 = vld [vmem:[%s1527 + $0x30] sm:$0xf]
      %v1541 = vld [vmem:[%s1527 + $0x34] sm:$0xf]
      %v1542 = vld [vmem:[%s1527 + $0x38] sm:$0xf]
      %v1543 = vld [vmem:[%s1527 + $0x3c] sm:$0xf]
      %v1544 = vld [vmem:[%s1527 + $0x40] sm:$0xf]
      %v1545 = vld [vmem:[%s1527 + $0x44] sm:$0xf]
      %v1546 = vld [vmem:[%s1527 + $0x48] sm:$0xf]
      %v1547 = vld [vmem:[%s1527 + $0x4c] sm:$0xf]
      %v1548 = vld [vmem:[%s1527 + $0x50] sm:$0xf]
      %v1549 = vld [vmem:[%s1527 + $0x54] sm:$0xf]
      %v1550 = vld [vmem:[%s1527 + $0x58] sm:$0xf]
      %v1551 = vld [vmem:[%s1527 + $0x5c] sm:$0xf]
      %v1552 = vld [vmem:[#allocation3] sm:$0xff]
      %v1553 = vld [vmem:[#allocation3 + $0x8] sm:$0xff]
      %v1554 = vld [vmem:[#allocation3 + $0x10] sm:$0xff]
      %v1555 = vld [vmem:[#allocation3 + $0x18] sm:$0xff]
      %v1556 = vld [vmem:[#allocation3 + $0x20] sm:$0xff]
      %v1557 = vld [vmem:[#allocation3 + $0x28] sm:$0xff]
      %v1558 = vld [vmem:[#allocation3 + $0x30] sm:$0xff]
      %v1559 = vld [vmem:[#allocation3 + $0x38] sm:$0xff]
      %v1561 = vshrl.u32 %v1528, 16
      %v1563 = vrot.slane %v1561, 7
      %v1564 = vrot.slane %v1563, 4
      %v1566 = vshrl.u32 %v1529, 16
      %v1568 = vrot.slane %v1566, 7
      %v1569 = vshll.u32 %v1529, 16
      %v1571 = vor.u32 %v1568, %v1569
      %v1572 = vsel %vm336, %v1564, %v1571
      %v1574 = vshrl.u32 %v1531, 16
      %v1576 = vrot.slane %v1574, 7
      %v1577 = vrot.slane %v1576, 4
      %v1579 = vshrl.u32 %v1532, 16
      %v1581 = vrot.slane %v1579, 7
      %v1582 = vshll.u32 %v1532, 16
      %v1584 = vor.u32 %v1581, %v1582
      %v1585 = vsel %vm336, %v1577, %v1584
      %v1587 = vshrl.u32 %v1534, 16
      %v1589 = vrot.slane %v1587, 7
      %v1590 = vrot.slane %v1589, 4
      %v1592 = vshrl.u32 %v1535, 16
      %v1594 = vrot.slane %v1592, 7
      %v1595 = vshll.u32 %v1535, 16
      %v1597 = vor.u32 %v1594, %v1595
      %v1598 = vsel %vm336, %v1590, %v1597
      %v1600 = vshrl.u32 %v1537, 16
      %v1602 = vrot.slane %v1600, 7
      %v1603 = vrot.slane %v1602, 4
      %v1605 = vshrl.u32 %v1538, 16
      %v1607 = vrot.slane %v1605, 7
      %v1608 = vshll.u32 %v1538, 16
      %v1610 = vor.u32 %v1607, %v1608
      %v1611 = vsel %vm336, %v1603, %v1610
      %v1613 = vshrl.u32 %v1540, 16
      %v1615 = vrot.slane %v1613, 7
      %v1616 = vrot.slane %v1615, 4
      %v1618 = vshrl.u32 %v1541, 16
      %v1620 = vrot.slane %v1618, 7
      %v1621 = vshll.u32 %v1541, 16
      %v1623 = vor.u32 %v1620, %v1621
      %v1624 = vsel %vm336, %v1616, %v1623
      %v1626 = vshrl.u32 %v1543, 16
      %v1628 = vrot.slane %v1626, 7
      %v1629 = vrot.slane %v1628, 4
      %v1631 = vshrl.u32 %v1544, 16
      %v1633 = vrot.slane %v1631, 7
      %v1634 = vshll.u32 %v1544, 16
      %v1636 = vor.u32 %v1633, %v1634
      %v1637 = vsel %vm336, %v1629, %v1636
      %v1639 = vshrl.u32 %v1546, 16
      %v1641 = vrot.slane %v1639, 7
      %v1642 = vrot.slane %v1641, 4
      %v1644 = vshrl.u32 %v1547, 16
      %v1646 = vrot.slane %v1644, 7
      %v1647 = vshll.u32 %v1547, 16
      %v1649 = vor.u32 %v1646, %v1647
      %v1650 = vsel %vm336, %v1642, %v1649
      %v1652 = vshrl.u32 %v1549, 16
      %v1654 = vrot.slane %v1652, 7
      %v1655 = vrot.slane %v1654, 4
      %v1657 = vshrl.u32 %v1550, 16
      %v1659 = vrot.slane %v1657, 7
      %v1660 = vshll.u32 %v1550, 16
      %v1662 = vor.u32 %v1659, %v1660
      %v1663 = vsel %vm336, %v1655, %v1662
      %s1664 = scalar_lea.vmem %s3, 384
      %v1665 = vld [vmem:[%s1664] sm:$0xf]
      %v1666 = vld [vmem:[%s1664 + $0x4] sm:$0xf]
      %v1667 = vld [vmem:[%s1664 + $0x8] sm:$0xf]
      %v1668 = vld [vmem:[%s1664 + $0xc] sm:$0xf]
      %v1669 = vld [vmem:[%s1664 + $0x10] sm:$0xf]
      %v1670 = vld [vmem:[%s1664 + $0x14] sm:$0xf]
      %v1671 = vld [vmem:[%s1664 + $0x18] sm:$0xf]
      %v1672 = vld [vmem:[%s1664 + $0x1c] sm:$0xf]
      %v1673 = vld [vmem:[%s1664 + $0x20] sm:$0xf]
      %v1674 = vld [vmem:[%s1664 + $0x24] sm:$0xf]
      %v1675 = vld [vmem:[%s1664 + $0x28] sm:$0xf]
      %v1676 = vld [vmem:[%s1664 + $0x2c] sm:$0xf]
      %v1677 = vld [vmem:[%s1664 + $0x30] sm:$0xf]
      %v1678 = vld [vmem:[%s1664 + $0x34] sm:$0xf]
      %v1679 = vld [vmem:[%s1664 + $0x38] sm:$0xf]
      %v1680 = vld [vmem:[%s1664 + $0x3c] sm:$0xf]
      %v1681 = vunpack.c.l.b16 %v1572
      %v1682 = vunpack.c.l.b16 %v1585
      %v1683 = vunpack.c.l.b16 %v1598
      %v1684 = vunpack.c.l.b16 %v1611
      %v1685 = vunpack.c.l.b16 %v1624
      %v1686 = vunpack.c.l.b16 %v1637
      %v1687 = vunpack.c.l.b16 %v1650
      %v1688 = vunpack.c.l.b16 %v1663
      %v1689 = vpack.c.b16 %v1682, %v1681
      %v1690 = vpack.c.b16 %v1684, %v1683
      %v1691 = vpack.c.b16 %v1686, %v1685
      %v1692 = vpack.c.b16 %v1688, %v1687
      %v1713 = vunpack.c.l.b16 %v1665
      %v1714 = vunpack.c.l.b16 %v1666
      %v1715 = vunpack.c.l.b16 %v1667
      %v1716 = vunpack.c.l.b16 %v1668
      %v1717 = vunpack.c.l.b16 %v1669
      %v1718 = vunpack.c.l.b16 %v1670
      %v1719 = vunpack.c.l.b16 %v1671
      %v1720 = vunpack.c.l.b16 %v1672
      %v1721 = vunpack.c.l.b16 %v1673
      %v1722 = vunpack.c.l.b16 %v1674
      %v1723 = vunpack.c.l.b16 %v1675
      %v1724 = vunpack.c.l.b16 %v1676
      %v1725 = vunpack.c.l.b16 %v1677
      %v1726 = vunpack.c.l.b16 %v1678
      %v1727 = vunpack.c.l.b16 %v1679
      %v1728 = vunpack.c.l.b16 %v1680
      %v1729 = vpack.c.b16 %v1714, %v1713
      %v1730 = vpack.c.b16 %v1716, %v1715
      %v1731 = vpack.c.b16 %v1718, %v1717
      %v1732 = vpack.c.b16 %v1720, %v1719
      %v1733 = vpack.c.b16 %v1722, %v1721
      %v1734 = vpack.c.b16 %v1724, %v1723
      %v1735 = vpack.c.b16 %v1726, %v1725
      %v1736 = vpack.c.b16 %v1728, %v1727
      %1745 = vmatpush.bf16.msra.mxu0 %v1736
      %1746 = vmatpush.bf16.msra.mxu0 %v1735
      %1747 = vmatpush.bf16.msra.mxu0 %v1734
      %1748 = vmatpush.bf16.msra.mxu0 %v1733
      %1749 = vmatpush.bf16.msra.mxu0 %v1732
      %1750 = vmatpush.bf16.msra.mxu0 %v1731
      %1751 = vmatpush.bf16.msra.mxu0 %v1730
      %1752 = vmatpush.bf16.msra.mxu0 %v1729
      %1753 = vmatmul.bf16.gmra.mxu0 %v1689
      %v1754 = vpop.f32.mrf.mxu0
      %v1755 = vadd.f32 0.0, %v1754
      %v1756 = vpop.f32.mrf.mxu0
      %v1757 = vadd.f32 0.0, %v1756
      %1758 = vmatmul.bf16.gmra.mxu0 %v1690
      %v1759 = vpop.f32.mrf.mxu0
      %v1760 = vadd.f32 0.0, %v1759
      %v1761 = vpop.f32.mrf.mxu0
      %v1762 = vadd.f32 0.0, %v1761
      %1763 = vmatmul.bf16.gmra.mxu0 %v1691
      %v1764 = vpop.f32.mrf.mxu0
      %v1765 = vadd.f32 0.0, %v1764
      %v1766 = vpop.f32.mrf.mxu0
      %v1767 = vadd.f32 0.0, %v1766
      %1768 = vmatmul.bf16.gmra.mxu0 %v1692
      %v1769 = vpop.f32.mrf.mxu0
      %v1770 = vadd.f32 0.0, %v1769
      %v1771 = vpop.f32.mrf.mxu0
      %v1772 = vadd.f32 0.0, %v1771
      %1773 = vdwg.mxu0
      %v1774 = vadd.f32 %v1552, %v1755
      %v1775 = vadd.f32 %v1553, %v1757
      %v1776 = vadd.f32 %v1554, %v1760
      %v1777 = vadd.f32 %v1555, %v1762
      %v1778 = vadd.f32 %v1556, %v1765
      %v1779 = vadd.f32 %v1557, %v1767
      %v1780 = vadd.f32 %v1558, %v1770
      %v1781 = vadd.f32 %v1559, %v1772
      %1782 = vst [vmem:[#allocation3] sm:$0xff] %v1774
      %1783 = vst [vmem:[#allocation3 + $0x8] sm:$0xff] %v1775
      %1784 = vst [vmem:[#allocation3 + $0x10] sm:$0xff] %v1776
      %1785 = vst [vmem:[#allocation3 + $0x18] sm:$0xff] %v1777
      %1786 = vst [vmem:[#allocation3 + $0x20] sm:$0xff] %v1778
      %1787 = vst [vmem:[#allocation3 + $0x28] sm:$0xff] %v1779
      %1788 = vst [vmem:[#allocation3 + $0x30] sm:$0xff] %v1780
      %1789 = vst [vmem:[#allocation3 + $0x38] sm:$0xff] %v1781
      %v1790 = vld [vmem:[#allocation3] sm:$0xff]
      %v1791 = vld [vmem:[#allocation3 + $0x8] sm:$0xff]
      %v1792 = vld [vmem:[#allocation3 + $0x10] sm:$0xff]
      %v1793 = vld [vmem:[#allocation3 + $0x18] sm:$0xff]
      %v1794 = vld [vmem:[#allocation3 + $0x20] sm:$0xff]
      %v1795 = vld [vmem:[#allocation3 + $0x28] sm:$0xff]
      %v1796 = vld [vmem:[#allocation3 + $0x30] sm:$0xff]
      %v1797 = vld [vmem:[#allocation3 + $0x38] sm:$0xff]
      %s1798 = scalar_lea.vmem %s3, 448
      %v1799 = vld [vmem:[%s1798] sm:$0xf]
      %v1800 = vld [vmem:[%s1798 + $0x4] sm:$0xf]
      %v1801 = vld [vmem:[%s1798 + $0x8] sm:$0xf]
      %v1802 = vld [vmem:[%s1798 + $0xc] sm:$0xf]
      %v1803 = vld [vmem:[%s1798 + $0x10] sm:$0xf]
      %v1804 = vld [vmem:[%s1798 + $0x14] sm:$0xf]
      %v1805 = vld [vmem:[%s1798 + $0x18] sm:$0xf]
      %v1806 = vld [vmem:[%s1798 + $0x1c] sm:$0xf]
      %v1807 = vld [vmem:[%s1798 + $0x20] sm:$0xf]
      %v1808 = vld [vmem:[%s1798 + $0x24] sm:$0xf]
      %v1809 = vld [vmem:[%s1798 + $0x28] sm:$0xf]
      %v1810 = vld [vmem:[%s1798 + $0x2c] sm:$0xf]
      %v1811 = vld [vmem:[%s1798 + $0x30] sm:$0xf]
      %v1812 = vld [vmem:[%s1798 + $0x34] sm:$0xf]
      %v1813 = vld [vmem:[%s1798 + $0x38] sm:$0xf]
      %v1814 = vld [vmem:[%s1798 + $0x3c] sm:$0xf]
      %v1823 = vunpack.c.l.b16 %v1529
      %v1824 = vunpack.c.l.b16 %v1532
      %v1825 = vunpack.c.l.b16 %v1535
      %v1826 = vunpack.c.l.b16 %v1538
      %v1827 = vunpack.c.l.b16 %v1541
      %v1828 = vunpack.c.l.b16 %v1544
      %v1829 = vunpack.c.l.b16 %v1547
      %v1830 = vunpack.c.l.b16 %v1550
      %v1831 = vpack.c.b16 %v1824, %v1823
      %v1832 = vpack.c.b16 %v1826, %v1825
      %v1833 = vpack.c.b16 %v1828, %v1827
      %v1834 = vpack.c.b16 %v1830, %v1829
      %v1855 = vunpack.c.l.b16 %v1799
      %v1856 = vunpack.c.l.b16 %v1800
      %v1857 = vunpack.c.l.b16 %v1801
      %v1858 = vunpack.c.l.b16 %v1802
      %v1859 = vunpack.c.l.b16 %v1803
      %v1860 = vunpack.c.l.b16 %v1804
      %v1861 = vunpack.c.l.b16 %v1805
      %v1862 = vunpack.c.l.b16 %v1806
      %v1863 = vunpack.c.l.b16 %v1807
      %v1864 = vunpack.c.l.b16 %v1808
      %v1865 = vunpack.c.l.b16 %v1809
      %v1866 = vunpack.c.l.b16 %v1810
      %v1867 = vunpack.c.l.b16 %v1811
      %v1868 = vunpack.c.l.b16 %v1812
      %v1869 = vunpack.c.l.b16 %v1813
      %v1870 = vunpack.c.l.b16 %v1814
      %v1871 = vpack.c.b16 %v1856, %v1855
      %v1872 = vpack.c.b16 %v1858, %v1857
      %v1873 = vpack.c.b16 %v1860, %v1859
      %v1874 = vpack.c.b16 %v1862, %v1861
      %v1875 = vpack.c.b16 %v1864, %v1863
      %v1876 = vpack.c.b16 %v1866, %v1865
      %v1877 = vpack.c.b16 %v1868, %v1867
      %v1878 = vpack.c.b16 %v1870, %v1869
      %1887 = vmatpush.bf16.msra.mxu0 %v1878
      %1888 = vmatpush.bf16.msra.mxu0 %v1877
      %1889 = vmatpush.bf16.msra.mxu0 %v1876
      %1890 = vmatpush.bf16.msra.mxu0 %v1875
      %1891 = vmatpush.bf16.msra.mxu0 %v1874
      %1892 = vmatpush.bf16.msra.mxu0 %v1873
      %1893 = vmatpush.bf16.msra.mxu0 %v1872
      %1894 = vmatpush.bf16.msra.mxu0 %v1871
      %1895 = vmatmul.bf16.gmra.mxu0 %v1831
      %v1896 = vpop.f32.mrf.mxu0
      %v1897 = vadd.f32 0.0, %v1896
      %v1898 = vpop.f32.mrf.mxu0
      %v1899 = vadd.f32 0.0, %v1898
      %1900 = vmatmul.bf16.gmra.mxu0 %v1832
      %v1901 = vpop.f32.mrf.mxu0
      %v1902 = vadd.f32 0.0, %v1901
      %v1903 = vpop.f32.mrf.mxu0
      %v1904 = vadd.f32 0.0, %v1903
      %1905 = vmatmul.bf16.gmra.mxu0 %v1833
      %v1906 = vpop.f32.mrf.mxu0
      %v1907 = vadd.f32 0.0, %v1906
      %v1908 = vpop.f32.mrf.mxu0
      %v1909 = vadd.f32 0.0, %v1908
      %1910 = vmatmul.bf16.gmra.mxu0 %v1834
      %v1911 = vpop.f32.mrf.mxu0
      %v1912 = vadd.f32 0.0, %v1911
      %v1913 = vpop.f32.mrf.mxu0
      %v1914 = vadd.f32 0.0, %v1913
      %1915 = vdwg.mxu0
      %v1916 = vadd.f32 %v1790, %v1897
      %v1917 = vadd.f32 %v1791, %v1899
      %v1918 = vadd.f32 %v1792, %v1902
      %v1919 = vadd.f32 %v1793, %v1904
      %v1920 = vadd.f32 %v1794, %v1907
      %v1921 = vadd.f32 %v1795, %v1909
      %v1922 = vadd.f32 %v1796, %v1912
      %v1923 = vadd.f32 %v1797, %v1914
      %1924 = vst [vmem:[#allocation3] sm:$0xff] %v1916
      %1925 = vst [vmem:[#allocation3 + $0x8] sm:$0xff] %v1917
      %1926 = vst [vmem:[#allocation3 + $0x10] sm:$0xff] %v1918
      %1927 = vst [vmem:[#allocation3 + $0x18] sm:$0xff] %v1919
      %1928 = vst [vmem:[#allocation3 + $0x20] sm:$0xff] %v1920
      %1929 = vst [vmem:[#allocation3 + $0x28] sm:$0xff] %v1921
      %1930 = vst [vmem:[#allocation3 + $0x30] sm:$0xff] %v1922
      %1931 = vst [vmem:[#allocation3 + $0x38] sm:$0xff] %v1923
      %v1932 = vld [vmem:[#allocation3] sm:$0xff]
      %v1933 = vld [vmem:[#allocation3 + $0x8] sm:$0xff]
      %v1934 = vld [vmem:[#allocation3 + $0x10] sm:$0xff]
      %v1935 = vld [vmem:[#allocation3 + $0x18] sm:$0xff]
      %v1936 = vld [vmem:[#allocation3 + $0x20] sm:$0xff]
      %v1937 = vld [vmem:[#allocation3 + $0x28] sm:$0xff]
      %v1938 = vld [vmem:[#allocation3 + $0x30] sm:$0xff]
      %v1939 = vld [vmem:[#allocation3 + $0x38] sm:$0xff]
      %v1940 = vrot.slane %v1566, 4
      %v1941 = vrot.slane %v1569, 5
      %v1942 = vor.u32 %v1940, %v1941
      %v1943 = vrot.slane %v1942, 4
      %v1945 = vshll.u32 %v1530, 16
      %v1947 = vrot.slane %v1945, 5
      %v1948 = vsel %vm718, %v1943, %v1947
      %v1949 = vrot.slane %v1579, 4
      %v1950 = vrot.slane %v1582, 5
      %v1951 = vor.u32 %v1949, %v1950
      %v1952 = vrot.slane %v1951, 4
      %v1954 = vshll.u32 %v1533, 16
      %v1956 = vrot.slane %v1954, 5
      %v1957 = vsel %vm718, %v1952, %v1956
      %v1958 = vrot.slane %v1592, 4
      %v1959 = vrot.slane %v1595, 5
      %v1960 = vor.u32 %v1958, %v1959
      %v1961 = vrot.slane %v1960, 4
      %v1963 = vshll.u32 %v1536, 16
      %v1965 = vrot.slane %v1963, 5
      %v1966 = vsel %vm718, %v1961, %v1965
      %v1967 = vrot.slane %v1605, 4
      %v1968 = vrot.slane %v1608, 5
      %v1969 = vor.u32 %v1967, %v1968
      %v1970 = vrot.slane %v1969, 4
      %v1972 = vshll.u32 %v1539, 16
      %v1974 = vrot.slane %v1972, 5
      %v1975 = vsel %vm718, %v1970, %v1974
      %v1976 = vrot.slane %v1618, 4
      %v1977 = vrot.slane %v1621, 5
      %v1978 = vor.u32 %v1976, %v1977
      %v1979 = vrot.slane %v1978, 4
      %v1981 = vshll.u32 %v1542, 16
      %v1983 = vrot.slane %v1981, 5
      %v1984 = vsel %vm718, %v1979, %v1983
      %v1985 = vrot.slane %v1631, 4
      %v1986 = vrot.slane %v1634, 5
      %v1987 = vor.u32 %v1985, %v1986
      %v1988 = vrot.slane %v1987, 4
      %v1990 = vshll.u32 %v1545, 16
      %v1992 = vrot.slane %v1990, 5
      %v1993 = vsel %vm718, %v1988, %v1992
      %v1994 = vrot.slane %v1644, 4
      %v1995 = vrot.slane %v1647, 5
      %v1996 = vor.u32 %v1994, %v1995
      %v1997 = vrot.slane %v1996, 4
      %v1999 = vshll.u32 %v1548, 16
      %v2001 = vrot.slane %v1999, 5
      %v2002 = vsel %vm718, %v1997, %v2001
      %v2003 = vrot.slane %v1657, 4
      %v2004 = vrot.slane %v1660, 5
      %v2005 = vor.u32 %v2003, %v2004
      %v2006 = vrot.slane %v2005, 4
      %v2008 = vshll.u32 %v1551, 16
      %v2010 = vrot.slane %v2008, 5
      %v2011 = vsel %vm718, %v2006, %v2010
      %s2012 = scalar_lea.vmem %s3, 512
      %v2013 = vld [vmem:[%s2012] sm:$0xf]
      %v2014 = vld [vmem:[%s2012 + $0x4] sm:$0xf]
      %v2015 = vld [vmem:[%s2012 + $0x8] sm:$0xf]
      %v2016 = vld [vmem:[%s2012 + $0xc] sm:$0xf]
      %v2017 = vld [vmem:[%s2012 + $0x10] sm:$0xf]
      %v2018 = vld [vmem:[%s2012 + $0x14] sm:$0xf]
      %v2019 = vld [vmem:[%s2012 + $0x18] sm:$0xf]
      %v2020 = vld [vmem:[%s2012 + $0x1c] sm:$0xf]
      %v2021 = vld [vmem:[%s2012 + $0x20] sm:$0xf]
      %v2022 = vld [vmem:[%s2012 + $0x24] sm:$0xf]
      %v2023 = vld [vmem:[%s2012 + $0x28] sm:$0xf]
      %v2024 = vld [vmem:[%s2012 + $0x2c] sm:$0xf]
      %v2025 = vld [vmem:[%s2012 + $0x30] sm:$0xf]
      %v2026 = vld [vmem:[%s2012 + $0x34] sm:$0xf]
      %v2027 = vld [vmem:[%s2012 + $0x38] sm:$0xf]
      %v2028 = vld [vmem:[%s2012 + $0x3c] sm:$0xf]
      %v2029 = vunpack.c.l.b16 %v1948
      %v2030 = vunpack.c.l.b16 %v1957
      %v2031 = vunpack.c.l.b16 %v1966
      %v2032 = vunpack.c.l.b16 %v1975
      %v2033 = vunpack.c.l.b16 %v1984
      %v2034 = vunpack.c.l.b16 %v1993
      %v2035 = vunpack.c.l.b16 %v2002
      %v2036 = vunpack.c.l.b16 %v2011
      %v2037 = vpack.c.b16 %v2030, %v2029
      %v2038 = vpack.c.b16 %v2032, %v2031
      %v2039 = vpack.c.b16 %v2034, %v2033
      %v2040 = vpack.c.b16 %v2036, %v2035
      %v2061 = vunpack.c.l.b16 %v2013
      %v2062 = vunpack.c.l.b16 %v2014
      %v2063 = vunpack.c.l.b16 %v2015
      %v2064 = vunpack.c.l.b16 %v2016
      %v2065 = vunpack.c.l.b16 %v2017
      %v2066 = vunpack.c.l.b16 %v2018
      %v2067 = vunpack.c.l.b16 %v2019
      %v2068 = vunpack.c.l.b16 %v2020
      %v2069 = vunpack.c.l.b16 %v2021
      %v2070 = vunpack.c.l.b16 %v2022
      %v2071 = vunpack.c.l.b16 %v2023
      %v2072 = vunpack.c.l.b16 %v2024
      %v2073 = vunpack.c.l.b16 %v2025
      %v2074 = vunpack.c.l.b16 %v2026
      %v2075 = vunpack.c.l.b16 %v2027
      %v2076 = vunpack.c.l.b16 %v2028
      %v2077 = vpack.c.b16 %v2062, %v2061
      %v2078 = vpack.c.b16 %v2064, %v2063
      %v2079 = vpack.c.b16 %v2066, %v2065
      %v2080 = vpack.c.b16 %v2068, %v2067
      %v2081 = vpack.c.b16 %v2070, %v2069
      %v2082 = vpack.c.b16 %v2072, %v2071
      %v2083 = vpack.c.b16 %v2074, %v2073
      %v2084 = vpack.c.b16 %v2076, %v2075
      %2093 = vmatpush.bf16.msra.mxu0 %v2084
      %2094 = vmatpush.bf16.msra.mxu0 %v2083
      %2095 = vmatpush.bf16.msra.mxu0 %v2082
      %2096 = vmatpush.bf16.msra.mxu0 %v2081
      %2097 = vmatpush.bf16.msra.mxu0 %v2080
      %2098 = vmatpush.bf16.msra.mxu0 %v2079
      %2099 = vmatpush.bf16.msra.mxu0 %v2078
      %2100 = vmatpush.bf16.msra.mxu0 %v2077
      %2101 = vmatmul.bf16.gmra.mxu0 %v2037
      %v2102 = vpop.f32.mrf.mxu0
      %v2103 = vadd.f32 0.0, %v2102
      %v2104 = vpop.f32.mrf.mxu0
      %v2105 = vadd.f32 0.0, %v2104
      %2106 = vmatmul.bf16.gmra.mxu0 %v2038
      %v2107 = vpop.f32.mrf.mxu0
      %v2108 = vadd.f32 0.0, %v2107
      %v2109 = vpop.f32.mrf.mxu0
      %v2110 = vadd.f32 0.0, %v2109
      %2111 = vmatmul.bf16.gmra.mxu0 %v2039
      %v2112 = vpop.f32.mrf.mxu0
      %v2113 = vadd.f32 0.0, %v2112
      %v2114 = vpop.f32.mrf.mxu0
      %v2115 = vadd.f32 0.0, %v2114
      %2116 = vmatmul.bf16.gmra.mxu0 %v2040
      %v2117 = vpop.f32.mrf.mxu0
      %v2118 = vadd.f32 0.0, %v2117
      %v2119 = vpop.f32.mrf.mxu0
      %v2120 = vadd.f32 0.0, %v2119
      %2121 = vdwg.mxu0
      %v2122 = vadd.f32 %v1932, %v2103
      %v2123 = vadd.f32 %v1933, %v2105
      %v2124 = vadd.f32 %v1934, %v2108
      %v2125 = vadd.f32 %v1935, %v2110
      %v2126 = vadd.f32 %v1936, %v2113
      %v2127 = vadd.f32 %v1937, %v2115
      %v2128 = vadd.f32 %v1938, %v2118
      %v2129 = vadd.f32 %v1939, %v2120
      %2130 = vst [vmem:[#allocation3] sm:$0xff] %v2122
      %2131 = vst [vmem:[#allocation3 + $0x8] sm:$0xff] %v2123
      %2132 = vst [vmem:[#allocation3 + $0x10] sm:$0xff] %v2124
      %2133 = vst [vmem:[#allocation3 + $0x18] sm:$0xff] %v2125
      %2134 = vst [vmem:[#allocation3 + $0x20] sm:$0xff] %v2126
      %2135 = vst [vmem:[#allocation3 + $0x28] sm:$0xff] %v2127
      %2136 = vst [vmem:[#allocation3 + $0x30] sm:$0xff] %v2128
      %2137 = vst [vmem:[#allocation3 + $0x38] sm:$0xff] %v2129
      %v2138 = vld [vmem:[#allocation3] sm:$0xff]
      %v2139 = vld [vmem:[#allocation3 + $0x8] sm:$0xff]
      %v2140 = vld [vmem:[#allocation3 + $0x10] sm:$0xff]
      %v2141 = vld [vmem:[#allocation3 + $0x18] sm:$0xff]
      %v2142 = vld [vmem:[#allocation3 + $0x20] sm:$0xff]
      %v2143 = vld [vmem:[#allocation3 + $0x28] sm:$0xff]
      %v2144 = vld [vmem:[#allocation3 + $0x30] sm:$0xff]
      %v2145 = vld [vmem:[#allocation3 + $0x38] sm:$0xff]
      %v2146 = vpack.c.bf16 %v2138, %v2138
      %v2147 = vpack.c.bf16 %v2139, %v2139
      %v2148 = vpack.c.bf16 %v2140, %v2140
      %v2149 = vpack.c.bf16 %v2141, %v2141
      %v2150 = vpack.c.bf16 %v2142, %v2142
      %v2151 = vpack.c.bf16 %v2143, %v2143
      %v2152 = vpack.c.bf16 %v2144, %v2144
      %v2153 = vpack.c.bf16 %v2145, %v2145
      %2154 = vst [vmem:[%s197] sm:$0xf] %v2146
      %2155 = vst [vmem:[%s197 + $0x4] sm:$0xf] %v2147
      %2156 = vst [vmem:[%s197 + $0x8] sm:$0xf] %v2148
      %2157 = vst [vmem:[%s197 + $0xc] sm:$0xf] %v2149
      %2158 = vst [vmem:[%s197 + $0x10] sm:$0xf] %v2150
      %2159 = vst [vmem:[%s197 + $0x14] sm:$0xf] %v2151
      %2160 = vst [vmem:[%s197 + $0x18] sm:$0xf] %v2152
      %2161 = vst [vmem:[%s197 + $0x1c] sm:$0xf] %v2153
      %p2162 = scmp.lt.s32.totalorder %s15, 1
      %s2163 = scalar_select %p2162, %s15, 1
      %s2164 = smul.addr %s2163, 8
      %s2165 = smul.addr %s2164, 4
      %s2166 = scalar_lea.vmem %s4, %s2165
      // Predicated region
      $region37: #{network_block_forward.17} parent=35 // pred_check
        %p2167 = pneg %p122
      $region38: #{network_block_forward.17} parent=35 // pred_check_branch
        %2169 = sbr.rel (%p2167) target = $region40
      $region39: #{network_block_forward.17} parent=35 // pred_region
        _
      $region40: #{network_block_forward.17} parent=35 // pred_fallthru
        _
    $region36: #{network_block_forward.17} parent=5 // pred_fallthru
      _
    %p2170 = scmp.le.s32.totalorder 2, %s10
    // Predicated region
    $region41: #{network_block_forward.17} parent=5 // pred_check
      %p2171 = pneg %p2170
    $region42: #{network_block_forward.17} parent=5 // pred_check_branch
      %2173 = sbr.rel (%p2171) target = $region44
    $region43: #{network_block_forward.17} parent=5 // pred_region
      %s2174 = ssub.s32 %s10, 2
      // Predicated region
      $region45: #{network_block_forward.17} parent=43 // pred_check
        %p2175 = pneg %p128
      $region46: #{network_block_forward.17} parent=43 // pred_check_branch
        %2177 = sbr.rel (%p2175) target = $region48
      $region47: #{network_block_forward.17} parent=43 // pred_region
        %p2178 = scmp.lt.s32.totalorder %s16, 1
        %s2179 = scalar_select %p2178, %s16, 1
        %s2180 = smul.addr %s2179, 8
        %s2181 = smul.addr %s2180, 4
        %s2182 = scalar_lea.vmem %s4, %s2181
      $region48: #{network_block_forward.17} parent=43 // pred_fallthru
        _
    $region44: #{network_block_forward.17} parent=5 // pred_fallthru
      _
  $region6: #{network_block_forward.17} parent=0 // loop_footer
    %s14 = sadd.s32 1, %s10
  $region7: #{network_block_forward.17} parent=0 // loop_footer_branch
    %9 = sbr.rel target = $region3
  $region8: #{network_block_forward.17} parent=0 // loop_exit
    _

</llo_original>
